<compile_context>
chip_gen: v7x
topology: tpu7x:2x2x1
jax: 0.10.0
libtpu: 0.0.40
codegen_flags: <defaults>
</compile_context>

<pallas_src>
import jax
import jax.numpy as jnp
import numpy as np
from jax.experimental import pallas as pl
from jax.experimental.pallas import tpu as pltpu

LN_EPS = 1e-5  # torch.nn.LayerNorm default


def _layernorm(x, w, b):
    # Two-pass variance ((x - mean)^2): more accurate than E[x^2] - mean^2 on
    # positive-mean (post-ReLU) activations; extra cross-lane reduce is free
    # here since the kernel is bound by HBM traffic / step overhead, not VPU.
    mean = jnp.mean(x, axis=-1, keepdims=True)
    c = x - mean
    var = jnp.mean(c * c, axis=-1, keepdims=True)
    return c * jax.lax.rsqrt(var + LN_EPS) * w + b


def _decoder_kernel(x_ref,
                    ln0_w, ln0_b, w1, b1,
                    ln1_w, ln1_b, w2, b2,
                    ln2_w, ln2_b,
                    wh, bh,
                    out_ref):
    # x_ref: (tm, H).  Param refs keep their full (A, ...) shapes; constant
    # index_map -> DMA'd once, VMEM-resident across all grid steps.
    x = x_ref[...].astype(jnp.float32)
    A = w1.shape[0]
    Wp = wh.shape[-1]                       # fused-head width, padded to 128*k lanes

    for a in range(A):                      # static unroll (A is small, e.g. 3)
        h = _layernorm(x, ln0_w[a], ln0_b[a])                        # LayerNorm(H)
        h = jnp.dot(h.astype(jnp.bfloat16), w1[a],                   # Linear H->256
                    preferred_element_type=jnp.float32) + b1[a]
        h = jnp.maximum(h, 0.0)                                      # ReLU
        h = _layernorm(h, ln1_w[a], ln1_b[a])                        # LayerNorm(256)
        h = jnp.dot(h.astype(jnp.bfloat16), w2[a],                   # Linear 256->256
                    preferred_element_type=jnp.float32) + b2[a]
        h = jnp.maximum(h, 0.0)                                      # ReLU
        h = _layernorm(h, ln2_w[a], ln2_b[a])                        # LayerNorm(256)

        # fused [x_coords | y_coords] head -> one lane-dense, 128-aligned store
        p = jnp.dot(h.astype(jnp.bfloat16), wh[a],
                    preferred_element_type=jnp.float32) + bh[a]
        out_ref[:, a * Wp:(a + 1) * Wp] = jax.nn.sigmoid(p).astype(out_ref.dtype)


def decoder_forward(x, params, *, tile_m=1024, out_dtype=jnp.float32):
    """x: (bs, seq, hidden) -> (bs, seq, n_articulators, 2, n_samples)."""
    bs, seq, H = x.shape
    M = bs * seq
    A = params["w1"].shape[0]
    N = params["wx"].shape[-1]

    # ---- pack parameters: fuse x/y heads, pre-cast matmul weights to bf16 ----
    wh = jnp.concatenate([params["wx"], params["wy"]], axis=-1)   # (A, 256, 2N)
    bh = jnp.concatenate([params["bx"], params["by"]], axis=-1)   # (A, 1,  2N)

    W = 2 * N
    W_pad = max(128, pl.cdiv(W, 128) * 128)   # keep output stores 128-lane dense
    if W_pad != W:
        wh = jnp.pad(wh, ((0, 0), (0, 0), (0, W_pad - W)))
        bh = jnp.pad(bh, ((0, 0), (0, 0), (0, W_pad - W)))

    w1 = params["w1"].astype(jnp.bfloat16)
    w2 = params["w2"].astype(jnp.bfloat16)
    wh = wh.astype(jnp.bfloat16)

    flat_params = [params["ln0_w"], params["ln0_b"], w1, params["b1"],
                   params["ln1_w"], params["ln1_b"], w2, params["b2"],
                   params["ln2_w"], params["ln2_b"],
                   wh, bh]

    # ---- token tiling: multiple of 256 rows (safe MXU height on v5e/v6e/v7x) ----
    if M <= tile_m:
        tm = max(256, pl.cdiv(M, 256) * 256)  # small M -> one full-height tile
    else:
        tm = tile_m
    M_pad = pl.cdiv(M, tm) * tm

    # keep upstream dtype for the DMA; upcast to f32 inside the kernel
    x_flat = x.reshape(M, H)
    if M_pad != M:
        x_flat = jnp.pad(x_flat, ((0, M_pad - M), (0, 0)))

    def const_spec(p):
        # whole array, same block every grid step -> DMA'd once, stays in VMEM
        return pl.BlockSpec(p.shape, lambda m, _nd=p.ndim: (0,) * _nd)

    in_specs = ([pl.BlockSpec((tm, H), lambda m: (m, 0))]
                + [const_spec(p) for p in flat_params])
    # token-major output: (tm, A*W_pad) block -> reshape-only epilogue
    out_spec = pl.BlockSpec((tm, A * W_pad), lambda m: (m, 0))

    out = pl.pallas_call(
        _decoder_kernel,
        out_shape=jax.ShapeDtypeStruct((M_pad, A * W_pad), out_dtype),
        grid_spec=pltpu.PrefetchScalarGridSpec(
            num_scalar_prefetch=0,
            grid=(M_pad // tm,),              # tokens only; articulators fused in-kernel
            in_specs=in_specs,
            out_specs=out_spec,
        ),
        compiler_params=pltpu.CompilerParams(
            dimension_semantics=("parallel",)),
    )(x_flat, *flat_params)

    # (M_pad, A*W_pad) -> (bs, seq, A, 2, N): slice padding, pure reshape
    out = out.reshape(M_pad, A, W_pad)[:M, :, :W]
    return out.reshape(bs, seq, A, 2, N)


# --------------------------- pure-JAX reference ---------------------------

def _layernorm_ref(x, w, b):
    mean = jnp.mean(x, axis=-1, keepdims=True)
    var = jnp.mean((x - mean) ** 2, axis=-1, keepdims=True)
    return (x - mean) * jax.lax.rsqrt(var + LN_EPS) * w + b


def decoder_reference(x, params):
    """f32 reference mirroring the PyTorch Decoder forward."""
    A = params["w1"].shape[0]
    outs = []
    for a in range(A):
        h = _layernorm_ref(x, params["ln0_w"][a, 0], params["ln0_b"][a, 0])
        h = jnp.maximum(h @ params["w1"][a] + params["b1"][a, 0], 0.0)
        h = _layernorm_ref(h, params["ln1_w"][a, 0], params["ln1_b"][a, 0])
        h = jnp.maximum(h @ params["w2"][a] + params["b2"][a, 0], 0.0)
        h = _layernorm_ref(h, params["ln2_w"][a, 0], params["ln2_b"][a, 0])
        xp = h @ params["wx"][a] + params["bx"][a, 0]
        yp = h @ params["wy"][a] + params["by"][a, 0]
        outs.append(jnp.stack([xp, yp], axis=2))          # (bs, seq, 2, N)
    out = jnp.stack(outs, axis=2)                         # (bs, seq, A, 2, N)
    return jax.nn.sigmoid(out)


def init_params(key, n_articulators, hidden_size, n_samples, inner=256):
    A, H, N = n_articulators, hidden_size, n_samples
    keys = jax.random.split(key, 10)

    def lin_w(k, fan_in, fan_out):
        bound = 1.0 / np.sqrt(fan_in)
        return jax.random.uniform(k, (A, fan_in, fan_out), jnp.float32, -bound, bound)

    def lin_b(k, fan_in, fan_out):
        bound = 1.0 / np.sqrt(fan_in)
        return jax.random.uniform(k, (A, 1, fan_out), jnp.float32, -bound, bound)

    return {
        # LayerNorm params (torch init: weight=1, bias=0) — perturbed so the test is non-trivial
        "ln0_w": jnp.ones((A, 1, H), jnp.float32) + 0.01 * jax.random.normal(keys[0], (A, 1, H)),
        "ln0_b": 0.01 * jax.random.normal(keys[1], (A, 1, H)),
        "w1": lin_w(keys[2], H, inner),
        "b1": lin_b(keys[3], H, inner),
        "ln1_w": jnp.ones((A, 1, inner), jnp.float32),
        "ln1_b": jnp.zeros((A, 1, inner), jnp.float32),
        "w2": lin_w(keys[4], inner, inner),
        "b2": lin_b(keys[5], inner, inner),
        "ln2_w": jnp.ones((A, 1, inner), jnp.float32),
        "ln2_b": jnp.zeros((A, 1, inner), jnp.float32),
        "wx": lin_w(keys[6], inner, N),
        "bx": lin_b(keys[7], inner, N),
        "wy": lin_w(keys[8], inner, N),
        "by": lin_b(keys[9], inner, N),
    }


if __name__ == "__main__":
    bs, seq_len, hidden_size = 2, 8, 32
    n_articulators, n_samples = 3, 64

    key = jax.random.PRNGKey(0)
    kx, kp = jax.random.split(key)
    x = jax.random.normal(kx, (bs, seq_len, hidden_size), jnp.float32)
    params = init_params(kp, n_articulators, hidden_size, n_samples)

    out = jax.block_until_ready(decoder_forward(x, params))
    ref = jax.block_until_ready(decoder_reference(x, params))

    assert out.shape == (bs, seq_len, n_articulators, 2, n_samples), out.shape
    # bf16 matmuls (f32 accumulate) -> relaxed tolerance vs the f32 reference
    np.testing.assert_allclose(np.asarray(out), np.asarray(ref), atol=2e-2, rtol=2e-2)

    print("KERNEL_OK")
</pallas_src>

<mosaic_0001>
module attributes {stable_mosaic.version = 11 : i64} {
  func.func @_decoder_kernel(%arg0: i32, %arg1: memref<256x32xf32, #tpu.memory_space<vmem>>, %arg2: memref<3x1x32xf32, #tpu.memory_space<vmem>>, %arg3: memref<3x1x32xf32, #tpu.memory_space<vmem>>, %arg4: memref<3x32x256xbf16, #tpu.memory_space<vmem>>, %arg5: memref<3x1x256xf32, #tpu.memory_space<vmem>>, %arg6: memref<3x1x256xf32, #tpu.memory_space<vmem>>, %arg7: memref<3x1x256xf32, #tpu.memory_space<vmem>>, %arg8: memref<3x256x256xbf16, #tpu.memory_space<vmem>>, %arg9: memref<3x1x256xf32, #tpu.memory_space<vmem>>, %arg10: memref<3x1x256xf32, #tpu.memory_space<vmem>>, %arg11: memref<3x1x256xf32, #tpu.memory_space<vmem>>, %arg12: memref<3x256x128xbf16, #tpu.memory_space<vmem>>, %arg13: memref<3x1x128xf32, #tpu.memory_space<vmem>>, %arg14: memref<256x384xf32, #tpu.memory_space<vmem>>) attributes {dimension_semantics = [#tpu.dimension_semantics<parallel>], iteration_bounds = array<i64: 1>, scalar_prefetch = 0 : i64, scratch_operands = 0 : i64, tpu.core_type = #tpu.core_type<tc>, window_params = [{transform_indices = @transform_0, window_bounds = array<i64: 256, 32>}, {pipeline_mode = #tpu.pipeline_mode<synchronous>, transform_indices = @transform_1, window_bounds = array<i64: 3, 1, 32>}, {pipeline_mode = #tpu.pipeline_mode<synchronous>, transform_indices = @transform_2, window_bounds = array<i64: 3, 1, 32>}, {pipeline_mode = #tpu.pipeline_mode<synchronous>, transform_indices = @transform_3, window_bounds = array<i64: 3, 32, 256>}, {pipeline_mode = #tpu.pipeline_mode<synchronous>, transform_indices = @transform_4, window_bounds = array<i64: 3, 1, 256>}, {pipeline_mode = #tpu.pipeline_mode<synchronous>, transform_indices = @transform_5, window_bounds = array<i64: 3, 1, 256>}, {pipeline_mode = #tpu.pipeline_mode<synchronous>, transform_indices = @transform_6, window_bounds = array<i64: 3, 1, 256>}, {pipeline_mode = #tpu.pipeline_mode<synchronous>, transform_indices = @transform_7, window_bounds = array<i64: 3, 256, 256>}, {pipeline_mode = #tpu.pipeline_mode<synchronous>, transform_indices = @transform_8, window_bounds = array<i64: 3, 1, 256>}, {pipeline_mode = #tpu.pipeline_mode<synchronous>, transform_indices = @transform_9, window_bounds = array<i64: 3, 1, 256>}, {pipeline_mode = #tpu.pipeline_mode<synchronous>, transform_indices = @transform_10, window_bounds = array<i64: 3, 1, 256>}, {pipeline_mode = #tpu.pipeline_mode<synchronous>, transform_indices = @transform_11, window_bounds = array<i64: 3, 256, 128>}, {pipeline_mode = #tpu.pipeline_mode<synchronous>, transform_indices = @transform_12, window_bounds = array<i64: 3, 1, 128>}, {transform_indices = @transform_13, window_bounds = array<i64: 256, 384>}]} {
    %c0 = arith.constant 0 : index
    %c0_0 = arith.constant 0 : index
    %0 = vector.load %arg1[%c0, %c0_0] : memref<256x32xf32, #tpu.memory_space<vmem>>, vector<256x32xf32>
    %c0_1 = arith.constant 0 : index
    %c0_2 = arith.constant 0 : index
    %c0_3 = arith.constant 0 : index
    %1 = vector.load %arg2[%c0_1, %c0_2, %c0_3] : memref<3x1x32xf32, #tpu.memory_space<vmem>>, vector<1x1x32xf32>
    %2 = vector.shape_cast %1 : vector<1x1x32xf32> to vector<1x32xf32>
    %c0_4 = arith.constant 0 : index
    %c0_5 = arith.constant 0 : index
    %c0_6 = arith.constant 0 : index
    %3 = vector.load %arg3[%c0_4, %c0_5, %c0_6] : memref<3x1x32xf32, #tpu.memory_space<vmem>>, vector<1x1x32xf32>
    %4 = vector.shape_cast %3 : vector<1x1x32xf32> to vector<1x32xf32>
    %cst = arith.constant dense<0.000000e+00> : vector<256xf32>
    %5 = vector.multi_reduction <add>, %0, %cst [1] : vector<256x32xf32> to vector<256xf32>
    %6 = vector.shape_cast %5 : vector<256xf32> to vector<256x1xf32>
    %cst_7 = arith.constant 3.200000e+01 : f32
    %7 = vector.broadcast %cst_7 : f32 to vector<256x1xf32>
    %8 = arith.divf %6, %7 : vector<256x1xf32>
    %9 = vector.broadcast %8 : vector<256x1xf32> to vector<256x32xf32>
    %10 = arith.subf %0, %9 : vector<256x32xf32>
    %11 = arith.mulf %10, %10 : vector<256x32xf32>
    %cst_8 = arith.constant dense<0.000000e+00> : vector<256xf32>
    %12 = vector.multi_reduction <add>, %11, %cst_8 [1] : vector<256x32xf32> to vector<256xf32>
    %13 = vector.shape_cast %12 : vector<256xf32> to vector<256x1xf32>
    %cst_9 = arith.constant 3.200000e+01 : f32
    %14 = vector.broadcast %cst_9 : f32 to vector<256x1xf32>
    %15 = arith.divf %13, %14 : vector<256x1xf32>
    %cst_10 = arith.constant 9.99999974E-6 : f32
    %16 = vector.broadcast %cst_10 : f32 to vector<256x1xf32>
    %17 = arith.addf %15, %16 : vector<256x1xf32>
    %18 = math.rsqrt %17 : vector<256x1xf32>
    %19 = vector.broadcast %18 : vector<256x1xf32> to vector<256x32xf32>
    %20 = arith.mulf %10, %19 : vector<256x32xf32>
    %21 = vector.broadcast %2 : vector<1x32xf32> to vector<256x32xf32>
    %22 = arith.mulf %20, %21 : vector<256x32xf32>
    %23 = vector.broadcast %4 : vector<1x32xf32> to vector<256x32xf32>
    %24 = arith.addf %22, %23 : vector<256x32xf32>
    %25 = arith.truncf %24 : vector<256x32xf32> to vector<256x32xbf16>
    %c0_11 = arith.constant 0 : index
    %c0_12 = arith.constant 0 : index
    %c0_13 = arith.constant 0 : index
    %26 = vector.load %arg4[%c0_11, %c0_12, %c0_13] : memref<3x32x256xbf16, #tpu.memory_space<vmem>>, vector<1x32x256xbf16>
    %27 = vector.shape_cast %26 : vector<1x32x256xbf16> to vector<32x256xbf16>
    %cst_14 = arith.constant dense<0.000000e+00> : vector<256x256xf32>
    %28 = tpu.matmul %25, %27, %cst_14 {dimension_numbers = #tpu.dot_dimension_numbers<[1], [0], [0], [1], [0, 0, 1, 1], [], []>} : vector<256x32xbf16>, vector<32x256xbf16>, vector<256x256xf32> -> vector<256x256xf32>
    %c0_15 = arith.constant 0 : index
    %c0_16 = arith.constant 0 : index
    %c0_17 = arith.constant 0 : index
    %29 = vector.load %arg5[%c0_15, %c0_16, %c0_17] : memref<3x1x256xf32, #tpu.memory_space<vmem>>, vector<1x1x256xf32>
    %30 = vector.shape_cast %29 : vector<1x1x256xf32> to vector<1x256xf32>
    %31 = vector.broadcast %30 : vector<1x256xf32> to vector<256x256xf32>
    %32 = arith.addf %28, %31 : vector<256x256xf32>
    %cst_18 = arith.constant 0.000000e+00 : f32
    %33 = vector.broadcast %cst_18 : f32 to vector<256x256xf32>
    %34 = arith.maximumf %32, %33 : vector<256x256xf32>
    %c0_19 = arith.constant 0 : index
    %c0_20 = arith.constant 0 : index
    %c0_21 = arith.constant 0 : index
    %35 = vector.load %arg6[%c0_19, %c0_20, %c0_21] : memref<3x1x256xf32, #tpu.memory_space<vmem>>, vector<1x1x256xf32>
    %36 = vector.shape_cast %35 : vector<1x1x256xf32> to vector<1x256xf32>
    %c0_22 = arith.constant 0 : index
    %c0_23 = arith.constant 0 : index
    %c0_24 = arith.constant 0 : index
    %37 = vector.load %arg7[%c0_22, %c0_23, %c0_24] : memref<3x1x256xf32, #tpu.memory_space<vmem>>, vector<1x1x256xf32>
    %38 = vector.shape_cast %37 : vector<1x1x256xf32> to vector<1x256xf32>
    %cst_25 = arith.constant dense<0.000000e+00> : vector<256xf32>
    %39 = vector.multi_reduction <add>, %34, %cst_25 [1] : vector<256x256xf32> to vector<256xf32>
    %40 = vector.shape_cast %39 : vector<256xf32> to vector<256x1xf32>
    %cst_26 = arith.constant 2.560000e+02 : f32
    %41 = vector.broadcast %cst_26 : f32 to vector<256x1xf32>
    %42 = arith.divf %40, %41 : vector<256x1xf32>
    %43 = vector.broadcast %42 : vector<256x1xf32> to vector<256x256xf32>
    %44 = arith.subf %34, %43 : vector<256x256xf32>
    %45 = arith.mulf %44, %44 : vector<256x256xf32>
    %cst_27 = arith.constant dense<0.000000e+00> : vector<256xf32>
    %46 = vector.multi_reduction <add>, %45, %cst_27 [1] : vector<256x256xf32> to vector<256xf32>
    %47 = vector.shape_cast %46 : vector<256xf32> to vector<256x1xf32>
    %cst_28 = arith.constant 2.560000e+02 : f32
    %48 = vector.broadcast %cst_28 : f32 to vector<256x1xf32>
    %49 = arith.divf %47, %48 : vector<256x1xf32>
    %cst_29 = arith.constant 9.99999974E-6 : f32
    %50 = vector.broadcast %cst_29 : f32 to vector<256x1xf32>
    %51 = arith.addf %49, %50 : vector<256x1xf32>
    %52 = math.rsqrt %51 : vector<256x1xf32>
    %53 = vector.broadcast %52 : vector<256x1xf32> to vector<256x256xf32>
    %54 = arith.mulf %44, %53 : vector<256x256xf32>
    %55 = vector.broadcast %36 : vector<1x256xf32> to vector<256x256xf32>
    %56 = arith.mulf %54, %55 : vector<256x256xf32>
    %57 = vector.broadcast %38 : vector<1x256xf32> to vector<256x256xf32>
    %58 = arith.addf %56, %57 : vector<256x256xf32>
    %59 = arith.truncf %58 : vector<256x256xf32> to vector<256x256xbf16>
    %c0_30 = arith.constant 0 : index
    %c0_31 = arith.constant 0 : index
    %c0_32 = arith.constant 0 : index
    %60 = vector.load %arg8[%c0_30, %c0_31, %c0_32] : memref<3x256x256xbf16, #tpu.memory_space<vmem>>, vector<1x256x256xbf16>
    %61 = vector.shape_cast %60 : vector<1x256x256xbf16> to vector<256x256xbf16>
    %cst_33 = arith.constant dense<0.000000e+00> : vector<256x256xf32>
    %62 = tpu.matmul %59, %61, %cst_33 {dimension_numbers = #tpu.dot_dimension_numbers<[1], [0], [0], [1], [0, 0, 1, 1], [], []>} : vector<256x256xbf16>, vector<256x256xbf16>, vector<256x256xf32> -> vector<256x256xf32>
    %c0_34 = arith.constant 0 : index
    %c0_35 = arith.constant 0 : index
    %c0_36 = arith.constant 0 : index
    %63 = vector.load %arg9[%c0_34, %c0_35, %c0_36] : memref<3x1x256xf32, #tpu.memory_space<vmem>>, vector<1x1x256xf32>
    %64 = vector.shape_cast %63 : vector<1x1x256xf32> to vector<1x256xf32>
    %65 = vector.broadcast %64 : vector<1x256xf32> to vector<256x256xf32>
    %66 = arith.addf %62, %65 : vector<256x256xf32>
    %cst_37 = arith.constant 0.000000e+00 : f32
    %67 = vector.broadcast %cst_37 : f32 to vector<256x256xf32>
    %68 = arith.maximumf %66, %67 : vector<256x256xf32>
    %c0_38 = arith.constant 0 : index
    %c0_39 = arith.constant 0 : index
    %c0_40 = arith.constant 0 : index
    %69 = vector.load %arg10[%c0_38, %c0_39, %c0_40] : memref<3x1x256xf32, #tpu.memory_space<vmem>>, vector<1x1x256xf32>
    %70 = vector.shape_cast %69 : vector<1x1x256xf32> to vector<1x256xf32>
    %c0_41 = arith.constant 0 : index
    %c0_42 = arith.constant 0 : index
    %c0_43 = arith.constant 0 : index
    %71 = vector.load %arg11[%c0_41, %c0_42, %c0_43] : memref<3x1x256xf32, #tpu.memory_space<vmem>>, vector<1x1x256xf32>
    %72 = vector.shape_cast %71 : vector<1x1x256xf32> to vector<1x256xf32>
    %cst_44 = arith.constant dense<0.000000e+00> : vector<256xf32>
    %73 = vector.multi_reduction <add>, %68, %cst_44 [1] : vector<256x256xf32> to vector<256xf32>
    %74 = vector.shape_cast %73 : vector<256xf32> to vector<256x1xf32>
    %cst_45 = arith.constant 2.560000e+02 : f32
    %75 = vector.broadcast %cst_45 : f32 to vector<256x1xf32>
    %76 = arith.divf %74, %75 : vector<256x1xf32>
    %77 = vector.broadcast %76 : vector<256x1xf32> to vector<256x256xf32>
    %78 = arith.subf %68, %77 : vector<256x256xf32>
    %79 = arith.mulf %78, %78 : vector<256x256xf32>
    %cst_46 = arith.constant dense<0.000000e+00> : vector<256xf32>
    %80 = vector.multi_reduction <add>, %79, %cst_46 [1] : vector<256x256xf32> to vector<256xf32>
    %81 = vector.shape_cast %80 : vector<256xf32> to vector<256x1xf32>
    %cst_47 = arith.constant 2.560000e+02 : f32
    %82 = vector.broadcast %cst_47 : f32 to vector<256x1xf32>
    %83 = arith.divf %81, %82 : vector<256x1xf32>
    %cst_48 = arith.constant 9.99999974E-6 : f32
    %84 = vector.broadcast %cst_48 : f32 to vector<256x1xf32>
    %85 = arith.addf %83, %84 : vector<256x1xf32>
    %86 = math.rsqrt %85 : vector<256x1xf32>
    %87 = vector.broadcast %86 : vector<256x1xf32> to vector<256x256xf32>
    %88 = arith.mulf %78, %87 : vector<256x256xf32>
    %89 = vector.broadcast %70 : vector<1x256xf32> to vector<256x256xf32>
    %90 = arith.mulf %88, %89 : vector<256x256xf32>
    %91 = vector.broadcast %72 : vector<1x256xf32> to vector<256x256xf32>
    %92 = arith.addf %90, %91 : vector<256x256xf32>
    %93 = arith.truncf %92 : vector<256x256xf32> to vector<256x256xbf16>
    %c0_49 = arith.constant 0 : index
    %c0_50 = arith.constant 0 : index
    %c0_51 = arith.constant 0 : index
    %94 = vector.load %arg12[%c0_49, %c0_50, %c0_51] : memref<3x256x128xbf16, #tpu.memory_space<vmem>>, vector<1x256x128xbf16>
    %95 = vector.shape_cast %94 : vector<1x256x128xbf16> to vector<256x128xbf16>
    %cst_52 = arith.constant dense<0.000000e+00> : vector<256x128xf32>
    %96 = tpu.matmul %93, %95, %cst_52 {dimension_numbers = #tpu.dot_dimension_numbers<[1], [0], [0], [1], [0, 0, 1, 1], [], []>} : vector<256x256xbf16>, vector<256x128xbf16>, vector<256x128xf32> -> vector<256x128xf32>
    %c0_53 = arith.constant 0 : index
    %c0_54 = arith.constant 0 : index
    %c0_55 = arith.constant 0 : index
    %97 = vector.load %arg13[%c0_53, %c0_54, %c0_55] : memref<3x1x128xf32, #tpu.memory_space<vmem>>, vector<1x1x128xf32>
    %98 = vector.shape_cast %97 : vector<1x1x128xf32> to vector<1x128xf32>
    %99 = vector.broadcast %98 : vector<1x128xf32> to vector<256x128xf32>
    %100 = arith.addf %96, %99 : vector<256x128xf32>
    %101 = arith.negf %100 : vector<256x128xf32>
    %102 = math.exp %101 : vector<256x128xf32>
    %cst_56 = arith.constant 1.000000e+00 : f32
    %103 = vector.broadcast %cst_56 : f32 to vector<256x128xf32>
    %104 = arith.addf %103, %102 : vector<256x128xf32>
    %105 = arith.divf %103, %104 : vector<256x128xf32>
    %c0_57 = arith.constant 0 : index
    %c0_58 = arith.constant 0 : index
    %106 = vector.load %arg14[%c0_57, %c0_58] : memref<256x384xf32, #tpu.memory_space<vmem>>, vector<256x128xf32>
    tpu.vector_store %arg14[%c0_57, %c0_58], %105 {strides = array<i32>} : memref<256x384xf32, #tpu.memory_space<vmem>>, vector<256x128xf32>,
    %c1 = arith.constant 1 : index
    %c0_59 = arith.constant 0 : index
    %c0_60 = arith.constant 0 : index
    %107 = vector.load %arg2[%c1, %c0_59, %c0_60] : memref<3x1x32xf32, #tpu.memory_space<vmem>>, vector<1x1x32xf32>
    %108 = vector.shape_cast %107 : vector<1x1x32xf32> to vector<1x32xf32>
    %c1_61 = arith.constant 1 : index
    %c0_62 = arith.constant 0 : index
    %c0_63 = arith.constant 0 : index
    %109 = vector.load %arg3[%c1_61, %c0_62, %c0_63] : memref<3x1x32xf32, #tpu.memory_space<vmem>>, vector<1x1x32xf32>
    %110 = vector.shape_cast %109 : vector<1x1x32xf32> to vector<1x32xf32>
    %cst_64 = arith.constant dense<0.000000e+00> : vector<256xf32>
    %111 = vector.multi_reduction <add>, %0, %cst_64 [1] : vector<256x32xf32> to vector<256xf32>
    %112 = vector.shape_cast %111 : vector<256xf32> to vector<256x1xf32>
    %cst_65 = arith.constant 3.200000e+01 : f32
    %113 = vector.broadcast %cst_65 : f32 to vector<256x1xf32>
    %114 = arith.divf %112, %113 : vector<256x1xf32>
    %115 = vector.broadcast %114 : vector<256x1xf32> to vector<256x32xf32>
    %116 = arith.subf %0, %115 : vector<256x32xf32>
    %117 = arith.mulf %116, %116 : vector<256x32xf32>
    %cst_66 = arith.constant dense<0.000000e+00> : vector<256xf32>
    %118 = vector.multi_reduction <add>, %117, %cst_66 [1] : vector<256x32xf32> to vector<256xf32>
    %119 = vector.shape_cast %118 : vector<256xf32> to vector<256x1xf32>
    %cst_67 = arith.constant 3.200000e+01 : f32
    %120 = vector.broadcast %cst_67 : f32 to vector<256x1xf32>
    %121 = arith.divf %119, %120 : vector<256x1xf32>
    %cst_68 = arith.constant 9.99999974E-6 : f32
    %122 = vector.broadcast %cst_68 : f32 to vector<256x1xf32>
    %123 = arith.addf %121, %122 : vector<256x1xf32>
    %124 = math.rsqrt %123 : vector<256x1xf32>
    %125 = vector.broadcast %124 : vector<256x1xf32> to vector<256x32xf32>
    %126 = arith.mulf %116, %125 : vector<256x32xf32>
    %127 = vector.broadcast %108 : vector<1x32xf32> to vector<256x32xf32>
    %128 = arith.mulf %126, %127 : vector<256x32xf32>
    %129 = vector.broadcast %110 : vector<1x32xf32> to vector<256x32xf32>
    %130 = arith.addf %128, %129 : vector<256x32xf32>
    %131 = arith.truncf %130 : vector<256x32xf32> to vector<256x32xbf16>
    %c1_69 = arith.constant 1 : index
    %c0_70 = arith.constant 0 : index
    %c0_71 = arith.constant 0 : index
    %132 = vector.load %arg4[%c1_69, %c0_70, %c0_71] : memref<3x32x256xbf16, #tpu.memory_space<vmem>>, vector<1x32x256xbf16>
    %133 = vector.shape_cast %132 : vector<1x32x256xbf16> to vector<32x256xbf16>
    %cst_72 = arith.constant dense<0.000000e+00> : vector<256x256xf32>
    %134 = tpu.matmul %131, %133, %cst_72 {dimension_numbers = #tpu.dot_dimension_numbers<[1], [0], [0], [1], [0, 0, 1, 1], [], []>} : vector<256x32xbf16>, vector<32x256xbf16>, vector<256x256xf32> -> vector<256x256xf32>
    %c1_73 = arith.constant 1 : index
    %c0_74 = arith.constant 0 : index
    %c0_75 = arith.constant 0 : index
    %135 = vector.load %arg5[%c1_73, %c0_74, %c0_75] : memref<3x1x256xf32, #tpu.memory_space<vmem>>, vector<1x1x256xf32>
    %136 = vector.shape_cast %135 : vector<1x1x256xf32> to vector<1x256xf32>
    %137 = vector.broadcast %136 : vector<1x256xf32> to vector<256x256xf32>
    %138 = arith.addf %134, %137 : vector<256x256xf32>
    %cst_76 = arith.constant 0.000000e+00 : f32
    %139 = vector.broadcast %cst_76 : f32 to vector<256x256xf32>
    %140 = arith.maximumf %138, %139 : vector<256x256xf32>
    %c1_77 = arith.constant 1 : index
    %c0_78 = arith.constant 0 : index
    %c0_79 = arith.constant 0 : index
    %141 = vector.load %arg6[%c1_77, %c0_78, %c0_79] : memref<3x1x256xf32, #tpu.memory_space<vmem>>, vector<1x1x256xf32>
    %142 = vector.shape_cast %141 : vector<1x1x256xf32> to vector<1x256xf32>
    %c1_80 = arith.constant 1 : index
    %c0_81 = arith.constant 0 : index
    %c0_82 = arith.constant 0 : index
    %143 = vector.load %arg7[%c1_80, %c0_81, %c0_82] : memref<3x1x256xf32, #tpu.memory_space<vmem>>, vector<1x1x256xf32>
    %144 = vector.shape_cast %143 : vector<1x1x256xf32> to vector<1x256xf32>
    %cst_83 = arith.constant dense<0.000000e+00> : vector<256xf32>
    %145 = vector.multi_reduction <add>, %140, %cst_83 [1] : vector<256x256xf32> to vector<256xf32>
    %146 = vector.shape_cast %145 : vector<256xf32> to vector<256x1xf32>
    %cst_84 = arith.constant 2.560000e+02 : f32
    %147 = vector.broadcast %cst_84 : f32 to vector<256x1xf32>
    %148 = arith.divf %146, %147 : vector<256x1xf32>
    %149 = vector.broadcast %148 : vector<256x1xf32> to vector<256x256xf32>
    %150 = arith.subf %140, %149 : vector<256x256xf32>
    %151 = arith.mulf %150, %150 : vector<256x256xf32>
    %cst_85 = arith.constant dense<0.000000e+00> : vector<256xf32>
    %152 = vector.multi_reduction <add>, %151, %cst_85 [1] : vector<256x256xf32> to vector<256xf32>
    %153 = vector.shape_cast %152 : vector<256xf32> to vector<256x1xf32>
    %cst_86 = arith.constant 2.560000e+02 : f32
    %154 = vector.broadcast %cst_86 : f32 to vector<256x1xf32>
    %155 = arith.divf %153, %154 : vector<256x1xf32>
    %cst_87 = arith.constant 9.99999974E-6 : f32
    %156 = vector.broadcast %cst_87 : f32 to vector<256x1xf32>
    %157 = arith.addf %155, %156 : vector<256x1xf32>
    %158 = math.rsqrt %157 : vector<256x1xf32>
    %159 = vector.broadcast %158 : vector<256x1xf32> to vector<256x256xf32>
    %160 = arith.mulf %150, %159 : vector<256x256xf32>
    %161 = vector.broadcast %142 : vector<1x256xf32> to vector<256x256xf32>
    %162 = arith.mulf %160, %161 : vector<256x256xf32>
    %163 = vector.broadcast %144 : vector<1x256xf32> to vector<256x256xf32>
    %164 = arith.addf %162, %163 : vector<256x256xf32>
    %165 = arith.truncf %164 : vector<256x256xf32> to vector<256x256xbf16>
    %c1_88 = arith.constant 1 : index
    %c0_89 = arith.constant 0 : index
    %c0_90 = arith.constant 0 : index
    %166 = vector.load %arg8[%c1_88, %c0_89, %c0_90] : memref<3x256x256xbf16, #tpu.memory_space<vmem>>, vector<1x256x256xbf16>
    %167 = vector.shape_cast %166 : vector<1x256x256xbf16> to vector<256x256xbf16>
    %cst_91 = arith.constant dense<0.000000e+00> : vector<256x256xf32>
    %168 = tpu.matmul %165, %167, %cst_91 {dimension_numbers = #tpu.dot_dimension_numbers<[1], [0], [0], [1], [0, 0, 1, 1], [], []>} : vector<256x256xbf16>, vector<256x256xbf16>, vector<256x256xf32> -> vector<256x256xf32>
    %c1_92 = arith.constant 1 : index
    %c0_93 = arith.constant 0 : index
    %c0_94 = arith.constant 0 : index
    %169 = vector.load %arg9[%c1_92, %c0_93, %c0_94] : memref<3x1x256xf32, #tpu.memory_space<vmem>>, vector<1x1x256xf32>
    %170 = vector.shape_cast %169 : vector<1x1x256xf32> to vector<1x256xf32>
    %171 = vector.broadcast %170 : vector<1x256xf32> to vector<256x256xf32>
    %172 = arith.addf %168, %171 : vector<256x256xf32>
    %cst_95 = arith.constant 0.000000e+00 : f32
    %173 = vector.broadcast %cst_95 : f32 to vector<256x256xf32>
    %174 = arith.maximumf %172, %173 : vector<256x256xf32>
    %c1_96 = arith.constant 1 : index
    %c0_97 = arith.constant 0 : index
    %c0_98 = arith.constant 0 : index
    %175 = vector.load %arg10[%c1_96, %c0_97, %c0_98] : memref<3x1x256xf32, #tpu.memory_space<vmem>>, vector<1x1x256xf32>
    %176 = vector.shape_cast %175 : vector<1x1x256xf32> to vector<1x256xf32>
    %c1_99 = arith.constant 1 : index
    %c0_100 = arith.constant 0 : index
    %c0_101 = arith.constant 0 : index
    %177 = vector.load %arg11[%c1_99, %c0_100, %c0_101] : memref<3x1x256xf32, #tpu.memory_space<vmem>>, vector<1x1x256xf32>
    %178 = vector.shape_cast %177 : vector<1x1x256xf32> to vector<1x256xf32>
    %cst_102 = arith.constant dense<0.000000e+00> : vector<256xf32>
    %179 = vector.multi_reduction <add>, %174, %cst_102 [1] : vector<256x256xf32> to vector<256xf32>
    %180 = vector.shape_cast %179 : vector<256xf32> to vector<256x1xf32>
    %cst_103 = arith.constant 2.560000e+02 : f32
    %181 = vector.broadcast %cst_103 : f32 to vector<256x1xf32>
    %182 = arith.divf %180, %181 : vector<256x1xf32>
    %183 = vector.broadcast %182 : vector<256x1xf32> to vector<256x256xf32>
    %184 = arith.subf %174, %183 : vector<256x256xf32>
    %185 = arith.mulf %184, %184 : vector<256x256xf32>
    %cst_104 = arith.constant dense<0.000000e+00> : vector<256xf32>
    %186 = vector.multi_reduction <add>, %185, %cst_104 [1] : vector<256x256xf32> to vector<256xf32>
    %187 = vector.shape_cast %186 : vector<256xf32> to vector<256x1xf32>
    %cst_105 = arith.constant 2.560000e+02 : f32
    %188 = vector.broadcast %cst_105 : f32 to vector<256x1xf32>
    %189 = arith.divf %187, %188 : vector<256x1xf32>
    %cst_106 = arith.constant 9.99999974E-6 : f32
    %190 = vector.broadcast %cst_106 : f32 to vector<256x1xf32>
    %191 = arith.addf %189, %190 : vector<256x1xf32>
    %192 = math.rsqrt %191 : vector<256x1xf32>
    %193 = vector.broadcast %192 : vector<256x1xf32> to vector<256x256xf32>
    %194 = arith.mulf %184, %193 : vector<256x256xf32>
    %195 = vector.broadcast %176 : vector<1x256xf32> to vector<256x256xf32>
    %196 = arith.mulf %194, %195 : vector<256x256xf32>
    %197 = vector.broadcast %178 : vector<1x256xf32> to vector<256x256xf32>
    %198 = arith.addf %196, %197 : vector<256x256xf32>
    %199 = arith.truncf %198 : vector<256x256xf32> to vector<256x256xbf16>
    %c1_107 = arith.constant 1 : index
    %c0_108 = arith.constant 0 : index
    %c0_109 = arith.constant 0 : index
    %200 = vector.load %arg12[%c1_107, %c0_108, %c0_109] : memref<3x256x128xbf16, #tpu.memory_space<vmem>>, vector<1x256x128xbf16>
    %201 = vector.shape_cast %200 : vector<1x256x128xbf16> to vector<256x128xbf16>
    %cst_110 = arith.constant dense<0.000000e+00> : vector<256x128xf32>
    %202 = tpu.matmul %199, %201, %cst_110 {dimension_numbers = #tpu.dot_dimension_numbers<[1], [0], [0], [1], [0, 0, 1, 1], [], []>} : vector<256x256xbf16>, vector<256x128xbf16>, vector<256x128xf32> -> vector<256x128xf32>
    %c1_111 = arith.constant 1 : index
    %c0_112 = arith.constant 0 : index
    %c0_113 = arith.constant 0 : index
    %203 = vector.load %arg13[%c1_111, %c0_112, %c0_113] : memref<3x1x128xf32, #tpu.memory_space<vmem>>, vector<1x1x128xf32>
    %204 = vector.shape_cast %203 : vector<1x1x128xf32> to vector<1x128xf32>
    %205 = vector.broadcast %204 : vector<1x128xf32> to vector<256x128xf32>
    %206 = arith.addf %202, %205 : vector<256x128xf32>
    %207 = arith.negf %206 : vector<256x128xf32>
    %208 = math.exp %207 : vector<256x128xf32>
    %cst_114 = arith.constant 1.000000e+00 : f32
    %209 = vector.broadcast %cst_114 : f32 to vector<256x128xf32>
    %210 = arith.addf %209, %208 : vector<256x128xf32>
    %211 = arith.divf %209, %210 : vector<256x128xf32>
    %c0_115 = arith.constant 0 : index
    %c128 = arith.constant 128 : index
    %212 = vector.load %arg14[%c0_115, %c128] : memref<256x384xf32, #tpu.memory_space<vmem>>, vector<256x128xf32>
    tpu.vector_store %arg14[%c0_115, %c128], %211 {strides = array<i32>} : memref<256x384xf32, #tpu.memory_space<vmem>>, vector<256x128xf32>,
    %c2 = arith.constant 2 : index
    %c0_116 = arith.constant 0 : index
    %c0_117 = arith.constant 0 : index
    %213 = vector.load %arg2[%c2, %c0_116, %c0_117] : memref<3x1x32xf32, #tpu.memory_space<vmem>>, vector<1x1x32xf32>
    %214 = vector.shape_cast %213 : vector<1x1x32xf32> to vector<1x32xf32>
    %c2_118 = arith.constant 2 : index
    %c0_119 = arith.constant 0 : index
    %c0_120 = arith.constant 0 : index
    %215 = vector.load %arg3[%c2_118, %c0_119, %c0_120] : memref<3x1x32xf32, #tpu.memory_space<vmem>>, vector<1x1x32xf32>
    %216 = vector.shape_cast %215 : vector<1x1x32xf32> to vector<1x32xf32>
    %cst_121 = arith.constant dense<0.000000e+00> : vector<256xf32>
    %217 = vector.multi_reduction <add>, %0, %cst_121 [1] : vector<256x32xf32> to vector<256xf32>
    %218 = vector.shape_cast %217 : vector<256xf32> to vector<256x1xf32>
    %cst_122 = arith.constant 3.200000e+01 : f32
    %219 = vector.broadcast %cst_122 : f32 to vector<256x1xf32>
    %220 = arith.divf %218, %219 : vector<256x1xf32>
    %221 = vector.broadcast %220 : vector<256x1xf32> to vector<256x32xf32>
    %222 = arith.subf %0, %221 : vector<256x32xf32>
    %223 = arith.mulf %222, %222 : vector<256x32xf32>
    %cst_123 = arith.constant dense<0.000000e+00> : vector<256xf32>
    %224 = vector.multi_reduction <add>, %223, %cst_123 [1] : vector<256x32xf32> to vector<256xf32>
    %225 = vector.shape_cast %224 : vector<256xf32> to vector<256x1xf32>
    %cst_124 = arith.constant 3.200000e+01 : f32
    %226 = vector.broadcast %cst_124 : f32 to vector<256x1xf32>
    %227 = arith.divf %225, %226 : vector<256x1xf32>
    %cst_125 = arith.constant 9.99999974E-6 : f32
    %228 = vector.broadcast %cst_125 : f32 to vector<256x1xf32>
    %229 = arith.addf %227, %228 : vector<256x1xf32>
    %230 = math.rsqrt %229 : vector<256x1xf32>
    %231 = vector.broadcast %230 : vector<256x1xf32> to vector<256x32xf32>
    %232 = arith.mulf %222, %231 : vector<256x32xf32>
    %233 = vector.broadcast %214 : vector<1x32xf32> to vector<256x32xf32>
    %234 = arith.mulf %232, %233 : vector<256x32xf32>
    %235 = vector.broadcast %216 : vector<1x32xf32> to vector<256x32xf32>
    %236 = arith.addf %234, %235 : vector<256x32xf32>
    %237 = arith.truncf %236 : vector<256x32xf32> to vector<256x32xbf16>
    %c2_126 = arith.constant 2 : index
    %c0_127 = arith.constant 0 : index
    %c0_128 = arith.constant 0 : index
    %238 = vector.load %arg4[%c2_126, %c0_127, %c0_128] : memref<3x32x256xbf16, #tpu.memory_space<vmem>>, vector<1x32x256xbf16>
    %239 = vector.shape_cast %238 : vector<1x32x256xbf16> to vector<32x256xbf16>
    %cst_129 = arith.constant dense<0.000000e+00> : vector<256x256xf32>
    %240 = tpu.matmul %237, %239, %cst_129 {dimension_numbers = #tpu.dot_dimension_numbers<[1], [0], [0], [1], [0, 0, 1, 1], [], []>} : vector<256x32xbf16>, vector<32x256xbf16>, vector<256x256xf32> -> vector<256x256xf32>
    %c2_130 = arith.constant 2 : index
    %c0_131 = arith.constant 0 : index
    %c0_132 = arith.constant 0 : index
    %241 = vector.load %arg5[%c2_130, %c0_131, %c0_132] : memref<3x1x256xf32, #tpu.memory_space<vmem>>, vector<1x1x256xf32>
    %242 = vector.shape_cast %241 : vector<1x1x256xf32> to vector<1x256xf32>
    %243 = vector.broadcast %242 : vector<1x256xf32> to vector<256x256xf32>
    %244 = arith.addf %240, %243 : vector<256x256xf32>
    %cst_133 = arith.constant 0.000000e+00 : f32
    %245 = vector.broadcast %cst_133 : f32 to vector<256x256xf32>
    %246 = arith.maximumf %244, %245 : vector<256x256xf32>
    %c2_134 = arith.constant 2 : index
    %c0_135 = arith.constant 0 : index
    %c0_136 = arith.constant 0 : index
    %247 = vector.load %arg6[%c2_134, %c0_135, %c0_136] : memref<3x1x256xf32, #tpu.memory_space<vmem>>, vector<1x1x256xf32>
    %248 = vector.shape_cast %247 : vector<1x1x256xf32> to vector<1x256xf32>
    %c2_137 = arith.constant 2 : index
    %c0_138 = arith.constant 0 : index
    %c0_139 = arith.constant 0 : index
    %249 = vector.load %arg7[%c2_137, %c0_138, %c0_139] : memref<3x1x256xf32, #tpu.memory_space<vmem>>, vector<1x1x256xf32>
    %250 = vector.shape_cast %249 : vector<1x1x256xf32> to vector<1x256xf32>
    %cst_140 = arith.constant dense<0.000000e+00> : vector<256xf32>
    %251 = vector.multi_reduction <add>, %246, %cst_140 [1] : vector<256x256xf32> to vector<256xf32>
    %252 = vector.shape_cast %251 : vector<256xf32> to vector<256x1xf32>
    %cst_141 = arith.constant 2.560000e+02 : f32
    %253 = vector.broadcast %cst_141 : f32 to vector<256x1xf32>
    %254 = arith.divf %252, %253 : vector<256x1xf32>
    %255 = vector.broadcast %254 : vector<256x1xf32> to vector<256x256xf32>
    %256 = arith.subf %246, %255 : vector<256x256xf32>
    %257 = arith.mulf %256, %256 : vector<256x256xf32>
    %cst_142 = arith.constant dense<0.000000e+00> : vector<256xf32>
    %258 = vector.multi_reduction <add>, %257, %cst_142 [1] : vector<256x256xf32> to vector<256xf32>
    %259 = vector.shape_cast %258 : vector<256xf32> to vector<256x1xf32>
    %cst_143 = arith.constant 2.560000e+02 : f32
    %260 = vector.broadcast %cst_143 : f32 to vector<256x1xf32>
    %261 = arith.divf %259, %260 : vector<256x1xf32>
    %cst_144 = arith.constant 9.99999974E-6 : f32
    %262 = vector.broadcast %cst_144 : f32 to vector<256x1xf32>
    %263 = arith.addf %261, %262 : vector<256x1xf32>
    %264 = math.rsqrt %263 : vector<256x1xf32>
    %265 = vector.broadcast %264 : vector<256x1xf32> to vector<256x256xf32>
    %266 = arith.mulf %256, %265 : vector<256x256xf32>
    %267 = vector.broadcast %248 : vector<1x256xf32> to vector<256x256xf32>
    %268 = arith.mulf %266, %267 : vector<256x256xf32>
    %269 = vector.broadcast %250 : vector<1x256xf32> to vector<256x256xf32>
    %270 = arith.addf %268, %269 : vector<256x256xf32>
    %271 = arith.truncf %270 : vector<256x256xf32> to vector<256x256xbf16>
    %c2_145 = arith.constant 2 : index
    %c0_146 = arith.constant 0 : index
    %c0_147 = arith.constant 0 : index
    %272 = vector.load %arg8[%c2_145, %c0_146, %c0_147] : memref<3x256x256xbf16, #tpu.memory_space<vmem>>, vector<1x256x256xbf16>
    %273 = vector.shape_cast %272 : vector<1x256x256xbf16> to vector<256x256xbf16>
    %cst_148 = arith.constant dense<0.000000e+00> : vector<256x256xf32>
    %274 = tpu.matmul %271, %273, %cst_148 {dimension_numbers = #tpu.dot_dimension_numbers<[1], [0], [0], [1], [0, 0, 1, 1], [], []>} : vector<256x256xbf16>, vector<256x256xbf16>, vector<256x256xf32> -> vector<256x256xf32>
    %c2_149 = arith.constant 2 : index
    %c0_150 = arith.constant 0 : index
    %c0_151 = arith.constant 0 : index
    %275 = vector.load %arg9[%c2_149, %c0_150, %c0_151] : memref<3x1x256xf32, #tpu.memory_space<vmem>>, vector<1x1x256xf32>
    %276 = vector.shape_cast %275 : vector<1x1x256xf32> to vector<1x256xf32>
    %277 = vector.broadcast %276 : vector<1x256xf32> to vector<256x256xf32>
    %278 = arith.addf %274, %277 : vector<256x256xf32>
    %cst_152 = arith.constant 0.000000e+00 : f32
    %279 = vector.broadcast %cst_152 : f32 to vector<256x256xf32>
    %280 = arith.maximumf %278, %279 : vector<256x256xf32>
    %c2_153 = arith.constant 2 : index
    %c0_154 = arith.constant 0 : index
    %c0_155 = arith.constant 0 : index
    %281 = vector.load %arg10[%c2_153, %c0_154, %c0_155] : memref<3x1x256xf32, #tpu.memory_space<vmem>>, vector<1x1x256xf32>
    %282 = vector.shape_cast %281 : vector<1x1x256xf32> to vector<1x256xf32>
    %c2_156 = arith.constant 2 : index
    %c0_157 = arith.constant 0 : index
    %c0_158 = arith.constant 0 : index
    %283 = vector.load %arg11[%c2_156, %c0_157, %c0_158] : memref<3x1x256xf32, #tpu.memory_space<vmem>>, vector<1x1x256xf32>
    %284 = vector.shape_cast %283 : vector<1x1x256xf32> to vector<1x256xf32>
    %cst_159 = arith.constant dense<0.000000e+00> : vector<256xf32>
    %285 = vector.multi_reduction <add>, %280, %cst_159 [1] : vector<256x256xf32> to vector<256xf32>
    %286 = vector.shape_cast %285 : vector<256xf32> to vector<256x1xf32>
    %cst_160 = arith.constant 2.560000e+02 : f32
    %287 = vector.broadcast %cst_160 : f32 to vector<256x1xf32>
    %288 = arith.divf %286, %287 : vector<256x1xf32>
    %289 = vector.broadcast %288 : vector<256x1xf32> to vector<256x256xf32>
    %290 = arith.subf %280, %289 : vector<256x256xf32>
    %291 = arith.mulf %290, %290 : vector<256x256xf32>
    %cst_161 = arith.constant dense<0.000000e+00> : vector<256xf32>
    %292 = vector.multi_reduction <add>, %291, %cst_161 [1] : vector<256x256xf32> to vector<256xf32>
    %293 = vector.shape_cast %292 : vector<256xf32> to vector<256x1xf32>
    %cst_162 = arith.constant 2.560000e+02 : f32
    %294 = vector.broadcast %cst_162 : f32 to vector<256x1xf32>
    %295 = arith.divf %293, %294 : vector<256x1xf32>
    %cst_163 = arith.constant 9.99999974E-6 : f32
    %296 = vector.broadcast %cst_163 : f32 to vector<256x1xf32>
    %297 = arith.addf %295, %296 : vector<256x1xf32>
    %298 = math.rsqrt %297 : vector<256x1xf32>
    %299 = vector.broadcast %298 : vector<256x1xf32> to vector<256x256xf32>
    %300 = arith.mulf %290, %299 : vector<256x256xf32>
    %301 = vector.broadcast %282 : vector<1x256xf32> to vector<256x256xf32>
    %302 = arith.mulf %300, %301 : vector<256x256xf32>
    %303 = vector.broadcast %284 : vector<1x256xf32> to vector<256x256xf32>
    %304 = arith.addf %302, %303 : vector<256x256xf32>
    %305 = arith.truncf %304 : vector<256x256xf32> to vector<256x256xbf16>
    %c2_164 = arith.constant 2 : index
    %c0_165 = arith.constant 0 : index
    %c0_166 = arith.constant 0 : index
    %306 = vector.load %arg12[%c2_164, %c0_165, %c0_166] : memref<3x256x128xbf16, #tpu.memory_space<vmem>>, vector<1x256x128xbf16>
    %307 = vector.shape_cast %306 : vector<1x256x128xbf16> to vector<256x128xbf16>
    %cst_167 = arith.constant dense<0.000000e+00> : vector<256x128xf32>
    %308 = tpu.matmul %305, %307, %cst_167 {dimension_numbers = #tpu.dot_dimension_numbers<[1], [0], [0], [1], [0, 0, 1, 1], [], []>} : vector<256x256xbf16>, vector<256x128xbf16>, vector<256x128xf32> -> vector<256x128xf32>
    %c2_168 = arith.constant 2 : index
    %c0_169 = arith.constant 0 : index
    %c0_170 = arith.constant 0 : index
    %309 = vector.load %arg13[%c2_168, %c0_169, %c0_170] : memref<3x1x128xf32, #tpu.memory_space<vmem>>, vector<1x1x128xf32>
    %310 = vector.shape_cast %309 : vector<1x1x128xf32> to vector<1x128xf32>
    %311 = vector.broadcast %310 : vector<1x128xf32> to vector<256x128xf32>
    %312 = arith.addf %308, %311 : vector<256x128xf32>
    %313 = arith.negf %312 : vector<256x128xf32>
    %314 = math.exp %313 : vector<256x128xf32>
    %cst_171 = arith.constant 1.000000e+00 : f32
    %315 = vector.broadcast %cst_171 : f32 to vector<256x128xf32>
    %316 = arith.addf %315, %314 : vector<256x128xf32>
    %317 = arith.divf %315, %316 : vector<256x128xf32>
    %c0_172 = arith.constant 0 : index
    %c256 = arith.constant 256 : index
    %318 = vector.load %arg14[%c0_172, %c256] : memref<256x384xf32, #tpu.memory_space<vmem>>, vector<256x128xf32>
    tpu.vector_store %arg14[%c0_172, %c256], %317 {strides = array<i32>} : memref<256x384xf32, #tpu.memory_space<vmem>>, vector<256x128xf32>,
    return
  }
  func.func @transform_0(%arg0: i32) -> (i32, i32) {
    %c0_i32 = arith.constant 0 : i32
    %c0_i32_0 = arith.constant 0 : i32
    return %arg0, %c0_i32 : i32, i32
  }
  func.func @transform_1(%arg0: i32) -> (i32, i32, i32) {
    %c0_i32 = arith.constant 0 : i32
    %c0_i32_0 = arith.constant 0 : i32
    %c0_i32_1 = arith.constant 0 : i32
    %c0_i32_2 = arith.constant 0 : i32
    return %c0_i32, %c0_i32_0, %c0_i32_1 : i32, i32, i32
  }
  func.func @transform_2(%arg0: i32) -> (i32, i32, i32) {
    %c0_i32 = arith.constant 0 : i32
    %c0_i32_0 = arith.constant 0 : i32
    %c0_i32_1 = arith.constant 0 : i32
    %c0_i32_2 = arith.constant 0 : i32
    return %c0_i32, %c0_i32_0, %c0_i32_1 : i32, i32, i32
  }
  func.func @transform_3(%arg0: i32) -> (i32, i32, i32) {
    %c0_i32 = arith.constant 0 : i32
    %c0_i32_0 = arith.constant 0 : i32
    %c0_i32_1 = arith.constant 0 : i32
    %c0_i32_2 = arith.constant 0 : i32
    return %c0_i32, %c0_i32_0, %c0_i32_1 : i32, i32, i32
  }
  func.func @transform_4(%arg0: i32) -> (i32, i32, i32) {
    %c0_i32 = arith.constant 0 : i32
    %c0_i32_0 = arith.constant 0 : i32
    %c0_i32_1 = arith.constant 0 : i32
    %c0_i32_2 = arith.constant 0 : i32
    return %c0_i32, %c0_i32_0, %c0_i32_1 : i32, i32, i32
  }
  func.func @transform_5(%arg0: i32) -> (i32, i32, i32) {
    %c0_i32 = arith.constant 0 : i32
    %c0_i32_0 = arith.constant 0 : i32
    %c0_i32_1 = arith.constant 0 : i32
    %c0_i32_2 = arith.constant 0 : i32
    return %c0_i32, %c0_i32_0, %c0_i32_1 : i32, i32, i32
  }
  func.func @transform_6(%arg0: i32) -> (i32, i32, i32) {
    %c0_i32 = arith.constant 0 : i32
    %c0_i32_0 = arith.constant 0 : i32
    %c0_i32_1 = arith.constant 0 : i32
    %c0_i32_2 = arith.constant 0 : i32
    return %c0_i32, %c0_i32_0, %c0_i32_1 : i32, i32, i32
  }
  func.func @transform_7(%arg0: i32) -> (i32, i32, i32) {
    %c0_i32 = arith.constant 0 : i32
    %c0_i32_0 = arith.constant 0 : i32
    %c0_i32_1 = arith.constant 0 : i32
    %c0_i32_2 = arith.constant 0 : i32
    return %c0_i32, %c0_i32_0, %c0_i32_1 : i32, i32, i32
  }
  func.func @transform_8(%arg0: i32) -> (i32, i32, i32) {
    %c0_i32 = arith.constant 0 : i32
    %c0_i32_0 = arith.constant 0 : i32
    %c0_i32_1 = arith.constant 0 : i32
    %c0_i32_2 = arith.constant 0 : i32
    return %c0_i32, %c0_i32_0, %c0_i32_1 : i32, i32, i32
  }
  func.func @transform_9(%arg0: i32) -> (i32, i32, i32) {
    %c0_i32 = arith.constant 0 : i32
    %c0_i32_0 = arith.constant 0 : i32
    %c0_i32_1 = arith.constant 0 : i32
    %c0_i32_2 = arith.constant 0 : i32
    return %c0_i32, %c0_i32_0, %c0_i32_1 : i32, i32, i32
  }
  func.func @transform_10(%arg0: i32) -> (i32, i32, i32) {
    %c0_i32 = arith.constant 0 : i32
    %c0_i32_0 = arith.constant 0 : i32
    %c0_i32_1 = arith.constant 0 : i32
    %c0_i32_2 = arith.constant 0 : i32
    return %c0_i32, %c0_i32_0, %c0_i32_1 : i32, i32, i32
  }
  func.func @transform_11(%arg0: i32) -> (i32, i32, i32) {
    %c0_i32 = arith.constant 0 : i32
    %c0_i32_0 = arith.constant 0 : i32
    %c0_i32_1 = arith.constant 0 : i32
    %c0_i32_2 = arith.constant 0 : i32
    return %c0_i32, %c0_i32_0, %c0_i32_1 : i32, i32, i32
  }
  func.func @transform_12(%arg0: i32) -> (i32, i32, i32) {
    %c0_i32 = arith.constant 0 : i32
    %c0_i32_0 = arith.constant 0 : i32
    %c0_i32_1 = arith.constant 0 : i32
    %c0_i32_2 = arith.constant 0 : i32
    return %c0_i32, %c0_i32_0, %c0_i32_1 : i32, i32, i32
  }
  func.func @transform_13(%arg0: i32) -> (i32, i32) {
    %c0_i32 = arith.constant 0 : i32
    %c0_i32_0 = arith.constant 0 : i32
    return %arg0, %c0_i32 : i32, i32
  }
}

</mosaic_0001>

<llo_original>
// kernel: tpu_custom_call.1
$region0: #{tpu_custom_call.1}
  #allocation0 [shape = 'u32[]', space=smem, size = 0x4, offset = 0x4, fixed_abs, tag = 'smem constant byte address 0x4 - core index']
  #allocation1 [shape = 'u32[144,128]{1,0:T(1,128)}', space=vmem, size = 0x12000, scoped, tag = 'internal scratch']
  %s0 = inlined_call_operand.vmem [shape: f32[256,32], index: 0, kind: input, shape index: {}]
  %s1 = inlined_call_operand.vmem [shape: f32[3,1,32], index: 1, kind: input, shape index: {}]
  %s2 = inlined_call_operand.vmem [shape: f32[3,1,32], index: 2, kind: input, shape index: {}]
  %s3 = inlined_call_operand.vmem [shape: bf16[3,32,256], index: 3, kind: input, shape index: {}]
  %s4 = inlined_call_operand.vmem [shape: f32[3,1,256], index: 4, kind: input, shape index: {}]
  %s5 = inlined_call_operand.vmem [shape: f32[3,1,256], index: 5, kind: input, shape index: {}]
  %s6 = inlined_call_operand.vmem [shape: f32[3,1,256], index: 6, kind: input, shape index: {}]
  %s7 = inlined_call_operand.hbm [shape: bf16[3,256,256], index: 7, kind: input, shape index: {}]
  %s8 = inlined_call_operand.vmem [shape: f32[3,1,256], index: 8, kind: input, shape index: {}]
  %s9 = inlined_call_operand.vmem [shape: f32[3,1,256], index: 9, kind: input, shape index: {}]
  %s10 = inlined_call_operand.vmem [shape: f32[3,1,256], index: 10, kind: input, shape index: {}]
  %s11 = inlined_call_operand.hbm [shape: bf16[3,256,128], index: 11, kind: input, shape index: {}]
  %s12 = inlined_call_operand.vmem [shape: f32[3,1,128], index: 12, kind: input, shape index: {}]
  %s13 = inlined_call_operand.hbm [shape: f32[256,384], index: 13, kind: output, shape index: {}]
  %s14 = sld [smem:[#allocation0]]
  $region70: #{tpu_custom_call.1} parent=0
    _
  %s16 = ssub.s32 1, %s14
  %s17 = scalar_select 0, %s16, %s14
  $region1: #{tpu_custom_call.1} parent=0
    #allocation2 [shape = 'u8[393216]{0}', space=vmem, size = 0x60000, scoped, tag = 'input window, operand 7, single buffered']
    #allocation3 [shape = 's32[1]{0}', space=sflag, size = 0x4, scoped, tag = 'scoped memory for tpu_custom_call.1']
    #allocation4 [shape = 's32[1]{0}', space=sflag, size = 0x4, scoped, tag = 'scoped memory for tpu_custom_call.1']
    #allocation5 [shape = 'u8[196608]{0}', space=vmem, size = 0x30000, scoped, tag = 'input window, operand 11, single buffered']
    #allocation6 [shape = 's32[1]{0}', space=sflag, size = 0x4, scoped, tag = 'scoped memory for tpu_custom_call.1']
    #allocation7 [shape = 'u8[393216]{0}', space=vmem, size = 0x60000, scoped, tag = 'output window, operand 0, single buffered']
    %18 = vsyncpa [#allocation3], 0
    %19 = vsyncpa [#allocation6], 0
    %20 = vsyncpa [#allocation4], 0
    // Predicated region
    $region2: #{tpu_custom_call.1} parent=1 // pred_check
      _
    $region3: #{tpu_custom_call.1} parent=1 // pred_check_branch
      %22 = sbr.rel (0) target = $region5
    $region4: #{tpu_custom_call.1} parent=1 // pred_region
      _
    $region5: #{tpu_custom_call.1} parent=1 // pred_fallthru
      _
    // Predicated region
    $region6: #{tpu_custom_call.1} parent=1 // pred_check
      _
    $region7: #{tpu_custom_call.1} parent=1 // pred_check_branch
      %24 = sbr.rel (0) target = $region9
    $region8: #{tpu_custom_call.1} parent=1 // pred_region
      _
    $region9: #{tpu_custom_call.1} parent=1 // pred_fallthru
      _
    // Predicated region
    $region10: #{tpu_custom_call.1} parent=1 // pred_check
      _
    $region11: #{tpu_custom_call.1} parent=1 // pred_check_branch
      %26 = sbr.rel (0) target = $region13
    $region12: #{tpu_custom_call.1} parent=1 // pred_region
      _
    $region13: #{tpu_custom_call.1} parent=1 // pred_fallthru
      _
    // Predicated region
    $region14: #{tpu_custom_call.1} parent=1 // pred_check
      _
    $region15: #{tpu_custom_call.1} parent=1 // pred_check_branch
      %28 = sbr.rel (0) target = $region17
    $region16: #{tpu_custom_call.1} parent=1 // pred_region
      _
    $region17: #{tpu_custom_call.1} parent=1 // pred_fallthru
      _
    // Predicated region
    $region18: #{tpu_custom_call.1} parent=1 // pred_check
      _
    $region19: #{tpu_custom_call.1} parent=1 // pred_check_branch
      %30 = sbr.rel (0) target = $region21
    $region20: #{tpu_custom_call.1} parent=1 // pred_region
      _
    $region21: #{tpu_custom_call.1} parent=1 // pred_fallthru
      _
    // Predicated region
    $region22: #{tpu_custom_call.1} parent=1 // pred_check
      _
    $region23: #{tpu_custom_call.1} parent=1 // pred_check_branch
      %32 = sbr.rel (0) target = $region25
    $region24: #{tpu_custom_call.1} parent=1 // pred_region
      _
    $region25: #{tpu_custom_call.1} parent=1 // pred_fallthru
      _
    // Predicated region
    $region26: #{tpu_custom_call.1} parent=1 // pred_check
      _
    $region27: #{tpu_custom_call.1} parent=1 // pred_check_branch
      %34 = sbr.rel (0) target = $region29
    $region28: #{tpu_custom_call.1} parent=1 // pred_region
      _
    $region29: #{tpu_custom_call.1} parent=1 // pred_fallthru
      _
    // Predicated region
    $region30: #{tpu_custom_call.1} parent=1 // pred_check
      _
    $region31: #{tpu_custom_call.1} parent=1 // pred_check_branch
      %36 = sbr.rel (0) target = $region33
    $region32: #{tpu_custom_call.1} parent=1 // pred_region
      %s38 = ssub.s32 12288, 12288
      %39 = vsyncadd [#allocation3], %s38
      %s40 = sshll.u32 [#allocation2], 4
      %s41 = int_to_ptr.vmem [resolvable:$true] %s40
      %46 = dma.hbm_to_vmem [thread:$0]  %s7, 12288, %s41, [#allocation3], 128, 128, 8
    $region33: #{tpu_custom_call.1} parent=1 // pred_fallthru
      _
    // Predicated region
    $region34: #{tpu_custom_call.1} parent=1 // pred_check
      _
    $region35: #{tpu_custom_call.1} parent=1 // pred_check_branch
      %48 = sbr.rel (0) target = $region37
    $region36: #{tpu_custom_call.1} parent=1 // pred_region
      _
    $region37: #{tpu_custom_call.1} parent=1 // pred_fallthru
      _
    // Predicated region
    $region38: #{tpu_custom_call.1} parent=1 // pred_check
      _
    $region39: #{tpu_custom_call.1} parent=1 // pred_check_branch
      %50 = sbr.rel (0) target = $region41
    $region40: #{tpu_custom_call.1} parent=1 // pred_region
      _
    $region41: #{tpu_custom_call.1} parent=1 // pred_fallthru
      _
    // Predicated region
    $region42: #{tpu_custom_call.1} parent=1 // pred_check
      _
    $region43: #{tpu_custom_call.1} parent=1 // pred_check_branch
      %52 = sbr.rel (0) target = $region45
    $region44: #{tpu_custom_call.1} parent=1 // pred_region
      _
    $region45: #{tpu_custom_call.1} parent=1 // pred_fallthru
      _
    // Predicated region
    $region46: #{tpu_custom_call.1} parent=1 // pred_check
      _
    $region47: #{tpu_custom_call.1} parent=1 // pred_check_branch
      %54 = sbr.rel (0) target = $region49
    $region48: #{tpu_custom_call.1} parent=1 // pred_region
      %s56 = ssub.s32 6144, 6144
      %57 = vsyncadd [#allocation6], %s56
      %s58 = sshll.u32 [#allocation5], 4
      %s59 = int_to_ptr.vmem [resolvable:$true] %s58
      %64 = dma.hbm_to_vmem [thread:$0]  %s11, 6144, %s59, [#allocation6], 64, 64, 4
    $region49: #{tpu_custom_call.1} parent=1 // pred_fallthru
      _
    // Predicated region
    $region50: #{tpu_custom_call.1} parent=1 // pred_check
      _
    $region51: #{tpu_custom_call.1} parent=1 // pred_check_branch
      %66 = sbr.rel (0) target = $region53
    $region52: #{tpu_custom_call.1} parent=1 // pred_region
      _
    $region53: #{tpu_custom_call.1} parent=1 // pred_fallthru
      _
    // Predicated region
    $region54: #{tpu_custom_call.1} parent=1 // pred_check
      _
    $region55: #{tpu_custom_call.1} parent=1 // pred_check_branch
      %68 = sbr.rel (0) target = $region57
    $region56: #{tpu_custom_call.1} parent=1 // pred_region
      %69 = dma.done [#allocation3], 12288
    $region57: #{tpu_custom_call.1} parent=1 // pred_fallthru
      _
    // Predicated region
    $region58: #{tpu_custom_call.1} parent=1 // pred_check
      _
    $region59: #{tpu_custom_call.1} parent=1 // pred_check_branch
      %71 = sbr.rel (0) target = $region61
    $region60: #{tpu_custom_call.1} parent=1 // pred_region
      %72 = dma.done [#allocation6], 6144
    $region61: #{tpu_custom_call.1} parent=1 // pred_fallthru
      _
    %v74 = vld [vmem:[%s0] sm:$0xff]
    %v75 = vld [vmem:[%s0 + $0x8] sm:$0xff]
    %v76 = vld [vmem:[%s0 + $0x10] sm:$0xff]
    %v77 = vld [vmem:[%s0 + $0x18] sm:$0xff]
    %v78 = vld [vmem:[%s0 + $0x20] sm:$0xff]
    %v79 = vld [vmem:[%s0 + $0x28] sm:$0xff]
    %v80 = vld [vmem:[%s0 + $0x30] sm:$0xff]
    %v81 = vld [vmem:[%s0 + $0x38] sm:$0xff]
    %v82 = vld [vmem:[%s0 + $0x40] sm:$0xff]
    %v83 = vld [vmem:[%s0 + $0x48] sm:$0xff]
    %v84 = vld [vmem:[%s0 + $0x50] sm:$0xff]
    %v85 = vld [vmem:[%s0 + $0x58] sm:$0xff]
    %v86 = vld [vmem:[%s0 + $0x60] sm:$0xff]
    %v87 = vld [vmem:[%s0 + $0x68] sm:$0xff]
    %v88 = vld [vmem:[%s0 + $0x70] sm:$0xff]
    %v89 = vld [vmem:[%s0 + $0x78] sm:$0xff]
    %v90 = vld [vmem:[%s0 + $0x80] sm:$0xff]
    %v91 = vld [vmem:[%s0 + $0x88] sm:$0xff]
    %v92 = vld [vmem:[%s0 + $0x90] sm:$0xff]
    %v93 = vld [vmem:[%s0 + $0x98] sm:$0xff]
    %v94 = vld [vmem:[%s0 + $0xa0] sm:$0xff]
    %v95 = vld [vmem:[%s0 + $0xa8] sm:$0xff]
    %v96 = vld [vmem:[%s0 + $0xb0] sm:$0xff]
    %v97 = vld [vmem:[%s0 + $0xb8] sm:$0xff]
    %v98 = vld [vmem:[%s0 + $0xc0] sm:$0xff]
    %v99 = vld [vmem:[%s0 + $0xc8] sm:$0xff]
    %v100 = vld [vmem:[%s0 + $0xd0] sm:$0xff]
    %v101 = vld [vmem:[%s0 + $0xd8] sm:$0xff]
    %v102 = vld [vmem:[%s0 + $0xe0] sm:$0xff]
    %v103 = vld [vmem:[%s0 + $0xe8] sm:$0xff]
    %v104 = vld [vmem:[%s0 + $0xf0] sm:$0xff]
    %v105 = vld [vmem:[%s0 + $0xf8] sm:$0xff]
    %v106 = vld [vmem:[%s1] sm:$0x1]
    %v107 = vld [vmem:[%s2] sm:$0x1]
    %vm108 = vcmask 261120
    %v109 = vsel %vm108, %v74, 0.0
    %110 = vadd.xlane.f32.xlu0 %v109
    %v111 = vpop.xlane.xlu0 %110
    %v112 = vsel %vm108, %v75, 0.0
    %113 = vadd.xlane.f32.xlu0 %v112
    %v114 = vpop.xlane.xlu0 %113
    %v115 = vsel %vm108, %v76, 0.0
    %116 = vadd.xlane.f32.xlu0 %v115
    %v117 = vpop.xlane.xlu0 %116
    %v118 = vsel %vm108, %v77, 0.0
    %119 = vadd.xlane.f32.xlu0 %v118
    %v120 = vpop.xlane.xlu0 %119
    %v121 = vsel %vm108, %v78, 0.0
    %122 = vadd.xlane.f32.xlu0 %v121
    %v123 = vpop.xlane.xlu0 %122
    %v124 = vsel %vm108, %v79, 0.0
    %125 = vadd.xlane.f32.xlu0 %v124
    %v126 = vpop.xlane.xlu0 %125
    %v127 = vsel %vm108, %v80, 0.0
    %128 = vadd.xlane.f32.xlu0 %v127
    %v129 = vpop.xlane.xlu0 %128
    %v130 = vsel %vm108, %v81, 0.0
    %131 = vadd.xlane.f32.xlu0 %v130
    %v132 = vpop.xlane.xlu0 %131
    %v133 = vsel %vm108, %v82, 0.0
    %134 = vadd.xlane.f32.xlu0 %v133
    %v135 = vpop.xlane.xlu0 %134
    %v136 = vsel %vm108, %v83, 0.0
    %137 = vadd.xlane.f32.xlu0 %v136
    %v138 = vpop.xlane.xlu0 %137
    %v139 = vsel %vm108, %v84, 0.0
    %140 = vadd.xlane.f32.xlu0 %v139
    %v141 = vpop.xlane.xlu0 %140
    %v142 = vsel %vm108, %v85, 0.0
    %143 = vadd.xlane.f32.xlu0 %v142
    %v144 = vpop.xlane.xlu0 %143
    %v145 = vsel %vm108, %v86, 0.0
    %146 = vadd.xlane.f32.xlu0 %v145
    %v147 = vpop.xlane.xlu0 %146
    %v148 = vsel %vm108, %v87, 0.0
    %149 = vadd.xlane.f32.xlu0 %v148
    %v150 = vpop.xlane.xlu0 %149
    %v151 = vsel %vm108, %v88, 0.0
    %152 = vadd.xlane.f32.xlu0 %v151
    %v153 = vpop.xlane.xlu0 %152
    %v154 = vsel %vm108, %v89, 0.0
    %155 = vadd.xlane.f32.xlu0 %v154
    %v156 = vpop.xlane.xlu0 %155
    %v157 = vsel %vm108, %v90, 0.0
    %158 = vadd.xlane.f32.xlu0 %v157
    %v159 = vpop.xlane.xlu0 %158
    %v160 = vsel %vm108, %v91, 0.0
    %161 = vadd.xlane.f32.xlu0 %v160
    %v162 = vpop.xlane.xlu0 %161
    %v163 = vsel %vm108, %v92, 0.0
    %164 = vadd.xlane.f32.xlu0 %v163
    %v165 = vpop.xlane.xlu0 %164
    %v166 = vsel %vm108, %v93, 0.0
    %167 = vadd.xlane.f32.xlu0 %v166
    %v168 = vpop.xlane.xlu0 %167
    %v169 = vsel %vm108, %v94, 0.0
    %170 = vadd.xlane.f32.xlu0 %v169
    %v171 = vpop.xlane.xlu0 %170
    %v172 = vsel %vm108, %v95, 0.0
    %173 = vadd.xlane.f32.xlu0 %v172
    %v174 = vpop.xlane.xlu0 %173
    %v175 = vsel %vm108, %v96, 0.0
    %176 = vadd.xlane.f32.xlu0 %v175
    %v177 = vpop.xlane.xlu0 %176
    %v178 = vsel %vm108, %v97, 0.0
    %179 = vadd.xlane.f32.xlu0 %v178
    %v180 = vpop.xlane.xlu0 %179
    %v181 = vsel %vm108, %v98, 0.0
    %182 = vadd.xlane.f32.xlu0 %v181
    %v183 = vpop.xlane.xlu0 %182
    %v184 = vsel %vm108, %v99, 0.0
    %185 = vadd.xlane.f32.xlu0 %v184
    %v186 = vpop.xlane.xlu0 %185
    %v187 = vsel %vm108, %v100, 0.0
    %188 = vadd.xlane.f32.xlu0 %v187
    %v189 = vpop.xlane.xlu0 %188
    %v190 = vsel %vm108, %v101, 0.0
    %191 = vadd.xlane.f32.xlu0 %v190
    %v192 = vpop.xlane.xlu0 %191
    %v193 = vsel %vm108, %v102, 0.0
    %194 = vadd.xlane.f32.xlu0 %v193
    %v195 = vpop.xlane.xlu0 %194
    %v196 = vsel %vm108, %v103, 0.0
    %197 = vadd.xlane.f32.xlu0 %v196
    %v198 = vpop.xlane.xlu0 %197
    %v199 = vsel %vm108, %v104, 0.0
    %200 = vadd.xlane.f32.xlu0 %v199
    %v201 = vpop.xlane.xlu0 %200
    %v202 = vsel %vm108, %v105, 0.0
    %203 = vadd.xlane.f32.xlu0 %v202
    %v204 = vpop.xlane.xlu0 %203
    %v205 = vrcp.pop 32.0
    %v206 = vmul.f32 %v111, %v205
    %v207 = vmul.f32 %v114, %v205
    %v208 = vmul.f32 %v117, %v205
    %v209 = vmul.f32 %v120, %v205
    %v210 = vmul.f32 %v123, %v205
    %v211 = vmul.f32 %v126, %v205
    %v212 = vmul.f32 %v129, %v205
    %v213 = vmul.f32 %v132, %v205
    %v214 = vmul.f32 %v135, %v205
    %v215 = vmul.f32 %v138, %v205
    %v216 = vmul.f32 %v141, %v205
    %v217 = vmul.f32 %v144, %v205
    %v218 = vmul.f32 %v147, %v205
    %v219 = vmul.f32 %v150, %v205
    %v220 = vmul.f32 %v153, %v205
    %v221 = vmul.f32 %v156, %v205
    %v222 = vmul.f32 %v159, %v205
    %v223 = vmul.f32 %v162, %v205
    %v224 = vmul.f32 %v165, %v205
    %v225 = vmul.f32 %v168, %v205
    %v226 = vmul.f32 %v171, %v205
    %v227 = vmul.f32 %v174, %v205
    %v228 = vmul.f32 %v177, %v205
    %v229 = vmul.f32 %v180, %v205
    %v230 = vmul.f32 %v183, %v205
    %v231 = vmul.f32 %v186, %v205
    %v232 = vmul.f32 %v189, %v205
    %v233 = vmul.f32 %v192, %v205
    %v234 = vmul.f32 %v195, %v205
    %v235 = vmul.f32 %v198, %v205
    %v236 = vmul.f32 %v201, %v205
    %v237 = vmul.f32 %v204, %v205
    %v238 = vsub.f32 %v74, %v206
    %v239 = vsub.f32 %v75, %v207
    %v240 = vsub.f32 %v76, %v208
    %v241 = vsub.f32 %v77, %v209
    %v242 = vsub.f32 %v78, %v210
    %v243 = vsub.f32 %v79, %v211
    %v244 = vsub.f32 %v80, %v212
    %v245 = vsub.f32 %v81, %v213
    %v246 = vsub.f32 %v82, %v214
    %v247 = vsub.f32 %v83, %v215
    %v248 = vsub.f32 %v84, %v216
    %v249 = vsub.f32 %v85, %v217
    %v250 = vsub.f32 %v86, %v218
    %v251 = vsub.f32 %v87, %v219
    %v252 = vsub.f32 %v88, %v220
    %v253 = vsub.f32 %v89, %v221
    %v254 = vsub.f32 %v90, %v222
    %v255 = vsub.f32 %v91, %v223
    %v256 = vsub.f32 %v92, %v224
    %v257 = vsub.f32 %v93, %v225
    %v258 = vsub.f32 %v94, %v226
    %v259 = vsub.f32 %v95, %v227
    %v260 = vsub.f32 %v96, %v228
    %v261 = vsub.f32 %v97, %v229
    %v262 = vsub.f32 %v98, %v230
    %v263 = vsub.f32 %v99, %v231
    %v264 = vsub.f32 %v100, %v232
    %v265 = vsub.f32 %v101, %v233
    %v266 = vsub.f32 %v102, %v234
    %v267 = vsub.f32 %v103, %v235
    %v268 = vsub.f32 %v104, %v236
    %v269 = vsub.f32 %v105, %v237
    %v270 = vmul.f32 %v238, %v238
    %v271 = vmul.f32 %v239, %v239
    %v272 = vmul.f32 %v240, %v240
    %v273 = vmul.f32 %v241, %v241
    %v274 = vmul.f32 %v242, %v242
    %v275 = vmul.f32 %v243, %v243
    %v276 = vmul.f32 %v244, %v244
    %v277 = vmul.f32 %v245, %v245
    %v278 = vmul.f32 %v246, %v246
    %v279 = vmul.f32 %v247, %v247
    %v280 = vmul.f32 %v248, %v248
    %v281 = vmul.f32 %v249, %v249
    %v282 = vmul.f32 %v250, %v250
    %v283 = vmul.f32 %v251, %v251
    %v284 = vmul.f32 %v252, %v252
    %v285 = vmul.f32 %v253, %v253
    %v286 = vmul.f32 %v254, %v254
    %v287 = vmul.f32 %v255, %v255
    %v288 = vmul.f32 %v256, %v256
    %v289 = vmul.f32 %v257, %v257
    %v290 = vmul.f32 %v258, %v258
    %v291 = vmul.f32 %v259, %v259
    %v292 = vmul.f32 %v260, %v260
    %v293 = vmul.f32 %v261, %v261
    %v294 = vmul.f32 %v262, %v262
    %v295 = vmul.f32 %v263, %v263
    %v296 = vmul.f32 %v264, %v264
    %v297 = vmul.f32 %v265, %v265
    %v298 = vmul.f32 %v266, %v266
    %v299 = vmul.f32 %v267, %v267
    %v300 = vmul.f32 %v268, %v268
    %v301 = vmul.f32 %v269, %v269
    %v302 = vsel %vm108, %v270, 0.0
    %303 = vadd.xlane.f32.xlu0 %v302
    %v304 = vpop.xlane.xlu0 %303
    %v305 = vsel %vm108, %v271, 0.0
    %306 = vadd.xlane.f32.xlu0 %v305
    %v307 = vpop.xlane.xlu0 %306
    %v308 = vsel %vm108, %v272, 0.0
    %309 = vadd.xlane.f32.xlu0 %v308
    %v310 = vpop.xlane.xlu0 %309
    %v311 = vsel %vm108, %v273, 0.0
    %312 = vadd.xlane.f32.xlu0 %v311
    %v313 = vpop.xlane.xlu0 %312
    %v314 = vsel %vm108, %v274, 0.0
    %315 = vadd.xlane.f32.xlu0 %v314
    %v316 = vpop.xlane.xlu0 %315
    %v317 = vsel %vm108, %v275, 0.0
    %318 = vadd.xlane.f32.xlu0 %v317
    %v319 = vpop.xlane.xlu0 %318
    %v320 = vsel %vm108, %v276, 0.0
    %321 = vadd.xlane.f32.xlu0 %v320
    %v322 = vpop.xlane.xlu0 %321
    %v323 = vsel %vm108, %v277, 0.0
    %324 = vadd.xlane.f32.xlu0 %v323
    %v325 = vpop.xlane.xlu0 %324
    %v326 = vsel %vm108, %v278, 0.0
    %327 = vadd.xlane.f32.xlu0 %v326
    %v328 = vpop.xlane.xlu0 %327
    %v329 = vsel %vm108, %v279, 0.0
    %330 = vadd.xlane.f32.xlu0 %v329
    %v331 = vpop.xlane.xlu0 %330
    %v332 = vsel %vm108, %v280, 0.0
    %333 = vadd.xlane.f32.xlu0 %v332
    %v334 = vpop.xlane.xlu0 %333
    %v335 = vsel %vm108, %v281, 0.0
    %336 = vadd.xlane.f32.xlu0 %v335
    %v337 = vpop.xlane.xlu0 %336
    %v338 = vsel %vm108, %v282, 0.0
    %339 = vadd.xlane.f32.xlu0 %v338
    %v340 = vpop.xlane.xlu0 %339
    %v341 = vsel %vm108, %v283, 0.0
    %342 = vadd.xlane.f32.xlu0 %v341
    %v343 = vpop.xlane.xlu0 %342
    %v344 = vsel %vm108, %v284, 0.0
    %345 = vadd.xlane.f32.xlu0 %v344
    %v346 = vpop.xlane.xlu0 %345
    %v347 = vsel %vm108, %v285, 0.0
    %348 = vadd.xlane.f32.xlu0 %v347
    %v349 = vpop.xlane.xlu0 %348
    %v350 = vsel %vm108, %v286, 0.0
    %351 = vadd.xlane.f32.xlu0 %v350
    %v352 = vpop.xlane.xlu0 %351
    %v353 = vsel %vm108, %v287, 0.0
    %354 = vadd.xlane.f32.xlu0 %v353
    %v355 = vpop.xlane.xlu0 %354
    %v356 = vsel %vm108, %v288, 0.0
    %357 = vadd.xlane.f32.xlu0 %v356
    %v358 = vpop.xlane.xlu0 %357
    %v359 = vsel %vm108, %v289, 0.0
    %360 = vadd.xlane.f32.xlu0 %v359
    %v361 = vpop.xlane.xlu0 %360
    %v362 = vsel %vm108, %v290, 0.0
    %363 = vadd.xlane.f32.xlu0 %v362
    %v364 = vpop.xlane.xlu0 %363
    %v365 = vsel %vm108, %v291, 0.0
    %366 = vadd.xlane.f32.xlu0 %v365
    %v367 = vpop.xlane.xlu0 %366
    %v368 = vsel %vm108, %v292, 0.0
    %369 = vadd.xlane.f32.xlu0 %v368
    %v370 = vpop.xlane.xlu0 %369
    %v371 = vsel %vm108, %v293, 0.0
    %372 = vadd.xlane.f32.xlu0 %v371
    %v373 = vpop.xlane.xlu0 %372
    %v374 = vsel %vm108, %v294, 0.0
    %375 = vadd.xlane.f32.xlu0 %v374
    %v376 = vpop.xlane.xlu0 %375
    %v377 = vsel %vm108, %v295, 0.0
    %378 = vadd.xlane.f32.xlu0 %v377
    %v379 = vpop.xlane.xlu0 %378
    %v380 = vsel %vm108, %v296, 0.0
    %381 = vadd.xlane.f32.xlu0 %v380
    %v382 = vpop.xlane.xlu0 %381
    %v383 = vsel %vm108, %v297, 0.0
    %384 = vadd.xlane.f32.xlu0 %v383
    %v385 = vpop.xlane.xlu0 %384
    %v386 = vsel %vm108, %v298, 0.0
    %387 = vadd.xlane.f32.xlu0 %v386
    %v388 = vpop.xlane.xlu0 %387
    %v389 = vsel %vm108, %v299, 0.0
    %390 = vadd.xlane.f32.xlu0 %v389
    %v391 = vpop.xlane.xlu0 %390
    %v392 = vsel %vm108, %v300, 0.0
    %393 = vadd.xlane.f32.xlu0 %v392
    %v394 = vpop.xlane.xlu0 %393
    %v395 = vsel %vm108, %v301, 0.0
    %396 = vadd.xlane.f32.xlu0 %v395
    %v397 = vpop.xlane.xlu0 %396
    %v398 = vmul.f32 %v304, %v205
    %v399 = vmul.f32 %v307, %v205
    %v400 = vmul.f32 %v310, %v205
    %v401 = vmul.f32 %v313, %v205
    %v402 = vmul.f32 %v316, %v205
    %v403 = vmul.f32 %v319, %v205
    %v404 = vmul.f32 %v322, %v205
    %v405 = vmul.f32 %v325, %v205
    %v406 = vmul.f32 %v328, %v205
    %v407 = vmul.f32 %v331, %v205
    %v408 = vmul.f32 %v334, %v205
    %v409 = vmul.f32 %v337, %v205
    %v410 = vmul.f32 %v340, %v205
    %v411 = vmul.f32 %v343, %v205
    %v412 = vmul.f32 %v346, %v205
    %v413 = vmul.f32 %v349, %v205
    %v414 = vmul.f32 %v352, %v205
    %v415 = vmul.f32 %v355, %v205
    %v416 = vmul.f32 %v358, %v205
    %v417 = vmul.f32 %v361, %v205
    %v418 = vmul.f32 %v364, %v205
    %v419 = vmul.f32 %v367, %v205
    %v420 = vmul.f32 %v370, %v205
    %v421 = vmul.f32 %v373, %v205
    %v422 = vmul.f32 %v376, %v205
    %v423 = vmul.f32 %v379, %v205
    %v424 = vmul.f32 %v382, %v205
    %v425 = vmul.f32 %v385, %v205
    %v426 = vmul.f32 %v388, %v205
    %v427 = vmul.f32 %v391, %v205
    %v428 = vmul.f32 %v394, %v205
    %v429 = vmul.f32 %v397, %v205
    %v430 = vadd.f32 %v398, 1e-05
    %v431 = vadd.f32 %v399, 1e-05
    %v432 = vadd.f32 %v400, 1e-05
    %v433 = vadd.f32 %v401, 1e-05
    %v434 = vadd.f32 %v402, 1e-05
    %v435 = vadd.f32 %v403, 1e-05
    %v436 = vadd.f32 %v404, 1e-05
    %v437 = vadd.f32 %v405, 1e-05
    %v438 = vadd.f32 %v406, 1e-05
    %v439 = vadd.f32 %v407, 1e-05
    %v440 = vadd.f32 %v408, 1e-05
    %v441 = vadd.f32 %v409, 1e-05
    %v442 = vadd.f32 %v410, 1e-05
    %v443 = vadd.f32 %v411, 1e-05
    %v444 = vadd.f32 %v412, 1e-05
    %v445 = vadd.f32 %v413, 1e-05
    %v446 = vadd.f32 %v414, 1e-05
    %v447 = vadd.f32 %v415, 1e-05
    %v448 = vadd.f32 %v416, 1e-05
    %v449 = vadd.f32 %v417, 1e-05
    %v450 = vadd.f32 %v418, 1e-05
    %v451 = vadd.f32 %v419, 1e-05
    %v452 = vadd.f32 %v420, 1e-05
    %v453 = vadd.f32 %v421, 1e-05
    %v454 = vadd.f32 %v422, 1e-05
    %v455 = vadd.f32 %v423, 1e-05
    %v456 = vadd.f32 %v424, 1e-05
    %v457 = vadd.f32 %v425, 1e-05
    %v458 = vadd.f32 %v426, 1e-05
    %v459 = vadd.f32 %v427, 1e-05
    %v460 = vadd.f32 %v428, 1e-05
    %v461 = vadd.f32 %v429, 1e-05
    %v462 = vrsqrt.pop %v430
    %v463 = vrsqrt.pop %v431
    %v464 = vrsqrt.pop %v432
    %v465 = vrsqrt.pop %v433
    %v466 = vrsqrt.pop %v434
    %v467 = vrsqrt.pop %v435
    %v468 = vrsqrt.pop %v436
    %v469 = vrsqrt.pop %v437
    %v470 = vrsqrt.pop %v438
    %v471 = vrsqrt.pop %v439
    %v472 = vrsqrt.pop %v440
    %v473 = vrsqrt.pop %v441
    %v474 = vrsqrt.pop %v442
    %v475 = vrsqrt.pop %v443
    %v476 = vrsqrt.pop %v444
    %v477 = vrsqrt.pop %v445
    %v478 = vrsqrt.pop %v446
    %v479 = vrsqrt.pop %v447
    %v480 = vrsqrt.pop %v448
    %v481 = vrsqrt.pop %v449
    %v482 = vrsqrt.pop %v450
    %v483 = vrsqrt.pop %v451
    %v484 = vrsqrt.pop %v452
    %v485 = vrsqrt.pop %v453
    %v486 = vrsqrt.pop %v454
    %v487 = vrsqrt.pop %v455
    %v488 = vrsqrt.pop %v456
    %v489 = vrsqrt.pop %v457
    %v490 = vrsqrt.pop %v458
    %v491 = vrsqrt.pop %v459
    %v492 = vrsqrt.pop %v460
    %v493 = vrsqrt.pop %v461
    %v494 = vmul.f32 %v238, %v462
    %v495 = vmul.f32 %v239, %v463
    %v496 = vmul.f32 %v240, %v464
    %v497 = vmul.f32 %v241, %v465
    %v498 = vmul.f32 %v242, %v466
    %v499 = vmul.f32 %v243, %v467
    %v500 = vmul.f32 %v244, %v468
    %v501 = vmul.f32 %v245, %v469
    %v502 = vmul.f32 %v246, %v470
    %v503 = vmul.f32 %v247, %v471
    %v504 = vmul.f32 %v248, %v472
    %v505 = vmul.f32 %v249, %v473
    %v506 = vmul.f32 %v250, %v474
    %v507 = vmul.f32 %v251, %v475
    %v508 = vmul.f32 %v252, %v476
    %v509 = vmul.f32 %v253, %v477
    %v510 = vmul.f32 %v254, %v478
    %v511 = vmul.f32 %v255, %v479
    %v512 = vmul.f32 %v256, %v480
    %v513 = vmul.f32 %v257, %v481
    %v514 = vmul.f32 %v258, %v482
    %v515 = vmul.f32 %v259, %v483
    %v516 = vmul.f32 %v260, %v484
    %v517 = vmul.f32 %v261, %v485
    %v518 = vmul.f32 %v262, %v486
    %v519 = vmul.f32 %v263, %v487
    %v520 = vmul.f32 %v264, %v488
    %v521 = vmul.f32 %v265, %v489
    %v522 = vmul.f32 %v266, %v490
    %v523 = vmul.f32 %v267, %v491
    %v524 = vmul.f32 %v268, %v492
    %v525 = vmul.f32 %v269, %v493
    %v527 = vlaneseq
    %v528 = vshrl.u32 %v527, 7
    %v529 = vsub.s32 0, %v528
    %v530 = vrot.slane %v106, %v529
    %v532 = vmul.f32 %v494, %v530
    %v533 = vmul.f32 %v495, %v530
    %v534 = vmul.f32 %v496, %v530
    %v535 = vmul.f32 %v497, %v530
    %v536 = vmul.f32 %v498, %v530
    %v537 = vmul.f32 %v499, %v530
    %v538 = vmul.f32 %v500, %v530
    %v539 = vmul.f32 %v501, %v530
    %v540 = vmul.f32 %v502, %v530
    %v541 = vmul.f32 %v503, %v530
    %v542 = vmul.f32 %v504, %v530
    %v543 = vmul.f32 %v505, %v530
    %v544 = vmul.f32 %v506, %v530
    %v545 = vmul.f32 %v507, %v530
    %v546 = vmul.f32 %v508, %v530
    %v547 = vmul.f32 %v509, %v530
    %v548 = vmul.f32 %v510, %v530
    %v549 = vmul.f32 %v511, %v530
    %v550 = vmul.f32 %v512, %v530
    %v551 = vmul.f32 %v513, %v530
    %v552 = vmul.f32 %v514, %v530
    %v553 = vmul.f32 %v515, %v530
    %v554 = vmul.f32 %v516, %v530
    %v555 = vmul.f32 %v517, %v530
    %v556 = vmul.f32 %v518, %v530
    %v557 = vmul.f32 %v519, %v530
    %v558 = vmul.f32 %v520, %v530
    %v559 = vmul.f32 %v521, %v530
    %v560 = vmul.f32 %v522, %v530
    %v561 = vmul.f32 %v523, %v530
    %v562 = vmul.f32 %v524, %v530
    %v563 = vmul.f32 %v525, %v530
    %v565 = vlaneseq
    %v566 = vshrl.u32 %v565, 7
    %v567 = vsub.s32 0, %v566
    %v568 = vrot.slane %v107, %v567
    %v570 = vadd.f32 %v532, %v568
    %v571 = vadd.f32 %v533, %v568
    %v572 = vadd.f32 %v534, %v568
    %v573 = vadd.f32 %v535, %v568
    %v574 = vadd.f32 %v536, %v568
    %v575 = vadd.f32 %v537, %v568
    %v576 = vadd.f32 %v538, %v568
    %v577 = vadd.f32 %v539, %v568
    %v578 = vadd.f32 %v540, %v568
    %v579 = vadd.f32 %v541, %v568
    %v580 = vadd.f32 %v542, %v568
    %v581 = vadd.f32 %v543, %v568
    %v582 = vadd.f32 %v544, %v568
    %v583 = vadd.f32 %v545, %v568
    %v584 = vadd.f32 %v546, %v568
    %v585 = vadd.f32 %v547, %v568
    %v586 = vadd.f32 %v548, %v568
    %v587 = vadd.f32 %v549, %v568
    %v588 = vadd.f32 %v550, %v568
    %v589 = vadd.f32 %v551, %v568
    %v590 = vadd.f32 %v552, %v568
    %v591 = vadd.f32 %v553, %v568
    %v592 = vadd.f32 %v554, %v568
    %v593 = vadd.f32 %v555, %v568
    %v594 = vadd.f32 %v556, %v568
    %v595 = vadd.f32 %v557, %v568
    %v596 = vadd.f32 %v558, %v568
    %v597 = vadd.f32 %v559, %v568
    %v598 = vadd.f32 %v560, %v568
    %v599 = vadd.f32 %v561, %v568
    %v600 = vadd.f32 %v562, %v568
    %v601 = vadd.f32 %v563, %v568
    %v602 = vpack.c.bf16 %v571, %v570
    %v603 = vpack.c.bf16 %v573, %v572
    %v604 = vpack.c.bf16 %v575, %v574
    %v605 = vpack.c.bf16 %v577, %v576
    %v606 = vpack.c.bf16 %v579, %v578
    %v607 = vpack.c.bf16 %v581, %v580
    %v608 = vpack.c.bf16 %v583, %v582
    %v609 = vpack.c.bf16 %v585, %v584
    %v610 = vpack.c.bf16 %v587, %v586
    %v611 = vpack.c.bf16 %v589, %v588
    %v612 = vpack.c.bf16 %v591, %v590
    %v613 = vpack.c.bf16 %v593, %v592
    %v614 = vpack.c.bf16 %v595, %v594
    %v615 = vpack.c.bf16 %v597, %v596
    %v616 = vpack.c.bf16 %v599, %v598
    %v617 = vpack.c.bf16 %v601, %v600
    %v618 = vld [vmem:[%s3] sm:$0xff]
    %v619 = vld [vmem:[%s3 + $0x8] sm:$0xff]
    %v620 = vld [vmem:[%s3 + $0x10] sm:$0xff]
    %v621 = vld [vmem:[%s3 + $0x18] sm:$0xff]
    %v622 = vld [vmem:[%s4] sm:$0x3]
    %v624 = vlaneseq
    %v625 = vshrl.u32 %v624, 7
    %v626 = vsub.s32 0, %v625
    %v627 = vrot.slane %v622, %v626
    %v628 = vlaneseq
    %v629 = vshrl.u32 %v628, 7
    %v630 = vsub.s32 1, %v629
    %v631 = vrot.slane %v622, %v630
    %v638 = vunpack.c.l.b16 %v618
    %v639 = vunpack.c.h.b16 %v618
    %v640 = vunpack.c.l.b16 %v619
    %v641 = vunpack.c.h.b16 %v619
    %v642 = vunpack.c.l.b16 %v620
    %v643 = vunpack.c.h.b16 %v620
    %v644 = vunpack.c.l.b16 %v621
    %v645 = vunpack.c.h.b16 %v621
    %v646 = vpack.c.b16 %v640, %v638
    %v647 = vpack.c.b16 %v641, %v639
    %v648 = vpack.c.b16 %v644, %v642
    %v649 = vpack.c.b16 %v645, %v643
    %v655 = vsel %vm108, %v602, 0
    %v658 = vsel %vm108, %v603, 0
    %v661 = vsel %vm108, %v604, 0
    %v664 = vsel %vm108, %v605, 0
    %v667 = vsel %vm108, %v606, 0
    %v670 = vsel %vm108, %v607, 0
    %v673 = vsel %vm108, %v608, 0
    %v676 = vsel %vm108, %v609, 0
    %v679 = vsel %vm108, %v610, 0
    %v682 = vsel %vm108, %v611, 0
    %v685 = vsel %vm108, %v612, 0
    %v688 = vsel %vm108, %v613, 0
    %v691 = vsel %vm108, %v614, 0
    %v694 = vsel %vm108, %v615, 0
    %v697 = vsel %vm108, %v616, 0
    %v700 = vsel %vm108, %v617, 0
    %702 = vmatprep.subr.bf16.mxu0 %v647
    %703 = vmatpush1.bf16.msra.mxu0 %v646
    %704 = vmatprep.subr.bf16.mxu0 %v649
    %705 = vmatpush1.bf16.msra.mxu0 %v648
    %706 = vmatprep.subr.bf16.mxu0 0
    %707 = vmatpush1.bf16.msra.mxu0 0
    %708 = vmatprep.subr.bf16.mxu0 0
    %709 = vmatpush1.bf16.msra.mxu0 0
    %710 = vmatprep.subr.bf16.mxu0 0
    %711 = vmatpush1.bf16.msra.mxu0 0
    %712 = vmatprep.subr.bf16.mxu0 0
    %713 = vmatpush1.bf16.msra.mxu0 0
    %714 = vmatprep.subr.bf16.mxu0 0
    %715 = vmatpush1.bf16.msra.mxu0 0
    %716 = vmatprep.subr.bf16.mxu0 0
    %717 = vmatpush1.bf16.msra.mxu0 0
    %718 = vmatprep.subr.bf16.mxu0 0
    %719 = vmatpush1.bf16.msra.mxu0 0
    %720 = vmatprep.subr.bf16.mxu0 0
    %721 = vmatpush1.bf16.msra.mxu0 0
    %722 = vmatprep.subr.bf16.mxu0 0
    %723 = vmatpush1.bf16.msra.mxu0 0
    %724 = vmatprep.subr.bf16.mxu0 0
    %725 = vmatpush1.bf16.msra.mxu0 0
    %726 = vmatprep.subr.bf16.mxu0 0
    %727 = vmatpush1.bf16.msra.mxu0 0
    %728 = vmatprep.subr.bf16.mxu0 0
    %729 = vmatpush1.bf16.msra.mxu0 0
    %730 = vmatprep.subr.bf16.mxu0 0
    %731 = vmatpush1.bf16.msra.mxu0 0
    %732 = vmatprep.subr.bf16.mxu0 0
    %733 = vmatpush1.bf16.msra.mxu0 0
    %734 = vmatprep.mubr.bf16.mxu0 0
    %735 = vmatmul.mubr.bf16.gmra.mrb[0].mxu0 %v655
    %v736 = vpop.f32.mrb[0].mxu0
    %v737 = vadd.f32 %v627, %v736
    %v738 = vpop.f32.mrb[0].mxu0
    %v739 = vadd.f32 %v631, %v738
    %v740 = vpop.f32.mrb[0].mxu0
    %v741 = vadd.f32 %v627, %v740
    %v742 = vpop.f32.mrb[0].mxu0
    %v743 = vadd.f32 %v631, %v742
    %744 = vmatprep.mubr.bf16.mxu0 0
    %745 = vmatmul.mubr.bf16.gmra.mrb[0].mxu0 %v658
    %v746 = vpop.f32.mrb[0].mxu0
    %v747 = vadd.f32 %v627, %v746
    %v748 = vpop.f32.mrb[0].mxu0
    %v749 = vadd.f32 %v631, %v748
    %v750 = vpop.f32.mrb[0].mxu0
    %v751 = vadd.f32 %v627, %v750
    %v752 = vpop.f32.mrb[0].mxu0
    %v753 = vadd.f32 %v631, %v752
    %754 = vmatprep.mubr.bf16.mxu0 0
    %755 = vmatmul.mubr.bf16.gmra.mrb[0].mxu0 %v661
    %v756 = vpop.f32.mrb[0].mxu0
    %v757 = vadd.f32 %v627, %v756
    %v758 = vpop.f32.mrb[0].mxu0
    %v759 = vadd.f32 %v631, %v758
    %v760 = vpop.f32.mrb[0].mxu0
    %v761 = vadd.f32 %v627, %v760
    %v762 = vpop.f32.mrb[0].mxu0
    %v763 = vadd.f32 %v631, %v762
    %764 = vmatprep.mubr.bf16.mxu0 0
    %765 = vmatmul.mubr.bf16.gmra.mrb[0].mxu0 %v664
    %v766 = vpop.f32.mrb[0].mxu0
    %v767 = vadd.f32 %v627, %v766
    %v768 = vpop.f32.mrb[0].mxu0
    %v769 = vadd.f32 %v631, %v768
    %v770 = vpop.f32.mrb[0].mxu0
    %v771 = vadd.f32 %v627, %v770
    %v772 = vpop.f32.mrb[0].mxu0
    %v773 = vadd.f32 %v631, %v772
    %774 = vmatprep.mubr.bf16.mxu0 0
    %775 = vmatmul.mubr.bf16.gmra.mrb[0].mxu0 %v667
    %v776 = vpop.f32.mrb[0].mxu0
    %v777 = vadd.f32 %v627, %v776
    %v778 = vpop.f32.mrb[0].mxu0
    %v779 = vadd.f32 %v631, %v778
    %v780 = vpop.f32.mrb[0].mxu0
    %v781 = vadd.f32 %v627, %v780
    %v782 = vpop.f32.mrb[0].mxu0
    %v783 = vadd.f32 %v631, %v782
    %784 = vmatprep.mubr.bf16.mxu0 0
    %785 = vmatmul.mubr.bf16.gmra.mrb[0].mxu0 %v670
    %v786 = vpop.f32.mrb[0].mxu0
    %v787 = vadd.f32 %v627, %v786
    %v788 = vpop.f32.mrb[0].mxu0
    %v789 = vadd.f32 %v631, %v788
    %v790 = vpop.f32.mrb[0].mxu0
    %v791 = vadd.f32 %v627, %v790
    %v792 = vpop.f32.mrb[0].mxu0
    %v793 = vadd.f32 %v631, %v792
    %794 = vmatprep.mubr.bf16.mxu0 0
    %795 = vmatmul.mubr.bf16.gmra.mrb[0].mxu0 %v673
    %v796 = vpop.f32.mrb[0].mxu0
    %v797 = vadd.f32 %v627, %v796
    %v798 = vpop.f32.mrb[0].mxu0
    %v799 = vadd.f32 %v631, %v798
    %v800 = vpop.f32.mrb[0].mxu0
    %v801 = vadd.f32 %v627, %v800
    %v802 = vpop.f32.mrb[0].mxu0
    %v803 = vadd.f32 %v631, %v802
    %804 = vmatprep.mubr.bf16.mxu0 0
    %805 = vmatmul.mubr.bf16.gmra.mrb[0].mxu0 %v676
    %v806 = vpop.f32.mrb[0].mxu0
    %v807 = vadd.f32 %v627, %v806
    %v808 = vpop.f32.mrb[0].mxu0
    %v809 = vadd.f32 %v631, %v808
    %v810 = vpop.f32.mrb[0].mxu0
    %v811 = vadd.f32 %v627, %v810
    %v812 = vpop.f32.mrb[0].mxu0
    %v813 = vadd.f32 %v631, %v812
    %814 = vmatprep.mubr.bf16.mxu0 0
    %815 = vmatmul.mubr.bf16.gmra.mrb[0].mxu0 %v679
    %v816 = vpop.f32.mrb[0].mxu0
    %v817 = vadd.f32 %v627, %v816
    %v818 = vpop.f32.mrb[0].mxu0
    %v819 = vadd.f32 %v631, %v818
    %v820 = vpop.f32.mrb[0].mxu0
    %v821 = vadd.f32 %v627, %v820
    %v822 = vpop.f32.mrb[0].mxu0
    %v823 = vadd.f32 %v631, %v822
    %824 = vmatprep.mubr.bf16.mxu0 0
    %825 = vmatmul.mubr.bf16.gmra.mrb[0].mxu0 %v682
    %v826 = vpop.f32.mrb[0].mxu0
    %v827 = vadd.f32 %v627, %v826
    %v828 = vpop.f32.mrb[0].mxu0
    %v829 = vadd.f32 %v631, %v828
    %v830 = vpop.f32.mrb[0].mxu0
    %v831 = vadd.f32 %v627, %v830
    %v832 = vpop.f32.mrb[0].mxu0
    %v833 = vadd.f32 %v631, %v832
    %834 = vmatprep.mubr.bf16.mxu0 0
    %835 = vmatmul.mubr.bf16.gmra.mrb[0].mxu0 %v685
    %v836 = vpop.f32.mrb[0].mxu0
    %v837 = vadd.f32 %v627, %v836
    %v838 = vpop.f32.mrb[0].mxu0
    %v839 = vadd.f32 %v631, %v838
    %v840 = vpop.f32.mrb[0].mxu0
    %v841 = vadd.f32 %v627, %v840
    %v842 = vpop.f32.mrb[0].mxu0
    %v843 = vadd.f32 %v631, %v842
    %844 = vmatprep.mubr.bf16.mxu0 0
    %845 = vmatmul.mubr.bf16.gmra.mrb[0].mxu0 %v688
    %v846 = vpop.f32.mrb[0].mxu0
    %v847 = vadd.f32 %v627, %v846
    %v848 = vpop.f32.mrb[0].mxu0
    %v849 = vadd.f32 %v631, %v848
    %v850 = vpop.f32.mrb[0].mxu0
    %v851 = vadd.f32 %v627, %v850
    %v852 = vpop.f32.mrb[0].mxu0
    %v853 = vadd.f32 %v631, %v852
    %854 = vmatprep.mubr.bf16.mxu0 0
    %855 = vmatmul.mubr.bf16.gmra.mrb[0].mxu0 %v691
    %v856 = vpop.f32.mrb[0].mxu0
    %v857 = vadd.f32 %v627, %v856
    %v858 = vpop.f32.mrb[0].mxu0
    %v859 = vadd.f32 %v631, %v858
    %v860 = vpop.f32.mrb[0].mxu0
    %v861 = vadd.f32 %v627, %v860
    %v862 = vpop.f32.mrb[0].mxu0
    %v863 = vadd.f32 %v631, %v862
    %864 = vmatprep.mubr.bf16.mxu0 0
    %865 = vmatmul.mubr.bf16.gmra.mrb[0].mxu0 %v694
    %v866 = vpop.f32.mrb[0].mxu0
    %v867 = vadd.f32 %v627, %v866
    %v868 = vpop.f32.mrb[0].mxu0
    %v869 = vadd.f32 %v631, %v868
    %v870 = vpop.f32.mrb[0].mxu0
    %v871 = vadd.f32 %v627, %v870
    %v872 = vpop.f32.mrb[0].mxu0
    %v873 = vadd.f32 %v631, %v872
    %874 = vmatprep.mubr.bf16.mxu0 0
    %875 = vmatmul.mubr.bf16.gmra.mrb[0].mxu0 %v697
    %v876 = vpop.f32.mrb[0].mxu0
    %v877 = vadd.f32 %v627, %v876
    %v878 = vpop.f32.mrb[0].mxu0
    %v879 = vadd.f32 %v631, %v878
    %v880 = vpop.f32.mrb[0].mxu0
    %v881 = vadd.f32 %v627, %v880
    %v882 = vpop.f32.mrb[0].mxu0
    %v883 = vadd.f32 %v631, %v882
    %884 = vmatprep.mubr.bf16.mxu0 0
    %885 = vmatmul.mubr.bf16.gmra.mrb[0].mxu0 %v700
    %v886 = vpop.f32.mrb[0].mxu0
    %v887 = vadd.f32 %v627, %v886
    %v888 = vpop.f32.mrb[0].mxu0
    %v889 = vadd.f32 %v631, %v888
    %v890 = vpop.f32.mrb[0].mxu0
    %v891 = vadd.f32 %v627, %v890
    %v892 = vpop.f32.mrb[0].mxu0
    %v893 = vadd.f32 %v631, %v892
    %894 = vdwg.mxu0
    %v895 = vmax.f32 %v737, 0.0
    %v896 = vmax.f32 %v739, 0.0
    %v897 = vmax.f32 %v741, 0.0
    %v898 = vmax.f32 %v743, 0.0
    %v899 = vmax.f32 %v747, 0.0
    %v900 = vmax.f32 %v749, 0.0
    %v901 = vmax.f32 %v751, 0.0
    %v902 = vmax.f32 %v753, 0.0
    %v903 = vmax.f32 %v757, 0.0
    %v904 = vmax.f32 %v759, 0.0
    %v905 = vmax.f32 %v761, 0.0
    %v906 = vmax.f32 %v763, 0.0
    %v907 = vmax.f32 %v767, 0.0
    %v908 = vmax.f32 %v769, 0.0
    %v909 = vmax.f32 %v771, 0.0
    %v910 = vmax.f32 %v773, 0.0
    %v911 = vmax.f32 %v777, 0.0
    %v912 = vmax.f32 %v779, 0.0
    %v913 = vmax.f32 %v781, 0.0
    %v914 = vmax.f32 %v783, 0.0
    %v915 = vmax.f32 %v787, 0.0
    %v916 = vmax.f32 %v789, 0.0
    %v917 = vmax.f32 %v791, 0.0
    %v918 = vmax.f32 %v793, 0.0
    %v919 = vmax.f32 %v797, 0.0
    %v920 = vmax.f32 %v799, 0.0
    %v921 = vmax.f32 %v801, 0.0
    %v922 = vmax.f32 %v803, 0.0
    %v923 = vmax.f32 %v807, 0.0
    %v924 = vmax.f32 %v809, 0.0
    %v925 = vmax.f32 %v811, 0.0
    %v926 = vmax.f32 %v813, 0.0
    %v927 = vmax.f32 %v817, 0.0
    %v928 = vmax.f32 %v819, 0.0
    %v929 = vmax.f32 %v821, 0.0
    %v930 = vmax.f32 %v823, 0.0
    %v931 = vmax.f32 %v827, 0.0
    %v932 = vmax.f32 %v829, 0.0
    %v933 = vmax.f32 %v831, 0.0
    %v934 = vmax.f32 %v833, 0.0
    %v935 = vmax.f32 %v837, 0.0
    %v936 = vmax.f32 %v839, 0.0
    %v937 = vmax.f32 %v841, 0.0
    %v938 = vmax.f32 %v843, 0.0
    %v939 = vmax.f32 %v847, 0.0
    %v940 = vmax.f32 %v849, 0.0
    %v941 = vmax.f32 %v851, 0.0
    %v942 = vmax.f32 %v853, 0.0
    %v943 = vmax.f32 %v857, 0.0
    %v944 = vmax.f32 %v859, 0.0
    %v945 = vmax.f32 %v861, 0.0
    %v946 = vmax.f32 %v863, 0.0
    %v947 = vmax.f32 %v867, 0.0
    %v948 = vmax.f32 %v869, 0.0
    %v949 = vmax.f32 %v871, 0.0
    %v950 = vmax.f32 %v873, 0.0
    %v951 = vmax.f32 %v877, 0.0
    %v952 = vmax.f32 %v879, 0.0
    %v953 = vmax.f32 %v881, 0.0
    %v954 = vmax.f32 %v883, 0.0
    %v955 = vmax.f32 %v887, 0.0
    %v956 = vmax.f32 %v889, 0.0
    %v957 = vmax.f32 %v891, 0.0
    %v958 = vmax.f32 %v893, 0.0
    %v959 = vld [vmem:[%s5] sm:$0x3]
    %v960 = vld [vmem:[%s6] sm:$0x3]
    %v961 = vadd.f32 %v895, %v896
    %962 = vadd.xlane.f32.xlu0 %v961
    %v963 = vpop.xlane.xlu0 %962
    %v964 = vadd.f32 %v897, %v898
    %965 = vadd.xlane.f32.xlu0 %v964
    %v966 = vpop.xlane.xlu0 %965
    %v967 = vadd.f32 %v899, %v900
    %968 = vadd.xlane.f32.xlu0 %v967
    %v969 = vpop.xlane.xlu0 %968
    %v970 = vadd.f32 %v901, %v902
    %971 = vadd.xlane.f32.xlu0 %v970
    %v972 = vpop.xlane.xlu0 %971
    %v973 = vadd.f32 %v903, %v904
    %974 = vadd.xlane.f32.xlu0 %v973
    %v975 = vpop.xlane.xlu0 %974
    %v976 = vadd.f32 %v905, %v906
    %977 = vadd.xlane.f32.xlu0 %v976
    %v978 = vpop.xlane.xlu0 %977
    %v979 = vadd.f32 %v907, %v908
    %980 = vadd.xlane.f32.xlu0 %v979
    %v981 = vpop.xlane.xlu0 %980
    %v982 = vadd.f32 %v909, %v910
    %983 = vadd.xlane.f32.xlu0 %v982
    %v984 = vpop.xlane.xlu0 %983
    %v985 = vadd.f32 %v911, %v912
    %986 = vadd.xlane.f32.xlu0 %v985
    %v987 = vpop.xlane.xlu0 %986
    %v988 = vadd.f32 %v913, %v914
    %989 = vadd.xlane.f32.xlu0 %v988
    %v990 = vpop.xlane.xlu0 %989
    %v991 = vadd.f32 %v915, %v916
    %992 = vadd.xlane.f32.xlu0 %v991
    %v993 = vpop.xlane.xlu0 %992
    %v994 = vadd.f32 %v917, %v918
    %995 = vadd.xlane.f32.xlu0 %v994
    %v996 = vpop.xlane.xlu0 %995
    %v997 = vadd.f32 %v919, %v920
    %998 = vadd.xlane.f32.xlu0 %v997
    %v999 = vpop.xlane.xlu0 %998
    %v1000 = vadd.f32 %v921, %v922
    %1001 = vadd.xlane.f32.xlu0 %v1000
    %v1002 = vpop.xlane.xlu0 %1001
    %v1003 = vadd.f32 %v923, %v924
    %1004 = vadd.xlane.f32.xlu0 %v1003
    %v1005 = vpop.xlane.xlu0 %1004
    %v1006 = vadd.f32 %v925, %v926
    %1007 = vadd.xlane.f32.xlu0 %v1006
    %v1008 = vpop.xlane.xlu0 %1007
    %v1009 = vadd.f32 %v927, %v928
    %1010 = vadd.xlane.f32.xlu0 %v1009
    %v1011 = vpop.xlane.xlu0 %1010
    %v1012 = vadd.f32 %v929, %v930
    %1013 = vadd.xlane.f32.xlu0 %v1012
    %v1014 = vpop.xlane.xlu0 %1013
    %v1015 = vadd.f32 %v931, %v932
    %1016 = vadd.xlane.f32.xlu0 %v1015
    %v1017 = vpop.xlane.xlu0 %1016
    %v1018 = vadd.f32 %v933, %v934
    %1019 = vadd.xlane.f32.xlu0 %v1018
    %v1020 = vpop.xlane.xlu0 %1019
    %v1021 = vadd.f32 %v935, %v936
    %1022 = vadd.xlane.f32.xlu0 %v1021
    %v1023 = vpop.xlane.xlu0 %1022
    %v1024 = vadd.f32 %v937, %v938
    %1025 = vadd.xlane.f32.xlu0 %v1024
    %v1026 = vpop.xlane.xlu0 %1025
    %v1027 = vadd.f32 %v939, %v940
    %1028 = vadd.xlane.f32.xlu0 %v1027
    %v1029 = vpop.xlane.xlu0 %1028
    %v1030 = vadd.f32 %v941, %v942
    %1031 = vadd.xlane.f32.xlu0 %v1030
    %v1032 = vpop.xlane.xlu0 %1031
    %v1033 = vadd.f32 %v943, %v944
    %1034 = vadd.xlane.f32.xlu0 %v1033
    %v1035 = vpop.xlane.xlu0 %1034
    %v1036 = vadd.f32 %v945, %v946
    %1037 = vadd.xlane.f32.xlu0 %v1036
    %v1038 = vpop.xlane.xlu0 %1037
    %v1039 = vadd.f32 %v947, %v948
    %1040 = vadd.xlane.f32.xlu0 %v1039
    %v1041 = vpop.xlane.xlu0 %1040
    %v1042 = vadd.f32 %v949, %v950
    %1043 = vadd.xlane.f32.xlu0 %v1042
    %v1044 = vpop.xlane.xlu0 %1043
    %v1045 = vadd.f32 %v951, %v952
    %1046 = vadd.xlane.f32.xlu0 %v1045
    %v1047 = vpop.xlane.xlu0 %1046
    %v1048 = vadd.f32 %v953, %v954
    %1049 = vadd.xlane.f32.xlu0 %v1048
    %v1050 = vpop.xlane.xlu0 %1049
    %v1051 = vadd.f32 %v955, %v956
    %1052 = vadd.xlane.f32.xlu0 %v1051
    %v1053 = vpop.xlane.xlu0 %1052
    %v1054 = vadd.f32 %v957, %v958
    %1055 = vadd.xlane.f32.xlu0 %v1054
    %v1056 = vpop.xlane.xlu0 %1055
    %v1057 = vrcp.pop 256.0
    %v1058 = vmul.f32 %v963, %v1057
    %v1059 = vmul.f32 %v966, %v1057
    %v1060 = vmul.f32 %v969, %v1057
    %v1061 = vmul.f32 %v972, %v1057
    %v1062 = vmul.f32 %v975, %v1057
    %v1063 = vmul.f32 %v978, %v1057
    %v1064 = vmul.f32 %v981, %v1057
    %v1065 = vmul.f32 %v984, %v1057
    %v1066 = vmul.f32 %v987, %v1057
    %v1067 = vmul.f32 %v990, %v1057
    %v1068 = vmul.f32 %v993, %v1057
    %v1069 = vmul.f32 %v996, %v1057
    %v1070 = vmul.f32 %v999, %v1057
    %v1071 = vmul.f32 %v1002, %v1057
    %v1072 = vmul.f32 %v1005, %v1057
    %v1073 = vmul.f32 %v1008, %v1057
    %v1074 = vmul.f32 %v1011, %v1057
    %v1075 = vmul.f32 %v1014, %v1057
    %v1076 = vmul.f32 %v1017, %v1057
    %v1077 = vmul.f32 %v1020, %v1057
    %v1078 = vmul.f32 %v1023, %v1057
    %v1079 = vmul.f32 %v1026, %v1057
    %v1080 = vmul.f32 %v1029, %v1057
    %v1081 = vmul.f32 %v1032, %v1057
    %v1082 = vmul.f32 %v1035, %v1057
    %v1083 = vmul.f32 %v1038, %v1057
    %v1084 = vmul.f32 %v1041, %v1057
    %v1085 = vmul.f32 %v1044, %v1057
    %v1086 = vmul.f32 %v1047, %v1057
    %v1087 = vmul.f32 %v1050, %v1057
    %v1088 = vmul.f32 %v1053, %v1057
    %v1089 = vmul.f32 %v1056, %v1057
    %v1090 = vsub.f32 %v895, %v1058
    %v1091 = vsub.f32 %v896, %v1058
    %v1092 = vsub.f32 %v897, %v1059
    %v1093 = vsub.f32 %v898, %v1059
    %v1094 = vsub.f32 %v899, %v1060
    %v1095 = vsub.f32 %v900, %v1060
    %v1096 = vsub.f32 %v901, %v1061
    %v1097 = vsub.f32 %v902, %v1061
    %v1098 = vsub.f32 %v903, %v1062
    %v1099 = vsub.f32 %v904, %v1062
    %v1100 = vsub.f32 %v905, %v1063
    %v1101 = vsub.f32 %v906, %v1063
    %v1102 = vsub.f32 %v907, %v1064
    %v1103 = vsub.f32 %v908, %v1064
    %v1104 = vsub.f32 %v909, %v1065
    %v1105 = vsub.f32 %v910, %v1065
    %v1106 = vsub.f32 %v911, %v1066
    %v1107 = vsub.f32 %v912, %v1066
    %v1108 = vsub.f32 %v913, %v1067
    %v1109 = vsub.f32 %v914, %v1067
    %v1110 = vsub.f32 %v915, %v1068
    %v1111 = vsub.f32 %v916, %v1068
    %v1112 = vsub.f32 %v917, %v1069
    %v1113 = vsub.f32 %v918, %v1069
    %v1114 = vsub.f32 %v919, %v1070
    %v1115 = vsub.f32 %v920, %v1070
    %v1116 = vsub.f32 %v921, %v1071
    %v1117 = vsub.f32 %v922, %v1071
    %v1118 = vsub.f32 %v923, %v1072
    %v1119 = vsub.f32 %v924, %v1072
    %v1120 = vsub.f32 %v925, %v1073
    %v1121 = vsub.f32 %v926, %v1073
    %v1122 = vsub.f32 %v927, %v1074
    %v1123 = vsub.f32 %v928, %v1074
    %v1124 = vsub.f32 %v929, %v1075
    %v1125 = vsub.f32 %v930, %v1075
    %v1126 = vsub.f32 %v931, %v1076
    %v1127 = vsub.f32 %v932, %v1076
    %v1128 = vsub.f32 %v933, %v1077
    %v1129 = vsub.f32 %v934, %v1077
    %v1130 = vsub.f32 %v935, %v1078
    %v1131 = vsub.f32 %v936, %v1078
    %v1132 = vsub.f32 %v937, %v1079
    %v1133 = vsub.f32 %v938, %v1079
    %v1134 = vsub.f32 %v939, %v1080
    %v1135 = vsub.f32 %v940, %v1080
    %v1136 = vsub.f32 %v941, %v1081
    %v1137 = vsub.f32 %v942, %v1081
    %v1138 = vsub.f32 %v943, %v1082
    %v1139 = vsub.f32 %v944, %v1082
    %v1140 = vsub.f32 %v945, %v1083
    %v1141 = vsub.f32 %v946, %v1083
    %v1142 = vsub.f32 %v947, %v1084
    %v1143 = vsub.f32 %v948, %v1084
    %v1144 = vsub.f32 %v949, %v1085
    %v1145 = vsub.f32 %v950, %v1085
    %v1146 = vsub.f32 %v951, %v1086
    %v1147 = vsub.f32 %v952, %v1086
    %v1148 = vsub.f32 %v953, %v1087
    %v1149 = vsub.f32 %v954, %v1087
    %v1150 = vsub.f32 %v955, %v1088
    %v1151 = vsub.f32 %v956, %v1088
    %v1152 = vsub.f32 %v957, %v1089
    %v1153 = vsub.f32 %v958, %v1089
    %v1154 = vmul.f32 %v1090, %v1090
    %v1155 = vmul.f32 %v1091, %v1091
    %v1156 = vmul.f32 %v1092, %v1092
    %v1157 = vmul.f32 %v1093, %v1093
    %v1158 = vmul.f32 %v1094, %v1094
    %v1159 = vmul.f32 %v1095, %v1095
    %v1160 = vmul.f32 %v1096, %v1096
    %v1161 = vmul.f32 %v1097, %v1097
    %v1162 = vmul.f32 %v1098, %v1098
    %v1163 = vmul.f32 %v1099, %v1099
    %v1164 = vmul.f32 %v1100, %v1100
    %v1165 = vmul.f32 %v1101, %v1101
    %v1166 = vmul.f32 %v1102, %v1102
    %v1167 = vmul.f32 %v1103, %v1103
    %v1168 = vmul.f32 %v1104, %v1104
    %v1169 = vmul.f32 %v1105, %v1105
    %v1170 = vmul.f32 %v1106, %v1106
    %v1171 = vmul.f32 %v1107, %v1107
    %v1172 = vmul.f32 %v1108, %v1108
    %v1173 = vmul.f32 %v1109, %v1109
    %v1174 = vmul.f32 %v1110, %v1110
    %v1175 = vmul.f32 %v1111, %v1111
    %v1176 = vmul.f32 %v1112, %v1112
    %v1177 = vmul.f32 %v1113, %v1113
    %v1178 = vmul.f32 %v1114, %v1114
    %v1179 = vmul.f32 %v1115, %v1115
    %v1180 = vmul.f32 %v1116, %v1116
    %v1181 = vmul.f32 %v1117, %v1117
    %v1182 = vmul.f32 %v1118, %v1118
    %v1183 = vmul.f32 %v1119, %v1119
    %v1184 = vmul.f32 %v1120, %v1120
    %v1185 = vmul.f32 %v1121, %v1121
    %v1186 = vmul.f32 %v1122, %v1122
    %v1187 = vmul.f32 %v1123, %v1123
    %v1188 = vmul.f32 %v1124, %v1124
    %v1189 = vmul.f32 %v1125, %v1125
    %v1190 = vmul.f32 %v1126, %v1126
    %v1191 = vmul.f32 %v1127, %v1127
    %v1192 = vmul.f32 %v1128, %v1128
    %v1193 = vmul.f32 %v1129, %v1129
    %v1194 = vmul.f32 %v1130, %v1130
    %v1195 = vmul.f32 %v1131, %v1131
    %v1196 = vmul.f32 %v1132, %v1132
    %v1197 = vmul.f32 %v1133, %v1133
    %v1198 = vmul.f32 %v1134, %v1134
    %v1199 = vmul.f32 %v1135, %v1135
    %v1200 = vmul.f32 %v1136, %v1136
    %v1201 = vmul.f32 %v1137, %v1137
    %v1202 = vmul.f32 %v1138, %v1138
    %v1203 = vmul.f32 %v1139, %v1139
    %v1204 = vmul.f32 %v1140, %v1140
    %v1205 = vmul.f32 %v1141, %v1141
    %v1206 = vmul.f32 %v1142, %v1142
    %v1207 = vmul.f32 %v1143, %v1143
    %v1208 = vmul.f32 %v1144, %v1144
    %v1209 = vmul.f32 %v1145, %v1145
    %v1210 = vmul.f32 %v1146, %v1146
    %v1211 = vmul.f32 %v1147, %v1147
    %v1212 = vmul.f32 %v1148, %v1148
    %v1213 = vmul.f32 %v1149, %v1149
    %v1214 = vmul.f32 %v1150, %v1150
    %v1215 = vmul.f32 %v1151, %v1151
    %v1216 = vmul.f32 %v1152, %v1152
    %v1217 = vmul.f32 %v1153, %v1153
    %v1218 = vadd.f32 %v1154, %v1155
    %1219 = vadd.xlane.f32.xlu0 %v1218
    %v1220 = vpop.xlane.xlu0 %1219
    %v1221 = vadd.f32 %v1156, %v1157
    %1222 = vadd.xlane.f32.xlu0 %v1221
    %v1223 = vpop.xlane.xlu0 %1222
    %v1224 = vadd.f32 %v1158, %v1159
    %1225 = vadd.xlane.f32.xlu0 %v1224
    %v1226 = vpop.xlane.xlu0 %1225
    %v1227 = vadd.f32 %v1160, %v1161
    %1228 = vadd.xlane.f32.xlu0 %v1227
    %v1229 = vpop.xlane.xlu0 %1228
    %v1230 = vadd.f32 %v1162, %v1163
    %1231 = vadd.xlane.f32.xlu0 %v1230
    %v1232 = vpop.xlane.xlu0 %1231
    %v1233 = vadd.f32 %v1164, %v1165
    %1234 = vadd.xlane.f32.xlu0 %v1233
    %v1235 = vpop.xlane.xlu0 %1234
    %v1236 = vadd.f32 %v1166, %v1167
    %1237 = vadd.xlane.f32.xlu0 %v1236
    %v1238 = vpop.xlane.xlu0 %1237
    %v1239 = vadd.f32 %v1168, %v1169
    %1240 = vadd.xlane.f32.xlu0 %v1239
    %v1241 = vpop.xlane.xlu0 %1240
    %v1242 = vadd.f32 %v1170, %v1171
    %1243 = vadd.xlane.f32.xlu0 %v1242
    %v1244 = vpop.xlane.xlu0 %1243
    %v1245 = vadd.f32 %v1172, %v1173
    %1246 = vadd.xlane.f32.xlu0 %v1245
    %v1247 = vpop.xlane.xlu0 %1246
    %v1248 = vadd.f32 %v1174, %v1175
    %1249 = vadd.xlane.f32.xlu0 %v1248
    %v1250 = vpop.xlane.xlu0 %1249
    %v1251 = vadd.f32 %v1176, %v1177
    %1252 = vadd.xlane.f32.xlu0 %v1251
    %v1253 = vpop.xlane.xlu0 %1252
    %v1254 = vadd.f32 %v1178, %v1179
    %1255 = vadd.xlane.f32.xlu0 %v1254
    %v1256 = vpop.xlane.xlu0 %1255
    %v1257 = vadd.f32 %v1180, %v1181
    %1258 = vadd.xlane.f32.xlu0 %v1257
    %v1259 = vpop.xlane.xlu0 %1258
    %v1260 = vadd.f32 %v1182, %v1183
    %1261 = vadd.xlane.f32.xlu0 %v1260
    %v1262 = vpop.xlane.xlu0 %1261
    %v1263 = vadd.f32 %v1184, %v1185
    %1264 = vadd.xlane.f32.xlu0 %v1263
    %v1265 = vpop.xlane.xlu0 %1264
    %v1266 = vadd.f32 %v1186, %v1187
    %1267 = vadd.xlane.f32.xlu0 %v1266
    %v1268 = vpop.xlane.xlu0 %1267
    %v1269 = vadd.f32 %v1188, %v1189
    %1270 = vadd.xlane.f32.xlu0 %v1269
    %v1271 = vpop.xlane.xlu0 %1270
    %v1272 = vadd.f32 %v1190, %v1191
    %1273 = vadd.xlane.f32.xlu0 %v1272
    %v1274 = vpop.xlane.xlu0 %1273
    %v1275 = vadd.f32 %v1192, %v1193
    %1276 = vadd.xlane.f32.xlu0 %v1275
    %v1277 = vpop.xlane.xlu0 %1276
    %v1278 = vadd.f32 %v1194, %v1195
    %1279 = vadd.xlane.f32.xlu0 %v1278
    %v1280 = vpop.xlane.xlu0 %1279
    %v1281 = vadd.f32 %v1196, %v1197
    %1282 = vadd.xlane.f32.xlu0 %v1281
    %v1283 = vpop.xlane.xlu0 %1282
    %v1284 = vadd.f32 %v1198, %v1199
    %1285 = vadd.xlane.f32.xlu0 %v1284
    %v1286 = vpop.xlane.xlu0 %1285
    %v1287 = vadd.f32 %v1200, %v1201
    %1288 = vadd.xlane.f32.xlu0 %v1287
    %v1289 = vpop.xlane.xlu0 %1288
    %v1290 = vadd.f32 %v1202, %v1203
    %1291 = vadd.xlane.f32.xlu0 %v1290
    %v1292 = vpop.xlane.xlu0 %1291
    %v1293 = vadd.f32 %v1204, %v1205
    %1294 = vadd.xlane.f32.xlu0 %v1293
    %v1295 = vpop.xlane.xlu0 %1294
    %v1296 = vadd.f32 %v1206, %v1207
    %1297 = vadd.xlane.f32.xlu0 %v1296
    %v1298 = vpop.xlane.xlu0 %1297
    %v1299 = vadd.f32 %v1208, %v1209
    %1300 = vadd.xlane.f32.xlu0 %v1299
    %v1301 = vpop.xlane.xlu0 %1300
    %v1302 = vadd.f32 %v1210, %v1211
    %1303 = vadd.xlane.f32.xlu0 %v1302
    %v1304 = vpop.xlane.xlu0 %1303
    %v1305 = vadd.f32 %v1212, %v1213
    %1306 = vadd.xlane.f32.xlu0 %v1305
    %v1307 = vpop.xlane.xlu0 %1306
    %v1308 = vadd.f32 %v1214, %v1215
    %1309 = vadd.xlane.f32.xlu0 %v1308
    %v1310 = vpop.xlane.xlu0 %1309
    %v1311 = vadd.f32 %v1216, %v1217
    %1312 = vadd.xlane.f32.xlu0 %v1311
    %v1313 = vpop.xlane.xlu0 %1312
    %v1314 = vmul.f32 %v1220, %v1057
    %v1315 = vmul.f32 %v1223, %v1057
    %v1316 = vmul.f32 %v1226, %v1057
    %v1317 = vmul.f32 %v1229, %v1057
    %v1318 = vmul.f32 %v1232, %v1057
    %v1319 = vmul.f32 %v1235, %v1057
    %v1320 = vmul.f32 %v1238, %v1057
    %v1321 = vmul.f32 %v1241, %v1057
    %v1322 = vmul.f32 %v1244, %v1057
    %v1323 = vmul.f32 %v1247, %v1057
    %v1324 = vmul.f32 %v1250, %v1057
    %v1325 = vmul.f32 %v1253, %v1057
    %v1326 = vmul.f32 %v1256, %v1057
    %v1327 = vmul.f32 %v1259, %v1057
    %v1328 = vmul.f32 %v1262, %v1057
    %v1329 = vmul.f32 %v1265, %v1057
    %v1330 = vmul.f32 %v1268, %v1057
    %v1331 = vmul.f32 %v1271, %v1057
    %v1332 = vmul.f32 %v1274, %v1057
    %v1333 = vmul.f32 %v1277, %v1057
    %v1334 = vmul.f32 %v1280, %v1057
    %v1335 = vmul.f32 %v1283, %v1057
    %v1336 = vmul.f32 %v1286, %v1057
    %v1337 = vmul.f32 %v1289, %v1057
    %v1338 = vmul.f32 %v1292, %v1057
    %v1339 = vmul.f32 %v1295, %v1057
    %v1340 = vmul.f32 %v1298, %v1057
    %v1341 = vmul.f32 %v1301, %v1057
    %v1342 = vmul.f32 %v1304, %v1057
    %v1343 = vmul.f32 %v1307, %v1057
    %v1344 = vmul.f32 %v1310, %v1057
    %v1345 = vmul.f32 %v1313, %v1057
    %v1346 = vadd.f32 %v1314, 1e-05
    %v1347 = vadd.f32 %v1315, 1e-05
    %v1348 = vadd.f32 %v1316, 1e-05
    %v1349 = vadd.f32 %v1317, 1e-05
    %v1350 = vadd.f32 %v1318, 1e-05
    %v1351 = vadd.f32 %v1319, 1e-05
    %v1352 = vadd.f32 %v1320, 1e-05
    %v1353 = vadd.f32 %v1321, 1e-05
    %v1354 = vadd.f32 %v1322, 1e-05
    %v1355 = vadd.f32 %v1323, 1e-05
    %v1356 = vadd.f32 %v1324, 1e-05
    %v1357 = vadd.f32 %v1325, 1e-05
    %v1358 = vadd.f32 %v1326, 1e-05
    %v1359 = vadd.f32 %v1327, 1e-05
    %v1360 = vadd.f32 %v1328, 1e-05
    %v1361 = vadd.f32 %v1329, 1e-05
    %v1362 = vadd.f32 %v1330, 1e-05
    %v1363 = vadd.f32 %v1331, 1e-05
    %v1364 = vadd.f32 %v1332, 1e-05
    %v1365 = vadd.f32 %v1333, 1e-05
    %v1366 = vadd.f32 %v1334, 1e-05
    %v1367 = vadd.f32 %v1335, 1e-05
    %v1368 = vadd.f32 %v1336, 1e-05
    %v1369 = vadd.f32 %v1337, 1e-05
    %v1370 = vadd.f32 %v1338, 1e-05
    %v1371 = vadd.f32 %v1339, 1e-05
    %v1372 = vadd.f32 %v1340, 1e-05
    %v1373 = vadd.f32 %v1341, 1e-05
    %v1374 = vadd.f32 %v1342, 1e-05
    %v1375 = vadd.f32 %v1343, 1e-05
    %v1376 = vadd.f32 %v1344, 1e-05
    %v1377 = vadd.f32 %v1345, 1e-05
    %v1378 = vrsqrt.pop %v1346
    %v1379 = vrsqrt.pop %v1347
    %v1380 = vrsqrt.pop %v1348
    %v1381 = vrsqrt.pop %v1349
    %v1382 = vrsqrt.pop %v1350
    %v1383 = vrsqrt.pop %v1351
    %v1384 = vrsqrt.pop %v1352
    %v1385 = vrsqrt.pop %v1353
    %v1386 = vrsqrt.pop %v1354
    %v1387 = vrsqrt.pop %v1355
    %v1388 = vrsqrt.pop %v1356
    %v1389 = vrsqrt.pop %v1357
    %v1390 = vrsqrt.pop %v1358
    %v1391 = vrsqrt.pop %v1359
    %v1392 = vrsqrt.pop %v1360
    %v1393 = vrsqrt.pop %v1361
    %v1394 = vrsqrt.pop %v1362
    %v1395 = vrsqrt.pop %v1363
    %v1396 = vrsqrt.pop %v1364
    %v1397 = vrsqrt.pop %v1365
    %v1398 = vrsqrt.pop %v1366
    %v1399 = vrsqrt.pop %v1367
    %v1400 = vrsqrt.pop %v1368
    %v1401 = vrsqrt.pop %v1369
    %v1402 = vrsqrt.pop %v1370
    %v1403 = vrsqrt.pop %v1371
    %v1404 = vrsqrt.pop %v1372
    %v1405 = vrsqrt.pop %v1373
    %v1406 = vrsqrt.pop %v1374
    %v1407 = vrsqrt.pop %v1375
    %v1408 = vrsqrt.pop %v1376
    %v1409 = vrsqrt.pop %v1377
    %v1410 = vmul.f32 %v1090, %v1378
    %v1411 = vmul.f32 %v1091, %v1378
    %v1412 = vmul.f32 %v1092, %v1379
    %v1413 = vmul.f32 %v1093, %v1379
    %v1414 = vmul.f32 %v1094, %v1380
    %v1415 = vmul.f32 %v1095, %v1380
    %v1416 = vmul.f32 %v1096, %v1381
    %v1417 = vmul.f32 %v1097, %v1381
    %v1418 = vmul.f32 %v1098, %v1382
    %v1419 = vmul.f32 %v1099, %v1382
    %v1420 = vmul.f32 %v1100, %v1383
    %v1421 = vmul.f32 %v1101, %v1383
    %v1422 = vmul.f32 %v1102, %v1384
    %v1423 = vmul.f32 %v1103, %v1384
    %v1424 = vmul.f32 %v1104, %v1385
    %v1425 = vmul.f32 %v1105, %v1385
    %v1426 = vmul.f32 %v1106, %v1386
    %v1427 = vmul.f32 %v1107, %v1386
    %v1428 = vmul.f32 %v1108, %v1387
    %v1429 = vmul.f32 %v1109, %v1387
    %v1430 = vmul.f32 %v1110, %v1388
    %v1431 = vmul.f32 %v1111, %v1388
    %v1432 = vmul.f32 %v1112, %v1389
    %v1433 = vmul.f32 %v1113, %v1389
    %v1434 = vmul.f32 %v1114, %v1390
    %v1435 = vmul.f32 %v1115, %v1390
    %v1436 = vmul.f32 %v1116, %v1391
    %v1437 = vmul.f32 %v1117, %v1391
    %v1438 = vmul.f32 %v1118, %v1392
    %v1439 = vmul.f32 %v1119, %v1392
    %v1440 = vmul.f32 %v1120, %v1393
    %v1441 = vmul.f32 %v1121, %v1393
    %v1442 = vmul.f32 %v1122, %v1394
    %v1443 = vmul.f32 %v1123, %v1394
    %v1444 = vmul.f32 %v1124, %v1395
    %v1445 = vmul.f32 %v1125, %v1395
    %v1446 = vmul.f32 %v1126, %v1396
    %v1447 = vmul.f32 %v1127, %v1396
    %v1448 = vmul.f32 %v1128, %v1397
    %v1449 = vmul.f32 %v1129, %v1397
    %v1450 = vmul.f32 %v1130, %v1398
    %v1451 = vmul.f32 %v1131, %v1398
    %v1452 = vmul.f32 %v1132, %v1399
    %v1453 = vmul.f32 %v1133, %v1399
    %v1454 = vmul.f32 %v1134, %v1400
    %v1455 = vmul.f32 %v1135, %v1400
    %v1456 = vmul.f32 %v1136, %v1401
    %v1457 = vmul.f32 %v1137, %v1401
    %v1458 = vmul.f32 %v1138, %v1402
    %v1459 = vmul.f32 %v1139, %v1402
    %v1460 = vmul.f32 %v1140, %v1403
    %v1461 = vmul.f32 %v1141, %v1403
    %v1462 = vmul.f32 %v1142, %v1404
    %v1463 = vmul.f32 %v1143, %v1404
    %v1464 = vmul.f32 %v1144, %v1405
    %v1465 = vmul.f32 %v1145, %v1405
    %v1466 = vmul.f32 %v1146, %v1406
    %v1467 = vmul.f32 %v1147, %v1406
    %v1468 = vmul.f32 %v1148, %v1407
    %v1469 = vmul.f32 %v1149, %v1407
    %v1470 = vmul.f32 %v1150, %v1408
    %v1471 = vmul.f32 %v1151, %v1408
    %v1472 = vmul.f32 %v1152, %v1409
    %v1473 = vmul.f32 %v1153, %v1409
    %v1475 = vlaneseq
    %v1476 = vshrl.u32 %v1475, 7
    %v1477 = vsub.s32 0, %v1476
    %v1478 = vrot.slane %v959, %v1477
    %v1479 = vlaneseq
    %v1480 = vshrl.u32 %v1479, 7
    %v1481 = vsub.s32 1, %v1480
    %v1482 = vrot.slane %v959, %v1481
    %v1485 = vmul.f32 %v1410, %v1478
    %v1486 = vmul.f32 %v1411, %v1482
    %v1487 = vmul.f32 %v1412, %v1478
    %v1488 = vmul.f32 %v1413, %v1482
    %v1489 = vmul.f32 %v1414, %v1478
    %v1490 = vmul.f32 %v1415, %v1482
    %v1491 = vmul.f32 %v1416, %v1478
    %v1492 = vmul.f32 %v1417, %v1482
    %v1493 = vmul.f32 %v1418, %v1478
    %v1494 = vmul.f32 %v1419, %v1482
    %v1495 = vmul.f32 %v1420, %v1478
    %v1496 = vmul.f32 %v1421, %v1482
    %v1497 = vmul.f32 %v1422, %v1478
    %v1498 = vmul.f32 %v1423, %v1482
    %v1499 = vmul.f32 %v1424, %v1478
    %v1500 = vmul.f32 %v1425, %v1482
    %v1501 = vmul.f32 %v1426, %v1478
    %v1502 = vmul.f32 %v1427, %v1482
    %v1503 = vmul.f32 %v1428, %v1478
    %v1504 = vmul.f32 %v1429, %v1482
    %v1505 = vmul.f32 %v1430, %v1478
    %v1506 = vmul.f32 %v1431, %v1482
    %v1507 = vmul.f32 %v1432, %v1478
    %v1508 = vmul.f32 %v1433, %v1482
    %v1509 = vmul.f32 %v1434, %v1478
    %v1510 = vmul.f32 %v1435, %v1482
    %v1511 = vmul.f32 %v1436, %v1478
    %v1512 = vmul.f32 %v1437, %v1482
    %v1513 = vmul.f32 %v1438, %v1478
    %v1514 = vmul.f32 %v1439, %v1482
    %v1515 = vmul.f32 %v1440, %v1478
    %v1516 = vmul.f32 %v1441, %v1482
    %v1517 = vmul.f32 %v1442, %v1478
    %v1518 = vmul.f32 %v1443, %v1482
    %v1519 = vmul.f32 %v1444, %v1478
    %v1520 = vmul.f32 %v1445, %v1482
    %v1521 = vmul.f32 %v1446, %v1478
    %v1522 = vmul.f32 %v1447, %v1482
    %v1523 = vmul.f32 %v1448, %v1478
    %v1524 = vmul.f32 %v1449, %v1482
    %v1525 = vmul.f32 %v1450, %v1478
    %v1526 = vmul.f32 %v1451, %v1482
    %v1527 = vmul.f32 %v1452, %v1478
    %v1528 = vmul.f32 %v1453, %v1482
    %v1529 = vmul.f32 %v1454, %v1478
    %v1530 = vmul.f32 %v1455, %v1482
    %v1531 = vmul.f32 %v1456, %v1478
    %v1532 = vmul.f32 %v1457, %v1482
    %v1533 = vmul.f32 %v1458, %v1478
    %v1534 = vmul.f32 %v1459, %v1482
    %v1535 = vmul.f32 %v1460, %v1478
    %v1536 = vmul.f32 %v1461, %v1482
    %v1537 = vmul.f32 %v1462, %v1478
    %v1538 = vmul.f32 %v1463, %v1482
    %v1539 = vmul.f32 %v1464, %v1478
    %v1540 = vmul.f32 %v1465, %v1482
    %v1541 = vmul.f32 %v1466, %v1478
    %v1542 = vmul.f32 %v1467, %v1482
    %v1543 = vmul.f32 %v1468, %v1478
    %v1544 = vmul.f32 %v1469, %v1482
    %v1545 = vmul.f32 %v1470, %v1478
    %v1546 = vmul.f32 %v1471, %v1482
    %v1547 = vmul.f32 %v1472, %v1478
    %v1548 = vmul.f32 %v1473, %v1482
    %v1550 = vlaneseq
    %v1551 = vshrl.u32 %v1550, 7
    %v1552 = vsub.s32 0, %v1551
    %v1553 = vrot.slane %v960, %v1552
    %v1554 = vlaneseq
    %v1555 = vshrl.u32 %v1554, 7
    %v1556 = vsub.s32 1, %v1555
    %v1557 = vrot.slane %v960, %v1556
    %v1560 = vadd.f32 %v1485, %v1553
    %v1561 = vadd.f32 %v1486, %v1557
    %v1562 = vadd.f32 %v1487, %v1553
    %v1563 = vadd.f32 %v1488, %v1557
    %v1564 = vadd.f32 %v1489, %v1553
    %v1565 = vadd.f32 %v1490, %v1557
    %v1566 = vadd.f32 %v1491, %v1553
    %v1567 = vadd.f32 %v1492, %v1557
    %v1568 = vadd.f32 %v1493, %v1553
    %v1569 = vadd.f32 %v1494, %v1557
    %v1570 = vadd.f32 %v1495, %v1553
    %v1571 = vadd.f32 %v1496, %v1557
    %v1572 = vadd.f32 %v1497, %v1553
    %v1573 = vadd.f32 %v1498, %v1557
    %v1574 = vadd.f32 %v1499, %v1553
    %v1575 = vadd.f32 %v1500, %v1557
    %v1576 = vadd.f32 %v1501, %v1553
    %v1577 = vadd.f32 %v1502, %v1557
    %v1578 = vadd.f32 %v1503, %v1553
    %v1579 = vadd.f32 %v1504, %v1557
    %v1580 = vadd.f32 %v1505, %v1553
    %v1581 = vadd.f32 %v1506, %v1557
    %v1582 = vadd.f32 %v1507, %v1553
    %v1583 = vadd.f32 %v1508, %v1557
    %v1584 = vadd.f32 %v1509, %v1553
    %v1585 = vadd.f32 %v1510, %v1557
    %v1586 = vadd.f32 %v1511, %v1553
    %v1587 = vadd.f32 %v1512, %v1557
    %v1588 = vadd.f32 %v1513, %v1553
    %v1589 = vadd.f32 %v1514, %v1557
    %v1590 = vadd.f32 %v1515, %v1553
    %v1591 = vadd.f32 %v1516, %v1557
    %v1592 = vadd.f32 %v1517, %v1553
    %v1593 = vadd.f32 %v1518, %v1557
    %v1594 = vadd.f32 %v1519, %v1553
    %v1595 = vadd.f32 %v1520, %v1557
    %v1596 = vadd.f32 %v1521, %v1553
    %v1597 = vadd.f32 %v1522, %v1557
    %v1598 = vadd.f32 %v1523, %v1553
    %v1599 = vadd.f32 %v1524, %v1557
    %v1600 = vadd.f32 %v1525, %v1553
    %v1601 = vadd.f32 %v1526, %v1557
    %v1602 = vadd.f32 %v1527, %v1553
    %v1603 = vadd.f32 %v1528, %v1557
    %v1604 = vadd.f32 %v1529, %v1553
    %v1605 = vadd.f32 %v1530, %v1557
    %v1606 = vadd.f32 %v1531, %v1553
    %v1607 = vadd.f32 %v1532, %v1557
    %v1608 = vadd.f32 %v1533, %v1553
    %v1609 = vadd.f32 %v1534, %v1557
    %v1610 = vadd.f32 %v1535, %v1553
    %v1611 = vadd.f32 %v1536, %v1557
    %v1612 = vadd.f32 %v1537, %v1553
    %v1613 = vadd.f32 %v1538, %v1557
    %v1614 = vadd.f32 %v1539, %v1553
    %v1615 = vadd.f32 %v1540, %v1557
    %v1616 = vadd.f32 %v1541, %v1553
    %v1617 = vadd.f32 %v1542, %v1557
    %v1618 = vadd.f32 %v1543, %v1553
    %v1619 = vadd.f32 %v1544, %v1557
    %v1620 = vadd.f32 %v1545, %v1553
    %v1621 = vadd.f32 %v1546, %v1557
    %v1622 = vadd.f32 %v1547, %v1553
    %v1623 = vadd.f32 %v1548, %v1557
    %v1624 = vpack.c.bf16 %v1562, %v1560
    %v1625 = vpack.c.bf16 %v1563, %v1561
    %v1626 = vpack.c.bf16 %v1566, %v1564
    %v1627 = vpack.c.bf16 %v1567, %v1565
    %v1628 = vpack.c.bf16 %v1570, %v1568
    %v1629 = vpack.c.bf16 %v1571, %v1569
    %v1630 = vpack.c.bf16 %v1574, %v1572
    %v1631 = vpack.c.bf16 %v1575, %v1573
    %v1632 = vpack.c.bf16 %v1578, %v1576
    %v1633 = vpack.c.bf16 %v1579, %v1577
    %v1634 = vpack.c.bf16 %v1582, %v1580
    %v1635 = vpack.c.bf16 %v1583, %v1581
    %v1636 = vpack.c.bf16 %v1586, %v1584
    %v1637 = vpack.c.bf16 %v1587, %v1585
    %v1638 = vpack.c.bf16 %v1590, %v1588
    %v1639 = vpack.c.bf16 %v1591, %v1589
    %v1640 = vpack.c.bf16 %v1594, %v1592
    %v1641 = vpack.c.bf16 %v1595, %v1593
    %v1642 = vpack.c.bf16 %v1598, %v1596
    %v1643 = vpack.c.bf16 %v1599, %v1597
    %v1644 = vpack.c.bf16 %v1602, %v1600
    %v1645 = vpack.c.bf16 %v1603, %v1601
    %v1646 = vpack.c.bf16 %v1606, %v1604
    %v1647 = vpack.c.bf16 %v1607, %v1605
    %v1648 = vpack.c.bf16 %v1610, %v1608
    %v1649 = vpack.c.bf16 %v1611, %v1609
    %v1650 = vpack.c.bf16 %v1614, %v1612
    %v1651 = vpack.c.bf16 %v1615, %v1613
    %v1652 = vpack.c.bf16 %v1618, %v1616
    %v1653 = vpack.c.bf16 %v1619, %v1617
    %v1654 = vpack.c.bf16 %v1622, %v1620
    %v1655 = vpack.c.bf16 %v1623, %v1621
    %v1656 = vld [vmem:[#allocation2] sm:$0xff]
    %v1657 = vld [vmem:[#allocation2 + $0x8] sm:$0xff]
    %v1658 = vld [vmem:[#allocation2 + $0x10] sm:$0xff]
    %v1659 = vld [vmem:[#allocation2 + $0x18] sm:$0xff]
    %v1660 = vld [vmem:[#allocation2 + $0x20] sm:$0xff]
    %v1661 = vld [vmem:[#allocation2 + $0x28] sm:$0xff]
    %v1662 = vld [vmem:[#allocation2 + $0x30] sm:$0xff]
    %v1663 = vld [vmem:[#allocation2 + $0x38] sm:$0xff]
    %v1664 = vld [vmem:[#allocation2 + $0x40] sm:$0xff]
    %v1665 = vld [vmem:[#allocation2 + $0x48] sm:$0xff]
    %v1666 = vld [vmem:[#allocation2 + $0x50] sm:$0xff]
    %v1667 = vld [vmem:[#allocation2 + $0x58] sm:$0xff]
    %v1668 = vld [vmem:[#allocation2 + $0x60] sm:$0xff]
    %v1669 = vld [vmem:[#allocation2 + $0x68] sm:$0xff]
    %v1670 = vld [vmem:[#allocation2 + $0x70] sm:$0xff]
    %v1671 = vld [vmem:[#allocation2 + $0x78] sm:$0xff]
    %v1672 = vld [vmem:[#allocation2 + $0x80] sm:$0xff]
    %v1673 = vld [vmem:[#allocation2 + $0x88] sm:$0xff]
    %v1674 = vld [vmem:[#allocation2 + $0x90] sm:$0xff]
    %v1675 = vld [vmem:[#allocation2 + $0x98] sm:$0xff]
    %v1676 = vld [vmem:[#allocation2 + $0xa0] sm:$0xff]
    %v1677 = vld [vmem:[#allocation2 + $0xa8] sm:$0xff]
    %v1678 = vld [vmem:[#allocation2 + $0xb0] sm:$0xff]
    %v1679 = vld [vmem:[#allocation2 + $0xb8] sm:$0xff]
    %v1680 = vld [vmem:[#allocation2 + $0xc0] sm:$0xff]
    %v1681 = vld [vmem:[#allocation2 + $0xc8] sm:$0xff]
    %v1682 = vld [vmem:[#allocation2 + $0xd0] sm:$0xff]
    %v1683 = vld [vmem:[#allocation2 + $0xd8] sm:$0xff]
    %v1684 = vld [vmem:[#allocation2 + $0xe0] sm:$0xff]
    %v1685 = vld [vmem:[#allocation2 + $0xe8] sm:$0xff]
    %v1686 = vld [vmem:[#allocation2 + $0xf0] sm:$0xff]
    %v1687 = vld [vmem:[#allocation2 + $0xf8] sm:$0xff]
    %v1688 = vld [vmem:[%s8] sm:$0x3]
    %v1690 = vlaneseq
    %v1691 = vshrl.u32 %v1690, 7
    %v1692 = vsub.s32 0, %v1691
    %v1693 = vrot.slane %v1688, %v1692
    %v1694 = vlaneseq
    %v1695 = vshrl.u32 %v1694, 7
    %v1696 = vsub.s32 1, %v1695
    %v1697 = vrot.slane %v1688, %v1696
    %v1732 = vunpack.c.l.b16 %v1656
    %v1733 = vunpack.c.h.b16 %v1656
    %v1734 = vunpack.c.l.b16 %v1657
    %v1735 = vunpack.c.h.b16 %v1657
    %v1736 = vunpack.c.l.b16 %v1658
    %v1737 = vunpack.c.h.b16 %v1658
    %v1738 = vunpack.c.l.b16 %v1659
    %v1739 = vunpack.c.h.b16 %v1659
    %v1740 = vunpack.c.l.b16 %v1660
    %v1741 = vunpack.c.h.b16 %v1660
    %v1742 = vunpack.c.l.b16 %v1661
    %v1743 = vunpack.c.h.b16 %v1661
    %v1744 = vunpack.c.l.b16 %v1662
    %v1745 = vunpack.c.h.b16 %v1662
    %v1746 = vunpack.c.l.b16 %v1663
    %v1747 = vunpack.c.h.b16 %v1663
    %v1748 = vunpack.c.l.b16 %v1664
    %v1749 = vunpack.c.h.b16 %v1664
    %v1750 = vunpack.c.l.b16 %v1665
    %v1751 = vunpack.c.h.b16 %v1665
    %v1752 = vunpack.c.l.b16 %v1666
    %v1753 = vunpack.c.h.b16 %v1666
    %v1754 = vunpack.c.l.b16 %v1667
    %v1755 = vunpack.c.h.b16 %v1667
    %v1756 = vunpack.c.l.b16 %v1668
    %v1757 = vunpack.c.h.b16 %v1668
    %v1758 = vunpack.c.l.b16 %v1669
    %v1759 = vunpack.c.h.b16 %v1669
    %v1760 = vunpack.c.l.b16 %v1670
    %v1761 = vunpack.c.h.b16 %v1670
    %v1762 = vunpack.c.l.b16 %v1671
    %v1763 = vunpack.c.h.b16 %v1671
    %v1764 = vunpack.c.l.b16 %v1672
    %v1765 = vunpack.c.h.b16 %v1672
    %v1766 = vunpack.c.l.b16 %v1673
    %v1767 = vunpack.c.h.b16 %v1673
    %v1768 = vunpack.c.l.b16 %v1674
    %v1769 = vunpack.c.h.b16 %v1674
    %v1770 = vunpack.c.l.b16 %v1675
    %v1771 = vunpack.c.h.b16 %v1675
    %v1772 = vunpack.c.l.b16 %v1676
    %v1773 = vunpack.c.h.b16 %v1676
    %v1774 = vunpack.c.l.b16 %v1677
    %v1775 = vunpack.c.h.b16 %v1677
    %v1776 = vunpack.c.l.b16 %v1678
    %v1777 = vunpack.c.h.b16 %v1678
    %v1778 = vunpack.c.l.b16 %v1679
    %v1779 = vunpack.c.h.b16 %v1679
    %v1780 = vunpack.c.l.b16 %v1680
    %v1781 = vunpack.c.h.b16 %v1680
    %v1782 = vunpack.c.l.b16 %v1681
    %v1783 = vunpack.c.h.b16 %v1681
    %v1784 = vunpack.c.l.b16 %v1682
    %v1785 = vunpack.c.h.b16 %v1682
    %v1786 = vunpack.c.l.b16 %v1683
    %v1787 = vunpack.c.h.b16 %v1683
    %v1788 = vunpack.c.l.b16 %v1684
    %v1789 = vunpack.c.h.b16 %v1684
    %v1790 = vunpack.c.l.b16 %v1685
    %v1791 = vunpack.c.h.b16 %v1685
    %v1792 = vunpack.c.l.b16 %v1686
    %v1793 = vunpack.c.h.b16 %v1686
    %v1794 = vunpack.c.l.b16 %v1687
    %v1795 = vunpack.c.h.b16 %v1687
    %v1796 = vpack.c.b16 %v1734, %v1732
    %v1797 = vpack.c.b16 %v1735, %v1733
    %v1798 = vpack.c.b16 %v1738, %v1736
    %v1799 = vpack.c.b16 %v1739, %v1737
    %v1800 = vpack.c.b16 %v1742, %v1740
    %v1801 = vpack.c.b16 %v1743, %v1741
    %v1802 = vpack.c.b16 %v1746, %v1744
    %v1803 = vpack.c.b16 %v1747, %v1745
    %v1804 = vpack.c.b16 %v1750, %v1748
    %v1805 = vpack.c.b16 %v1751, %v1749
    %v1806 = vpack.c.b16 %v1754, %v1752
    %v1807 = vpack.c.b16 %v1755, %v1753
    %v1808 = vpack.c.b16 %v1758, %v1756
    %v1809 = vpack.c.b16 %v1759, %v1757
    %v1810 = vpack.c.b16 %v1762, %v1760
    %v1811 = vpack.c.b16 %v1763, %v1761
    %v1812 = vpack.c.b16 %v1766, %v1764
    %v1813 = vpack.c.b16 %v1767, %v1765
    %v1814 = vpack.c.b16 %v1770, %v1768
    %v1815 = vpack.c.b16 %v1771, %v1769
    %v1816 = vpack.c.b16 %v1774, %v1772
    %v1817 = vpack.c.b16 %v1775, %v1773
    %v1818 = vpack.c.b16 %v1778, %v1776
    %v1819 = vpack.c.b16 %v1779, %v1777
    %v1820 = vpack.c.b16 %v1782, %v1780
    %v1821 = vpack.c.b16 %v1783, %v1781
    %v1822 = vpack.c.b16 %v1786, %v1784
    %v1823 = vpack.c.b16 %v1787, %v1785
    %v1824 = vpack.c.b16 %v1790, %v1788
    %v1825 = vpack.c.b16 %v1791, %v1789
    %v1826 = vpack.c.b16 %v1794, %v1792
    %v1827 = vpack.c.b16 %v1795, %v1793
    %1860 = vmatprep.subr.bf16.mxu0 %v1797
    %1861 = vmatpush1.bf16.msra.mxu0 %v1796
    %1862 = vmatprep.subr.bf16.mxu0 %v1799
    %1863 = vmatpush1.bf16.msra.mxu0 %v1798
    %1864 = vmatprep.subr.bf16.mxu0 %v1801
    %1865 = vmatpush1.bf16.msra.mxu0 %v1800
    %1866 = vmatprep.subr.bf16.mxu0 %v1803
    %1867 = vmatpush1.bf16.msra.mxu0 %v1802
    %1868 = vmatprep.subr.bf16.mxu0 %v1805
    %1869 = vmatpush1.bf16.msra.mxu0 %v1804
    %1870 = vmatprep.subr.bf16.mxu0 %v1807
    %1871 = vmatpush1.bf16.msra.mxu0 %v1806
    %1872 = vmatprep.subr.bf16.mxu0 %v1809
    %1873 = vmatpush1.bf16.msra.mxu0 %v1808
    %1874 = vmatprep.subr.bf16.mxu0 %v1811
    %1875 = vmatpush1.bf16.msra.mxu0 %v1810
    %1876 = vmatprep.subr.bf16.mxu0 %v1813
    %1877 = vmatpush1.bf16.msra.mxu0 %v1812
    %1878 = vmatprep.subr.bf16.mxu0 %v1815
    %1879 = vmatpush1.bf16.msra.mxu0 %v1814
    %1880 = vmatprep.subr.bf16.mxu0 %v1817
    %1881 = vmatpush1.bf16.msra.mxu0 %v1816
    %1882 = vmatprep.subr.bf16.mxu0 %v1819
    %1883 = vmatpush1.bf16.msra.mxu0 %v1818
    %1884 = vmatprep.subr.bf16.mxu0 %v1821
    %1885 = vmatpush1.bf16.msra.mxu0 %v1820
    %1886 = vmatprep.subr.bf16.mxu0 %v1823
    %1887 = vmatpush1.bf16.msra.mxu0 %v1822
    %1888 = vmatprep.subr.bf16.mxu0 %v1825
    %1889 = vmatpush1.bf16.msra.mxu0 %v1824
    %1890 = vmatprep.subr.bf16.mxu0 %v1827
    %1891 = vmatpush1.bf16.msra.mxu0 %v1826
    %1892 = vmatprep.mubr.bf16.mxu0 %v1625
    %1893 = vmatmul.mubr.bf16.gmra.mrb[0].mxu0 %v1624
    %v1894 = vpop.f32.mrb[0].mxu0
    %v1895 = vadd.f32 %v1693, %v1894
    %v1896 = vpop.f32.mrb[0].mxu0
    %v1897 = vadd.f32 %v1697, %v1896
    %v1898 = vpop.f32.mrb[0].mxu0
    %v1899 = vadd.f32 %v1693, %v1898
    %v1900 = vpop.f32.mrb[0].mxu0
    %v1901 = vadd.f32 %v1697, %v1900
    %1902 = vmatprep.mubr.bf16.mxu0 %v1627
    %1903 = vmatmul.mubr.bf16.gmra.mrb[0].mxu0 %v1626
    %v1904 = vpop.f32.mrb[0].mxu0
    %v1905 = vadd.f32 %v1693, %v1904
    %v1906 = vpop.f32.mrb[0].mxu0
    %v1907 = vadd.f32 %v1697, %v1906
    %v1908 = vpop.f32.mrb[0].mxu0
    %v1909 = vadd.f32 %v1693, %v1908
    %v1910 = vpop.f32.mrb[0].mxu0
    %v1911 = vadd.f32 %v1697, %v1910
    %1912 = vmatprep.mubr.bf16.mxu0 %v1629
    %1913 = vmatmul.mubr.bf16.gmra.mrb[0].mxu0 %v1628
    %v1914 = vpop.f32.mrb[0].mxu0
    %v1915 = vadd.f32 %v1693, %v1914
    %v1916 = vpop.f32.mrb[0].mxu0
    %v1917 = vadd.f32 %v1697, %v1916
    %v1918 = vpop.f32.mrb[0].mxu0
    %v1919 = vadd.f32 %v1693, %v1918
    %v1920 = vpop.f32.mrb[0].mxu0
    %v1921 = vadd.f32 %v1697, %v1920
    %1922 = vmatprep.mubr.bf16.mxu0 %v1631
    %1923 = vmatmul.mubr.bf16.gmra.mrb[0].mxu0 %v1630
    %v1924 = vpop.f32.mrb[0].mxu0
    %v1925 = vadd.f32 %v1693, %v1924
    %v1926 = vpop.f32.mrb[0].mxu0
    %v1927 = vadd.f32 %v1697, %v1926
    %v1928 = vpop.f32.mrb[0].mxu0
    %v1929 = vadd.f32 %v1693, %v1928
    %v1930 = vpop.f32.mrb[0].mxu0
    %v1931 = vadd.f32 %v1697, %v1930
    %1932 = vmatprep.mubr.bf16.mxu0 %v1633
    %1933 = vmatmul.mubr.bf16.gmra.mrb[0].mxu0 %v1632
    %v1934 = vpop.f32.mrb[0].mxu0
    %v1935 = vadd.f32 %v1693, %v1934
    %v1936 = vpop.f32.mrb[0].mxu0
    %v1937 = vadd.f32 %v1697, %v1936
    %v1938 = vpop.f32.mrb[0].mxu0
    %v1939 = vadd.f32 %v1693, %v1938
    %v1940 = vpop.f32.mrb[0].mxu0
    %v1941 = vadd.f32 %v1697, %v1940
    %1942 = vmatprep.mubr.bf16.mxu0 %v1635
    %1943 = vmatmul.mubr.bf16.gmra.mrb[0].mxu0 %v1634
    %v1944 = vpop.f32.mrb[0].mxu0
    %v1945 = vadd.f32 %v1693, %v1944
    %v1946 = vpop.f32.mrb[0].mxu0
    %v1947 = vadd.f32 %v1697, %v1946
    %v1948 = vpop.f32.mrb[0].mxu0
    %v1949 = vadd.f32 %v1693, %v1948
    %v1950 = vpop.f32.mrb[0].mxu0
    %v1951 = vadd.f32 %v1697, %v1950
    %1952 = vmatprep.mubr.bf16.mxu0 %v1637
    %1953 = vmatmul.mubr.bf16.gmra.mrb[0].mxu0 %v1636
    %v1954 = vpop.f32.mrb[0].mxu0
    %v1955 = vadd.f32 %v1693, %v1954
    %v1956 = vpop.f32.mrb[0].mxu0
    %v1957 = vadd.f32 %v1697, %v1956
    %v1958 = vpop.f32.mrb[0].mxu0
    %v1959 = vadd.f32 %v1693, %v1958
    %v1960 = vpop.f32.mrb[0].mxu0
    %v1961 = vadd.f32 %v1697, %v1960
    %1962 = vmatprep.mubr.bf16.mxu0 %v1639
    %1963 = vmatmul.mubr.bf16.gmra.mrb[0].mxu0 %v1638
    %v1964 = vpop.f32.mrb[0].mxu0
    %v1965 = vadd.f32 %v1693, %v1964
    %v1966 = vpop.f32.mrb[0].mxu0
    %v1967 = vadd.f32 %v1697, %v1966
    %v1968 = vpop.f32.mrb[0].mxu0
    %v1969 = vadd.f32 %v1693, %v1968
    %v1970 = vpop.f32.mrb[0].mxu0
    %v1971 = vadd.f32 %v1697, %v1970
    %1972 = vmatprep.mubr.bf16.mxu0 %v1641
    %1973 = vmatmul.mubr.bf16.gmra.mrb[0].mxu0 %v1640
    %v1974 = vpop.f32.mrb[0].mxu0
    %v1975 = vadd.f32 %v1693, %v1974
    %v1976 = vpop.f32.mrb[0].mxu0
    %v1977 = vadd.f32 %v1697, %v1976
    %v1978 = vpop.f32.mrb[0].mxu0
    %v1979 = vadd.f32 %v1693, %v1978
    %v1980 = vpop.f32.mrb[0].mxu0
    %v1981 = vadd.f32 %v1697, %v1980
    %1982 = vmatprep.mubr.bf16.mxu0 %v1643
    %1983 = vmatmul.mubr.bf16.gmra.mrb[0].mxu0 %v1642
    %v1984 = vpop.f32.mrb[0].mxu0
    %v1985 = vadd.f32 %v1693, %v1984
    %v1986 = vpop.f32.mrb[0].mxu0
    %v1987 = vadd.f32 %v1697, %v1986
    %v1988 = vpop.f32.mrb[0].mxu0
    %v1989 = vadd.f32 %v1693, %v1988
    %v1990 = vpop.f32.mrb[0].mxu0
    %v1991 = vadd.f32 %v1697, %v1990
    %1992 = vmatprep.mubr.bf16.mxu0 %v1645
    %1993 = vmatmul.mubr.bf16.gmra.mrb[0].mxu0 %v1644
    %v1994 = vpop.f32.mrb[0].mxu0
    %v1995 = vadd.f32 %v1693, %v1994
    %v1996 = vpop.f32.mrb[0].mxu0
    %v1997 = vadd.f32 %v1697, %v1996
    %v1998 = vpop.f32.mrb[0].mxu0
    %v1999 = vadd.f32 %v1693, %v1998
    %v2000 = vpop.f32.mrb[0].mxu0
    %v2001 = vadd.f32 %v1697, %v2000
    %2002 = vmatprep.mubr.bf16.mxu0 %v1647
    %2003 = vmatmul.mubr.bf16.gmra.mrb[0].mxu0 %v1646
    %v2004 = vpop.f32.mrb[0].mxu0
    %v2005 = vadd.f32 %v1693, %v2004
    %v2006 = vpop.f32.mrb[0].mxu0
    %v2007 = vadd.f32 %v1697, %v2006
    %v2008 = vpop.f32.mrb[0].mxu0
    %v2009 = vadd.f32 %v1693, %v2008
    %v2010 = vpop.f32.mrb[0].mxu0
    %v2011 = vadd.f32 %v1697, %v2010
    %2012 = vmatprep.mubr.bf16.mxu0 %v1649
    %2013 = vmatmul.mubr.bf16.gmra.mrb[0].mxu0 %v1648
    %v2014 = vpop.f32.mrb[0].mxu0
    %v2015 = vadd.f32 %v1693, %v2014
    %v2016 = vpop.f32.mrb[0].mxu0
    %v2017 = vadd.f32 %v1697, %v2016
    %v2018 = vpop.f32.mrb[0].mxu0
    %v2019 = vadd.f32 %v1693, %v2018
    %v2020 = vpop.f32.mrb[0].mxu0
    %v2021 = vadd.f32 %v1697, %v2020
    %2022 = vmatprep.mubr.bf16.mxu0 %v1651
    %2023 = vmatmul.mubr.bf16.gmra.mrb[0].mxu0 %v1650
    %v2024 = vpop.f32.mrb[0].mxu0
    %v2025 = vadd.f32 %v1693, %v2024
    %v2026 = vpop.f32.mrb[0].mxu0
    %v2027 = vadd.f32 %v1697, %v2026
    %v2028 = vpop.f32.mrb[0].mxu0
    %v2029 = vadd.f32 %v1693, %v2028
    %v2030 = vpop.f32.mrb[0].mxu0
    %v2031 = vadd.f32 %v1697, %v2030
    %2032 = vmatprep.mubr.bf16.mxu0 %v1653
    %2033 = vmatmul.mubr.bf16.gmra.mrb[0].mxu0 %v1652
    %v2034 = vpop.f32.mrb[0].mxu0
    %v2035 = vadd.f32 %v1693, %v2034
    %v2036 = vpop.f32.mrb[0].mxu0
    %v2037 = vadd.f32 %v1697, %v2036
    %v2038 = vpop.f32.mrb[0].mxu0
    %v2039 = vadd.f32 %v1693, %v2038
    %v2040 = vpop.f32.mrb[0].mxu0
    %v2041 = vadd.f32 %v1697, %v2040
    %2042 = vmatprep.mubr.bf16.mxu0 %v1655
    %2043 = vmatmul.mubr.bf16.gmra.mrb[0].mxu0 %v1654
    %v2044 = vpop.f32.mrb[0].mxu0
    %v2045 = vadd.f32 %v1693, %v2044
    %v2046 = vpop.f32.mrb[0].mxu0
    %v2047 = vadd.f32 %v1697, %v2046
    %v2048 = vpop.f32.mrb[0].mxu0
    %v2049 = vadd.f32 %v1693, %v2048
    %v2050 = vpop.f32.mrb[0].mxu0
    %v2051 = vadd.f32 %v1697, %v2050
    %2052 = vdwg.mxu0
    %v2053 = vmax.f32 %v1895, 0.0
    %v2054 = vmax.f32 %v1897, 0.0
    %v2055 = vmax.f32 %v1899, 0.0
    %v2056 = vmax.f32 %v1901, 0.0
    %v2057 = vmax.f32 %v1905, 0.0
    %v2058 = vmax.f32 %v1907, 0.0
    %v2059 = vmax.f32 %v1909, 0.0
    %v2060 = vmax.f32 %v1911, 0.0
    %v2061 = vmax.f32 %v1915, 0.0
    %v2062 = vmax.f32 %v1917, 0.0
    %v2063 = vmax.f32 %v1919, 0.0
    %v2064 = vmax.f32 %v1921, 0.0
    %v2065 = vmax.f32 %v1925, 0.0
    %v2066 = vmax.f32 %v1927, 0.0
    %v2067 = vmax.f32 %v1929, 0.0
    %v2068 = vmax.f32 %v1931, 0.0
    %v2069 = vmax.f32 %v1935, 0.0
    %v2070 = vmax.f32 %v1937, 0.0
    %v2071 = vmax.f32 %v1939, 0.0
    %v2072 = vmax.f32 %v1941, 0.0
    %v2073 = vmax.f32 %v1945, 0.0
    %v2074 = vmax.f32 %v1947, 0.0
    %v2075 = vmax.f32 %v1949, 0.0
    %v2076 = vmax.f32 %v1951, 0.0
    %v2077 = vmax.f32 %v1955, 0.0
    %v2078 = vmax.f32 %v1957, 0.0
    %v2079 = vmax.f32 %v1959, 0.0
    %v2080 = vmax.f32 %v1961, 0.0
    %v2081 = vmax.f32 %v1965, 0.0
    %v2082 = vmax.f32 %v1967, 0.0
    %v2083 = vmax.f32 %v1969, 0.0
    %v2084 = vmax.f32 %v1971, 0.0
    %v2085 = vmax.f32 %v1975, 0.0
    %v2086 = vmax.f32 %v1977, 0.0
    %v2087 = vmax.f32 %v1979, 0.0
    %v2088 = vmax.f32 %v1981, 0.0
    %v2089 = vmax.f32 %v1985, 0.0
    %v2090 = vmax.f32 %v1987, 0.0
    %v2091 = vmax.f32 %v1989, 0.0
    %v2092 = vmax.f32 %v1991, 0.0
    %v2093 = vmax.f32 %v1995, 0.0
    %v2094 = vmax.f32 %v1997, 0.0
    %v2095 = vmax.f32 %v1999, 0.0
    %v2096 = vmax.f32 %v2001, 0.0
    %v2097 = vmax.f32 %v2005, 0.0
    %v2098 = vmax.f32 %v2007, 0.0
    %v2099 = vmax.f32 %v2009, 0.0
    %v2100 = vmax.f32 %v2011, 0.0
    %v2101 = vmax.f32 %v2015, 0.0
    %v2102 = vmax.f32 %v2017, 0.0
    %v2103 = vmax.f32 %v2019, 0.0
    %v2104 = vmax.f32 %v2021, 0.0
    %v2105 = vmax.f32 %v2025, 0.0
    %v2106 = vmax.f32 %v2027, 0.0
    %v2107 = vmax.f32 %v2029, 0.0
    %v2108 = vmax.f32 %v2031, 0.0
    %v2109 = vmax.f32 %v2035, 0.0
    %v2110 = vmax.f32 %v2037, 0.0
    %v2111 = vmax.f32 %v2039, 0.0
    %v2112 = vmax.f32 %v2041, 0.0
    %v2113 = vmax.f32 %v2045, 0.0
    %v2114 = vmax.f32 %v2047, 0.0
    %v2115 = vmax.f32 %v2049, 0.0
    %v2116 = vmax.f32 %v2051, 0.0
    %v2117 = vld [vmem:[%s9] sm:$0x3]
    %v2118 = vld [vmem:[%s10] sm:$0x3]
    %v2119 = vadd.f32 %v2053, %v2054
    %2120 = vadd.xlane.f32.xlu0 %v2119
    %v2121 = vpop.xlane.xlu0 %2120
    %v2122 = vadd.f32 %v2055, %v2056
    %2123 = vadd.xlane.f32.xlu0 %v2122
    %v2124 = vpop.xlane.xlu0 %2123
    %v2125 = vadd.f32 %v2057, %v2058
    %2126 = vadd.xlane.f32.xlu0 %v2125
    %v2127 = vpop.xlane.xlu0 %2126
    %v2128 = vadd.f32 %v2059, %v2060
    %2129 = vadd.xlane.f32.xlu0 %v2128
    %v2130 = vpop.xlane.xlu0 %2129
    %v2131 = vadd.f32 %v2061, %v2062
    %2132 = vadd.xlane.f32.xlu0 %v2131
    %v2133 = vpop.xlane.xlu0 %2132
    %v2134 = vadd.f32 %v2063, %v2064
    %2135 = vadd.xlane.f32.xlu0 %v2134
    %v2136 = vpop.xlane.xlu0 %2135
    %v2137 = vadd.f32 %v2065, %v2066
    %2138 = vadd.xlane.f32.xlu0 %v2137
    %v2139 = vpop.xlane.xlu0 %2138
    %v2140 = vadd.f32 %v2067, %v2068
    %2141 = vadd.xlane.f32.xlu0 %v2140
    %v2142 = vpop.xlane.xlu0 %2141
    %v2143 = vadd.f32 %v2069, %v2070
    %2144 = vadd.xlane.f32.xlu0 %v2143
    %v2145 = vpop.xlane.xlu0 %2144
    %v2146 = vadd.f32 %v2071, %v2072
    %2147 = vadd.xlane.f32.xlu0 %v2146
    %v2148 = vpop.xlane.xlu0 %2147
    %v2149 = vadd.f32 %v2073, %v2074
    %2150 = vadd.xlane.f32.xlu0 %v2149
    %v2151 = vpop.xlane.xlu0 %2150
    %v2152 = vadd.f32 %v2075, %v2076
    %2153 = vadd.xlane.f32.xlu0 %v2152
    %v2154 = vpop.xlane.xlu0 %2153
    %v2155 = vadd.f32 %v2077, %v2078
    %2156 = vadd.xlane.f32.xlu0 %v2155
    %v2157 = vpop.xlane.xlu0 %2156
    %v2158 = vadd.f32 %v2079, %v2080
    %2159 = vadd.xlane.f32.xlu0 %v2158
    %v2160 = vpop.xlane.xlu0 %2159
    %v2161 = vadd.f32 %v2081, %v2082
    %2162 = vadd.xlane.f32.xlu0 %v2161
    %v2163 = vpop.xlane.xlu0 %2162
    %v2164 = vadd.f32 %v2083, %v2084
    %2165 = vadd.xlane.f32.xlu0 %v2164
    %v2166 = vpop.xlane.xlu0 %2165
    %v2167 = vadd.f32 %v2085, %v2086
    %2168 = vadd.xlane.f32.xlu0 %v2167
    %v2169 = vpop.xlane.xlu0 %2168
    %v2170 = vadd.f32 %v2087, %v2088
    %2171 = vadd.xlane.f32.xlu0 %v2170
    %v2172 = vpop.xlane.xlu0 %2171
    %v2173 = vadd.f32 %v2089, %v2090
    %2174 = vadd.xlane.f32.xlu0 %v2173
    %v2175 = vpop.xlane.xlu0 %2174
    %v2176 = vadd.f32 %v2091, %v2092
    %2177 = vadd.xlane.f32.xlu0 %v2176
    %v2178 = vpop.xlane.xlu0 %2177
    %v2179 = vadd.f32 %v2093, %v2094
    %2180 = vadd.xlane.f32.xlu0 %v2179
    %v2181 = vpop.xlane.xlu0 %2180
    %v2182 = vadd.f32 %v2095, %v2096
    %2183 = vadd.xlane.f32.xlu0 %v2182
    %v2184 = vpop.xlane.xlu0 %2183
    %v2185 = vadd.f32 %v2097, %v2098
    %2186 = vadd.xlane.f32.xlu0 %v2185
    %v2187 = vpop.xlane.xlu0 %2186
    %v2188 = vadd.f32 %v2099, %v2100
    %2189 = vadd.xlane.f32.xlu0 %v2188
    %v2190 = vpop.xlane.xlu0 %2189
    %v2191 = vadd.f32 %v2101, %v2102
    %2192 = vadd.xlane.f32.xlu0 %v2191
    %v2193 = vpop.xlane.xlu0 %2192
    %v2194 = vadd.f32 %v2103, %v2104
    %2195 = vadd.xlane.f32.xlu0 %v2194
    %v2196 = vpop.xlane.xlu0 %2195
    %v2197 = vadd.f32 %v2105, %v2106
    %2198 = vadd.xlane.f32.xlu0 %v2197
    %v2199 = vpop.xlane.xlu0 %2198
    %v2200 = vadd.f32 %v2107, %v2108
    %2201 = vadd.xlane.f32.xlu0 %v2200
    %v2202 = vpop.xlane.xlu0 %2201
    %v2203 = vadd.f32 %v2109, %v2110
    %2204 = vadd.xlane.f32.xlu0 %v2203
    %v2205 = vpop.xlane.xlu0 %2204
    %v2206 = vadd.f32 %v2111, %v2112
    %2207 = vadd.xlane.f32.xlu0 %v2206
    %v2208 = vpop.xlane.xlu0 %2207
    %v2209 = vadd.f32 %v2113, %v2114
    %2210 = vadd.xlane.f32.xlu0 %v2209
    %v2211 = vpop.xlane.xlu0 %2210
    %v2212 = vadd.f32 %v2115, %v2116
    %2213 = vadd.xlane.f32.xlu0 %v2212
    %v2214 = vpop.xlane.xlu0 %2213
    %v2215 = vmul.f32 %v2121, %v1057
    %v2216 = vmul.f32 %v2124, %v1057
    %v2217 = vmul.f32 %v2127, %v1057
    %v2218 = vmul.f32 %v2130, %v1057
    %v2219 = vmul.f32 %v2133, %v1057
    %v2220 = vmul.f32 %v2136, %v1057
    %v2221 = vmul.f32 %v2139, %v1057
    %v2222 = vmul.f32 %v2142, %v1057
    %v2223 = vmul.f32 %v2145, %v1057
    %v2224 = vmul.f32 %v2148, %v1057
    %v2225 = vmul.f32 %v2151, %v1057
    %v2226 = vmul.f32 %v2154, %v1057
    %v2227 = vmul.f32 %v2157, %v1057
    %v2228 = vmul.f32 %v2160, %v1057
    %v2229 = vmul.f32 %v2163, %v1057
    %v2230 = vmul.f32 %v2166, %v1057
    %v2231 = vmul.f32 %v2169, %v1057
    %v2232 = vmul.f32 %v2172, %v1057
    %v2233 = vmul.f32 %v2175, %v1057
    %v2234 = vmul.f32 %v2178, %v1057
    %v2235 = vmul.f32 %v2181, %v1057
    %v2236 = vmul.f32 %v2184, %v1057
    %v2237 = vmul.f32 %v2187, %v1057
    %v2238 = vmul.f32 %v2190, %v1057
    %v2239 = vmul.f32 %v2193, %v1057
    %v2240 = vmul.f32 %v2196, %v1057
    %v2241 = vmul.f32 %v2199, %v1057
    %v2242 = vmul.f32 %v2202, %v1057
    %v2243 = vmul.f32 %v2205, %v1057
    %v2244 = vmul.f32 %v2208, %v1057
    %v2245 = vmul.f32 %v2211, %v1057
    %v2246 = vmul.f32 %v2214, %v1057
    %v2247 = vsub.f32 %v2053, %v2215
    %v2248 = vsub.f32 %v2054, %v2215
    %v2249 = vsub.f32 %v2055, %v2216
    %v2250 = vsub.f32 %v2056, %v2216
    %v2251 = vsub.f32 %v2057, %v2217
    %v2252 = vsub.f32 %v2058, %v2217
    %v2253 = vsub.f32 %v2059, %v2218
    %v2254 = vsub.f32 %v2060, %v2218
    %v2255 = vsub.f32 %v2061, %v2219
    %v2256 = vsub.f32 %v2062, %v2219
    %v2257 = vsub.f32 %v2063, %v2220
    %v2258 = vsub.f32 %v2064, %v2220
    %v2259 = vsub.f32 %v2065, %v2221
    %v2260 = vsub.f32 %v2066, %v2221
    %v2261 = vsub.f32 %v2067, %v2222
    %v2262 = vsub.f32 %v2068, %v2222
    %v2263 = vsub.f32 %v2069, %v2223
    %v2264 = vsub.f32 %v2070, %v2223
    %v2265 = vsub.f32 %v2071, %v2224
    %v2266 = vsub.f32 %v2072, %v2224
    %v2267 = vsub.f32 %v2073, %v2225
    %v2268 = vsub.f32 %v2074, %v2225
    %v2269 = vsub.f32 %v2075, %v2226
    %v2270 = vsub.f32 %v2076, %v2226
    %v2271 = vsub.f32 %v2077, %v2227
    %v2272 = vsub.f32 %v2078, %v2227
    %v2273 = vsub.f32 %v2079, %v2228
    %v2274 = vsub.f32 %v2080, %v2228
    %v2275 = vsub.f32 %v2081, %v2229
    %v2276 = vsub.f32 %v2082, %v2229
    %v2277 = vsub.f32 %v2083, %v2230
    %v2278 = vsub.f32 %v2084, %v2230
    %v2279 = vsub.f32 %v2085, %v2231
    %v2280 = vsub.f32 %v2086, %v2231
    %v2281 = vsub.f32 %v2087, %v2232
    %v2282 = vsub.f32 %v2088, %v2232
    %v2283 = vsub.f32 %v2089, %v2233
    %v2284 = vsub.f32 %v2090, %v2233
    %v2285 = vsub.f32 %v2091, %v2234
    %v2286 = vsub.f32 %v2092, %v2234
    %v2287 = vsub.f32 %v2093, %v2235
    %v2288 = vsub.f32 %v2094, %v2235
    %v2289 = vsub.f32 %v2095, %v2236
    %v2290 = vsub.f32 %v2096, %v2236
    %v2291 = vsub.f32 %v2097, %v2237
    %v2292 = vsub.f32 %v2098, %v2237
    %v2293 = vsub.f32 %v2099, %v2238
    %v2294 = vsub.f32 %v2100, %v2238
    %v2295 = vsub.f32 %v2101, %v2239
    %v2296 = vsub.f32 %v2102, %v2239
    %v2297 = vsub.f32 %v2103, %v2240
    %v2298 = vsub.f32 %v2104, %v2240
    %v2299 = vsub.f32 %v2105, %v2241
    %v2300 = vsub.f32 %v2106, %v2241
    %v2301 = vsub.f32 %v2107, %v2242
    %v2302 = vsub.f32 %v2108, %v2242
    %v2303 = vsub.f32 %v2109, %v2243
    %v2304 = vsub.f32 %v2110, %v2243
    %v2305 = vsub.f32 %v2111, %v2244
    %v2306 = vsub.f32 %v2112, %v2244
    %v2307 = vsub.f32 %v2113, %v2245
    %v2308 = vsub.f32 %v2114, %v2245
    %v2309 = vsub.f32 %v2115, %v2246
    %v2310 = vsub.f32 %v2116, %v2246
    %v2311 = vmul.f32 %v2247, %v2247
    %v2312 = vmul.f32 %v2248, %v2248
    %v2313 = vmul.f32 %v2249, %v2249
    %v2314 = vmul.f32 %v2250, %v2250
    %v2315 = vmul.f32 %v2251, %v2251
    %v2316 = vmul.f32 %v2252, %v2252
    %v2317 = vmul.f32 %v2253, %v2253
    %v2318 = vmul.f32 %v2254, %v2254
    %v2319 = vmul.f32 %v2255, %v2255
    %v2320 = vmul.f32 %v2256, %v2256
    %v2321 = vmul.f32 %v2257, %v2257
    %v2322 = vmul.f32 %v2258, %v2258
    %v2323 = vmul.f32 %v2259, %v2259
    %v2324 = vmul.f32 %v2260, %v2260
    %v2325 = vmul.f32 %v2261, %v2261
    %v2326 = vmul.f32 %v2262, %v2262
    %v2327 = vmul.f32 %v2263, %v2263
    %v2328 = vmul.f32 %v2264, %v2264
    %v2329 = vmul.f32 %v2265, %v2265
    %v2330 = vmul.f32 %v2266, %v2266
    %v2331 = vmul.f32 %v2267, %v2267
    %v2332 = vmul.f32 %v2268, %v2268
    %v2333 = vmul.f32 %v2269, %v2269
    %v2334 = vmul.f32 %v2270, %v2270
    %v2335 = vmul.f32 %v2271, %v2271
    %v2336 = vmul.f32 %v2272, %v2272
    %v2337 = vmul.f32 %v2273, %v2273
    %v2338 = vmul.f32 %v2274, %v2274
    %v2339 = vmul.f32 %v2275, %v2275
    %v2340 = vmul.f32 %v2276, %v2276
    %v2341 = vmul.f32 %v2277, %v2277
    %v2342 = vmul.f32 %v2278, %v2278
    %v2343 = vmul.f32 %v2279, %v2279
    %v2344 = vmul.f32 %v2280, %v2280
    %v2345 = vmul.f32 %v2281, %v2281
    %v2346 = vmul.f32 %v2282, %v2282
    %v2347 = vmul.f32 %v2283, %v2283
    %v2348 = vmul.f32 %v2284, %v2284
    %v2349 = vmul.f32 %v2285, %v2285
    %v2350 = vmul.f32 %v2286, %v2286
    %v2351 = vmul.f32 %v2287, %v2287
    %v2352 = vmul.f32 %v2288, %v2288
    %v2353 = vmul.f32 %v2289, %v2289
    %v2354 = vmul.f32 %v2290, %v2290
    %v2355 = vmul.f32 %v2291, %v2291
    %v2356 = vmul.f32 %v2292, %v2292
    %v2357 = vmul.f32 %v2293, %v2293
    %v2358 = vmul.f32 %v2294, %v2294
    %v2359 = vmul.f32 %v2295, %v2295
    %v2360 = vmul.f32 %v2296, %v2296
    %v2361 = vmul.f32 %v2297, %v2297
    %v2362 = vmul.f32 %v2298, %v2298
    %v2363 = vmul.f32 %v2299, %v2299
    %v2364 = vmul.f32 %v2300, %v2300
    %v2365 = vmul.f32 %v2301, %v2301
    %v2366 = vmul.f32 %v2302, %v2302
    %v2367 = vmul.f32 %v2303, %v2303
    %v2368 = vmul.f32 %v2304, %v2304
    %v2369 = vmul.f32 %v2305, %v2305
    %v2370 = vmul.f32 %v2306, %v2306
    %v2371 = vmul.f32 %v2307, %v2307
    %v2372 = vmul.f32 %v2308, %v2308
    %v2373 = vmul.f32 %v2309, %v2309
    %v2374 = vmul.f32 %v2310, %v2310
    %v2375 = vadd.f32 %v2311, %v2312
    %2376 = vadd.xlane.f32.xlu0 %v2375
    %v2377 = vpop.xlane.xlu0 %2376
    %v2378 = vadd.f32 %v2313, %v2314
    %2379 = vadd.xlane.f32.xlu0 %v2378
    %v2380 = vpop.xlane.xlu0 %2379
    %v2381 = vadd.f32 %v2315, %v2316
    %2382 = vadd.xlane.f32.xlu0 %v2381
    %v2383 = vpop.xlane.xlu0 %2382
    %v2384 = vadd.f32 %v2317, %v2318
    %2385 = vadd.xlane.f32.xlu0 %v2384
    %v2386 = vpop.xlane.xlu0 %2385
    %v2387 = vadd.f32 %v2319, %v2320
    %2388 = vadd.xlane.f32.xlu0 %v2387
    %v2389 = vpop.xlane.xlu0 %2388
    %v2390 = vadd.f32 %v2321, %v2322
    %2391 = vadd.xlane.f32.xlu0 %v2390
    %v2392 = vpop.xlane.xlu0 %2391
    %v2393 = vadd.f32 %v2323, %v2324
    %2394 = vadd.xlane.f32.xlu0 %v2393
    %v2395 = vpop.xlane.xlu0 %2394
    %v2396 = vadd.f32 %v2325, %v2326
    %2397 = vadd.xlane.f32.xlu0 %v2396
    %v2398 = vpop.xlane.xlu0 %2397
    %v2399 = vadd.f32 %v2327, %v2328
    %2400 = vadd.xlane.f32.xlu0 %v2399
    %v2401 = vpop.xlane.xlu0 %2400
    %v2402 = vadd.f32 %v2329, %v2330
    %2403 = vadd.xlane.f32.xlu0 %v2402
    %v2404 = vpop.xlane.xlu0 %2403
    %v2405 = vadd.f32 %v2331, %v2332
    %2406 = vadd.xlane.f32.xlu0 %v2405
    %v2407 = vpop.xlane.xlu0 %2406
    %v2408 = vadd.f32 %v2333, %v2334
    %2409 = vadd.xlane.f32.xlu0 %v2408
    %v2410 = vpop.xlane.xlu0 %2409
    %v2411 = vadd.f32 %v2335, %v2336
    %2412 = vadd.xlane.f32.xlu0 %v2411
    %v2413 = vpop.xlane.xlu0 %2412
    %v2414 = vadd.f32 %v2337, %v2338
    %2415 = vadd.xlane.f32.xlu0 %v2414
    %v2416 = vpop.xlane.xlu0 %2415
    %v2417 = vadd.f32 %v2339, %v2340
    %2418 = vadd.xlane.f32.xlu0 %v2417
    %v2419 = vpop.xlane.xlu0 %2418
    %v2420 = vadd.f32 %v2341, %v2342
    %2421 = vadd.xlane.f32.xlu0 %v2420
    %v2422 = vpop.xlane.xlu0 %2421
    %v2423 = vadd.f32 %v2343, %v2344
    %2424 = vadd.xlane.f32.xlu0 %v2423
    %v2425 = vpop.xlane.xlu0 %2424
    %v2426 = vadd.f32 %v2345, %v2346
    %2427 = vadd.xlane.f32.xlu0 %v2426
    %v2428 = vpop.xlane.xlu0 %2427
    %v2429 = vadd.f32 %v2347, %v2348
    %2430 = vadd.xlane.f32.xlu0 %v2429
    %v2431 = vpop.xlane.xlu0 %2430
    %v2432 = vadd.f32 %v2349, %v2350
    %2433 = vadd.xlane.f32.xlu0 %v2432
    %v2434 = vpop.xlane.xlu0 %2433
    %v2435 = vadd.f32 %v2351, %v2352
    %2436 = vadd.xlane.f32.xlu0 %v2435
    %v2437 = vpop.xlane.xlu0 %2436
    %v2438 = vadd.f32 %v2353, %v2354
    %2439 = vadd.xlane.f32.xlu0 %v2438
    %v2440 = vpop.xlane.xlu0 %2439
    %v2441 = vadd.f32 %v2355, %v2356
    %2442 = vadd.xlane.f32.xlu0 %v2441
    %v2443 = vpop.xlane.xlu0 %2442
    %v2444 = vadd.f32 %v2357, %v2358
    %2445 = vadd.xlane.f32.xlu0 %v2444
    %v2446 = vpop.xlane.xlu0 %2445
    %v2447 = vadd.f32 %v2359, %v2360
    %2448 = vadd.xlane.f32.xlu0 %v2447
    %v2449 = vpop.xlane.xlu0 %2448
    %v2450 = vadd.f32 %v2361, %v2362
    %2451 = vadd.xlane.f32.xlu0 %v2450
    %v2452 = vpop.xlane.xlu0 %2451
    %v2453 = vadd.f32 %v2363, %v2364
    %2454 = vadd.xlane.f32.xlu0 %v2453
    %v2455 = vpop.xlane.xlu0 %2454
    %v2456 = vadd.f32 %v2365, %v2366
    %2457 = vadd.xlane.f32.xlu0 %v2456
    %v2458 = vpop.xlane.xlu0 %2457
    %v2459 = vadd.f32 %v2367, %v2368
    %2460 = vadd.xlane.f32.xlu0 %v2459
    %v2461 = vpop.xlane.xlu0 %2460
    %v2462 = vadd.f32 %v2369, %v2370
    %2463 = vadd.xlane.f32.xlu0 %v2462
    %v2464 = vpop.xlane.xlu0 %2463
    %v2465 = vadd.f32 %v2371, %v2372
    %2466 = vadd.xlane.f32.xlu0 %v2465
    %v2467 = vpop.xlane.xlu0 %2466
    %v2468 = vadd.f32 %v2373, %v2374
    %2469 = vadd.xlane.f32.xlu0 %v2468
    %v2470 = vpop.xlane.xlu0 %2469
    %v2471 = vmul.f32 %v2377, %v1057
    %v2472 = vmul.f32 %v2380, %v1057
    %v2473 = vmul.f32 %v2383, %v1057
    %v2474 = vmul.f32 %v2386, %v1057
    %v2475 = vmul.f32 %v2389, %v1057
    %v2476 = vmul.f32 %v2392, %v1057
    %v2477 = vmul.f32 %v2395, %v1057
    %v2478 = vmul.f32 %v2398, %v1057
    %v2479 = vmul.f32 %v2401, %v1057
    %v2480 = vmul.f32 %v2404, %v1057
    %v2481 = vmul.f32 %v2407, %v1057
    %v2482 = vmul.f32 %v2410, %v1057
    %v2483 = vmul.f32 %v2413, %v1057
    %v2484 = vmul.f32 %v2416, %v1057
    %v2485 = vmul.f32 %v2419, %v1057
    %v2486 = vmul.f32 %v2422, %v1057
    %v2487 = vmul.f32 %v2425, %v1057
    %v2488 = vmul.f32 %v2428, %v1057
    %v2489 = vmul.f32 %v2431, %v1057
    %v2490 = vmul.f32 %v2434, %v1057
    %v2491 = vmul.f32 %v2437, %v1057
    %v2492 = vmul.f32 %v2440, %v1057
    %v2493 = vmul.f32 %v2443, %v1057
    %v2494 = vmul.f32 %v2446, %v1057
    %v2495 = vmul.f32 %v2449, %v1057
    %v2496 = vmul.f32 %v2452, %v1057
    %v2497 = vmul.f32 %v2455, %v1057
    %v2498 = vmul.f32 %v2458, %v1057
    %v2499 = vmul.f32 %v2461, %v1057
    %v2500 = vmul.f32 %v2464, %v1057
    %v2501 = vmul.f32 %v2467, %v1057
    %v2502 = vmul.f32 %v2470, %v1057
    %v2503 = vadd.f32 %v2471, 1e-05
    %v2504 = vadd.f32 %v2472, 1e-05
    %v2505 = vadd.f32 %v2473, 1e-05
    %v2506 = vadd.f32 %v2474, 1e-05
    %v2507 = vadd.f32 %v2475, 1e-05
    %v2508 = vadd.f32 %v2476, 1e-05
    %v2509 = vadd.f32 %v2477, 1e-05
    %v2510 = vadd.f32 %v2478, 1e-05
    %v2511 = vadd.f32 %v2479, 1e-05
    %v2512 = vadd.f32 %v2480, 1e-05
    %v2513 = vadd.f32 %v2481, 1e-05
    %v2514 = vadd.f32 %v2482, 1e-05
    %v2515 = vadd.f32 %v2483, 1e-05
    %v2516 = vadd.f32 %v2484, 1e-05
    %v2517 = vadd.f32 %v2485, 1e-05
    %v2518 = vadd.f32 %v2486, 1e-05
    %v2519 = vadd.f32 %v2487, 1e-05
    %v2520 = vadd.f32 %v2488, 1e-05
    %v2521 = vadd.f32 %v2489, 1e-05
    %v2522 = vadd.f32 %v2490, 1e-05
    %v2523 = vadd.f32 %v2491, 1e-05
    %v2524 = vadd.f32 %v2492, 1e-05
    %v2525 = vadd.f32 %v2493, 1e-05
    %v2526 = vadd.f32 %v2494, 1e-05
    %v2527 = vadd.f32 %v2495, 1e-05
    %v2528 = vadd.f32 %v2496, 1e-05
    %v2529 = vadd.f32 %v2497, 1e-05
    %v2530 = vadd.f32 %v2498, 1e-05
    %v2531 = vadd.f32 %v2499, 1e-05
    %v2532 = vadd.f32 %v2500, 1e-05
    %v2533 = vadd.f32 %v2501, 1e-05
    %v2534 = vadd.f32 %v2502, 1e-05
    %v2535 = vrsqrt.pop %v2503
    %v2536 = vrsqrt.pop %v2504
    %v2537 = vrsqrt.pop %v2505
    %v2538 = vrsqrt.pop %v2506
    %v2539 = vrsqrt.pop %v2507
    %v2540 = vrsqrt.pop %v2508
    %v2541 = vrsqrt.pop %v2509
    %v2542 = vrsqrt.pop %v2510
    %v2543 = vrsqrt.pop %v2511
    %v2544 = vrsqrt.pop %v2512
    %v2545 = vrsqrt.pop %v2513
    %v2546 = vrsqrt.pop %v2514
    %v2547 = vrsqrt.pop %v2515
    %v2548 = vrsqrt.pop %v2516
    %v2549 = vrsqrt.pop %v2517
    %v2550 = vrsqrt.pop %v2518
    %v2551 = vrsqrt.pop %v2519
    %v2552 = vrsqrt.pop %v2520
    %v2553 = vrsqrt.pop %v2521
    %v2554 = vrsqrt.pop %v2522
    %v2555 = vrsqrt.pop %v2523
    %v2556 = vrsqrt.pop %v2524
    %v2557 = vrsqrt.pop %v2525
    %v2558 = vrsqrt.pop %v2526
    %v2559 = vrsqrt.pop %v2527
    %v2560 = vrsqrt.pop %v2528
    %v2561 = vrsqrt.pop %v2529
    %v2562 = vrsqrt.pop %v2530
    %v2563 = vrsqrt.pop %v2531
    %v2564 = vrsqrt.pop %v2532
    %v2565 = vrsqrt.pop %v2533
    %v2566 = vrsqrt.pop %v2534
    %v2567 = vmul.f32 %v2247, %v2535
    %v2568 = vmul.f32 %v2248, %v2535
    %v2569 = vmul.f32 %v2249, %v2536
    %v2570 = vmul.f32 %v2250, %v2536
    %v2571 = vmul.f32 %v2251, %v2537
    %v2572 = vmul.f32 %v2252, %v2537
    %v2573 = vmul.f32 %v2253, %v2538
    %v2574 = vmul.f32 %v2254, %v2538
    %v2575 = vmul.f32 %v2255, %v2539
    %v2576 = vmul.f32 %v2256, %v2539
    %v2577 = vmul.f32 %v2257, %v2540
    %v2578 = vmul.f32 %v2258, %v2540
    %v2579 = vmul.f32 %v2259, %v2541
    %v2580 = vmul.f32 %v2260, %v2541
    %v2581 = vmul.f32 %v2261, %v2542
    %v2582 = vmul.f32 %v2262, %v2542
    %v2583 = vmul.f32 %v2263, %v2543
    %v2584 = vmul.f32 %v2264, %v2543
    %v2585 = vmul.f32 %v2265, %v2544
    %v2586 = vmul.f32 %v2266, %v2544
    %v2587 = vmul.f32 %v2267, %v2545
    %v2588 = vmul.f32 %v2268, %v2545
    %v2589 = vmul.f32 %v2269, %v2546
    %v2590 = vmul.f32 %v2270, %v2546
    %v2591 = vmul.f32 %v2271, %v2547
    %v2592 = vmul.f32 %v2272, %v2547
    %v2593 = vmul.f32 %v2273, %v2548
    %v2594 = vmul.f32 %v2274, %v2548
    %v2595 = vmul.f32 %v2275, %v2549
    %v2596 = vmul.f32 %v2276, %v2549
    %v2597 = vmul.f32 %v2277, %v2550
    %v2598 = vmul.f32 %v2278, %v2550
    %v2599 = vmul.f32 %v2279, %v2551
    %v2600 = vmul.f32 %v2280, %v2551
    %v2601 = vmul.f32 %v2281, %v2552
    %v2602 = vmul.f32 %v2282, %v2552
    %v2603 = vmul.f32 %v2283, %v2553
    %v2604 = vmul.f32 %v2284, %v2553
    %v2605 = vmul.f32 %v2285, %v2554
    %v2606 = vmul.f32 %v2286, %v2554
    %v2607 = vmul.f32 %v2287, %v2555
    %v2608 = vmul.f32 %v2288, %v2555
    %v2609 = vmul.f32 %v2289, %v2556
    %v2610 = vmul.f32 %v2290, %v2556
    %v2611 = vmul.f32 %v2291, %v2557
    %v2612 = vmul.f32 %v2292, %v2557
    %v2613 = vmul.f32 %v2293, %v2558
    %v2614 = vmul.f32 %v2294, %v2558
    %v2615 = vmul.f32 %v2295, %v2559
    %v2616 = vmul.f32 %v2296, %v2559
    %v2617 = vmul.f32 %v2297, %v2560
    %v2618 = vmul.f32 %v2298, %v2560
    %v2619 = vmul.f32 %v2299, %v2561
    %v2620 = vmul.f32 %v2300, %v2561
    %v2621 = vmul.f32 %v2301, %v2562
    %v2622 = vmul.f32 %v2302, %v2562
    %v2623 = vmul.f32 %v2303, %v2563
    %v2624 = vmul.f32 %v2304, %v2563
    %v2625 = vmul.f32 %v2305, %v2564
    %v2626 = vmul.f32 %v2306, %v2564
    %v2627 = vmul.f32 %v2307, %v2565
    %v2628 = vmul.f32 %v2308, %v2565
    %v2629 = vmul.f32 %v2309, %v2566
    %v2630 = vmul.f32 %v2310, %v2566
    %v2632 = vlaneseq
    %v2633 = vshrl.u32 %v2632, 7
    %v2634 = vsub.s32 0, %v2633
    %v2635 = vrot.slane %v2117, %v2634
    %v2636 = vlaneseq
    %v2637 = vshrl.u32 %v2636, 7
    %v2638 = vsub.s32 1, %v2637
    %v2639 = vrot.slane %v2117, %v2638
    %v2642 = vmul.f32 %v2567, %v2635
    %v2643 = vmul.f32 %v2568, %v2639
    %v2644 = vmul.f32 %v2569, %v2635
    %v2645 = vmul.f32 %v2570, %v2639
    %v2646 = vmul.f32 %v2571, %v2635
    %v2647 = vmul.f32 %v2572, %v2639
    %v2648 = vmul.f32 %v2573, %v2635
    %v2649 = vmul.f32 %v2574, %v2639
    %v2650 = vmul.f32 %v2575, %v2635
    %v2651 = vmul.f32 %v2576, %v2639
    %v2652 = vmul.f32 %v2577, %v2635
    %v2653 = vmul.f32 %v2578, %v2639
    %v2654 = vmul.f32 %v2579, %v2635
    %v2655 = vmul.f32 %v2580, %v2639
    %v2656 = vmul.f32 %v2581, %v2635
    %v2657 = vmul.f32 %v2582, %v2639
    %v2658 = vmul.f32 %v2583, %v2635
    %v2659 = vmul.f32 %v2584, %v2639
    %v2660 = vmul.f32 %v2585, %v2635
    %v2661 = vmul.f32 %v2586, %v2639
    %v2662 = vmul.f32 %v2587, %v2635
    %v2663 = vmul.f32 %v2588, %v2639
    %v2664 = vmul.f32 %v2589, %v2635
    %v2665 = vmul.f32 %v2590, %v2639
    %v2666 = vmul.f32 %v2591, %v2635
    %v2667 = vmul.f32 %v2592, %v2639
    %v2668 = vmul.f32 %v2593, %v2635
    %v2669 = vmul.f32 %v2594, %v2639
    %v2670 = vmul.f32 %v2595, %v2635
    %v2671 = vmul.f32 %v2596, %v2639
    %v2672 = vmul.f32 %v2597, %v2635
    %v2673 = vmul.f32 %v2598, %v2639
    %v2674 = vmul.f32 %v2599, %v2635
    %v2675 = vmul.f32 %v2600, %v2639
    %v2676 = vmul.f32 %v2601, %v2635
    %v2677 = vmul.f32 %v2602, %v2639
    %v2678 = vmul.f32 %v2603, %v2635
    %v2679 = vmul.f32 %v2604, %v2639
    %v2680 = vmul.f32 %v2605, %v2635
    %v2681 = vmul.f32 %v2606, %v2639
    %v2682 = vmul.f32 %v2607, %v2635
    %v2683 = vmul.f32 %v2608, %v2639
    %v2684 = vmul.f32 %v2609, %v2635
    %v2685 = vmul.f32 %v2610, %v2639
    %v2686 = vmul.f32 %v2611, %v2635
    %v2687 = vmul.f32 %v2612, %v2639
    %v2688 = vmul.f32 %v2613, %v2635
    %v2689 = vmul.f32 %v2614, %v2639
    %v2690 = vmul.f32 %v2615, %v2635
    %v2691 = vmul.f32 %v2616, %v2639
    %v2692 = vmul.f32 %v2617, %v2635
    %v2693 = vmul.f32 %v2618, %v2639
    %v2694 = vmul.f32 %v2619, %v2635
    %v2695 = vmul.f32 %v2620, %v2639
    %v2696 = vmul.f32 %v2621, %v2635
    %v2697 = vmul.f32 %v2622, %v2639
    %v2698 = vmul.f32 %v2623, %v2635
    %v2699 = vmul.f32 %v2624, %v2639
    %v2700 = vmul.f32 %v2625, %v2635
    %v2701 = vmul.f32 %v2626, %v2639
    %v2702 = vmul.f32 %v2627, %v2635
    %v2703 = vmul.f32 %v2628, %v2639
    %v2704 = vmul.f32 %v2629, %v2635
    %v2705 = vmul.f32 %v2630, %v2639
    %v2707 = vlaneseq
    %v2708 = vshrl.u32 %v2707, 7
    %v2709 = vsub.s32 0, %v2708
    %v2710 = vrot.slane %v2118, %v2709
    %v2711 = vlaneseq
    %v2712 = vshrl.u32 %v2711, 7
    %v2713 = vsub.s32 1, %v2712
    %v2714 = vrot.slane %v2118, %v2713
    %v2717 = vadd.f32 %v2642, %v2710
    %v2718 = vadd.f32 %v2643, %v2714
    %v2719 = vadd.f32 %v2644, %v2710
    %v2720 = vadd.f32 %v2645, %v2714
    %v2721 = vadd.f32 %v2646, %v2710
    %v2722 = vadd.f32 %v2647, %v2714
    %v2723 = vadd.f32 %v2648, %v2710
    %v2724 = vadd.f32 %v2649, %v2714
    %v2725 = vadd.f32 %v2650, %v2710
    %v2726 = vadd.f32 %v2651, %v2714
    %v2727 = vadd.f32 %v2652, %v2710
    %v2728 = vadd.f32 %v2653, %v2714
    %v2729 = vadd.f32 %v2654, %v2710
    %v2730 = vadd.f32 %v2655, %v2714
    %v2731 = vadd.f32 %v2656, %v2710
    %v2732 = vadd.f32 %v2657, %v2714
    %v2733 = vadd.f32 %v2658, %v2710
    %v2734 = vadd.f32 %v2659, %v2714
    %v2735 = vadd.f32 %v2660, %v2710
    %v2736 = vadd.f32 %v2661, %v2714
    %v2737 = vadd.f32 %v2662, %v2710
    %v2738 = vadd.f32 %v2663, %v2714
    %v2739 = vadd.f32 %v2664, %v2710
    %v2740 = vadd.f32 %v2665, %v2714
    %v2741 = vadd.f32 %v2666, %v2710
    %v2742 = vadd.f32 %v2667, %v2714
    %v2743 = vadd.f32 %v2668, %v2710
    %v2744 = vadd.f32 %v2669, %v2714
    %v2745 = vadd.f32 %v2670, %v2710
    %v2746 = vadd.f32 %v2671, %v2714
    %v2747 = vadd.f32 %v2672, %v2710
    %v2748 = vadd.f32 %v2673, %v2714
    %v2749 = vadd.f32 %v2674, %v2710
    %v2750 = vadd.f32 %v2675, %v2714
    %v2751 = vadd.f32 %v2676, %v2710
    %v2752 = vadd.f32 %v2677, %v2714
    %v2753 = vadd.f32 %v2678, %v2710
    %v2754 = vadd.f32 %v2679, %v2714
    %v2755 = vadd.f32 %v2680, %v2710
    %v2756 = vadd.f32 %v2681, %v2714
    %v2757 = vadd.f32 %v2682, %v2710
    %v2758 = vadd.f32 %v2683, %v2714
    %v2759 = vadd.f32 %v2684, %v2710
    %v2760 = vadd.f32 %v2685, %v2714
    %v2761 = vadd.f32 %v2686, %v2710
    %v2762 = vadd.f32 %v2687, %v2714
    %v2763 = vadd.f32 %v2688, %v2710
    %v2764 = vadd.f32 %v2689, %v2714
    %v2765 = vadd.f32 %v2690, %v2710
    %v2766 = vadd.f32 %v2691, %v2714
    %v2767 = vadd.f32 %v2692, %v2710
    %v2768 = vadd.f32 %v2693, %v2714
    %v2769 = vadd.f32 %v2694, %v2710
    %v2770 = vadd.f32 %v2695, %v2714
    %v2771 = vadd.f32 %v2696, %v2710
    %v2772 = vadd.f32 %v2697, %v2714
    %v2773 = vadd.f32 %v2698, %v2710
    %v2774 = vadd.f32 %v2699, %v2714
    %v2775 = vadd.f32 %v2700, %v2710
    %v2776 = vadd.f32 %v2701, %v2714
    %v2777 = vadd.f32 %v2702, %v2710
    %v2778 = vadd.f32 %v2703, %v2714
    %v2779 = vadd.f32 %v2704, %v2710
    %v2780 = vadd.f32 %v2705, %v2714
    %v2781 = vpack.c.bf16 %v2719, %v2717
    %v2782 = vpack.c.bf16 %v2720, %v2718
    %v2783 = vpack.c.bf16 %v2723, %v2721
    %v2784 = vpack.c.bf16 %v2724, %v2722
    %v2785 = vpack.c.bf16 %v2727, %v2725
    %v2786 = vpack.c.bf16 %v2728, %v2726
    %v2787 = vpack.c.bf16 %v2731, %v2729
    %v2788 = vpack.c.bf16 %v2732, %v2730
    %v2789 = vpack.c.bf16 %v2735, %v2733
    %v2790 = vpack.c.bf16 %v2736, %v2734
    %v2791 = vpack.c.bf16 %v2739, %v2737
    %v2792 = vpack.c.bf16 %v2740, %v2738
    %v2793 = vpack.c.bf16 %v2743, %v2741
    %v2794 = vpack.c.bf16 %v2744, %v2742
    %v2795 = vpack.c.bf16 %v2747, %v2745
    %v2796 = vpack.c.bf16 %v2748, %v2746
    %v2797 = vpack.c.bf16 %v2751, %v2749
    %v2798 = vpack.c.bf16 %v2752, %v2750
    %v2799 = vpack.c.bf16 %v2755, %v2753
    %v2800 = vpack.c.bf16 %v2756, %v2754
    %v2801 = vpack.c.bf16 %v2759, %v2757
    %v2802 = vpack.c.bf16 %v2760, %v2758
    %v2803 = vpack.c.bf16 %v2763, %v2761
    %v2804 = vpack.c.bf16 %v2764, %v2762
    %v2805 = vpack.c.bf16 %v2767, %v2765
    %v2806 = vpack.c.bf16 %v2768, %v2766
    %v2807 = vpack.c.bf16 %v2771, %v2769
    %v2808 = vpack.c.bf16 %v2772, %v2770
    %v2809 = vpack.c.bf16 %v2775, %v2773
    %v2810 = vpack.c.bf16 %v2776, %v2774
    %v2811 = vpack.c.bf16 %v2779, %v2777
    %v2812 = vpack.c.bf16 %v2780, %v2778
    %v2813 = vld [vmem:[#allocation5] sm:$0xf]
    %v2814 = vld [vmem:[#allocation5 + $0x4] sm:$0xf]
    %v2815 = vld [vmem:[#allocation5 + $0x8] sm:$0xf]
    %v2816 = vld [vmem:[#allocation5 + $0xc] sm:$0xf]
    %v2817 = vld [vmem:[#allocation5 + $0x10] sm:$0xf]
    %v2818 = vld [vmem:[#allocation5 + $0x14] sm:$0xf]
    %v2819 = vld [vmem:[#allocation5 + $0x18] sm:$0xf]
    %v2820 = vld [vmem:[#allocation5 + $0x1c] sm:$0xf]
    %v2821 = vld [vmem:[#allocation5 + $0x20] sm:$0xf]
    %v2822 = vld [vmem:[#allocation5 + $0x24] sm:$0xf]
    %v2823 = vld [vmem:[#allocation5 + $0x28] sm:$0xf]
    %v2824 = vld [vmem:[#allocation5 + $0x2c] sm:$0xf]
    %v2825 = vld [vmem:[#allocation5 + $0x30] sm:$0xf]
    %v2826 = vld [vmem:[#allocation5 + $0x34] sm:$0xf]
    %v2827 = vld [vmem:[#allocation5 + $0x38] sm:$0xf]
    %v2828 = vld [vmem:[#allocation5 + $0x3c] sm:$0xf]
    %v2829 = vld [vmem:[#allocation5 + $0x40] sm:$0xf]
    %v2830 = vld [vmem:[#allocation5 + $0x44] sm:$0xf]
    %v2831 = vld [vmem:[#allocation5 + $0x48] sm:$0xf]
    %v2832 = vld [vmem:[#allocation5 + $0x4c] sm:$0xf]
    %v2833 = vld [vmem:[#allocation5 + $0x50] sm:$0xf]
    %v2834 = vld [vmem:[#allocation5 + $0x54] sm:$0xf]
    %v2835 = vld [vmem:[#allocation5 + $0x58] sm:$0xf]
    %v2836 = vld [vmem:[#allocation5 + $0x5c] sm:$0xf]
    %v2837 = vld [vmem:[#allocation5 + $0x60] sm:$0xf]
    %v2838 = vld [vmem:[#allocation5 + $0x64] sm:$0xf]
    %v2839 = vld [vmem:[#allocation5 + $0x68] sm:$0xf]
    %v2840 = vld [vmem:[#allocation5 + $0x6c] sm:$0xf]
    %v2841 = vld [vmem:[#allocation5 + $0x70] sm:$0xf]
    %v2842 = vld [vmem:[#allocation5 + $0x74] sm:$0xf]
    %v2843 = vld [vmem:[#allocation5 + $0x78] sm:$0xf]
    %v2844 = vld [vmem:[#allocation5 + $0x7c] sm:$0xf]
    %v2845 = vld [vmem:[%s12] sm:$0x1]
    %v2847 = vlaneseq
    %v2848 = vshrl.u32 %v2847, 7
    %v2849 = vsub.s32 0, %v2848
    %v2850 = vrot.slane %v2845, %v2849
    %v2884 = vunpack.c.l.b16 %v2813
    %v2885 = vunpack.c.l.b16 %v2814
    %v2886 = vunpack.c.l.b16 %v2815
    %v2887 = vunpack.c.l.b16 %v2816
    %v2888 = vunpack.c.l.b16 %v2817
    %v2889 = vunpack.c.l.b16 %v2818
    %v2890 = vunpack.c.l.b16 %v2819
    %v2891 = vunpack.c.l.b16 %v2820
    %v2892 = vunpack.c.l.b16 %v2821
    %v2893 = vunpack.c.l.b16 %v2822
    %v2894 = vunpack.c.l.b16 %v2823
    %v2895 = vunpack.c.l.b16 %v2824
    %v2896 = vunpack.c.l.b16 %v2825
    %v2897 = vunpack.c.l.b16 %v2826
    %v2898 = vunpack.c.l.b16 %v2827
    %v2899 = vunpack.c.l.b16 %v2828
    %v2900 = vunpack.c.l.b16 %v2829
    %v2901 = vunpack.c.l.b16 %v2830
    %v2902 = vunpack.c.l.b16 %v2831
    %v2903 = vunpack.c.l.b16 %v2832
    %v2904 = vunpack.c.l.b16 %v2833
    %v2905 = vunpack.c.l.b16 %v2834
    %v2906 = vunpack.c.l.b16 %v2835
    %v2907 = vunpack.c.l.b16 %v2836
    %v2908 = vunpack.c.l.b16 %v2837
    %v2909 = vunpack.c.l.b16 %v2838
    %v2910 = vunpack.c.l.b16 %v2839
    %v2911 = vunpack.c.l.b16 %v2840
    %v2912 = vunpack.c.l.b16 %v2841
    %v2913 = vunpack.c.l.b16 %v2842
    %v2914 = vunpack.c.l.b16 %v2843
    %v2915 = vunpack.c.l.b16 %v2844
    %v2916 = vpack.c.b16 %v2885, %v2884
    %v2917 = vpack.c.b16 %v2887, %v2886
    %v2918 = vpack.c.b16 %v2889, %v2888
    %v2919 = vpack.c.b16 %v2891, %v2890
    %v2920 = vpack.c.b16 %v2893, %v2892
    %v2921 = vpack.c.b16 %v2895, %v2894
    %v2922 = vpack.c.b16 %v2897, %v2896
    %v2923 = vpack.c.b16 %v2899, %v2898
    %v2924 = vpack.c.b16 %v2901, %v2900
    %v2925 = vpack.c.b16 %v2903, %v2902
    %v2926 = vpack.c.b16 %v2905, %v2904
    %v2927 = vpack.c.b16 %v2907, %v2906
    %v2928 = vpack.c.b16 %v2909, %v2908
    %v2929 = vpack.c.b16 %v2911, %v2910
    %v2930 = vpack.c.b16 %v2913, %v2912
    %v2931 = vpack.c.b16 %v2915, %v2914
    %2948 = vmatprep.subr.bf16.mxu0 0
    %2949 = vmatpush1.bf16.msra.mxu0 %v2916
    %2950 = vmatprep.subr.bf16.mxu0 0
    %2951 = vmatpush1.bf16.msra.mxu0 %v2917
    %2952 = vmatprep.subr.bf16.mxu0 0
    %2953 = vmatpush1.bf16.msra.mxu0 %v2918
    %2954 = vmatprep.subr.bf16.mxu0 0
    %2955 = vmatpush1.bf16.msra.mxu0 %v2919
    %2956 = vmatprep.subr.bf16.mxu0 0
    %2957 = vmatpush1.bf16.msra.mxu0 %v2920
    %2958 = vmatprep.subr.bf16.mxu0 0
    %2959 = vmatpush1.bf16.msra.mxu0 %v2921
    %2960 = vmatprep.subr.bf16.mxu0 0
    %2961 = vmatpush1.bf16.msra.mxu0 %v2922
    %2962 = vmatprep.subr.bf16.mxu0 0
    %2963 = vmatpush1.bf16.msra.mxu0 %v2923
    %2964 = vmatprep.subr.bf16.mxu0 0
    %2965 = vmatpush1.bf16.msra.mxu0 %v2924
    %2966 = vmatprep.subr.bf16.mxu0 0
    %2967 = vmatpush1.bf16.msra.mxu0 %v2925
    %2968 = vmatprep.subr.bf16.mxu0 0
    %2969 = vmatpush1.bf16.msra.mxu0 %v2926
    %2970 = vmatprep.subr.bf16.mxu0 0
    %2971 = vmatpush1.bf16.msra.mxu0 %v2927
    %2972 = vmatprep.subr.bf16.mxu0 0
    %2973 = vmatpush1.bf16.msra.mxu0 %v2928
    %2974 = vmatprep.subr.bf16.mxu0 0
    %2975 = vmatpush1.bf16.msra.mxu0 %v2929
    %2976 = vmatprep.subr.bf16.mxu0 0
    %2977 = vmatpush1.bf16.msra.mxu0 %v2930
    %2978 = vmatprep.subr.bf16.mxu0 0
    %2979 = vmatpush1.bf16.msra.mxu0 %v2931
    %2980 = vmatprep.mubr.bf16.mxu0 %v2782
    %2981 = vmatmul.mubr.bf16.gmra.mrb[0].mxu0 %v2781
    %v2982 = vpop.f32.mrb[0].mxu0
    %v2983 = vadd.f32 %v2850, %v2982
    %v2984 = vpop.f32.mrb[0].mxu0
    %v2985 = vpop.f32.mrb[0].mxu0
    %v2986 = vadd.f32 %v2850, %v2985
    %v2987 = vpop.f32.mrb[0].mxu0
    %2988 = vmatprep.mubr.bf16.mxu0 %v2784
    %2989 = vmatmul.mubr.bf16.gmra.mrb[0].mxu0 %v2783
    %v2990 = vpop.f32.mrb[0].mxu0
    %v2991 = vadd.f32 %v2850, %v2990
    %v2992 = vpop.f32.mrb[0].mxu0
    %v2993 = vpop.f32.mrb[0].mxu0
    %v2994 = vadd.f32 %v2850, %v2993
    %v2995 = vpop.f32.mrb[0].mxu0
    %2996 = vmatprep.mubr.bf16.mxu0 %v2786
    %2997 = vmatmul.mubr.bf16.gmra.mrb[0].mxu0 %v2785
    %v2998 = vpop.f32.mrb[0].mxu0
    %v2999 = vadd.f32 %v2850, %v2998
    %v3000 = vpop.f32.mrb[0].mxu0
    %v3001 = vpop.f32.mrb[0].mxu0
    %v3002 = vadd.f32 %v2850, %v3001
    %v3003 = vpop.f32.mrb[0].mxu0
    %3004 = vmatprep.mubr.bf16.mxu0 %v2788
    %3005 = vmatmul.mubr.bf16.gmra.mrb[0].mxu0 %v2787
    %v3006 = vpop.f32.mrb[0].mxu0
    %v3007 = vadd.f32 %v2850, %v3006
    %v3008 = vpop.f32.mrb[0].mxu0
    %v3009 = vpop.f32.mrb[0].mxu0
    %v3010 = vadd.f32 %v2850, %v3009
    %v3011 = vpop.f32.mrb[0].mxu0
    %3012 = vmatprep.mubr.bf16.mxu0 %v2790
    %3013 = vmatmul.mubr.bf16.gmra.mrb[0].mxu0 %v2789
    %v3014 = vpop.f32.mrb[0].mxu0
    %v3015 = vadd.f32 %v2850, %v3014
    %v3016 = vpop.f32.mrb[0].mxu0
    %v3017 = vpop.f32.mrb[0].mxu0
    %v3018 = vadd.f32 %v2850, %v3017
    %v3019 = vpop.f32.mrb[0].mxu0
    %3020 = vmatprep.mubr.bf16.mxu0 %v2792
    %3021 = vmatmul.mubr.bf16.gmra.mrb[0].mxu0 %v2791
    %v3022 = vpop.f32.mrb[0].mxu0
    %v3023 = vadd.f32 %v2850, %v3022
    %v3024 = vpop.f32.mrb[0].mxu0
    %v3025 = vpop.f32.mrb[0].mxu0
    %v3026 = vadd.f32 %v2850, %v3025
    %v3027 = vpop.f32.mrb[0].mxu0
    %3028 = vmatprep.mubr.bf16.mxu0 %v2794
    %3029 = vmatmul.mubr.bf16.gmra.mrb[0].mxu0 %v2793
    %v3030 = vpop.f32.mrb[0].mxu0
    %v3031 = vadd.f32 %v2850, %v3030
    %v3032 = vpop.f32.mrb[0].mxu0
    %v3033 = vpop.f32.mrb[0].mxu0
    %v3034 = vadd.f32 %v2850, %v3033
    %v3035 = vpop.f32.mrb[0].mxu0
    %3036 = vmatprep.mubr.bf16.mxu0 %v2796
    %3037 = vmatmul.mubr.bf16.gmra.mrb[0].mxu0 %v2795
    %v3038 = vpop.f32.mrb[0].mxu0
    %v3039 = vadd.f32 %v2850, %v3038
    %v3040 = vpop.f32.mrb[0].mxu0
    %v3041 = vpop.f32.mrb[0].mxu0
    %v3042 = vadd.f32 %v2850, %v3041
    %v3043 = vpop.f32.mrb[0].mxu0
    %3044 = vmatprep.mubr.bf16.mxu0 %v2798
    %3045 = vmatmul.mubr.bf16.gmra.mrb[0].mxu0 %v2797
    %v3046 = vpop.f32.mrb[0].mxu0
    %v3047 = vadd.f32 %v2850, %v3046
    %v3048 = vpop.f32.mrb[0].mxu0
    %v3049 = vpop.f32.mrb[0].mxu0
    %v3050 = vadd.f32 %v2850, %v3049
    %v3051 = vpop.f32.mrb[0].mxu0
    %3052 = vmatprep.mubr.bf16.mxu0 %v2800
    %3053 = vmatmul.mubr.bf16.gmra.mrb[0].mxu0 %v2799
    %v3054 = vpop.f32.mrb[0].mxu0
    %v3055 = vadd.f32 %v2850, %v3054
    %v3056 = vpop.f32.mrb[0].mxu0
    %v3057 = vpop.f32.mrb[0].mxu0
    %v3058 = vadd.f32 %v2850, %v3057
    %v3059 = vpop.f32.mrb[0].mxu0
    %3060 = vmatprep.mubr.bf16.mxu0 %v2802
    %3061 = vmatmul.mubr.bf16.gmra.mrb[0].mxu0 %v2801
    %v3062 = vpop.f32.mrb[0].mxu0
    %v3063 = vadd.f32 %v2850, %v3062
    %v3064 = vpop.f32.mrb[0].mxu0
    %v3065 = vpop.f32.mrb[0].mxu0
    %v3066 = vadd.f32 %v2850, %v3065
    %v3067 = vpop.f32.mrb[0].mxu0
    %3068 = vmatprep.mubr.bf16.mxu0 %v2804
    %3069 = vmatmul.mubr.bf16.gmra.mrb[0].mxu0 %v2803
    %v3070 = vpop.f32.mrb[0].mxu0
    %v3071 = vadd.f32 %v2850, %v3070
    %v3072 = vpop.f32.mrb[0].mxu0
    %v3073 = vpop.f32.mrb[0].mxu0
    %v3074 = vadd.f32 %v2850, %v3073
    %v3075 = vpop.f32.mrb[0].mxu0
    %3076 = vmatprep.mubr.bf16.mxu0 %v2806
    %3077 = vmatmul.mubr.bf16.gmra.mrb[0].mxu0 %v2805
    %v3078 = vpop.f32.mrb[0].mxu0
    %v3079 = vadd.f32 %v2850, %v3078
    %v3080 = vpop.f32.mrb[0].mxu0
    %v3081 = vpop.f32.mrb[0].mxu0
    %v3082 = vadd.f32 %v2850, %v3081
    %v3083 = vpop.f32.mrb[0].mxu0
    %3084 = vmatprep.mubr.bf16.mxu0 %v2808
    %3085 = vmatmul.mubr.bf16.gmra.mrb[0].mxu0 %v2807
    %v3086 = vpop.f32.mrb[0].mxu0
    %v3087 = vadd.f32 %v2850, %v3086
    %v3088 = vpop.f32.mrb[0].mxu0
    %v3089 = vpop.f32.mrb[0].mxu0
    %v3090 = vadd.f32 %v2850, %v3089
    %v3091 = vpop.f32.mrb[0].mxu0
    %3092 = vmatprep.mubr.bf16.mxu0 %v2810
    %3093 = vmatmul.mubr.bf16.gmra.mrb[0].mxu0 %v2809
    %v3094 = vpop.f32.mrb[0].mxu0
    %v3095 = vadd.f32 %v2850, %v3094
    %v3096 = vpop.f32.mrb[0].mxu0
    %v3097 = vpop.f32.mrb[0].mxu0
    %v3098 = vadd.f32 %v2850, %v3097
    %v3099 = vpop.f32.mrb[0].mxu0
    %3100 = vmatprep.mubr.bf16.mxu0 %v2812
    %3101 = vmatmul.mubr.bf16.gmra.mrb[0].mxu0 %v2811
    %v3102 = vpop.f32.mrb[0].mxu0
    %v3103 = vadd.f32 %v2850, %v3102
    %v3104 = vpop.f32.mrb[0].mxu0
    %v3105 = vpop.f32.mrb[0].mxu0
    %v3106 = vadd.f32 %v2850, %v3105
    %v3107 = vpop.f32.mrb[0].mxu0
    %3108 = vdwg.mxu0
    %v3109 = vxor.u32 %v2983, 2147483648
    %v3110 = vxor.u32 %v2986, 2147483648
    %v3111 = vxor.u32 %v2991, 2147483648
    %v3112 = vxor.u32 %v2994, 2147483648
    %v3113 = vxor.u32 %v2999, 2147483648
    %v3114 = vxor.u32 %v3002, 2147483648
    %v3115 = vxor.u32 %v3007, 2147483648
    %v3116 = vxor.u32 %v3010, 2147483648
    %v3117 = vxor.u32 %v3015, 2147483648
    %v3118 = vxor.u32 %v3018, 2147483648
    %v3119 = vxor.u32 %v3023, 2147483648
    %v3120 = vxor.u32 %v3026, 2147483648
    %v3121 = vxor.u32 %v3031, 2147483648
    %v3122 = vxor.u32 %v3034, 2147483648
    %v3123 = vxor.u32 %v3039, 2147483648
    %v3124 = vxor.u32 %v3042, 2147483648
    %v3125 = vxor.u32 %v3047, 2147483648
    %v3126 = vxor.u32 %v3050, 2147483648
    %v3127 = vxor.u32 %v3055, 2147483648
    %v3128 = vxor.u32 %v3058, 2147483648
    %v3129 = vxor.u32 %v3063, 2147483648
    %v3130 = vxor.u32 %v3066, 2147483648
    %v3131 = vxor.u32 %v3071, 2147483648
    %v3132 = vxor.u32 %v3074, 2147483648
    %v3133 = vxor.u32 %v3079, 2147483648
    %v3134 = vxor.u32 %v3082, 2147483648
    %v3135 = vxor.u32 %v3087, 2147483648
    %v3136 = vxor.u32 %v3090, 2147483648
    %v3137 = vxor.u32 %v3095, 2147483648
    %v3138 = vxor.u32 %v3098, 2147483648
    %v3139 = vxor.u32 %v3103, 2147483648
    %v3140 = vxor.u32 %v3106, 2147483648
    %v3141 = vmul.f32 %v3109, 1.442695
    %v3142 = vpow.pop %v3141
    %v3143 = vmul.f32 %v3110, 1.442695
    %v3144 = vpow.pop %v3143
    %v3145 = vmul.f32 %v3111, 1.442695
    %v3146 = vpow.pop %v3145
    %v3147 = vmul.f32 %v3112, 1.442695
    %v3148 = vpow.pop %v3147
    %v3149 = vmul.f32 %v3113, 1.442695
    %v3150 = vpow.pop %v3149
    %v3151 = vmul.f32 %v3114, 1.442695
    %v3152 = vpow.pop %v3151
    %v3153 = vmul.f32 %v3115, 1.442695
    %v3154 = vpow.pop %v3153
    %v3155 = vmul.f32 %v3116, 1.442695
    %v3156 = vpow.pop %v3155
    %v3157 = vmul.f32 %v3117, 1.442695
    %v3158 = vpow.pop %v3157
    %v3159 = vmul.f32 %v3118, 1.442695
    %v3160 = vpow.pop %v3159
    %v3161 = vmul.f32 %v3119, 1.442695
    %v3162 = vpow.pop %v3161
    %v3163 = vmul.f32 %v3120, 1.442695
    %v3164 = vpow.pop %v3163
    %v3165 = vmul.f32 %v3121, 1.442695
    %v3166 = vpow.pop %v3165
    %v3167 = vmul.f32 %v3122, 1.442695
    %v3168 = vpow.pop %v3167
    %v3169 = vmul.f32 %v3123, 1.442695
    %v3170 = vpow.pop %v3169
    %v3171 = vmul.f32 %v3124, 1.442695
    %v3172 = vpow.pop %v3171
    %v3173 = vmul.f32 %v3125, 1.442695
    %v3174 = vpow.pop %v3173
    %v3175 = vmul.f32 %v3126, 1.442695
    %v3176 = vpow.pop %v3175
    %v3177 = vmul.f32 %v3127, 1.442695
    %v3178 = vpow.pop %v3177
    %v3179 = vmul.f32 %v3128, 1.442695
    %v3180 = vpow.pop %v3179
    %v3181 = vmul.f32 %v3129, 1.442695
    %v3182 = vpow.pop %v3181
    %v3183 = vmul.f32 %v3130, 1.442695
    %v3184 = vpow.pop %v3183
    %v3185 = vmul.f32 %v3131, 1.442695
    %v3186 = vpow.pop %v3185
    %v3187 = vmul.f32 %v3132, 1.442695
    %v3188 = vpow.pop %v3187
    %v3189 = vmul.f32 %v3133, 1.442695
    %v3190 = vpow.pop %v3189
    %v3191 = vmul.f32 %v3134, 1.442695
    %v3192 = vpow.pop %v3191
    %v3193 = vmul.f32 %v3135, 1.442695
    %v3194 = vpow.pop %v3193
    %v3195 = vmul.f32 %v3136, 1.442695
    %v3196 = vpow.pop %v3195
    %v3197 = vmul.f32 %v3137, 1.442695
    %v3198 = vpow.pop %v3197
    %v3199 = vmul.f32 %v3138, 1.442695
    %v3200 = vpow.pop %v3199
    %v3201 = vmul.f32 %v3139, 1.442695
    %v3202 = vpow.pop %v3201
    %v3203 = vmul.f32 %v3140, 1.442695
    %v3204 = vpow.pop %v3203
    %v3205 = vadd.f32 %v3142, 1.0
    %v3206 = vadd.f32 %v3144, 1.0
    %v3207 = vadd.f32 %v3146, 1.0
    %v3208 = vadd.f32 %v3148, 1.0
    %v3209 = vadd.f32 %v3150, 1.0
    %v3210 = vadd.f32 %v3152, 1.0
    %v3211 = vadd.f32 %v3154, 1.0
    %v3212 = vadd.f32 %v3156, 1.0
    %v3213 = vadd.f32 %v3158, 1.0
    %v3214 = vadd.f32 %v3160, 1.0
    %v3215 = vadd.f32 %v3162, 1.0
    %v3216 = vadd.f32 %v3164, 1.0
    %v3217 = vadd.f32 %v3166, 1.0
    %v3218 = vadd.f32 %v3168, 1.0
    %v3219 = vadd.f32 %v3170, 1.0
    %v3220 = vadd.f32 %v3172, 1.0
    %v3221 = vadd.f32 %v3174, 1.0
    %v3222 = vadd.f32 %v3176, 1.0
    %v3223 = vadd.f32 %v3178, 1.0
    %v3224 = vadd.f32 %v3180, 1.0
    %v3225 = vadd.f32 %v3182, 1.0
    %v3226 = vadd.f32 %v3184, 1.0
    %v3227 = vadd.f32 %v3186, 1.0
    %v3228 = vadd.f32 %v3188, 1.0
    %v3229 = vadd.f32 %v3190, 1.0
    %v3230 = vadd.f32 %v3192, 1.0
    %v3231 = vadd.f32 %v3194, 1.0
    %v3232 = vadd.f32 %v3196, 1.0
    %v3233 = vadd.f32 %v3198, 1.0
    %v3234 = vadd.f32 %v3200, 1.0
    %v3235 = vadd.f32 %v3202, 1.0
    %v3236 = vadd.f32 %v3204, 1.0
    %v3237 = vrcp.pop %v3205
    %v3238 = vmul.f32 1.0, %v3237
    %v3239 = vrcp.pop %v3206
    %v3240 = vmul.f32 1.0, %v3239
    %v3241 = vrcp.pop %v3207
    %v3242 = vmul.f32 1.0, %v3241
    %v3243 = vrcp.pop %v3208
    %v3244 = vmul.f32 1.0, %v3243
    %v3245 = vrcp.pop %v3209
    %v3246 = vmul.f32 1.0, %v3245
    %v3247 = vrcp.pop %v3210
    %v3248 = vmul.f32 1.0, %v3247
    %v3249 = vrcp.pop %v3211
    %v3250 = vmul.f32 1.0, %v3249
    %v3251 = vrcp.pop %v3212
    %v3252 = vmul.f32 1.0, %v3251
    %v3253 = vrcp.pop %v3213
    %v3254 = vmul.f32 1.0, %v3253
    %v3255 = vrcp.pop %v3214
    %v3256 = vmul.f32 1.0, %v3255
    %v3257 = vrcp.pop %v3215
    %v3258 = vmul.f32 1.0, %v3257
    %v3259 = vrcp.pop %v3216
    %v3260 = vmul.f32 1.0, %v3259
    %v3261 = vrcp.pop %v3217
    %v3262 = vmul.f32 1.0, %v3261
    %v3263 = vrcp.pop %v3218
    %v3264 = vmul.f32 1.0, %v3263
    %v3265 = vrcp.pop %v3219
    %v3266 = vmul.f32 1.0, %v3265
    %v3267 = vrcp.pop %v3220
    %v3268 = vmul.f32 1.0, %v3267
    %v3269 = vrcp.pop %v3221
    %v3270 = vmul.f32 1.0, %v3269
    %v3271 = vrcp.pop %v3222
    %v3272 = vmul.f32 1.0, %v3271
    %v3273 = vrcp.pop %v3223
    %v3274 = vmul.f32 1.0, %v3273
    %v3275 = vrcp.pop %v3224
    %v3276 = vmul.f32 1.0, %v3275
    %v3277 = vrcp.pop %v3225
    %v3278 = vmul.f32 1.0, %v3277
    %v3279 = vrcp.pop %v3226
    %v3280 = vmul.f32 1.0, %v3279
    %v3281 = vrcp.pop %v3227
    %v3282 = vmul.f32 1.0, %v3281
    %v3283 = vrcp.pop %v3228
    %v3284 = vmul.f32 1.0, %v3283
    %v3285 = vrcp.pop %v3229
    %v3286 = vmul.f32 1.0, %v3285
    %v3287 = vrcp.pop %v3230
    %v3288 = vmul.f32 1.0, %v3287
    %v3289 = vrcp.pop %v3231
    %v3290 = vmul.f32 1.0, %v3289
    %v3291 = vrcp.pop %v3232
    %v3292 = vmul.f32 1.0, %v3291
    %v3293 = vrcp.pop %v3233
    %v3294 = vmul.f32 1.0, %v3293
    %v3295 = vrcp.pop %v3234
    %v3296 = vmul.f32 1.0, %v3295
    %v3297 = vrcp.pop %v3235
    %v3298 = vmul.f32 1.0, %v3297
    %v3299 = vrcp.pop %v3236
    %v3300 = vmul.f32 1.0, %v3299
    %3301 = vst [vmem:[#allocation7] sm:$0xff] %v3238
    %3302 = vst [vmem:[#allocation7 + $0x18] sm:$0xff] %v3240
    %3303 = vst [vmem:[#allocation7 + $0x30] sm:$0xff] %v3242
    %3304 = vst [vmem:[#allocation7 + $0x48] sm:$0xff] %v3244
    %3305 = vst [vmem:[#allocation7 + $0x60] sm:$0xff] %v3246
    %3306 = vst [vmem:[#allocation7 + $0x78] sm:$0xff] %v3248
    %3307 = vst [vmem:[#allocation7 + $0x90] sm:$0xff] %v3250
    %3308 = vst [vmem:[#allocation7 + $0xa8] sm:$0xff] %v3252
    %3309 = vst [vmem:[#allocation7 + $0xc0] sm:$0xff] %v3254
    %3310 = vst [vmem:[#allocation7 + $0xd8] sm:$0xff] %v3256
    %3311 = vst [vmem:[#allocation7 + $0xf0] sm:$0xff] %v3258
    %3312 = vst [vmem:[#allocation7 + $0x108] sm:$0xff] %v3260
    %3313 = vst [vmem:[#allocation7 + $0x120] sm:$0xff] %v3262
    %3314 = vst [vmem:[#allocation7 + $0x138] sm:$0xff] %v3264
    %3315 = vst [vmem:[#allocation7 + $0x150] sm:$0xff] %v3266
    %3316 = vst [vmem:[#allocation7 + $0x168] sm:$0xff] %v3268
    %3317 = vst [vmem:[#allocation7 + $0x180] sm:$0xff] %v3270
    %3318 = vst [vmem:[#allocation7 + $0x198] sm:$0xff] %v3272
    %3319 = vst [vmem:[#allocation7 + $0x1b0] sm:$0xff] %v3274
    %3320 = vst [vmem:[#allocation7 + $0x1c8] sm:$0xff] %v3276
    %3321 = vst [vmem:[#allocation7 + $0x1e0] sm:$0xff] %v3278
    %3322 = vst [vmem:[#allocation7 + $0x1f8] sm:$0xff] %v3280
    %3323 = vst [vmem:[#allocation7 + $0x210] sm:$0xff] %v3282
    %3324 = vst [vmem:[#allocation7 + $0x228] sm:$0xff] %v3284
    %3325 = vst [vmem:[#allocation7 + $0x240] sm:$0xff] %v3286
    %3326 = vst [vmem:[#allocation7 + $0x258] sm:$0xff] %v3288
    %3327 = vst [vmem:[#allocation7 + $0x270] sm:$0xff] %v3290
    %3328 = vst [vmem:[#allocation7 + $0x288] sm:$0xff] %v3292
    %3329 = vst [vmem:[#allocation7 + $0x2a0] sm:$0xff] %v3294
    %3330 = vst [vmem:[#allocation7 + $0x2b8] sm:$0xff] %v3296
    %3331 = vst [vmem:[#allocation7 + $0x2d0] sm:$0xff] %v3298
    %3332 = vst [vmem:[#allocation7 + $0x2e8] sm:$0xff] %v3300
    %s3333 = scalar_lea.vmem %s1, 1
    %v3334 = vld [vmem:[%s3333] sm:$0x1]
    %s3335 = scalar_lea.vmem %s2, 1
    %v3336 = vld [vmem:[%s3335] sm:$0x1]
    %v3338 = vlaneseq
    %v3339 = vshrl.u32 %v3338, 7
    %v3340 = vsub.s32 0, %v3339
    %v3341 = vrot.slane %v3334, %v3340
    %v3343 = vmul.f32 %v494, %v3341
    %v3344 = vmul.f32 %v495, %v3341
    %v3345 = vmul.f32 %v496, %v3341
    %v3346 = vmul.f32 %v497, %v3341
    %v3347 = vmul.f32 %v498, %v3341
    %v3348 = vmul.f32 %v499, %v3341
    %v3349 = vmul.f32 %v500, %v3341
    %v3350 = vmul.f32 %v501, %v3341
    %v3351 = vmul.f32 %v502, %v3341
    %v3352 = vmul.f32 %v503, %v3341
    %v3353 = vmul.f32 %v504, %v3341
    %v3354 = vmul.f32 %v505, %v3341
    %v3355 = vmul.f32 %v506, %v3341
    %v3356 = vmul.f32 %v507, %v3341
    %v3357 = vmul.f32 %v508, %v3341
    %v3358 = vmul.f32 %v509, %v3341
    %v3359 = vmul.f32 %v510, %v3341
    %v3360 = vmul.f32 %v511, %v3341
    %v3361 = vmul.f32 %v512, %v3341
    %v3362 = vmul.f32 %v513, %v3341
    %v3363 = vmul.f32 %v514, %v3341
    %v3364 = vmul.f32 %v515, %v3341
    %v3365 = vmul.f32 %v516, %v3341
    %v3366 = vmul.f32 %v517, %v3341
    %v3367 = vmul.f32 %v518, %v3341
    %v3368 = vmul.f32 %v519, %v3341
    %v3369 = vmul.f32 %v520, %v3341
    %v3370 = vmul.f32 %v521, %v3341
    %v3371 = vmul.f32 %v522, %v3341
    %v3372 = vmul.f32 %v523, %v3341
    %v3373 = vmul.f32 %v524, %v3341
    %v3374 = vmul.f32 %v525, %v3341
    %v3376 = vlaneseq
    %v3377 = vshrl.u32 %v3376, 7
    %v3378 = vsub.s32 0, %v3377
    %v3379 = vrot.slane %v3336, %v3378
    %v3381 = vadd.f32 %v3343, %v3379
    %v3382 = vadd.f32 %v3344, %v3379
    %v3383 = vadd.f32 %v3345, %v3379
    %v3384 = vadd.f32 %v3346, %v3379
    %v3385 = vadd.f32 %v3347, %v3379
    %v3386 = vadd.f32 %v3348, %v3379
    %v3387 = vadd.f32 %v3349, %v3379
    %v3388 = vadd.f32 %v3350, %v3379
    %v3389 = vadd.f32 %v3351, %v3379
    %v3390 = vadd.f32 %v3352, %v3379
    %v3391 = vadd.f32 %v3353, %v3379
    %v3392 = vadd.f32 %v3354, %v3379
    %v3393 = vadd.f32 %v3355, %v3379
    %v3394 = vadd.f32 %v3356, %v3379
    %v3395 = vadd.f32 %v3357, %v3379
    %v3396 = vadd.f32 %v3358, %v3379
    %v3397 = vadd.f32 %v3359, %v3379
    %v3398 = vadd.f32 %v3360, %v3379
    %v3399 = vadd.f32 %v3361, %v3379
    %v3400 = vadd.f32 %v3362, %v3379
    %v3401 = vadd.f32 %v3363, %v3379
    %v3402 = vadd.f32 %v3364, %v3379
    %v3403 = vadd.f32 %v3365, %v3379
    %v3404 = vadd.f32 %v3366, %v3379
    %v3405 = vadd.f32 %v3367, %v3379
    %v3406 = vadd.f32 %v3368, %v3379
    %v3407 = vadd.f32 %v3369, %v3379
    %v3408 = vadd.f32 %v3370, %v3379
    %v3409 = vadd.f32 %v3371, %v3379
    %v3410 = vadd.f32 %v3372, %v3379
    %v3411 = vadd.f32 %v3373, %v3379
    %v3412 = vadd.f32 %v3374, %v3379
    %v3413 = vpack.c.bf16 %v3382, %v3381
    %v3414 = vpack.c.bf16 %v3384, %v3383
    %v3415 = vpack.c.bf16 %v3386, %v3385
    %v3416 = vpack.c.bf16 %v3388, %v3387
    %v3417 = vpack.c.bf16 %v3390, %v3389
    %v3418 = vpack.c.bf16 %v3392, %v3391
    %v3419 = vpack.c.bf16 %v3394, %v3393
    %v3420 = vpack.c.bf16 %v3396, %v3395
    %v3421 = vpack.c.bf16 %v3398, %v3397
    %v3422 = vpack.c.bf16 %v3400, %v3399
    %v3423 = vpack.c.bf16 %v3402, %v3401
    %v3424 = vpack.c.bf16 %v3404, %v3403
    %v3425 = vpack.c.bf16 %v3406, %v3405
    %v3426 = vpack.c.bf16 %v3408, %v3407
    %v3427 = vpack.c.bf16 %v3410, %v3409
    %v3428 = vpack.c.bf16 %v3412, %v3411
    %s3429 = scalar_lea.vmem %s3, 32
    %v3430 = vld [vmem:[%s3429] sm:$0xff]
    %v3431 = vld [vmem:[%s3429 + $0x8] sm:$0xff]
    %v3432 = vld [vmem:[%s3429 + $0x10] sm:$0xff]
    %v3433 = vld [vmem:[%s3429 + $0x18] sm:$0xff]
    %s3434 = scalar_lea.vmem %s4, 2
    %v3435 = vld [vmem:[%s3434] sm:$0x3]
    %v3437 = vlaneseq
    %v3438 = vshrl.u32 %v3437, 7
    %v3439 = vsub.s32 0, %v3438
    %v3440 = vrot.slane %v3435, %v3439
    %v3441 = vlaneseq
    %v3442 = vshrl.u32 %v3441, 7
    %v3443 = vsub.s32 1, %v3442
    %v3444 = vrot.slane %v3435, %v3443
    %v3451 = vunpack.c.l.b16 %v3430
    %v3452 = vunpack.c.h.b16 %v3430
    %v3453 = vunpack.c.l.b16 %v3431
    %v3454 = vunpack.c.h.b16 %v3431
    %v3455 = vunpack.c.l.b16 %v3432
    %v3456 = vunpack.c.h.b16 %v3432
    %v3457 = vunpack.c.l.b16 %v3433
    %v3458 = vunpack.c.h.b16 %v3433
    %v3459 = vpack.c.b16 %v3453, %v3451
    %v3460 = vpack.c.b16 %v3454, %v3452
    %v3461 = vpack.c.b16 %v3457, %v3455
    %v3462 = vpack.c.b16 %v3458, %v3456
    %v3468 = vsel %vm108, %v3413, 0
    %v3471 = vsel %vm108, %v3414, 0
    %v3474 = vsel %vm108, %v3415, 0
    %v3477 = vsel %vm108, %v3416, 0
    %v3480 = vsel %vm108, %v3417, 0
    %v3483 = vsel %vm108, %v3418, 0
    %v3486 = vsel %vm108, %v3419, 0
    %v3489 = vsel %vm108, %v3420, 0
    %v3492 = vsel %vm108, %v3421, 0
    %v3495 = vsel %vm108, %v3422, 0
    %v3498 = vsel %vm108, %v3423, 0
    %v3501 = vsel %vm108, %v3424, 0
    %v3504 = vsel %vm108, %v3425, 0
    %v3507 = vsel %vm108, %v3426, 0
    %v3510 = vsel %vm108, %v3427, 0
    %v3513 = vsel %vm108, %v3428, 0
    %3515 = vmatprep.subr.bf16.mxu0 %v3460
    %3516 = vmatpush1.bf16.msra.mxu0 %v3459
    %3517 = vmatprep.subr.bf16.mxu0 %v3462
    %3518 = vmatpush1.bf16.msra.mxu0 %v3461
    %3519 = vmatprep.subr.bf16.mxu0 0
    %3520 = vmatpush1.bf16.msra.mxu0 0
    %3521 = vmatprep.subr.bf16.mxu0 0
    %3522 = vmatpush1.bf16.msra.mxu0 0
    %3523 = vmatprep.subr.bf16.mxu0 0
    %3524 = vmatpush1.bf16.msra.mxu0 0
    %3525 = vmatprep.subr.bf16.mxu0 0
    %3526 = vmatpush1.bf16.msra.mxu0 0
    %3527 = vmatprep.subr.bf16.mxu0 0
    %3528 = vmatpush1.bf16.msra.mxu0 0
    %3529 = vmatprep.subr.bf16.mxu0 0
    %3530 = vmatpush1.bf16.msra.mxu0 0
    %3531 = vmatprep.subr.bf16.mxu0 0
    %3532 = vmatpush1.bf16.msra.mxu0 0
    %3533 = vmatprep.subr.bf16.mxu0 0
    %3534 = vmatpush1.bf16.msra.mxu0 0
    %3535 = vmatprep.subr.bf16.mxu0 0
    %3536 = vmatpush1.bf16.msra.mxu0 0
    %3537 = vmatprep.subr.bf16.mxu0 0
    %3538 = vmatpush1.bf16.msra.mxu0 0
    %3539 = vmatprep.subr.bf16.mxu0 0
    %3540 = vmatpush1.bf16.msra.mxu0 0
    %3541 = vmatprep.subr.bf16.mxu0 0
    %3542 = vmatpush1.bf16.msra.mxu0 0
    %3543 = vmatprep.subr.bf16.mxu0 0
    %3544 = vmatpush1.bf16.msra.mxu0 0
    %3545 = vmatprep.subr.bf16.mxu0 0
    %3546 = vmatpush1.bf16.msra.mxu0 0
    %3547 = vmatprep.mubr.bf16.mxu0 0
    %3548 = vmatmul.mubr.bf16.gmra.mrb[0].mxu0 %v3468
    %v3549 = vpop.f32.mrb[0].mxu0
    %v3550 = vadd.f32 %v3440, %v3549
    %v3551 = vpop.f32.mrb[0].mxu0
    %v3552 = vadd.f32 %v3444, %v3551
    %v3553 = vpop.f32.mrb[0].mxu0
    %v3554 = vadd.f32 %v3440, %v3553
    %v3555 = vpop.f32.mrb[0].mxu0
    %v3556 = vadd.f32 %v3444, %v3555
    %3557 = vmatprep.mubr.bf16.mxu0 0
    %3558 = vmatmul.mubr.bf16.gmra.mrb[0].mxu0 %v3471
    %v3559 = vpop.f32.mrb[0].mxu0
    %v3560 = vadd.f32 %v3440, %v3559
    %v3561 = vpop.f32.mrb[0].mxu0
    %v3562 = vadd.f32 %v3444, %v3561
    %v3563 = vpop.f32.mrb[0].mxu0
    %v3564 = vadd.f32 %v3440, %v3563
    %v3565 = vpop.f32.mrb[0].mxu0
    %v3566 = vadd.f32 %v3444, %v3565
    %3567 = vmatprep.mubr.bf16.mxu0 0
    %3568 = vmatmul.mubr.bf16.gmra.mrb[0].mxu0 %v3474
    %v3569 = vpop.f32.mrb[0].mxu0
    %v3570 = vadd.f32 %v3440, %v3569
    %v3571 = vpop.f32.mrb[0].mxu0
    %v3572 = vadd.f32 %v3444, %v3571
    %v3573 = vpop.f32.mrb[0].mxu0
    %v3574 = vadd.f32 %v3440, %v3573
    %v3575 = vpop.f32.mrb[0].mxu0
    %v3576 = vadd.f32 %v3444, %v3575
    %3577 = vmatprep.mubr.bf16.mxu0 0
    %3578 = vmatmul.mubr.bf16.gmra.mrb[0].mxu0 %v3477
    %v3579 = vpop.f32.mrb[0].mxu0
    %v3580 = vadd.f32 %v3440, %v3579
    %v3581 = vpop.f32.mrb[0].mxu0
    %v3582 = vadd.f32 %v3444, %v3581
    %v3583 = vpop.f32.mrb[0].mxu0
    %v3584 = vadd.f32 %v3440, %v3583
    %v3585 = vpop.f32.mrb[0].mxu0
    %v3586 = vadd.f32 %v3444, %v3585
    %3587 = vmatprep.mubr.bf16.mxu0 0
    %3588 = vmatmul.mubr.bf16.gmra.mrb[0].mxu0 %v3480
    %v3589 = vpop.f32.mrb[0].mxu0
    %v3590 = vadd.f32 %v3440, %v3589
    %v3591 = vpop.f32.mrb[0].mxu0
    %v3592 = vadd.f32 %v3444, %v3591
    %v3593 = vpop.f32.mrb[0].mxu0
    %v3594 = vadd.f32 %v3440, %v3593
    %v3595 = vpop.f32.mrb[0].mxu0
    %v3596 = vadd.f32 %v3444, %v3595
    %3597 = vmatprep.mubr.bf16.mxu0 0
    %3598 = vmatmul.mubr.bf16.gmra.mrb[0].mxu0 %v3483
    %v3599 = vpop.f32.mrb[0].mxu0
    %v3600 = vadd.f32 %v3440, %v3599
    %v3601 = vpop.f32.mrb[0].mxu0
    %v3602 = vadd.f32 %v3444, %v3601
    %v3603 = vpop.f32.mrb[0].mxu0
    %v3604 = vadd.f32 %v3440, %v3603
    %v3605 = vpop.f32.mrb[0].mxu0
    %v3606 = vadd.f32 %v3444, %v3605
    %3607 = vmatprep.mubr.bf16.mxu0 0
    %3608 = vmatmul.mubr.bf16.gmra.mrb[0].mxu0 %v3486
    %v3609 = vpop.f32.mrb[0].mxu0
    %v3610 = vadd.f32 %v3440, %v3609
    %v3611 = vpop.f32.mrb[0].mxu0
    %v3612 = vadd.f32 %v3444, %v3611
    %v3613 = vpop.f32.mrb[0].mxu0
    %v3614 = vadd.f32 %v3440, %v3613
    %v3615 = vpop.f32.mrb[0].mxu0
    %v3616 = vadd.f32 %v3444, %v3615
    %3617 = vmatprep.mubr.bf16.mxu0 0
    %3618 = vmatmul.mubr.bf16.gmra.mrb[0].mxu0 %v3489
    %v3619 = vpop.f32.mrb[0].mxu0
    %v3620 = vadd.f32 %v3440, %v3619
    %v3621 = vpop.f32.mrb[0].mxu0
    %v3622 = vadd.f32 %v3444, %v3621
    %v3623 = vpop.f32.mrb[0].mxu0
    %v3624 = vadd.f32 %v3440, %v3623
    %v3625 = vpop.f32.mrb[0].mxu0
    %v3626 = vadd.f32 %v3444, %v3625
    %3627 = vmatprep.mubr.bf16.mxu0 0
    %3628 = vmatmul.mubr.bf16.gmra.mrb[0].mxu0 %v3492
    %v3629 = vpop.f32.mrb[0].mxu0
    %v3630 = vadd.f32 %v3440, %v3629
    %v3631 = vpop.f32.mrb[0].mxu0
    %v3632 = vadd.f32 %v3444, %v3631
    %v3633 = vpop.f32.mrb[0].mxu0
    %v3634 = vadd.f32 %v3440, %v3633
    %v3635 = vpop.f32.mrb[0].mxu0
    %v3636 = vadd.f32 %v3444, %v3635
    %3637 = vmatprep.mubr.bf16.mxu0 0
    %3638 = vmatmul.mubr.bf16.gmra.mrb[0].mxu0 %v3495
    %v3639 = vpop.f32.mrb[0].mxu0
    %v3640 = vadd.f32 %v3440, %v3639
    %v3641 = vpop.f32.mrb[0].mxu0
    %v3642 = vadd.f32 %v3444, %v3641
    %v3643 = vpop.f32.mrb[0].mxu0
    %v3644 = vadd.f32 %v3440, %v3643
    %v3645 = vpop.f32.mrb[0].mxu0
    %v3646 = vadd.f32 %v3444, %v3645
    %3647 = vmatprep.mubr.bf16.mxu0 0
    %3648 = vmatmul.mubr.bf16.gmra.mrb[0].mxu0 %v3498
    %v3649 = vpop.f32.mrb[0].mxu0
    %v3650 = vadd.f32 %v3440, %v3649
    %v3651 = vpop.f32.mrb[0].mxu0
    %v3652 = vadd.f32 %v3444, %v3651
    %v3653 = vpop.f32.mrb[0].mxu0
    %v3654 = vadd.f32 %v3440, %v3653
    %v3655 = vpop.f32.mrb[0].mxu0
    %v3656 = vadd.f32 %v3444, %v3655
    %3657 = vmatprep.mubr.bf16.mxu0 0
    %3658 = vmatmul.mubr.bf16.gmra.mrb[0].mxu0 %v3501
    %v3659 = vpop.f32.mrb[0].mxu0
    %v3660 = vadd.f32 %v3440, %v3659
    %v3661 = vpop.f32.mrb[0].mxu0
    %v3662 = vadd.f32 %v3444, %v3661
    %v3663 = vpop.f32.mrb[0].mxu0
    %v3664 = vadd.f32 %v3440, %v3663
    %v3665 = vpop.f32.mrb[0].mxu0
    %v3666 = vadd.f32 %v3444, %v3665
    %3667 = vmatprep.mubr.bf16.mxu0 0
    %3668 = vmatmul.mubr.bf16.gmra.mrb[0].mxu0 %v3504
    %v3669 = vpop.f32.mrb[0].mxu0
    %v3670 = vadd.f32 %v3440, %v3669
    %v3671 = vpop.f32.mrb[0].mxu0
    %v3672 = vadd.f32 %v3444, %v3671
    %v3673 = vpop.f32.mrb[0].mxu0
    %v3674 = vadd.f32 %v3440, %v3673
    %v3675 = vpop.f32.mrb[0].mxu0
    %v3676 = vadd.f32 %v3444, %v3675
    %3677 = vmatprep.mubr.bf16.mxu0 0
    %3678 = vmatmul.mubr.bf16.gmra.mrb[0].mxu0 %v3507
    %v3679 = vpop.f32.mrb[0].mxu0
    %v3680 = vadd.f32 %v3440, %v3679
    %v3681 = vpop.f32.mrb[0].mxu0
    %v3682 = vadd.f32 %v3444, %v3681
    %v3683 = vpop.f32.mrb[0].mxu0
    %v3684 = vadd.f32 %v3440, %v3683
    %v3685 = vpop.f32.mrb[0].mxu0
    %v3686 = vadd.f32 %v3444, %v3685
    %3687 = vmatprep.mubr.bf16.mxu0 0
    %3688 = vmatmul.mubr.bf16.gmra.mrb[0].mxu0 %v3510
    %v3689 = vpop.f32.mrb[0].mxu0
    %v3690 = vadd.f32 %v3440, %v3689
    %v3691 = vpop.f32.mrb[0].mxu0
    %v3692 = vadd.f32 %v3444, %v3691
    %v3693 = vpop.f32.mrb[0].mxu0
    %v3694 = vadd.f32 %v3440, %v3693
    %v3695 = vpop.f32.mrb[0].mxu0
    %v3696 = vadd.f32 %v3444, %v3695
    %3697 = vmatprep.mubr.bf16.mxu0 0
    %3698 = vmatmul.mubr.bf16.gmra.mrb[0].mxu0 %v3513
    %v3699 = vpop.f32.mrb[0].mxu0
    %v3700 = vadd.f32 %v3440, %v3699
    %v3701 = vpop.f32.mrb[0].mxu0
    %v3702 = vadd.f32 %v3444, %v3701
    %v3703 = vpop.f32.mrb[0].mxu0
    %v3704 = vadd.f32 %v3440, %v3703
    %v3705 = vpop.f32.mrb[0].mxu0
    %v3706 = vadd.f32 %v3444, %v3705
    %3707 = vdwg.mxu0
    %v3708 = vmax.f32 %v3550, 0.0
    %v3709 = vmax.f32 %v3552, 0.0
    %v3710 = vmax.f32 %v3554, 0.0
    %v3711 = vmax.f32 %v3556, 0.0
    %v3712 = vmax.f32 %v3560, 0.0
    %v3713 = vmax.f32 %v3562, 0.0
    %v3714 = vmax.f32 %v3564, 0.0
    %v3715 = vmax.f32 %v3566, 0.0
    %v3716 = vmax.f32 %v3570, 0.0
    %v3717 = vmax.f32 %v3572, 0.0
    %v3718 = vmax.f32 %v3574, 0.0
    %v3719 = vmax.f32 %v3576, 0.0
    %v3720 = vmax.f32 %v3580, 0.0
    %v3721 = vmax.f32 %v3582, 0.0
    %v3722 = vmax.f32 %v3584, 0.0
    %v3723 = vmax.f32 %v3586, 0.0
    %v3724 = vmax.f32 %v3590, 0.0
    %v3725 = vmax.f32 %v3592, 0.0
    %v3726 = vmax.f32 %v3594, 0.0
    %v3727 = vmax.f32 %v3596, 0.0
    %v3728 = vmax.f32 %v3600, 0.0
    %v3729 = vmax.f32 %v3602, 0.0
    %v3730 = vmax.f32 %v3604, 0.0
    %v3731 = vmax.f32 %v3606, 0.0
    %v3732 = vmax.f32 %v3610, 0.0
    %v3733 = vmax.f32 %v3612, 0.0
    %v3734 = vmax.f32 %v3614, 0.0
    %v3735 = vmax.f32 %v3616, 0.0
    %v3736 = vmax.f32 %v3620, 0.0
    %v3737 = vmax.f32 %v3622, 0.0
    %v3738 = vmax.f32 %v3624, 0.0
    %v3739 = vmax.f32 %v3626, 0.0
    %v3740 = vmax.f32 %v3630, 0.0
    %v3741 = vmax.f32 %v3632, 0.0
    %v3742 = vmax.f32 %v3634, 0.0
    %v3743 = vmax.f32 %v3636, 0.0
    %v3744 = vmax.f32 %v3640, 0.0
    %v3745 = vmax.f32 %v3642, 0.0
    %v3746 = vmax.f32 %v3644, 0.0
    %v3747 = vmax.f32 %v3646, 0.0
    %v3748 = vmax.f32 %v3650, 0.0
    %v3749 = vmax.f32 %v3652, 0.0
    %v3750 = vmax.f32 %v3654, 0.0
    %v3751 = vmax.f32 %v3656, 0.0
    %v3752 = vmax.f32 %v3660, 0.0
    %v3753 = vmax.f32 %v3662, 0.0
    %v3754 = vmax.f32 %v3664, 0.0
    %v3755 = vmax.f32 %v3666, 0.0
    %v3756 = vmax.f32 %v3670, 0.0
    %v3757 = vmax.f32 %v3672, 0.0
    %v3758 = vmax.f32 %v3674, 0.0
    %v3759 = vmax.f32 %v3676, 0.0
    %v3760 = vmax.f32 %v3680, 0.0
    %v3761 = vmax.f32 %v3682, 0.0
    %v3762 = vmax.f32 %v3684, 0.0
    %v3763 = vmax.f32 %v3686, 0.0
    %v3764 = vmax.f32 %v3690, 0.0
    %v3765 = vmax.f32 %v3692, 0.0
    %v3766 = vmax.f32 %v3694, 0.0
    %v3767 = vmax.f32 %v3696, 0.0
    %v3768 = vmax.f32 %v3700, 0.0
    %v3769 = vmax.f32 %v3702, 0.0
    %v3770 = vmax.f32 %v3704, 0.0
    %v3771 = vmax.f32 %v3706, 0.0
    %s3772 = scalar_lea.vmem %s5, 2
    %v3773 = vld [vmem:[%s3772] sm:$0x3]
    %s3774 = scalar_lea.vmem %s6, 2
    %v3775 = vld [vmem:[%s3774] sm:$0x3]
    %v3776 = vadd.f32 %v3708, %v3709
    %3777 = vadd.xlane.f32.xlu0 %v3776
    %v3778 = vpop.xlane.xlu0 %3777
    %v3779 = vadd.f32 %v3710, %v3711
    %3780 = vadd.xlane.f32.xlu0 %v3779
    %v3781 = vpop.xlane.xlu0 %3780
    %v3782 = vadd.f32 %v3712, %v3713
    %3783 = vadd.xlane.f32.xlu0 %v3782
    %v3784 = vpop.xlane.xlu0 %3783
    %v3785 = vadd.f32 %v3714, %v3715
    %3786 = vadd.xlane.f32.xlu0 %v3785
    %v3787 = vpop.xlane.xlu0 %3786
    %v3788 = vadd.f32 %v3716, %v3717
    %3789 = vadd.xlane.f32.xlu0 %v3788
    %v3790 = vpop.xlane.xlu0 %3789
    %v3791 = vadd.f32 %v3718, %v3719
    %3792 = vadd.xlane.f32.xlu0 %v3791
    %v3793 = vpop.xlane.xlu0 %3792
    %v3794 = vadd.f32 %v3720, %v3721
    %3795 = vadd.xlane.f32.xlu0 %v3794
    %v3796 = vpop.xlane.xlu0 %3795
    %v3797 = vadd.f32 %v3722, %v3723
    %3798 = vadd.xlane.f32.xlu0 %v3797
    %v3799 = vpop.xlane.xlu0 %3798
    %v3800 = vadd.f32 %v3724, %v3725
    %3801 = vadd.xlane.f32.xlu0 %v3800
    %v3802 = vpop.xlane.xlu0 %3801
    %v3803 = vadd.f32 %v3726, %v3727
    %3804 = vadd.xlane.f32.xlu0 %v3803
    %v3805 = vpop.xlane.xlu0 %3804
    %v3806 = vadd.f32 %v3728, %v3729
    %3807 = vadd.xlane.f32.xlu0 %v3806
    %v3808 = vpop.xlane.xlu0 %3807
    %v3809 = vadd.f32 %v3730, %v3731
    %3810 = vadd.xlane.f32.xlu0 %v3809
    %v3811 = vpop.xlane.xlu0 %3810
    %v3812 = vadd.f32 %v3732, %v3733
    %3813 = vadd.xlane.f32.xlu0 %v3812
    %v3814 = vpop.xlane.xlu0 %3813
    %v3815 = vadd.f32 %v3734, %v3735
    %3816 = vadd.xlane.f32.xlu0 %v3815
    %v3817 = vpop.xlane.xlu0 %3816
    %v3818 = vadd.f32 %v3736, %v3737
    %3819 = vadd.xlane.f32.xlu0 %v3818
    %v3820 = vpop.xlane.xlu0 %3819
    %v3821 = vadd.f32 %v3738, %v3739
    %3822 = vadd.xlane.f32.xlu0 %v3821
    %v3823 = vpop.xlane.xlu0 %3822
    %v3824 = vadd.f32 %v3740, %v3741
    %3825 = vadd.xlane.f32.xlu0 %v3824
    %v3826 = vpop.xlane.xlu0 %3825
    %v3827 = vadd.f32 %v3742, %v3743
    %3828 = vadd.xlane.f32.xlu0 %v3827
    %v3829 = vpop.xlane.xlu0 %3828
    %v3830 = vadd.f32 %v3744, %v3745
    %3831 = vadd.xlane.f32.xlu0 %v3830
    %v3832 = vpop.xlane.xlu0 %3831
    %v3833 = vadd.f32 %v3746, %v3747
    %3834 = vadd.xlane.f32.xlu0 %v3833
    %v3835 = vpop.xlane.xlu0 %3834
    %v3836 = vadd.f32 %v3748, %v3749
    %3837 = vadd.xlane.f32.xlu0 %v3836
    %v3838 = vpop.xlane.xlu0 %3837
    %v3839 = vadd.f32 %v3750, %v3751
    %3840 = vadd.xlane.f32.xlu0 %v3839
    %v3841 = vpop.xlane.xlu0 %3840
    %v3842 = vadd.f32 %v3752, %v3753
    %3843 = vadd.xlane.f32.xlu0 %v3842
    %v3844 = vpop.xlane.xlu0 %3843
    %v3845 = vadd.f32 %v3754, %v3755
    %3846 = vadd.xlane.f32.xlu0 %v3845
    %v3847 = vpop.xlane.xlu0 %3846
    %v3848 = vadd.f32 %v3756, %v3757
    %3849 = vadd.xlane.f32.xlu0 %v3848
    %v3850 = vpop.xlane.xlu0 %3849
    %v3851 = vadd.f32 %v3758, %v3759
    %3852 = vadd.xlane.f32.xlu0 %v3851
    %v3853 = vpop.xlane.xlu0 %3852
    %v3854 = vadd.f32 %v3760, %v3761
    %3855 = vadd.xlane.f32.xlu0 %v3854
    %v3856 = vpop.xlane.xlu0 %3855
    %v3857 = vadd.f32 %v3762, %v3763
    %3858 = vadd.xlane.f32.xlu0 %v3857
    %v3859 = vpop.xlane.xlu0 %3858
    %v3860 = vadd.f32 %v3764, %v3765
    %3861 = vadd.xlane.f32.xlu0 %v3860
    %v3862 = vpop.xlane.xlu0 %3861
    %v3863 = vadd.f32 %v3766, %v3767
    %3864 = vadd.xlane.f32.xlu0 %v3863
    %v3865 = vpop.xlane.xlu0 %3864
    %v3866 = vadd.f32 %v3768, %v3769
    %3867 = vadd.xlane.f32.xlu0 %v3866
    %v3868 = vpop.xlane.xlu0 %3867
    %v3869 = vadd.f32 %v3770, %v3771
    %3870 = vadd.xlane.f32.xlu0 %v3869
    %v3871 = vpop.xlane.xlu0 %3870
    %v3872 = vmul.f32 %v3778, %v1057
    %v3873 = vmul.f32 %v3781, %v1057
    %v3874 = vmul.f32 %v3784, %v1057
    %v3875 = vmul.f32 %v3787, %v1057
    %v3876 = vmul.f32 %v3790, %v1057
    %v3877 = vmul.f32 %v3793, %v1057
    %v3878 = vmul.f32 %v3796, %v1057
    %v3879 = vmul.f32 %v3799, %v1057
    %v3880 = vmul.f32 %v3802, %v1057
    %v3881 = vmul.f32 %v3805, %v1057
    %v3882 = vmul.f32 %v3808, %v1057
    %v3883 = vmul.f32 %v3811, %v1057
    %v3884 = vmul.f32 %v3814, %v1057
    %v3885 = vmul.f32 %v3817, %v1057
    %v3886 = vmul.f32 %v3820, %v1057
    %v3887 = vmul.f32 %v3823, %v1057
    %v3888 = vmul.f32 %v3826, %v1057
    %v3889 = vmul.f32 %v3829, %v1057
    %v3890 = vmul.f32 %v3832, %v1057
    %v3891 = vmul.f32 %v3835, %v1057
    %v3892 = vmul.f32 %v3838, %v1057
    %v3893 = vmul.f32 %v3841, %v1057
    %v3894 = vmul.f32 %v3844, %v1057
    %v3895 = vmul.f32 %v3847, %v1057
    %v3896 = vmul.f32 %v3850, %v1057
    %v3897 = vmul.f32 %v3853, %v1057
    %v3898 = vmul.f32 %v3856, %v1057
    %v3899 = vmul.f32 %v3859, %v1057
    %v3900 = vmul.f32 %v3862, %v1057
    %v3901 = vmul.f32 %v3865, %v1057
    %v3902 = vmul.f32 %v3868, %v1057
    %v3903 = vmul.f32 %v3871, %v1057
    %v3904 = vsub.f32 %v3708, %v3872
    %v3905 = vsub.f32 %v3709, %v3872
    %v3906 = vsub.f32 %v3710, %v3873
    %v3907 = vsub.f32 %v3711, %v3873
    %v3908 = vsub.f32 %v3712, %v3874
    %v3909 = vsub.f32 %v3713, %v3874
    %v3910 = vsub.f32 %v3714, %v3875
    %v3911 = vsub.f32 %v3715, %v3875
    %v3912 = vsub.f32 %v3716, %v3876
    %v3913 = vsub.f32 %v3717, %v3876
    %v3914 = vsub.f32 %v3718, %v3877
    %v3915 = vsub.f32 %v3719, %v3877
    %v3916 = vsub.f32 %v3720, %v3878
    %v3917 = vsub.f32 %v3721, %v3878
    %v3918 = vsub.f32 %v3722, %v3879
    %v3919 = vsub.f32 %v3723, %v3879
    %v3920 = vsub.f32 %v3724, %v3880
    %v3921 = vsub.f32 %v3725, %v3880
    %v3922 = vsub.f32 %v3726, %v3881
    %v3923 = vsub.f32 %v3727, %v3881
    %v3924 = vsub.f32 %v3728, %v3882
    %v3925 = vsub.f32 %v3729, %v3882
    %v3926 = vsub.f32 %v3730, %v3883
    %v3927 = vsub.f32 %v3731, %v3883
    %v3928 = vsub.f32 %v3732, %v3884
    %v3929 = vsub.f32 %v3733, %v3884
    %v3930 = vsub.f32 %v3734, %v3885
    %v3931 = vsub.f32 %v3735, %v3885
    %v3932 = vsub.f32 %v3736, %v3886
    %v3933 = vsub.f32 %v3737, %v3886
    %v3934 = vsub.f32 %v3738, %v3887
    %v3935 = vsub.f32 %v3739, %v3887
    %v3936 = vsub.f32 %v3740, %v3888
    %v3937 = vsub.f32 %v3741, %v3888
    %v3938 = vsub.f32 %v3742, %v3889
    %v3939 = vsub.f32 %v3743, %v3889
    %v3940 = vsub.f32 %v3744, %v3890
    %v3941 = vsub.f32 %v3745, %v3890
    %v3942 = vsub.f32 %v3746, %v3891
    %v3943 = vsub.f32 %v3747, %v3891
    %v3944 = vsub.f32 %v3748, %v3892
    %v3945 = vsub.f32 %v3749, %v3892
    %v3946 = vsub.f32 %v3750, %v3893
    %v3947 = vsub.f32 %v3751, %v3893
    %v3948 = vsub.f32 %v3752, %v3894
    %v3949 = vsub.f32 %v3753, %v3894
    %v3950 = vsub.f32 %v3754, %v3895
    %v3951 = vsub.f32 %v3755, %v3895
    %v3952 = vsub.f32 %v3756, %v3896
    %v3953 = vsub.f32 %v3757, %v3896
    %v3954 = vsub.f32 %v3758, %v3897
    %v3955 = vsub.f32 %v3759, %v3897
    %v3956 = vsub.f32 %v3760, %v3898
    %v3957 = vsub.f32 %v3761, %v3898
    %v3958 = vsub.f32 %v3762, %v3899
    %v3959 = vsub.f32 %v3763, %v3899
    %v3960 = vsub.f32 %v3764, %v3900
    %v3961 = vsub.f32 %v3765, %v3900
    %v3962 = vsub.f32 %v3766, %v3901
    %v3963 = vsub.f32 %v3767, %v3901
    %v3964 = vsub.f32 %v3768, %v3902
    %v3965 = vsub.f32 %v3769, %v3902
    %v3966 = vsub.f32 %v3770, %v3903
    %v3967 = vsub.f32 %v3771, %v3903
    %v3968 = vmul.f32 %v3904, %v3904
    %v3969 = vmul.f32 %v3905, %v3905
    %v3970 = vmul.f32 %v3906, %v3906
    %v3971 = vmul.f32 %v3907, %v3907
    %v3972 = vmul.f32 %v3908, %v3908
    %v3973 = vmul.f32 %v3909, %v3909
    %v3974 = vmul.f32 %v3910, %v3910
    %v3975 = vmul.f32 %v3911, %v3911
    %v3976 = vmul.f32 %v3912, %v3912
    %v3977 = vmul.f32 %v3913, %v3913
    %v3978 = vmul.f32 %v3914, %v3914
    %v3979 = vmul.f32 %v3915, %v3915
    %v3980 = vmul.f32 %v3916, %v3916
    %v3981 = vmul.f32 %v3917, %v3917
    %v3982 = vmul.f32 %v3918, %v3918
    %v3983 = vmul.f32 %v3919, %v3919
    %v3984 = vmul.f32 %v3920, %v3920
    %v3985 = vmul.f32 %v3921, %v3921
    %v3986 = vmul.f32 %v3922, %v3922
    %v3987 = vmul.f32 %v3923, %v3923
    %v3988 = vmul.f32 %v3924, %v3924
    %v3989 = vmul.f32 %v3925, %v3925
    %v3990 = vmul.f32 %v3926, %v3926
    %v3991 = vmul.f32 %v3927, %v3927
    %v3992 = vmul.f32 %v3928, %v3928
    %v3993 = vmul.f32 %v3929, %v3929
    %v3994 = vmul.f32 %v3930, %v3930
    %v3995 = vmul.f32 %v3931, %v3931
    %v3996 = vmul.f32 %v3932, %v3932
    %v3997 = vmul.f32 %v3933, %v3933
    %v3998 = vmul.f32 %v3934, %v3934
    %v3999 = vmul.f32 %v3935, %v3935
    %v4000 = vmul.f32 %v3936, %v3936
    %v4001 = vmul.f32 %v3937, %v3937
    %v4002 = vmul.f32 %v3938, %v3938
    %v4003 = vmul.f32 %v3939, %v3939
    %v4004 = vmul.f32 %v3940, %v3940
    %v4005 = vmul.f32 %v3941, %v3941
    %v4006 = vmul.f32 %v3942, %v3942
    %v4007 = vmul.f32 %v3943, %v3943
    %v4008 = vmul.f32 %v3944, %v3944
    %v4009 = vmul.f32 %v3945, %v3945
    %v4010 = vmul.f32 %v3946, %v3946
    %v4011 = vmul.f32 %v3947, %v3947
    %v4012 = vmul.f32 %v3948, %v3948
    %v4013 = vmul.f32 %v3949, %v3949
    %v4014 = vmul.f32 %v3950, %v3950
    %v4015 = vmul.f32 %v3951, %v3951
    %v4016 = vmul.f32 %v3952, %v3952
    %v4017 = vmul.f32 %v3953, %v3953
    %v4018 = vmul.f32 %v3954, %v3954
    %v4019 = vmul.f32 %v3955, %v3955
    %v4020 = vmul.f32 %v3956, %v3956
    %v4021 = vmul.f32 %v3957, %v3957
    %v4022 = vmul.f32 %v3958, %v3958
    %v4023 = vmul.f32 %v3959, %v3959
    %v4024 = vmul.f32 %v3960, %v3960
    %v4025 = vmul.f32 %v3961, %v3961
    %v4026 = vmul.f32 %v3962, %v3962
    %v4027 = vmul.f32 %v3963, %v3963
    %v4028 = vmul.f32 %v3964, %v3964
    %v4029 = vmul.f32 %v3965, %v3965
    %v4030 = vmul.f32 %v3966, %v3966
    %v4031 = vmul.f32 %v3967, %v3967
    %v4032 = vadd.f32 %v3968, %v3969
    %4033 = vadd.xlane.f32.xlu0 %v4032
    %v4034 = vpop.xlane.xlu0 %4033
    %v4035 = vadd.f32 %v3970, %v3971
    %4036 = vadd.xlane.f32.xlu0 %v4035
    %v4037 = vpop.xlane.xlu0 %4036
    %v4038 = vadd.f32 %v3972, %v3973
    %4039 = vadd.xlane.f32.xlu0 %v4038
    %v4040 = vpop.xlane.xlu0 %4039
    %v4041 = vadd.f32 %v3974, %v3975
    %4042 = vadd.xlane.f32.xlu0 %v4041
    %v4043 = vpop.xlane.xlu0 %4042
    %v4044 = vadd.f32 %v3976, %v3977
    %4045 = vadd.xlane.f32.xlu0 %v4044
    %v4046 = vpop.xlane.xlu0 %4045
    %v4047 = vadd.f32 %v3978, %v3979
    %4048 = vadd.xlane.f32.xlu0 %v4047
    %v4049 = vpop.xlane.xlu0 %4048
    %v4050 = vadd.f32 %v3980, %v3981
    %4051 = vadd.xlane.f32.xlu0 %v4050
    %v4052 = vpop.xlane.xlu0 %4051
    %v4053 = vadd.f32 %v3982, %v3983
    %4054 = vadd.xlane.f32.xlu0 %v4053
    %v4055 = vpop.xlane.xlu0 %4054
    %v4056 = vadd.f32 %v3984, %v3985
    %4057 = vadd.xlane.f32.xlu0 %v4056
    %v4058 = vpop.xlane.xlu0 %4057
    %v4059 = vadd.f32 %v3986, %v3987
    %4060 = vadd.xlane.f32.xlu0 %v4059
    %v4061 = vpop.xlane.xlu0 %4060
    %v4062 = vadd.f32 %v3988, %v3989
    %4063 = vadd.xlane.f32.xlu0 %v4062
    %v4064 = vpop.xlane.xlu0 %4063
    %v4065 = vadd.f32 %v3990, %v3991
    %4066 = vadd.xlane.f32.xlu0 %v4065
    %v4067 = vpop.xlane.xlu0 %4066
    %v4068 = vadd.f32 %v3992, %v3993
    %4069 = vadd.xlane.f32.xlu0 %v4068
    %v4070 = vpop.xlane.xlu0 %4069
    %v4071 = vadd.f32 %v3994, %v3995
    %4072 = vadd.xlane.f32.xlu0 %v4071
    %v4073 = vpop.xlane.xlu0 %4072
    %v4074 = vadd.f32 %v3996, %v3997
    %4075 = vadd.xlane.f32.xlu0 %v4074
    %v4076 = vpop.xlane.xlu0 %4075
    %v4077 = vadd.f32 %v3998, %v3999
    %4078 = vadd.xlane.f32.xlu0 %v4077
    %v4079 = vpop.xlane.xlu0 %4078
    %v4080 = vadd.f32 %v4000, %v4001
    %4081 = vadd.xlane.f32.xlu0 %v4080
    %v4082 = vpop.xlane.xlu0 %4081
    %v4083 = vadd.f32 %v4002, %v4003
    %4084 = vadd.xlane.f32.xlu0 %v4083
    %v4085 = vpop.xlane.xlu0 %4084
    %v4086 = vadd.f32 %v4004, %v4005
    %4087 = vadd.xlane.f32.xlu0 %v4086
    %v4088 = vpop.xlane.xlu0 %4087
    %v4089 = vadd.f32 %v4006, %v4007
    %4090 = vadd.xlane.f32.xlu0 %v4089
    %v4091 = vpop.xlane.xlu0 %4090
    %v4092 = vadd.f32 %v4008, %v4009
    %4093 = vadd.xlane.f32.xlu0 %v4092
    %v4094 = vpop.xlane.xlu0 %4093
    %v4095 = vadd.f32 %v4010, %v4011
    %4096 = vadd.xlane.f32.xlu0 %v4095
    %v4097 = vpop.xlane.xlu0 %4096
    %v4098 = vadd.f32 %v4012, %v4013
    %4099 = vadd.xlane.f32.xlu0 %v4098
    %v4100 = vpop.xlane.xlu0 %4099
    %v4101 = vadd.f32 %v4014, %v4015
    %4102 = vadd.xlane.f32.xlu0 %v4101
    %v4103 = vpop.xlane.xlu0 %4102
    %v4104 = vadd.f32 %v4016, %v4017
    %4105 = vadd.xlane.f32.xlu0 %v4104
    %v4106 = vpop.xlane.xlu0 %4105
    %v4107 = vadd.f32 %v4018, %v4019
    %4108 = vadd.xlane.f32.xlu0 %v4107
    %v4109 = vpop.xlane.xlu0 %4108
    %v4110 = vadd.f32 %v4020, %v4021
    %4111 = vadd.xlane.f32.xlu0 %v4110
    %v4112 = vpop.xlane.xlu0 %4111
    %v4113 = vadd.f32 %v4022, %v4023
    %4114 = vadd.xlane.f32.xlu0 %v4113
    %v4115 = vpop.xlane.xlu0 %4114
    %v4116 = vadd.f32 %v4024, %v4025
    %4117 = vadd.xlane.f32.xlu0 %v4116
    %v4118 = vpop.xlane.xlu0 %4117
    %v4119 = vadd.f32 %v4026, %v4027
    %4120 = vadd.xlane.f32.xlu0 %v4119
    %v4121 = vpop.xlane.xlu0 %4120
    %v4122 = vadd.f32 %v4028, %v4029
    %4123 = vadd.xlane.f32.xlu0 %v4122
    %v4124 = vpop.xlane.xlu0 %4123
    %v4125 = vadd.f32 %v4030, %v4031
    %4126 = vadd.xlane.f32.xlu0 %v4125
    %v4127 = vpop.xlane.xlu0 %4126
    %v4128 = vmul.f32 %v4034, %v1057
    %v4129 = vmul.f32 %v4037, %v1057
    %v4130 = vmul.f32 %v4040, %v1057
    %v4131 = vmul.f32 %v4043, %v1057
    %v4132 = vmul.f32 %v4046, %v1057
    %v4133 = vmul.f32 %v4049, %v1057
    %v4134 = vmul.f32 %v4052, %v1057
    %v4135 = vmul.f32 %v4055, %v1057
    %v4136 = vmul.f32 %v4058, %v1057
    %v4137 = vmul.f32 %v4061, %v1057
    %v4138 = vmul.f32 %v4064, %v1057
    %v4139 = vmul.f32 %v4067, %v1057
    %v4140 = vmul.f32 %v4070, %v1057
    %v4141 = vmul.f32 %v4073, %v1057
    %v4142 = vmul.f32 %v4076, %v1057
    %v4143 = vmul.f32 %v4079, %v1057
    %v4144 = vmul.f32 %v4082, %v1057
    %v4145 = vmul.f32 %v4085, %v1057
    %v4146 = vmul.f32 %v4088, %v1057
    %v4147 = vmul.f32 %v4091, %v1057
    %v4148 = vmul.f32 %v4094, %v1057
    %v4149 = vmul.f32 %v4097, %v1057
    %v4150 = vmul.f32 %v4100, %v1057
    %v4151 = vmul.f32 %v4103, %v1057
    %v4152 = vmul.f32 %v4106, %v1057
    %v4153 = vmul.f32 %v4109, %v1057
    %v4154 = vmul.f32 %v4112, %v1057
    %v4155 = vmul.f32 %v4115, %v1057
    %v4156 = vmul.f32 %v4118, %v1057
    %v4157 = vmul.f32 %v4121, %v1057
    %v4158 = vmul.f32 %v4124, %v1057
    %v4159 = vmul.f32 %v4127, %v1057
    %v4160 = vadd.f32 %v4128, 1e-05
    %v4161 = vadd.f32 %v4129, 1e-05
    %v4162 = vadd.f32 %v4130, 1e-05
    %v4163 = vadd.f32 %v4131, 1e-05
    %v4164 = vadd.f32 %v4132, 1e-05
    %v4165 = vadd.f32 %v4133, 1e-05
    %v4166 = vadd.f32 %v4134, 1e-05
    %v4167 = vadd.f32 %v4135, 1e-05
    %v4168 = vadd.f32 %v4136, 1e-05
    %v4169 = vadd.f32 %v4137, 1e-05
    %v4170 = vadd.f32 %v4138, 1e-05
    %v4171 = vadd.f32 %v4139, 1e-05
    %v4172 = vadd.f32 %v4140, 1e-05
    %v4173 = vadd.f32 %v4141, 1e-05
    %v4174 = vadd.f32 %v4142, 1e-05
    %v4175 = vadd.f32 %v4143, 1e-05
    %v4176 = vadd.f32 %v4144, 1e-05
    %v4177 = vadd.f32 %v4145, 1e-05
    %v4178 = vadd.f32 %v4146, 1e-05
    %v4179 = vadd.f32 %v4147, 1e-05
    %v4180 = vadd.f32 %v4148, 1e-05
    %v4181 = vadd.f32 %v4149, 1e-05
    %v4182 = vadd.f32 %v4150, 1e-05
    %v4183 = vadd.f32 %v4151, 1e-05
    %v4184 = vadd.f32 %v4152, 1e-05
    %v4185 = vadd.f32 %v4153, 1e-05
    %v4186 = vadd.f32 %v4154, 1e-05
    %v4187 = vadd.f32 %v4155, 1e-05
    %v4188 = vadd.f32 %v4156, 1e-05
    %v4189 = vadd.f32 %v4157, 1e-05
    %v4190 = vadd.f32 %v4158, 1e-05
    %v4191 = vadd.f32 %v4159, 1e-05
    %v4192 = vrsqrt.pop %v4160
    %v4193 = vrsqrt.pop %v4161
    %v4194 = vrsqrt.pop %v4162
    %v4195 = vrsqrt.pop %v4163
    %v4196 = vrsqrt.pop %v4164
    %v4197 = vrsqrt.pop %v4165
    %v4198 = vrsqrt.pop %v4166
    %v4199 = vrsqrt.pop %v4167
    %v4200 = vrsqrt.pop %v4168
    %v4201 = vrsqrt.pop %v4169
    %v4202 = vrsqrt.pop %v4170
    %v4203 = vrsqrt.pop %v4171
    %v4204 = vrsqrt.pop %v4172
    %v4205 = vrsqrt.pop %v4173
    %v4206 = vrsqrt.pop %v4174
    %v4207 = vrsqrt.pop %v4175
    %v4208 = vrsqrt.pop %v4176
    %v4209 = vrsqrt.pop %v4177
    %v4210 = vrsqrt.pop %v4178
    %v4211 = vrsqrt.pop %v4179
    %v4212 = vrsqrt.pop %v4180
    %v4213 = vrsqrt.pop %v4181
    %v4214 = vrsqrt.pop %v4182
    %v4215 = vrsqrt.pop %v4183
    %v4216 = vrsqrt.pop %v4184
    %v4217 = vrsqrt.pop %v4185
    %v4218 = vrsqrt.pop %v4186
    %v4219 = vrsqrt.pop %v4187
    %v4220 = vrsqrt.pop %v4188
    %v4221 = vrsqrt.pop %v4189
    %v4222 = vrsqrt.pop %v4190
    %v4223 = vrsqrt.pop %v4191
    %v4224 = vmul.f32 %v3904, %v4192
    %v4225 = vmul.f32 %v3905, %v4192
    %v4226 = vmul.f32 %v3906, %v4193
    %v4227 = vmul.f32 %v3907, %v4193
    %v4228 = vmul.f32 %v3908, %v4194
    %v4229 = vmul.f32 %v3909, %v4194
    %v4230 = vmul.f32 %v3910, %v4195
    %v4231 = vmul.f32 %v3911, %v4195
    %v4232 = vmul.f32 %v3912, %v4196
    %v4233 = vmul.f32 %v3913, %v4196
    %v4234 = vmul.f32 %v3914, %v4197
    %v4235 = vmul.f32 %v3915, %v4197
    %v4236 = vmul.f32 %v3916, %v4198
    %v4237 = vmul.f32 %v3917, %v4198
    %v4238 = vmul.f32 %v3918, %v4199
    %v4239 = vmul.f32 %v3919, %v4199
    %v4240 = vmul.f32 %v3920, %v4200
    %v4241 = vmul.f32 %v3921, %v4200
    %v4242 = vmul.f32 %v3922, %v4201
    %v4243 = vmul.f32 %v3923, %v4201
    %v4244 = vmul.f32 %v3924, %v4202
    %v4245 = vmul.f32 %v3925, %v4202
    %v4246 = vmul.f32 %v3926, %v4203
    %v4247 = vmul.f32 %v3927, %v4203
    %v4248 = vmul.f32 %v3928, %v4204
    %v4249 = vmul.f32 %v3929, %v4204
    %v4250 = vmul.f32 %v3930, %v4205
    %v4251 = vmul.f32 %v3931, %v4205
    %v4252 = vmul.f32 %v3932, %v4206
    %v4253 = vmul.f32 %v3933, %v4206
    %v4254 = vmul.f32 %v3934, %v4207
    %v4255 = vmul.f32 %v3935, %v4207
    %v4256 = vmul.f32 %v3936, %v4208
    %v4257 = vmul.f32 %v3937, %v4208
    %v4258 = vmul.f32 %v3938, %v4209
    %v4259 = vmul.f32 %v3939, %v4209
    %v4260 = vmul.f32 %v3940, %v4210
    %v4261 = vmul.f32 %v3941, %v4210
    %v4262 = vmul.f32 %v3942, %v4211
    %v4263 = vmul.f32 %v3943, %v4211
    %v4264 = vmul.f32 %v3944, %v4212
    %v4265 = vmul.f32 %v3945, %v4212
    %v4266 = vmul.f32 %v3946, %v4213
    %v4267 = vmul.f32 %v3947, %v4213
    %v4268 = vmul.f32 %v3948, %v4214
    %v4269 = vmul.f32 %v3949, %v4214
    %v4270 = vmul.f32 %v3950, %v4215
    %v4271 = vmul.f32 %v3951, %v4215
    %v4272 = vmul.f32 %v3952, %v4216
    %v4273 = vmul.f32 %v3953, %v4216
    %v4274 = vmul.f32 %v3954, %v4217
    %v4275 = vmul.f32 %v3955, %v4217
    %v4276 = vmul.f32 %v3956, %v4218
    %v4277 = vmul.f32 %v3957, %v4218
    %v4278 = vmul.f32 %v3958, %v4219
    %v4279 = vmul.f32 %v3959, %v4219
    %v4280 = vmul.f32 %v3960, %v4220
    %v4281 = vmul.f32 %v3961, %v4220
    %v4282 = vmul.f32 %v3962, %v4221
    %v4283 = vmul.f32 %v3963, %v4221
    %v4284 = vmul.f32 %v3964, %v4222
    %v4285 = vmul.f32 %v3965, %v4222
    %v4286 = vmul.f32 %v3966, %v4223
    %v4287 = vmul.f32 %v3967, %v4223
    %v4289 = vlaneseq
    %v4290 = vshrl.u32 %v4289, 7
    %v4291 = vsub.s32 0, %v4290
    %v4292 = vrot.slane %v3773, %v4291
    %v4293 = vlaneseq
    %v4294 = vshrl.u32 %v4293, 7
    %v4295 = vsub.s32 1, %v4294
    %v4296 = vrot.slane %v3773, %v4295
    %v4299 = vmul.f32 %v4224, %v4292
    %v4300 = vmul.f32 %v4225, %v4296
    %v4301 = vmul.f32 %v4226, %v4292
    %v4302 = vmul.f32 %v4227, %v4296
    %v4303 = vmul.f32 %v4228, %v4292
    %v4304 = vmul.f32 %v4229, %v4296
    %v4305 = vmul.f32 %v4230, %v4292
    %v4306 = vmul.f32 %v4231, %v4296
    %v4307 = vmul.f32 %v4232, %v4292
    %v4308 = vmul.f32 %v4233, %v4296
    %v4309 = vmul.f32 %v4234, %v4292
    %v4310 = vmul.f32 %v4235, %v4296
    %v4311 = vmul.f32 %v4236, %v4292
    %v4312 = vmul.f32 %v4237, %v4296
    %v4313 = vmul.f32 %v4238, %v4292
    %v4314 = vmul.f32 %v4239, %v4296
    %v4315 = vmul.f32 %v4240, %v4292
    %v4316 = vmul.f32 %v4241, %v4296
    %v4317 = vmul.f32 %v4242, %v4292
    %v4318 = vmul.f32 %v4243, %v4296
    %v4319 = vmul.f32 %v4244, %v4292
    %v4320 = vmul.f32 %v4245, %v4296
    %v4321 = vmul.f32 %v4246, %v4292
    %v4322 = vmul.f32 %v4247, %v4296
    %v4323 = vmul.f32 %v4248, %v4292
    %v4324 = vmul.f32 %v4249, %v4296
    %v4325 = vmul.f32 %v4250, %v4292
    %v4326 = vmul.f32 %v4251, %v4296
    %v4327 = vmul.f32 %v4252, %v4292
    %v4328 = vmul.f32 %v4253, %v4296
    %v4329 = vmul.f32 %v4254, %v4292
    %v4330 = vmul.f32 %v4255, %v4296
    %v4331 = vmul.f32 %v4256, %v4292
    %v4332 = vmul.f32 %v4257, %v4296
    %v4333 = vmul.f32 %v4258, %v4292
    %v4334 = vmul.f32 %v4259, %v4296
    %v4335 = vmul.f32 %v4260, %v4292
    %v4336 = vmul.f32 %v4261, %v4296
    %v4337 = vmul.f32 %v4262, %v4292
    %v4338 = vmul.f32 %v4263, %v4296
    %v4339 = vmul.f32 %v4264, %v4292
    %v4340 = vmul.f32 %v4265, %v4296
    %v4341 = vmul.f32 %v4266, %v4292
    %v4342 = vmul.f32 %v4267, %v4296
    %v4343 = vmul.f32 %v4268, %v4292
    %v4344 = vmul.f32 %v4269, %v4296
    %v4345 = vmul.f32 %v4270, %v4292
    %v4346 = vmul.f32 %v4271, %v4296
    %v4347 = vmul.f32 %v4272, %v4292
    %v4348 = vmul.f32 %v4273, %v4296
    %v4349 = vmul.f32 %v4274, %v4292
    %v4350 = vmul.f32 %v4275, %v4296
    %v4351 = vmul.f32 %v4276, %v4292
    %v4352 = vmul.f32 %v4277, %v4296
    %v4353 = vmul.f32 %v4278, %v4292
    %v4354 = vmul.f32 %v4279, %v4296
    %v4355 = vmul.f32 %v4280, %v4292
    %v4356 = vmul.f32 %v4281, %v4296
    %v4357 = vmul.f32 %v4282, %v4292
    %v4358 = vmul.f32 %v4283, %v4296
    %v4359 = vmul.f32 %v4284, %v4292
    %v4360 = vmul.f32 %v4285, %v4296
    %v4361 = vmul.f32 %v4286, %v4292
    %v4362 = vmul.f32 %v4287, %v4296
    %v4364 = vlaneseq
    %v4365 = vshrl.u32 %v4364, 7
    %v4366 = vsub.s32 0, %v4365
    %v4367 = vrot.slane %v3775, %v4366
    %v4368 = vlaneseq
    %v4369 = vshrl.u32 %v4368, 7
    %v4370 = vsub.s32 1, %v4369
    %v4371 = vrot.slane %v3775, %v4370
    %v4374 = vadd.f32 %v4299, %v4367
    %v4375 = vadd.f32 %v4300, %v4371
    %v4376 = vadd.f32 %v4301, %v4367
    %v4377 = vadd.f32 %v4302, %v4371
    %v4378 = vadd.f32 %v4303, %v4367
    %v4379 = vadd.f32 %v4304, %v4371
    %v4380 = vadd.f32 %v4305, %v4367
    %v4381 = vadd.f32 %v4306, %v4371
    %v4382 = vadd.f32 %v4307, %v4367
    %v4383 = vadd.f32 %v4308, %v4371
    %v4384 = vadd.f32 %v4309, %v4367
    %v4385 = vadd.f32 %v4310, %v4371
    %v4386 = vadd.f32 %v4311, %v4367
    %v4387 = vadd.f32 %v4312, %v4371
    %v4388 = vadd.f32 %v4313, %v4367
    %v4389 = vadd.f32 %v4314, %v4371
    %v4390 = vadd.f32 %v4315, %v4367
    %v4391 = vadd.f32 %v4316, %v4371
    %v4392 = vadd.f32 %v4317, %v4367
    %v4393 = vadd.f32 %v4318, %v4371
    %v4394 = vadd.f32 %v4319, %v4367
    %v4395 = vadd.f32 %v4320, %v4371
    %v4396 = vadd.f32 %v4321, %v4367
    %v4397 = vadd.f32 %v4322, %v4371
    %v4398 = vadd.f32 %v4323, %v4367
    %v4399 = vadd.f32 %v4324, %v4371
    %v4400 = vadd.f32 %v4325, %v4367
    %v4401 = vadd.f32 %v4326, %v4371
    %v4402 = vadd.f32 %v4327, %v4367
    %v4403 = vadd.f32 %v4328, %v4371
    %v4404 = vadd.f32 %v4329, %v4367
    %v4405 = vadd.f32 %v4330, %v4371
    %v4406 = vadd.f32 %v4331, %v4367
    %v4407 = vadd.f32 %v4332, %v4371
    %v4408 = vadd.f32 %v4333, %v4367
    %v4409 = vadd.f32 %v4334, %v4371
    %v4410 = vadd.f32 %v4335, %v4367
    %v4411 = vadd.f32 %v4336, %v4371
    %v4412 = vadd.f32 %v4337, %v4367
    %v4413 = vadd.f32 %v4338, %v4371
    %v4414 = vadd.f32 %v4339, %v4367
    %v4415 = vadd.f32 %v4340, %v4371
    %v4416 = vadd.f32 %v4341, %v4367
    %v4417 = vadd.f32 %v4342, %v4371
    %v4418 = vadd.f32 %v4343, %v4367
    %v4419 = vadd.f32 %v4344, %v4371
    %v4420 = vadd.f32 %v4345, %v4367
    %v4421 = vadd.f32 %v4346, %v4371
    %v4422 = vadd.f32 %v4347, %v4367
    %v4423 = vadd.f32 %v4348, %v4371
    %v4424 = vadd.f32 %v4349, %v4367
    %v4425 = vadd.f32 %v4350, %v4371
    %v4426 = vadd.f32 %v4351, %v4367
    %v4427 = vadd.f32 %v4352, %v4371
    %v4428 = vadd.f32 %v4353, %v4367
    %v4429 = vadd.f32 %v4354, %v4371
    %v4430 = vadd.f32 %v4355, %v4367
    %v4431 = vadd.f32 %v4356, %v4371
    %v4432 = vadd.f32 %v4357, %v4367
    %v4433 = vadd.f32 %v4358, %v4371
    %v4434 = vadd.f32 %v4359, %v4367
    %v4435 = vadd.f32 %v4360, %v4371
    %v4436 = vadd.f32 %v4361, %v4367
    %v4437 = vadd.f32 %v4362, %v4371
    %v4438 = vpack.c.bf16 %v4376, %v4374
    %v4439 = vpack.c.bf16 %v4377, %v4375
    %v4440 = vpack.c.bf16 %v4380, %v4378
    %v4441 = vpack.c.bf16 %v4381, %v4379
    %v4442 = vpack.c.bf16 %v4384, %v4382
    %v4443 = vpack.c.bf16 %v4385, %v4383
    %v4444 = vpack.c.bf16 %v4388, %v4386
    %v4445 = vpack.c.bf16 %v4389, %v4387
    %v4446 = vpack.c.bf16 %v4392, %v4390
    %v4447 = vpack.c.bf16 %v4393, %v4391
    %v4448 = vpack.c.bf16 %v4396, %v4394
    %v4449 = vpack.c.bf16 %v4397, %v4395
    %v4450 = vpack.c.bf16 %v4400, %v4398
    %v4451 = vpack.c.bf16 %v4401, %v4399
    %v4452 = vpack.c.bf16 %v4404, %v4402
    %v4453 = vpack.c.bf16 %v4405, %v4403
    %v4454 = vpack.c.bf16 %v4408, %v4406
    %v4455 = vpack.c.bf16 %v4409, %v4407
    %v4456 = vpack.c.bf16 %v4412, %v4410
    %v4457 = vpack.c.bf16 %v4413, %v4411
    %v4458 = vpack.c.bf16 %v4416, %v4414
    %v4459 = vpack.c.bf16 %v4417, %v4415
    %v4460 = vpack.c.bf16 %v4420, %v4418
    %v4461 = vpack.c.bf16 %v4421, %v4419
    %v4462 = vpack.c.bf16 %v4424, %v4422
    %v4463 = vpack.c.bf16 %v4425, %v4423
    %v4464 = vpack.c.bf16 %v4428, %v4426
    %v4465 = vpack.c.bf16 %v4429, %v4427
    %v4466 = vpack.c.bf16 %v4432, %v4430
    %v4467 = vpack.c.bf16 %v4433, %v4431
    %v4468 = vpack.c.bf16 %v4436, %v4434
    %v4469 = vpack.c.bf16 %v4437, %v4435
    %s4470 = scalar_lea.vmem [#allocation2], 256
    %v4471 = vld [vmem:[%s4470] sm:$0xff]
    %v4472 = vld [vmem:[%s4470 + $0x8] sm:$0xff]
    %v4473 = vld [vmem:[%s4470 + $0x10] sm:$0xff]
    %v4474 = vld [vmem:[%s4470 + $0x18] sm:$0xff]
    %v4475 = vld [vmem:[%s4470 + $0x20] sm:$0xff]
    %v4476 = vld [vmem:[%s4470 + $0x28] sm:$0xff]
    %v4477 = vld [vmem:[%s4470 + $0x30] sm:$0xff]
    %v4478 = vld [vmem:[%s4470 + $0x38] sm:$0xff]
    %v4479 = vld [vmem:[%s4470 + $0x40] sm:$0xff]
    %v4480 = vld [vmem:[%s4470 + $0x48] sm:$0xff]
    %v4481 = vld [vmem:[%s4470 + $0x50] sm:$0xff]
    %v4482 = vld [vmem:[%s4470 + $0x58] sm:$0xff]
    %v4483 = vld [vmem:[%s4470 + $0x60] sm:$0xff]
    %v4484 = vld [vmem:[%s4470 + $0x68] sm:$0xff]
    %v4485 = vld [vmem:[%s4470 + $0x70] sm:$0xff]
    %v4486 = vld [vmem:[%s4470 + $0x78] sm:$0xff]
    %v4487 = vld [vmem:[%s4470 + $0x80] sm:$0xff]
    %v4488 = vld [vmem:[%s4470 + $0x88] sm:$0xff]
    %v4489 = vld [vmem:[%s4470 + $0x90] sm:$0xff]
    %v4490 = vld [vmem:[%s4470 + $0x98] sm:$0xff]
    %v4491 = vld [vmem:[%s4470 + $0xa0] sm:$0xff]
    %v4492 = vld [vmem:[%s4470 + $0xa8] sm:$0xff]
    %v4493 = vld [vmem:[%s4470 + $0xb0] sm:$0xff]
    %v4494 = vld [vmem:[%s4470 + $0xb8] sm:$0xff]
    %v4495 = vld [vmem:[%s4470 + $0xc0] sm:$0xff]
    %v4496 = vld [vmem:[%s4470 + $0xc8] sm:$0xff]
    %v4497 = vld [vmem:[%s4470 + $0xd0] sm:$0xff]
    %v4498 = vld [vmem:[%s4470 + $0xd8] sm:$0xff]
    %v4499 = vld [vmem:[%s4470 + $0xe0] sm:$0xff]
    %v4500 = vld [vmem:[%s4470 + $0xe8] sm:$0xff]
    %v4501 = vld [vmem:[%s4470 + $0xf0] sm:$0xff]
    %v4502 = vld [vmem:[%s4470 + $0xf8] sm:$0xff]
    %s4503 = scalar_lea.vmem %s8, 2
    %v4504 = vld [vmem:[%s4503] sm:$0x3]
    %v4506 = vlaneseq
    %v4507 = vshrl.u32 %v4506, 7
    %v4508 = vsub.s32 0, %v4507
    %v4509 = vrot.slane %v4504, %v4508
    %v4510 = vlaneseq
    %v4511 = vshrl.u32 %v4510, 7
    %v4512 = vsub.s32 1, %v4511
    %v4513 = vrot.slane %v4504, %v4512
    %v4548 = vunpack.c.l.b16 %v4471
    %v4549 = vunpack.c.h.b16 %v4471
    %v4550 = vunpack.c.l.b16 %v4472
    %v4551 = vunpack.c.h.b16 %v4472
    %v4552 = vunpack.c.l.b16 %v4473
    %v4553 = vunpack.c.h.b16 %v4473
    %v4554 = vunpack.c.l.b16 %v4474
    %v4555 = vunpack.c.h.b16 %v4474
    %v4556 = vunpack.c.l.b16 %v4475
    %v4557 = vunpack.c.h.b16 %v4475
    %v4558 = vunpack.c.l.b16 %v4476
    %v4559 = vunpack.c.h.b16 %v4476
    %v4560 = vunpack.c.l.b16 %v4477
    %v4561 = vunpack.c.h.b16 %v4477
    %v4562 = vunpack.c.l.b16 %v4478
    %v4563 = vunpack.c.h.b16 %v4478
    %v4564 = vunpack.c.l.b16 %v4479
    %v4565 = vunpack.c.h.b16 %v4479
    %v4566 = vunpack.c.l.b16 %v4480
    %v4567 = vunpack.c.h.b16 %v4480
    %v4568 = vunpack.c.l.b16 %v4481
    %v4569 = vunpack.c.h.b16 %v4481
    %v4570 = vunpack.c.l.b16 %v4482
    %v4571 = vunpack.c.h.b16 %v4482
    %v4572 = vunpack.c.l.b16 %v4483
    %v4573 = vunpack.c.h.b16 %v4483
    %v4574 = vunpack.c.l.b16 %v4484
    %v4575 = vunpack.c.h.b16 %v4484
    %v4576 = vunpack.c.l.b16 %v4485
    %v4577 = vunpack.c.h.b16 %v4485
    %v4578 = vunpack.c.l.b16 %v4486
    %v4579 = vunpack.c.h.b16 %v4486
    %v4580 = vunpack.c.l.b16 %v4487
    %v4581 = vunpack.c.h.b16 %v4487
    %v4582 = vunpack.c.l.b16 %v4488
    %v4583 = vunpack.c.h.b16 %v4488
    %v4584 = vunpack.c.l.b16 %v4489
    %v4585 = vunpack.c.h.b16 %v4489
    %v4586 = vunpack.c.l.b16 %v4490
    %v4587 = vunpack.c.h.b16 %v4490
    %v4588 = vunpack.c.l.b16 %v4491
    %v4589 = vunpack.c.h.b16 %v4491
    %v4590 = vunpack.c.l.b16 %v4492
    %v4591 = vunpack.c.h.b16 %v4492
    %v4592 = vunpack.c.l.b16 %v4493
    %v4593 = vunpack.c.h.b16 %v4493
    %v4594 = vunpack.c.l.b16 %v4494
    %v4595 = vunpack.c.h.b16 %v4494
    %v4596 = vunpack.c.l.b16 %v4495
    %v4597 = vunpack.c.h.b16 %v4495
    %v4598 = vunpack.c.l.b16 %v4496
    %v4599 = vunpack.c.h.b16 %v4496
    %v4600 = vunpack.c.l.b16 %v4497
    %v4601 = vunpack.c.h.b16 %v4497
    %v4602 = vunpack.c.l.b16 %v4498
    %v4603 = vunpack.c.h.b16 %v4498
    %v4604 = vunpack.c.l.b16 %v4499
    %v4605 = vunpack.c.h.b16 %v4499
    %v4606 = vunpack.c.l.b16 %v4500
    %v4607 = vunpack.c.h.b16 %v4500
    %v4608 = vunpack.c.l.b16 %v4501
    %v4609 = vunpack.c.h.b16 %v4501
    %v4610 = vunpack.c.l.b16 %v4502
    %v4611 = vunpack.c.h.b16 %v4502
    %v4612 = vpack.c.b16 %v4550, %v4548
    %v4613 = vpack.c.b16 %v4551, %v4549
    %v4614 = vpack.c.b16 %v4554, %v4552
    %v4615 = vpack.c.b16 %v4555, %v4553
    %v4616 = vpack.c.b16 %v4558, %v4556
    %v4617 = vpack.c.b16 %v4559, %v4557
    %v4618 = vpack.c.b16 %v4562, %v4560
    %v4619 = vpack.c.b16 %v4563, %v4561
    %v4620 = vpack.c.b16 %v4566, %v4564
    %v4621 = vpack.c.b16 %v4567, %v4565
    %v4622 = vpack.c.b16 %v4570, %v4568
    %v4623 = vpack.c.b16 %v4571, %v4569
    %v4624 = vpack.c.b16 %v4574, %v4572
    %v4625 = vpack.c.b16 %v4575, %v4573
    %v4626 = vpack.c.b16 %v4578, %v4576
    %v4627 = vpack.c.b16 %v4579, %v4577
    %v4628 = vpack.c.b16 %v4582, %v4580
    %v4629 = vpack.c.b16 %v4583, %v4581
    %v4630 = vpack.c.b16 %v4586, %v4584
    %v4631 = vpack.c.b16 %v4587, %v4585
    %v4632 = vpack.c.b16 %v4590, %v4588
    %v4633 = vpack.c.b16 %v4591, %v4589
    %v4634 = vpack.c.b16 %v4594, %v4592
    %v4635 = vpack.c.b16 %v4595, %v4593
    %v4636 = vpack.c.b16 %v4598, %v4596
    %v4637 = vpack.c.b16 %v4599, %v4597
    %v4638 = vpack.c.b16 %v4602, %v4600
    %v4639 = vpack.c.b16 %v4603, %v4601
    %v4640 = vpack.c.b16 %v4606, %v4604
    %v4641 = vpack.c.b16 %v4607, %v4605
    %v4642 = vpack.c.b16 %v4610, %v4608
    %v4643 = vpack.c.b16 %v4611, %v4609
    %4676 = vmatprep.subr.bf16.mxu0 %v4613
    %4677 = vmatpush1.bf16.msra.mxu0 %v4612
    %4678 = vmatprep.subr.bf16.mxu0 %v4615
    %4679 = vmatpush1.bf16.msra.mxu0 %v4614
    %4680 = vmatprep.subr.bf16.mxu0 %v4617
    %4681 = vmatpush1.bf16.msra.mxu0 %v4616
    %4682 = vmatprep.subr.bf16.mxu0 %v4619
    %4683 = vmatpush1.bf16.msra.mxu0 %v4618
    %4684 = vmatprep.subr.bf16.mxu0 %v4621
    %4685 = vmatpush1.bf16.msra.mxu0 %v4620
    %4686 = vmatprep.subr.bf16.mxu0 %v4623
    %4687 = vmatpush1.bf16.msra.mxu0 %v4622
    %4688 = vmatprep.subr.bf16.mxu0 %v4625
    %4689 = vmatpush1.bf16.msra.mxu0 %v4624
    %4690 = vmatprep.subr.bf16.mxu0 %v4627
    %4691 = vmatpush1.bf16.msra.mxu0 %v4626
    %4692 = vmatprep.subr.bf16.mxu0 %v4629
    %4693 = vmatpush1.bf16.msra.mxu0 %v4628
    %4694 = vmatprep.subr.bf16.mxu0 %v4631
    %4695 = vmatpush1.bf16.msra.mxu0 %v4630
    %4696 = vmatprep.subr.bf16.mxu0 %v4633
    %4697 = vmatpush1.bf16.msra.mxu0 %v4632
    %4698 = vmatprep.subr.bf16.mxu0 %v4635
    %4699 = vmatpush1.bf16.msra.mxu0 %v4634
    %4700 = vmatprep.subr.bf16.mxu0 %v4637
    %4701 = vmatpush1.bf16.msra.mxu0 %v4636
    %4702 = vmatprep.subr.bf16.mxu0 %v4639
    %4703 = vmatpush1.bf16.msra.mxu0 %v4638
    %4704 = vmatprep.subr.bf16.mxu0 %v4641
    %4705 = vmatpush1.bf16.msra.mxu0 %v4640
    %4706 = vmatprep.subr.bf16.mxu0 %v4643
    %4707 = vmatpush1.bf16.msra.mxu0 %v4642
    %4708 = vmatprep.mubr.bf16.mxu0 %v4439
    %4709 = vmatmul.mubr.bf16.gmra.mrb[0].mxu0 %v4438
    %v4710 = vpop.f32.mrb[0].mxu0
    %v4711 = vadd.f32 %v4509, %v4710
    %v4712 = vpop.f32.mrb[0].mxu0
    %v4713 = vadd.f32 %v4513, %v4712
    %v4714 = vpop.f32.mrb[0].mxu0
    %v4715 = vadd.f32 %v4509, %v4714
    %v4716 = vpop.f32.mrb[0].mxu0
    %v4717 = vadd.f32 %v4513, %v4716
    %4718 = vmatprep.mubr.bf16.mxu0 %v4441
    %4719 = vmatmul.mubr.bf16.gmra.mrb[0].mxu0 %v4440
    %v4720 = vpop.f32.mrb[0].mxu0
    %v4721 = vadd.f32 %v4509, %v4720
    %v4722 = vpop.f32.mrb[0].mxu0
    %v4723 = vadd.f32 %v4513, %v4722
    %v4724 = vpop.f32.mrb[0].mxu0
    %v4725 = vadd.f32 %v4509, %v4724
    %v4726 = vpop.f32.mrb[0].mxu0
    %v4727 = vadd.f32 %v4513, %v4726
    %4728 = vmatprep.mubr.bf16.mxu0 %v4443
    %4729 = vmatmul.mubr.bf16.gmra.mrb[0].mxu0 %v4442
    %v4730 = vpop.f32.mrb[0].mxu0
    %v4731 = vadd.f32 %v4509, %v4730
    %v4732 = vpop.f32.mrb[0].mxu0
    %v4733 = vadd.f32 %v4513, %v4732
    %v4734 = vpop.f32.mrb[0].mxu0
    %v4735 = vadd.f32 %v4509, %v4734
    %v4736 = vpop.f32.mrb[0].mxu0
    %v4737 = vadd.f32 %v4513, %v4736
    %4738 = vmatprep.mubr.bf16.mxu0 %v4445
    %4739 = vmatmul.mubr.bf16.gmra.mrb[0].mxu0 %v4444
    %v4740 = vpop.f32.mrb[0].mxu0
    %v4741 = vadd.f32 %v4509, %v4740
    %v4742 = vpop.f32.mrb[0].mxu0
    %v4743 = vadd.f32 %v4513, %v4742
    %v4744 = vpop.f32.mrb[0].mxu0
    %v4745 = vadd.f32 %v4509, %v4744
    %v4746 = vpop.f32.mrb[0].mxu0
    %v4747 = vadd.f32 %v4513, %v4746
    %4748 = vmatprep.mubr.bf16.mxu0 %v4447
    %4749 = vmatmul.mubr.bf16.gmra.mrb[0].mxu0 %v4446
    %v4750 = vpop.f32.mrb[0].mxu0
    %v4751 = vadd.f32 %v4509, %v4750
    %v4752 = vpop.f32.mrb[0].mxu0
    %v4753 = vadd.f32 %v4513, %v4752
    %v4754 = vpop.f32.mrb[0].mxu0
    %v4755 = vadd.f32 %v4509, %v4754
    %v4756 = vpop.f32.mrb[0].mxu0
    %v4757 = vadd.f32 %v4513, %v4756
    %4758 = vmatprep.mubr.bf16.mxu0 %v4449
    %4759 = vmatmul.mubr.bf16.gmra.mrb[0].mxu0 %v4448
    %v4760 = vpop.f32.mrb[0].mxu0
    %v4761 = vadd.f32 %v4509, %v4760
    %v4762 = vpop.f32.mrb[0].mxu0
    %v4763 = vadd.f32 %v4513, %v4762
    %v4764 = vpop.f32.mrb[0].mxu0
    %v4765 = vadd.f32 %v4509, %v4764
    %v4766 = vpop.f32.mrb[0].mxu0
    %v4767 = vadd.f32 %v4513, %v4766
    %4768 = vmatprep.mubr.bf16.mxu0 %v4451
    %4769 = vmatmul.mubr.bf16.gmra.mrb[0].mxu0 %v4450
    %v4770 = vpop.f32.mrb[0].mxu0
    %v4771 = vadd.f32 %v4509, %v4770
    %v4772 = vpop.f32.mrb[0].mxu0
    %v4773 = vadd.f32 %v4513, %v4772
    %v4774 = vpop.f32.mrb[0].mxu0
    %v4775 = vadd.f32 %v4509, %v4774
    %v4776 = vpop.f32.mrb[0].mxu0
    %v4777 = vadd.f32 %v4513, %v4776
    %4778 = vmatprep.mubr.bf16.mxu0 %v4453
    %4779 = vmatmul.mubr.bf16.gmra.mrb[0].mxu0 %v4452
    %v4780 = vpop.f32.mrb[0].mxu0
    %v4781 = vadd.f32 %v4509, %v4780
    %v4782 = vpop.f32.mrb[0].mxu0
    %v4783 = vadd.f32 %v4513, %v4782
    %v4784 = vpop.f32.mrb[0].mxu0
    %v4785 = vadd.f32 %v4509, %v4784
    %v4786 = vpop.f32.mrb[0].mxu0
    %v4787 = vadd.f32 %v4513, %v4786
    %4788 = vmatprep.mubr.bf16.mxu0 %v4455
    %4789 = vmatmul.mubr.bf16.gmra.mrb[0].mxu0 %v4454
    %v4790 = vpop.f32.mrb[0].mxu0
    %v4791 = vadd.f32 %v4509, %v4790
    %v4792 = vpop.f32.mrb[0].mxu0
    %v4793 = vadd.f32 %v4513, %v4792
    %v4794 = vpop.f32.mrb[0].mxu0
    %v4795 = vadd.f32 %v4509, %v4794
    %v4796 = vpop.f32.mrb[0].mxu0
    %v4797 = vadd.f32 %v4513, %v4796
    %4798 = vmatprep.mubr.bf16.mxu0 %v4457
    %4799 = vmatmul.mubr.bf16.gmra.mrb[0].mxu0 %v4456
    %v4800 = vpop.f32.mrb[0].mxu0
    %v4801 = vadd.f32 %v4509, %v4800
    %v4802 = vpop.f32.mrb[0].mxu0
    %v4803 = vadd.f32 %v4513, %v4802
    %v4804 = vpop.f32.mrb[0].mxu0
    %v4805 = vadd.f32 %v4509, %v4804
    %v4806 = vpop.f32.mrb[0].mxu0
    %v4807 = vadd.f32 %v4513, %v4806
    %4808 = vmatprep.mubr.bf16.mxu0 %v4459
    %4809 = vmatmul.mubr.bf16.gmra.mrb[0].mxu0 %v4458
    %v4810 = vpop.f32.mrb[0].mxu0
    %v4811 = vadd.f32 %v4509, %v4810
    %v4812 = vpop.f32.mrb[0].mxu0
    %v4813 = vadd.f32 %v4513, %v4812
    %v4814 = vpop.f32.mrb[0].mxu0
    %v4815 = vadd.f32 %v4509, %v4814
    %v4816 = vpop.f32.mrb[0].mxu0
    %v4817 = vadd.f32 %v4513, %v4816
    %4818 = vmatprep.mubr.bf16.mxu0 %v4461
    %4819 = vmatmul.mubr.bf16.gmra.mrb[0].mxu0 %v4460
    %v4820 = vpop.f32.mrb[0].mxu0
    %v4821 = vadd.f32 %v4509, %v4820
    %v4822 = vpop.f32.mrb[0].mxu0
    %v4823 = vadd.f32 %v4513, %v4822
    %v4824 = vpop.f32.mrb[0].mxu0
    %v4825 = vadd.f32 %v4509, %v4824
    %v4826 = vpop.f32.mrb[0].mxu0
    %v4827 = vadd.f32 %v4513, %v4826
    %4828 = vmatprep.mubr.bf16.mxu0 %v4463
    %4829 = vmatmul.mubr.bf16.gmra.mrb[0].mxu0 %v4462
    %v4830 = vpop.f32.mrb[0].mxu0
    %v4831 = vadd.f32 %v4509, %v4830
    %v4832 = vpop.f32.mrb[0].mxu0
    %v4833 = vadd.f32 %v4513, %v4832
    %v4834 = vpop.f32.mrb[0].mxu0
    %v4835 = vadd.f32 %v4509, %v4834
    %v4836 = vpop.f32.mrb[0].mxu0
    %v4837 = vadd.f32 %v4513, %v4836
    %4838 = vmatprep.mubr.bf16.mxu0 %v4465
    %4839 = vmatmul.mubr.bf16.gmra.mrb[0].mxu0 %v4464
    %v4840 = vpop.f32.mrb[0].mxu0
    %v4841 = vadd.f32 %v4509, %v4840
    %v4842 = vpop.f32.mrb[0].mxu0
    %v4843 = vadd.f32 %v4513, %v4842
    %v4844 = vpop.f32.mrb[0].mxu0
    %v4845 = vadd.f32 %v4509, %v4844
    %v4846 = vpop.f32.mrb[0].mxu0
    %v4847 = vadd.f32 %v4513, %v4846
    %4848 = vmatprep.mubr.bf16.mxu0 %v4467
    %4849 = vmatmul.mubr.bf16.gmra.mrb[0].mxu0 %v4466
    %v4850 = vpop.f32.mrb[0].mxu0
    %v4851 = vadd.f32 %v4509, %v4850
    %v4852 = vpop.f32.mrb[0].mxu0
    %v4853 = vadd.f32 %v4513, %v4852
    %v4854 = vpop.f32.mrb[0].mxu0
    %v4855 = vadd.f32 %v4509, %v4854
    %v4856 = vpop.f32.mrb[0].mxu0
    %v4857 = vadd.f32 %v4513, %v4856
    %4858 = vmatprep.mubr.bf16.mxu0 %v4469
    %4859 = vmatmul.mubr.bf16.gmra.mrb[0].mxu0 %v4468
    %v4860 = vpop.f32.mrb[0].mxu0
    %v4861 = vadd.f32 %v4509, %v4860
    %v4862 = vpop.f32.mrb[0].mxu0
    %v4863 = vadd.f32 %v4513, %v4862
    %v4864 = vpop.f32.mrb[0].mxu0
    %v4865 = vadd.f32 %v4509, %v4864
    %v4866 = vpop.f32.mrb[0].mxu0
    %v4867 = vadd.f32 %v4513, %v4866
    %4868 = vdwg.mxu0
    %v4869 = vmax.f32 %v4711, 0.0
    %v4870 = vmax.f32 %v4713, 0.0
    %v4871 = vmax.f32 %v4715, 0.0
    %v4872 = vmax.f32 %v4717, 0.0
    %v4873 = vmax.f32 %v4721, 0.0
    %v4874 = vmax.f32 %v4723, 0.0
    %v4875 = vmax.f32 %v4725, 0.0
    %v4876 = vmax.f32 %v4727, 0.0
    %v4877 = vmax.f32 %v4731, 0.0
    %v4878 = vmax.f32 %v4733, 0.0
    %v4879 = vmax.f32 %v4735, 0.0
    %v4880 = vmax.f32 %v4737, 0.0
    %v4881 = vmax.f32 %v4741, 0.0
    %v4882 = vmax.f32 %v4743, 0.0
    %v4883 = vmax.f32 %v4745, 0.0
    %v4884 = vmax.f32 %v4747, 0.0
    %v4885 = vmax.f32 %v4751, 0.0
    %v4886 = vmax.f32 %v4753, 0.0
    %v4887 = vmax.f32 %v4755, 0.0
    %v4888 = vmax.f32 %v4757, 0.0
    %v4889 = vmax.f32 %v4761, 0.0
    %v4890 = vmax.f32 %v4763, 0.0
    %v4891 = vmax.f32 %v4765, 0.0
    %v4892 = vmax.f32 %v4767, 0.0
    %v4893 = vmax.f32 %v4771, 0.0
    %v4894 = vmax.f32 %v4773, 0.0
    %v4895 = vmax.f32 %v4775, 0.0
    %v4896 = vmax.f32 %v4777, 0.0
    %v4897 = vmax.f32 %v4781, 0.0
    %v4898 = vmax.f32 %v4783, 0.0
    %v4899 = vmax.f32 %v4785, 0.0
    %v4900 = vmax.f32 %v4787, 0.0
    %v4901 = vmax.f32 %v4791, 0.0
    %v4902 = vmax.f32 %v4793, 0.0
    %v4903 = vmax.f32 %v4795, 0.0
    %v4904 = vmax.f32 %v4797, 0.0
    %v4905 = vmax.f32 %v4801, 0.0
    %v4906 = vmax.f32 %v4803, 0.0
    %v4907 = vmax.f32 %v4805, 0.0
    %v4908 = vmax.f32 %v4807, 0.0
    %v4909 = vmax.f32 %v4811, 0.0
    %v4910 = vmax.f32 %v4813, 0.0
    %v4911 = vmax.f32 %v4815, 0.0
    %v4912 = vmax.f32 %v4817, 0.0
    %v4913 = vmax.f32 %v4821, 0.0
    %v4914 = vmax.f32 %v4823, 0.0
    %v4915 = vmax.f32 %v4825, 0.0
    %v4916 = vmax.f32 %v4827, 0.0
    %v4917 = vmax.f32 %v4831, 0.0
    %v4918 = vmax.f32 %v4833, 0.0
    %v4919 = vmax.f32 %v4835, 0.0
    %v4920 = vmax.f32 %v4837, 0.0
    %v4921 = vmax.f32 %v4841, 0.0
    %v4922 = vmax.f32 %v4843, 0.0
    %v4923 = vmax.f32 %v4845, 0.0
    %v4924 = vmax.f32 %v4847, 0.0
    %v4925 = vmax.f32 %v4851, 0.0
    %v4926 = vmax.f32 %v4853, 0.0
    %v4927 = vmax.f32 %v4855, 0.0
    %v4928 = vmax.f32 %v4857, 0.0
    %v4929 = vmax.f32 %v4861, 0.0
    %v4930 = vmax.f32 %v4863, 0.0
    %v4931 = vmax.f32 %v4865, 0.0
    %v4932 = vmax.f32 %v4867, 0.0
    %s4933 = scalar_lea.vmem %s9, 2
    %v4934 = vld [vmem:[%s4933] sm:$0x3]
    %s4935 = scalar_lea.vmem %s10, 2
    %v4936 = vld [vmem:[%s4935] sm:$0x3]
    %v4937 = vadd.f32 %v4869, %v4870
    %4938 = vadd.xlane.f32.xlu0 %v4937
    %v4939 = vpop.xlane.xlu0 %4938
    %v4940 = vadd.f32 %v4871, %v4872
    %4941 = vadd.xlane.f32.xlu0 %v4940
    %v4942 = vpop.xlane.xlu0 %4941
    %v4943 = vadd.f32 %v4873, %v4874
    %4944 = vadd.xlane.f32.xlu0 %v4943
    %v4945 = vpop.xlane.xlu0 %4944
    %v4946 = vadd.f32 %v4875, %v4876
    %4947 = vadd.xlane.f32.xlu0 %v4946
    %v4948 = vpop.xlane.xlu0 %4947
    %v4949 = vadd.f32 %v4877, %v4878
    %4950 = vadd.xlane.f32.xlu0 %v4949
    %v4951 = vpop.xlane.xlu0 %4950
    %v4952 = vadd.f32 %v4879, %v4880
    %4953 = vadd.xlane.f32.xlu0 %v4952
    %v4954 = vpop.xlane.xlu0 %4953
    %v4955 = vadd.f32 %v4881, %v4882
    %4956 = vadd.xlane.f32.xlu0 %v4955
    %v4957 = vpop.xlane.xlu0 %4956
    %v4958 = vadd.f32 %v4883, %v4884
    %4959 = vadd.xlane.f32.xlu0 %v4958
    %v4960 = vpop.xlane.xlu0 %4959
    %v4961 = vadd.f32 %v4885, %v4886
    %4962 = vadd.xlane.f32.xlu0 %v4961
    %v4963 = vpop.xlane.xlu0 %4962
    %v4964 = vadd.f32 %v4887, %v4888
    %4965 = vadd.xlane.f32.xlu0 %v4964
    %v4966 = vpop.xlane.xlu0 %4965
    %v4967 = vadd.f32 %v4889, %v4890
    %4968 = vadd.xlane.f32.xlu0 %v4967
    %v4969 = vpop.xlane.xlu0 %4968
    %v4970 = vadd.f32 %v4891, %v4892
    %4971 = vadd.xlane.f32.xlu0 %v4970
    %v4972 = vpop.xlane.xlu0 %4971
    %v4973 = vadd.f32 %v4893, %v4894
    %4974 = vadd.xlane.f32.xlu0 %v4973
    %v4975 = vpop.xlane.xlu0 %4974
    %v4976 = vadd.f32 %v4895, %v4896
    %4977 = vadd.xlane.f32.xlu0 %v4976
    %v4978 = vpop.xlane.xlu0 %4977
    %v4979 = vadd.f32 %v4897, %v4898
    %4980 = vadd.xlane.f32.xlu0 %v4979
    %v4981 = vpop.xlane.xlu0 %4980
    %v4982 = vadd.f32 %v4899, %v4900
    %4983 = vadd.xlane.f32.xlu0 %v4982
    %v4984 = vpop.xlane.xlu0 %4983
    %v4985 = vadd.f32 %v4901, %v4902
    %4986 = vadd.xlane.f32.xlu0 %v4985
    %v4987 = vpop.xlane.xlu0 %4986
    %v4988 = vadd.f32 %v4903, %v4904
    %4989 = vadd.xlane.f32.xlu0 %v4988
    %v4990 = vpop.xlane.xlu0 %4989
    %v4991 = vadd.f32 %v4905, %v4906
    %4992 = vadd.xlane.f32.xlu0 %v4991
    %v4993 = vpop.xlane.xlu0 %4992
    %v4994 = vadd.f32 %v4907, %v4908
    %4995 = vadd.xlane.f32.xlu0 %v4994
    %v4996 = vpop.xlane.xlu0 %4995
    %v4997 = vadd.f32 %v4909, %v4910
    %4998 = vadd.xlane.f32.xlu0 %v4997
    %v4999 = vpop.xlane.xlu0 %4998
    %v5000 = vadd.f32 %v4911, %v4912
    %5001 = vadd.xlane.f32.xlu0 %v5000
    %v5002 = vpop.xlane.xlu0 %5001
    %v5003 = vadd.f32 %v4913, %v4914
    %5004 = vadd.xlane.f32.xlu0 %v5003
    %v5005 = vpop.xlane.xlu0 %5004
    %v5006 = vadd.f32 %v4915, %v4916
    %5007 = vadd.xlane.f32.xlu0 %v5006
    %v5008 = vpop.xlane.xlu0 %5007
    %v5009 = vadd.f32 %v4917, %v4918
    %5010 = vadd.xlane.f32.xlu0 %v5009
    %v5011 = vpop.xlane.xlu0 %5010
    %v5012 = vadd.f32 %v4919, %v4920
    %5013 = vadd.xlane.f32.xlu0 %v5012
    %v5014 = vpop.xlane.xlu0 %5013
    %v5015 = vadd.f32 %v4921, %v4922
    %5016 = vadd.xlane.f32.xlu0 %v5015
    %v5017 = vpop.xlane.xlu0 %5016
    %v5018 = vadd.f32 %v4923, %v4924
    %5019 = vadd.xlane.f32.xlu0 %v5018
    %v5020 = vpop.xlane.xlu0 %5019
    %v5021 = vadd.f32 %v4925, %v4926
    %5022 = vadd.xlane.f32.xlu0 %v5021
    %v5023 = vpop.xlane.xlu0 %5022
    %v5024 = vadd.f32 %v4927, %v4928
    %5025 = vadd.xlane.f32.xlu0 %v5024
    %v5026 = vpop.xlane.xlu0 %5025
    %v5027 = vadd.f32 %v4929, %v4930
    %5028 = vadd.xlane.f32.xlu0 %v5027
    %v5029 = vpop.xlane.xlu0 %5028
    %v5030 = vadd.f32 %v4931, %v4932
    %5031 = vadd.xlane.f32.xlu0 %v5030
    %v5032 = vpop.xlane.xlu0 %5031
    %v5033 = vmul.f32 %v4939, %v1057
    %v5034 = vmul.f32 %v4942, %v1057
    %v5035 = vmul.f32 %v4945, %v1057
    %v5036 = vmul.f32 %v4948, %v1057
    %v5037 = vmul.f32 %v4951, %v1057
    %v5038 = vmul.f32 %v4954, %v1057
    %v5039 = vmul.f32 %v4957, %v1057
    %v5040 = vmul.f32 %v4960, %v1057
    %v5041 = vmul.f32 %v4963, %v1057
    %v5042 = vmul.f32 %v4966, %v1057
    %v5043 = vmul.f32 %v4969, %v1057
    %v5044 = vmul.f32 %v4972, %v1057
    %v5045 = vmul.f32 %v4975, %v1057
    %v5046 = vmul.f32 %v4978, %v1057
    %v5047 = vmul.f32 %v4981, %v1057
    %v5048 = vmul.f32 %v4984, %v1057
    %v5049 = vmul.f32 %v4987, %v1057
    %v5050 = vmul.f32 %v4990, %v1057
    %v5051 = vmul.f32 %v4993, %v1057
    %v5052 = vmul.f32 %v4996, %v1057
    %v5053 = vmul.f32 %v4999, %v1057
    %v5054 = vmul.f32 %v5002, %v1057
    %v5055 = vmul.f32 %v5005, %v1057
    %v5056 = vmul.f32 %v5008, %v1057
    %v5057 = vmul.f32 %v5011, %v1057
    %v5058 = vmul.f32 %v5014, %v1057
    %v5059 = vmul.f32 %v5017, %v1057
    %v5060 = vmul.f32 %v5020, %v1057
    %v5061 = vmul.f32 %v5023, %v1057
    %v5062 = vmul.f32 %v5026, %v1057
    %v5063 = vmul.f32 %v5029, %v1057
    %v5064 = vmul.f32 %v5032, %v1057
    %v5065 = vsub.f32 %v4869, %v5033
    %v5066 = vsub.f32 %v4870, %v5033
    %v5067 = vsub.f32 %v4871, %v5034
    %v5068 = vsub.f32 %v4872, %v5034
    %v5069 = vsub.f32 %v4873, %v5035
    %v5070 = vsub.f32 %v4874, %v5035
    %v5071 = vsub.f32 %v4875, %v5036
    %v5072 = vsub.f32 %v4876, %v5036
    %v5073 = vsub.f32 %v4877, %v5037
    %v5074 = vsub.f32 %v4878, %v5037
    %v5075 = vsub.f32 %v4879, %v5038
    %v5076 = vsub.f32 %v4880, %v5038
    %v5077 = vsub.f32 %v4881, %v5039
    %v5078 = vsub.f32 %v4882, %v5039
    %v5079 = vsub.f32 %v4883, %v5040
    %v5080 = vsub.f32 %v4884, %v5040
    %v5081 = vsub.f32 %v4885, %v5041
    %v5082 = vsub.f32 %v4886, %v5041
    %v5083 = vsub.f32 %v4887, %v5042
    %v5084 = vsub.f32 %v4888, %v5042
    %v5085 = vsub.f32 %v4889, %v5043
    %v5086 = vsub.f32 %v4890, %v5043
    %v5087 = vsub.f32 %v4891, %v5044
    %v5088 = vsub.f32 %v4892, %v5044
    %v5089 = vsub.f32 %v4893, %v5045
    %v5090 = vsub.f32 %v4894, %v5045
    %v5091 = vsub.f32 %v4895, %v5046
    %v5092 = vsub.f32 %v4896, %v5046
    %v5093 = vsub.f32 %v4897, %v5047
    %v5094 = vsub.f32 %v4898, %v5047
    %v5095 = vsub.f32 %v4899, %v5048
    %v5096 = vsub.f32 %v4900, %v5048
    %v5097 = vsub.f32 %v4901, %v5049
    %v5098 = vsub.f32 %v4902, %v5049
    %v5099 = vsub.f32 %v4903, %v5050
    %v5100 = vsub.f32 %v4904, %v5050
    %v5101 = vsub.f32 %v4905, %v5051
    %v5102 = vsub.f32 %v4906, %v5051
    %v5103 = vsub.f32 %v4907, %v5052
    %v5104 = vsub.f32 %v4908, %v5052
    %v5105 = vsub.f32 %v4909, %v5053
    %v5106 = vsub.f32 %v4910, %v5053
    %v5107 = vsub.f32 %v4911, %v5054
    %v5108 = vsub.f32 %v4912, %v5054
    %v5109 = vsub.f32 %v4913, %v5055
    %v5110 = vsub.f32 %v4914, %v5055
    %v5111 = vsub.f32 %v4915, %v5056
    %v5112 = vsub.f32 %v4916, %v5056
    %v5113 = vsub.f32 %v4917, %v5057
    %v5114 = vsub.f32 %v4918, %v5057
    %v5115 = vsub.f32 %v4919, %v5058
    %v5116 = vsub.f32 %v4920, %v5058
    %v5117 = vsub.f32 %v4921, %v5059
    %v5118 = vsub.f32 %v4922, %v5059
    %v5119 = vsub.f32 %v4923, %v5060
    %v5120 = vsub.f32 %v4924, %v5060
    %v5121 = vsub.f32 %v4925, %v5061
    %v5122 = vsub.f32 %v4926, %v5061
    %v5123 = vsub.f32 %v4927, %v5062
    %v5124 = vsub.f32 %v4928, %v5062
    %v5125 = vsub.f32 %v4929, %v5063
    %v5126 = vsub.f32 %v4930, %v5063
    %v5127 = vsub.f32 %v4931, %v5064
    %v5128 = vsub.f32 %v4932, %v5064
    %v5129 = vmul.f32 %v5065, %v5065
    %v5130 = vmul.f32 %v5066, %v5066
    %v5131 = vmul.f32 %v5067, %v5067
    %v5132 = vmul.f32 %v5068, %v5068
    %v5133 = vmul.f32 %v5069, %v5069
    %v5134 = vmul.f32 %v5070, %v5070
    %v5135 = vmul.f32 %v5071, %v5071
    %v5136 = vmul.f32 %v5072, %v5072
    %v5137 = vmul.f32 %v5073, %v5073
    %v5138 = vmul.f32 %v5074, %v5074
    %v5139 = vmul.f32 %v5075, %v5075
    %v5140 = vmul.f32 %v5076, %v5076
    %v5141 = vmul.f32 %v5077, %v5077
    %v5142 = vmul.f32 %v5078, %v5078
    %v5143 = vmul.f32 %v5079, %v5079
    %v5144 = vmul.f32 %v5080, %v5080
    %v5145 = vmul.f32 %v5081, %v5081
    %v5146 = vmul.f32 %v5082, %v5082
    %v5147 = vmul.f32 %v5083, %v5083
    %v5148 = vmul.f32 %v5084, %v5084
    %v5149 = vmul.f32 %v5085, %v5085
    %v5150 = vmul.f32 %v5086, %v5086
    %v5151 = vmul.f32 %v5087, %v5087
    %v5152 = vmul.f32 %v5088, %v5088
    %v5153 = vmul.f32 %v5089, %v5089
    %v5154 = vmul.f32 %v5090, %v5090
    %v5155 = vmul.f32 %v5091, %v5091
    %v5156 = vmul.f32 %v5092, %v5092
    %v5157 = vmul.f32 %v5093, %v5093
    %v5158 = vmul.f32 %v5094, %v5094
    %v5159 = vmul.f32 %v5095, %v5095
    %v5160 = vmul.f32 %v5096, %v5096
    %v5161 = vmul.f32 %v5097, %v5097
    %v5162 = vmul.f32 %v5098, %v5098
    %v5163 = vmul.f32 %v5099, %v5099
    %v5164 = vmul.f32 %v5100, %v5100
    %v5165 = vmul.f32 %v5101, %v5101
    %v5166 = vmul.f32 %v5102, %v5102
    %v5167 = vmul.f32 %v5103, %v5103
    %v5168 = vmul.f32 %v5104, %v5104
    %v5169 = vmul.f32 %v5105, %v5105
    %v5170 = vmul.f32 %v5106, %v5106
    %v5171 = vmul.f32 %v5107, %v5107
    %v5172 = vmul.f32 %v5108, %v5108
    %v5173 = vmul.f32 %v5109, %v5109
    %v5174 = vmul.f32 %v5110, %v5110
    %v5175 = vmul.f32 %v5111, %v5111
    %v5176 = vmul.f32 %v5112, %v5112
    %v5177 = vmul.f32 %v5113, %v5113
    %v5178 = vmul.f32 %v5114, %v5114
    %v5179 = vmul.f32 %v5115, %v5115
    %v5180 = vmul.f32 %v5116, %v5116
    %v5181 = vmul.f32 %v5117, %v5117
    %v5182 = vmul.f32 %v5118, %v5118
    %v5183 = vmul.f32 %v5119, %v5119
    %v5184 = vmul.f32 %v5120, %v5120
    %v5185 = vmul.f32 %v5121, %v5121
    %v5186 = vmul.f32 %v5122, %v5122
    %v5187 = vmul.f32 %v5123, %v5123
    %v5188 = vmul.f32 %v5124, %v5124
    %v5189 = vmul.f32 %v5125, %v5125
    %v5190 = vmul.f32 %v5126, %v5126
    %v5191 = vmul.f32 %v5127, %v5127
    %v5192 = vmul.f32 %v5128, %v5128
    %v5193 = vadd.f32 %v5129, %v5130
    %5194 = vadd.xlane.f32.xlu0 %v5193
    %v5195 = vpop.xlane.xlu0 %5194
    %v5196 = vadd.f32 %v5131, %v5132
    %5197 = vadd.xlane.f32.xlu0 %v5196
    %v5198 = vpop.xlane.xlu0 %5197
    %v5199 = vadd.f32 %v5133, %v5134
    %5200 = vadd.xlane.f32.xlu0 %v5199
    %v5201 = vpop.xlane.xlu0 %5200
    %v5202 = vadd.f32 %v5135, %v5136
    %5203 = vadd.xlane.f32.xlu0 %v5202
    %v5204 = vpop.xlane.xlu0 %5203
    %v5205 = vadd.f32 %v5137, %v5138
    %5206 = vadd.xlane.f32.xlu0 %v5205
    %v5207 = vpop.xlane.xlu0 %5206
    %v5208 = vadd.f32 %v5139, %v5140
    %5209 = vadd.xlane.f32.xlu0 %v5208
    %v5210 = vpop.xlane.xlu0 %5209
    %v5211 = vadd.f32 %v5141, %v5142
    %5212 = vadd.xlane.f32.xlu0 %v5211
    %v5213 = vpop.xlane.xlu0 %5212
    %v5214 = vadd.f32 %v5143, %v5144
    %5215 = vadd.xlane.f32.xlu0 %v5214
    %v5216 = vpop.xlane.xlu0 %5215
    %v5217 = vadd.f32 %v5145, %v5146
    %5218 = vadd.xlane.f32.xlu0 %v5217
    %v5219 = vpop.xlane.xlu0 %5218
    %v5220 = vadd.f32 %v5147, %v5148
    %5221 = vadd.xlane.f32.xlu0 %v5220
    %v5222 = vpop.xlane.xlu0 %5221
    %v5223 = vadd.f32 %v5149, %v5150
    %5224 = vadd.xlane.f32.xlu0 %v5223
    %v5225 = vpop.xlane.xlu0 %5224
    %v5226 = vadd.f32 %v5151, %v5152
    %5227 = vadd.xlane.f32.xlu0 %v5226
    %v5228 = vpop.xlane.xlu0 %5227
    %v5229 = vadd.f32 %v5153, %v5154
    %5230 = vadd.xlane.f32.xlu0 %v5229
    %v5231 = vpop.xlane.xlu0 %5230
    %v5232 = vadd.f32 %v5155, %v5156
    %5233 = vadd.xlane.f32.xlu0 %v5232
    %v5234 = vpop.xlane.xlu0 %5233
    %v5235 = vadd.f32 %v5157, %v5158
    %5236 = vadd.xlane.f32.xlu0 %v5235
    %v5237 = vpop.xlane.xlu0 %5236
    %v5238 = vadd.f32 %v5159, %v5160
    %5239 = vadd.xlane.f32.xlu0 %v5238
    %v5240 = vpop.xlane.xlu0 %5239
    %v5241 = vadd.f32 %v5161, %v5162
    %5242 = vadd.xlane.f32.xlu0 %v5241
    %v5243 = vpop.xlane.xlu0 %5242
    %v5244 = vadd.f32 %v5163, %v5164
    %5245 = vadd.xlane.f32.xlu0 %v5244
    %v5246 = vpop.xlane.xlu0 %5245
    %v5247 = vadd.f32 %v5165, %v5166
    %5248 = vadd.xlane.f32.xlu0 %v5247
    %v5249 = vpop.xlane.xlu0 %5248
    %v5250 = vadd.f32 %v5167, %v5168
    %5251 = vadd.xlane.f32.xlu0 %v5250
    %v5252 = vpop.xlane.xlu0 %5251
    %v5253 = vadd.f32 %v5169, %v5170
    %5254 = vadd.xlane.f32.xlu0 %v5253
    %v5255 = vpop.xlane.xlu0 %5254
    %v5256 = vadd.f32 %v5171, %v5172
    %5257 = vadd.xlane.f32.xlu0 %v5256
    %v5258 = vpop.xlane.xlu0 %5257
    %v5259 = vadd.f32 %v5173, %v5174
    %5260 = vadd.xlane.f32.xlu0 %v5259
    %v5261 = vpop.xlane.xlu0 %5260
    %v5262 = vadd.f32 %v5175, %v5176
    %5263 = vadd.xlane.f32.xlu0 %v5262
    %v5264 = vpop.xlane.xlu0 %5263
    %v5265 = vadd.f32 %v5177, %v5178
    %5266 = vadd.xlane.f32.xlu0 %v5265
    %v5267 = vpop.xlane.xlu0 %5266
    %v5268 = vadd.f32 %v5179, %v5180
    %5269 = vadd.xlane.f32.xlu0 %v5268
    %v5270 = vpop.xlane.xlu0 %5269
    %v5271 = vadd.f32 %v5181, %v5182
    %5272 = vadd.xlane.f32.xlu0 %v5271
    %v5273 = vpop.xlane.xlu0 %5272
    %v5274 = vadd.f32 %v5183, %v5184
    %5275 = vadd.xlane.f32.xlu0 %v5274
    %v5276 = vpop.xlane.xlu0 %5275
    %v5277 = vadd.f32 %v5185, %v5186
    %5278 = vadd.xlane.f32.xlu0 %v5277
    %v5279 = vpop.xlane.xlu0 %5278
    %v5280 = vadd.f32 %v5187, %v5188
    %5281 = vadd.xlane.f32.xlu0 %v5280
    %v5282 = vpop.xlane.xlu0 %5281
    %v5283 = vadd.f32 %v5189, %v5190
    %5284 = vadd.xlane.f32.xlu0 %v5283
    %v5285 = vpop.xlane.xlu0 %5284
    %v5286 = vadd.f32 %v5191, %v5192
    %5287 = vadd.xlane.f32.xlu0 %v5286
    %v5288 = vpop.xlane.xlu0 %5287
    %v5289 = vmul.f32 %v5195, %v1057
    %v5290 = vmul.f32 %v5198, %v1057
    %v5291 = vmul.f32 %v5201, %v1057
    %v5292 = vmul.f32 %v5204, %v1057
    %v5293 = vmul.f32 %v5207, %v1057
    %v5294 = vmul.f32 %v5210, %v1057
    %v5295 = vmul.f32 %v5213, %v1057
    %v5296 = vmul.f32 %v5216, %v1057
    %v5297 = vmul.f32 %v5219, %v1057
    %v5298 = vmul.f32 %v5222, %v1057
    %v5299 = vmul.f32 %v5225, %v1057
    %v5300 = vmul.f32 %v5228, %v1057
    %v5301 = vmul.f32 %v5231, %v1057
    %v5302 = vmul.f32 %v5234, %v1057
    %v5303 = vmul.f32 %v5237, %v1057
    %v5304 = vmul.f32 %v5240, %v1057
    %v5305 = vmul.f32 %v5243, %v1057
    %v5306 = vmul.f32 %v5246, %v1057
    %v5307 = vmul.f32 %v5249, %v1057
    %v5308 = vmul.f32 %v5252, %v1057
    %v5309 = vmul.f32 %v5255, %v1057
    %v5310 = vmul.f32 %v5258, %v1057
    %v5311 = vmul.f32 %v5261, %v1057
    %v5312 = vmul.f32 %v5264, %v1057
    %v5313 = vmul.f32 %v5267, %v1057
    %v5314 = vmul.f32 %v5270, %v1057
    %v5315 = vmul.f32 %v5273, %v1057
    %v5316 = vmul.f32 %v5276, %v1057
    %v5317 = vmul.f32 %v5279, %v1057
    %v5318 = vmul.f32 %v5282, %v1057
    %v5319 = vmul.f32 %v5285, %v1057
    %v5320 = vmul.f32 %v5288, %v1057
    %v5321 = vadd.f32 %v5289, 1e-05
    %v5322 = vadd.f32 %v5290, 1e-05
    %v5323 = vadd.f32 %v5291, 1e-05
    %v5324 = vadd.f32 %v5292, 1e-05
    %v5325 = vadd.f32 %v5293, 1e-05
    %v5326 = vadd.f32 %v5294, 1e-05
    %v5327 = vadd.f32 %v5295, 1e-05
    %v5328 = vadd.f32 %v5296, 1e-05
    %v5329 = vadd.f32 %v5297, 1e-05
    %v5330 = vadd.f32 %v5298, 1e-05
    %v5331 = vadd.f32 %v5299, 1e-05
    %v5332 = vadd.f32 %v5300, 1e-05
    %v5333 = vadd.f32 %v5301, 1e-05
    %v5334 = vadd.f32 %v5302, 1e-05
    %v5335 = vadd.f32 %v5303, 1e-05
    %v5336 = vadd.f32 %v5304, 1e-05
    %v5337 = vadd.f32 %v5305, 1e-05
    %v5338 = vadd.f32 %v5306, 1e-05
    %v5339 = vadd.f32 %v5307, 1e-05
    %v5340 = vadd.f32 %v5308, 1e-05
    %v5341 = vadd.f32 %v5309, 1e-05
    %v5342 = vadd.f32 %v5310, 1e-05
    %v5343 = vadd.f32 %v5311, 1e-05
    %v5344 = vadd.f32 %v5312, 1e-05
    %v5345 = vadd.f32 %v5313, 1e-05
    %v5346 = vadd.f32 %v5314, 1e-05
    %v5347 = vadd.f32 %v5315, 1e-05
    %v5348 = vadd.f32 %v5316, 1e-05
    %v5349 = vadd.f32 %v5317, 1e-05
    %v5350 = vadd.f32 %v5318, 1e-05
    %v5351 = vadd.f32 %v5319, 1e-05
    %v5352 = vadd.f32 %v5320, 1e-05
    %v5353 = vrsqrt.pop %v5321
    %v5354 = vrsqrt.pop %v5322
    %v5355 = vrsqrt.pop %v5323
    %v5356 = vrsqrt.pop %v5324
    %v5357 = vrsqrt.pop %v5325
    %v5358 = vrsqrt.pop %v5326
    %v5359 = vrsqrt.pop %v5327
    %v5360 = vrsqrt.pop %v5328
    %v5361 = vrsqrt.pop %v5329
    %v5362 = vrsqrt.pop %v5330
    %v5363 = vrsqrt.pop %v5331
    %v5364 = vrsqrt.pop %v5332
    %v5365 = vrsqrt.pop %v5333
    %v5366 = vrsqrt.pop %v5334
    %v5367 = vrsqrt.pop %v5335
    %v5368 = vrsqrt.pop %v5336
    %v5369 = vrsqrt.pop %v5337
    %v5370 = vrsqrt.pop %v5338
    %v5371 = vrsqrt.pop %v5339
    %v5372 = vrsqrt.pop %v5340
    %v5373 = vrsqrt.pop %v5341
    %v5374 = vrsqrt.pop %v5342
    %v5375 = vrsqrt.pop %v5343
    %v5376 = vrsqrt.pop %v5344
    %v5377 = vrsqrt.pop %v5345
    %v5378 = vrsqrt.pop %v5346
    %v5379 = vrsqrt.pop %v5347
    %v5380 = vrsqrt.pop %v5348
    %v5381 = vrsqrt.pop %v5349
    %v5382 = vrsqrt.pop %v5350
    %v5383 = vrsqrt.pop %v5351
    %v5384 = vrsqrt.pop %v5352
    %v5385 = vmul.f32 %v5065, %v5353
    %v5386 = vmul.f32 %v5066, %v5353
    %v5387 = vmul.f32 %v5067, %v5354
    %v5388 = vmul.f32 %v5068, %v5354
    %v5389 = vmul.f32 %v5069, %v5355
    %v5390 = vmul.f32 %v5070, %v5355
    %v5391 = vmul.f32 %v5071, %v5356
    %v5392 = vmul.f32 %v5072, %v5356
    %v5393 = vmul.f32 %v5073, %v5357
    %v5394 = vmul.f32 %v5074, %v5357
    %v5395 = vmul.f32 %v5075, %v5358
    %v5396 = vmul.f32 %v5076, %v5358
    %v5397 = vmul.f32 %v5077, %v5359
    %v5398 = vmul.f32 %v5078, %v5359
    %v5399 = vmul.f32 %v5079, %v5360
    %v5400 = vmul.f32 %v5080, %v5360
    %v5401 = vmul.f32 %v5081, %v5361
    %v5402 = vmul.f32 %v5082, %v5361
    %v5403 = vmul.f32 %v5083, %v5362
    %v5404 = vmul.f32 %v5084, %v5362
    %v5405 = vmul.f32 %v5085, %v5363
    %v5406 = vmul.f32 %v5086, %v5363
    %v5407 = vmul.f32 %v5087, %v5364
    %v5408 = vmul.f32 %v5088, %v5364
    %v5409 = vmul.f32 %v5089, %v5365
    %v5410 = vmul.f32 %v5090, %v5365
    %v5411 = vmul.f32 %v5091, %v5366
    %v5412 = vmul.f32 %v5092, %v5366
    %v5413 = vmul.f32 %v5093, %v5367
    %v5414 = vmul.f32 %v5094, %v5367
    %v5415 = vmul.f32 %v5095, %v5368
    %v5416 = vmul.f32 %v5096, %v5368
    %v5417 = vmul.f32 %v5097, %v5369
    %v5418 = vmul.f32 %v5098, %v5369
    %v5419 = vmul.f32 %v5099, %v5370
    %v5420 = vmul.f32 %v5100, %v5370
    %v5421 = vmul.f32 %v5101, %v5371
    %v5422 = vmul.f32 %v5102, %v5371
    %v5423 = vmul.f32 %v5103, %v5372
    %v5424 = vmul.f32 %v5104, %v5372
    %v5425 = vmul.f32 %v5105, %v5373
    %v5426 = vmul.f32 %v5106, %v5373
    %v5427 = vmul.f32 %v5107, %v5374
    %v5428 = vmul.f32 %v5108, %v5374
    %v5429 = vmul.f32 %v5109, %v5375
    %v5430 = vmul.f32 %v5110, %v5375
    %v5431 = vmul.f32 %v5111, %v5376
    %v5432 = vmul.f32 %v5112, %v5376
    %v5433 = vmul.f32 %v5113, %v5377
    %v5434 = vmul.f32 %v5114, %v5377
    %v5435 = vmul.f32 %v5115, %v5378
    %v5436 = vmul.f32 %v5116, %v5378
    %v5437 = vmul.f32 %v5117, %v5379
    %v5438 = vmul.f32 %v5118, %v5379
    %v5439 = vmul.f32 %v5119, %v5380
    %v5440 = vmul.f32 %v5120, %v5380
    %v5441 = vmul.f32 %v5121, %v5381
    %v5442 = vmul.f32 %v5122, %v5381
    %v5443 = vmul.f32 %v5123, %v5382
    %v5444 = vmul.f32 %v5124, %v5382
    %v5445 = vmul.f32 %v5125, %v5383
    %v5446 = vmul.f32 %v5126, %v5383
    %v5447 = vmul.f32 %v5127, %v5384
    %v5448 = vmul.f32 %v5128, %v5384
    %v5450 = vlaneseq
    %v5451 = vshrl.u32 %v5450, 7
    %v5452 = vsub.s32 0, %v5451
    %v5453 = vrot.slane %v4934, %v5452
    %v5454 = vlaneseq
    %v5455 = vshrl.u32 %v5454, 7
    %v5456 = vsub.s32 1, %v5455
    %v5457 = vrot.slane %v4934, %v5456
    %v5460 = vmul.f32 %v5385, %v5453
    %v5461 = vmul.f32 %v5386, %v5457
    %v5462 = vmul.f32 %v5387, %v5453
    %v5463 = vmul.f32 %v5388, %v5457
    %v5464 = vmul.f32 %v5389, %v5453
    %v5465 = vmul.f32 %v5390, %v5457
    %v5466 = vmul.f32 %v5391, %v5453
    %v5467 = vmul.f32 %v5392, %v5457
    %v5468 = vmul.f32 %v5393, %v5453
    %v5469 = vmul.f32 %v5394, %v5457
    %v5470 = vmul.f32 %v5395, %v5453
    %v5471 = vmul.f32 %v5396, %v5457
    %v5472 = vmul.f32 %v5397, %v5453
    %v5473 = vmul.f32 %v5398, %v5457
    %v5474 = vmul.f32 %v5399, %v5453
    %v5475 = vmul.f32 %v5400, %v5457
    %v5476 = vmul.f32 %v5401, %v5453
    %v5477 = vmul.f32 %v5402, %v5457
    %v5478 = vmul.f32 %v5403, %v5453
    %v5479 = vmul.f32 %v5404, %v5457
    %v5480 = vmul.f32 %v5405, %v5453
    %v5481 = vmul.f32 %v5406, %v5457
    %v5482 = vmul.f32 %v5407, %v5453
    %v5483 = vmul.f32 %v5408, %v5457
    %v5484 = vmul.f32 %v5409, %v5453
    %v5485 = vmul.f32 %v5410, %v5457
    %v5486 = vmul.f32 %v5411, %v5453
    %v5487 = vmul.f32 %v5412, %v5457
    %v5488 = vmul.f32 %v5413, %v5453
    %v5489 = vmul.f32 %v5414, %v5457
    %v5490 = vmul.f32 %v5415, %v5453
    %v5491 = vmul.f32 %v5416, %v5457
    %v5492 = vmul.f32 %v5417, %v5453
    %v5493 = vmul.f32 %v5418, %v5457
    %v5494 = vmul.f32 %v5419, %v5453
    %v5495 = vmul.f32 %v5420, %v5457
    %v5496 = vmul.f32 %v5421, %v5453
    %v5497 = vmul.f32 %v5422, %v5457
    %v5498 = vmul.f32 %v5423, %v5453
    %v5499 = vmul.f32 %v5424, %v5457
    %v5500 = vmul.f32 %v5425, %v5453
    %v5501 = vmul.f32 %v5426, %v5457
    %v5502 = vmul.f32 %v5427, %v5453
    %v5503 = vmul.f32 %v5428, %v5457
    %v5504 = vmul.f32 %v5429, %v5453
    %v5505 = vmul.f32 %v5430, %v5457
    %v5506 = vmul.f32 %v5431, %v5453
    %v5507 = vmul.f32 %v5432, %v5457
    %v5508 = vmul.f32 %v5433, %v5453
    %v5509 = vmul.f32 %v5434, %v5457
    %v5510 = vmul.f32 %v5435, %v5453
    %v5511 = vmul.f32 %v5436, %v5457
    %v5512 = vmul.f32 %v5437, %v5453
    %v5513 = vmul.f32 %v5438, %v5457
    %v5514 = vmul.f32 %v5439, %v5453
    %v5515 = vmul.f32 %v5440, %v5457
    %v5516 = vmul.f32 %v5441, %v5453
    %v5517 = vmul.f32 %v5442, %v5457
    %v5518 = vmul.f32 %v5443, %v5453
    %v5519 = vmul.f32 %v5444, %v5457
    %v5520 = vmul.f32 %v5445, %v5453
    %v5521 = vmul.f32 %v5446, %v5457
    %v5522 = vmul.f32 %v5447, %v5453
    %v5523 = vmul.f32 %v5448, %v5457
    %v5525 = vlaneseq
    %v5526 = vshrl.u32 %v5525, 7
    %v5527 = vsub.s32 0, %v5526
    %v5528 = vrot.slane %v4936, %v5527
    %v5529 = vlaneseq
    %v5530 = vshrl.u32 %v5529, 7
    %v5531 = vsub.s32 1, %v5530
    %v5532 = vrot.slane %v4936, %v5531
    %v5535 = vadd.f32 %v5460, %v5528
    %v5536 = vadd.f32 %v5461, %v5532
    %v5537 = vadd.f32 %v5462, %v5528
    %v5538 = vadd.f32 %v5463, %v5532
    %v5539 = vadd.f32 %v5464, %v5528
    %v5540 = vadd.f32 %v5465, %v5532
    %v5541 = vadd.f32 %v5466, %v5528
    %v5542 = vadd.f32 %v5467, %v5532
    %v5543 = vadd.f32 %v5468, %v5528
    %v5544 = vadd.f32 %v5469, %v5532
    %v5545 = vadd.f32 %v5470, %v5528
    %v5546 = vadd.f32 %v5471, %v5532
    %v5547 = vadd.f32 %v5472, %v5528
    %v5548 = vadd.f32 %v5473, %v5532
    %v5549 = vadd.f32 %v5474, %v5528
    %v5550 = vadd.f32 %v5475, %v5532
    %v5551 = vadd.f32 %v5476, %v5528
    %v5552 = vadd.f32 %v5477, %v5532
    %v5553 = vadd.f32 %v5478, %v5528
    %v5554 = vadd.f32 %v5479, %v5532
    %v5555 = vadd.f32 %v5480, %v5528
    %v5556 = vadd.f32 %v5481, %v5532
    %v5557 = vadd.f32 %v5482, %v5528
    %v5558 = vadd.f32 %v5483, %v5532
    %v5559 = vadd.f32 %v5484, %v5528
    %v5560 = vadd.f32 %v5485, %v5532
    %v5561 = vadd.f32 %v5486, %v5528
    %v5562 = vadd.f32 %v5487, %v5532
    %v5563 = vadd.f32 %v5488, %v5528
    %v5564 = vadd.f32 %v5489, %v5532
    %v5565 = vadd.f32 %v5490, %v5528
    %v5566 = vadd.f32 %v5491, %v5532
    %v5567 = vadd.f32 %v5492, %v5528
    %v5568 = vadd.f32 %v5493, %v5532
    %v5569 = vadd.f32 %v5494, %v5528
    %v5570 = vadd.f32 %v5495, %v5532
    %v5571 = vadd.f32 %v5496, %v5528
    %v5572 = vadd.f32 %v5497, %v5532
    %v5573 = vadd.f32 %v5498, %v5528
    %v5574 = vadd.f32 %v5499, %v5532
    %v5575 = vadd.f32 %v5500, %v5528
    %v5576 = vadd.f32 %v5501, %v5532
    %v5577 = vadd.f32 %v5502, %v5528
    %v5578 = vadd.f32 %v5503, %v5532
    %v5579 = vadd.f32 %v5504, %v5528
    %v5580 = vadd.f32 %v5505, %v5532
    %v5581 = vadd.f32 %v5506, %v5528
    %v5582 = vadd.f32 %v5507, %v5532
    %v5583 = vadd.f32 %v5508, %v5528
    %v5584 = vadd.f32 %v5509, %v5532
    %v5585 = vadd.f32 %v5510, %v5528
    %v5586 = vadd.f32 %v5511, %v5532
    %v5587 = vadd.f32 %v5512, %v5528
    %v5588 = vadd.f32 %v5513, %v5532
    %v5589 = vadd.f32 %v5514, %v5528
    %v5590 = vadd.f32 %v5515, %v5532
    %v5591 = vadd.f32 %v5516, %v5528
    %v5592 = vadd.f32 %v5517, %v5532
    %v5593 = vadd.f32 %v5518, %v5528
    %v5594 = vadd.f32 %v5519, %v5532
    %v5595 = vadd.f32 %v5520, %v5528
    %v5596 = vadd.f32 %v5521, %v5532
    %v5597 = vadd.f32 %v5522, %v5528
    %v5598 = vadd.f32 %v5523, %v5532
    %v5599 = vpack.c.bf16 %v5537, %v5535
    %v5600 = vpack.c.bf16 %v5538, %v5536
    %v5601 = vpack.c.bf16 %v5541, %v5539
    %v5602 = vpack.c.bf16 %v5542, %v5540
    %v5603 = vpack.c.bf16 %v5545, %v5543
    %v5604 = vpack.c.bf16 %v5546, %v5544
    %v5605 = vpack.c.bf16 %v5549, %v5547
    %v5606 = vpack.c.bf16 %v5550, %v5548
    %v5607 = vpack.c.bf16 %v5553, %v5551
    %v5608 = vpack.c.bf16 %v5554, %v5552
    %v5609 = vpack.c.bf16 %v5557, %v5555
    %v5610 = vpack.c.bf16 %v5558, %v5556
    %v5611 = vpack.c.bf16 %v5561, %v5559
    %v5612 = vpack.c.bf16 %v5562, %v5560
    %v5613 = vpack.c.bf16 %v5565, %v5563
    %v5614 = vpack.c.bf16 %v5566, %v5564
    %v5615 = vpack.c.bf16 %v5569, %v5567
    %v5616 = vpack.c.bf16 %v5570, %v5568
    %v5617 = vpack.c.bf16 %v5573, %v5571
    %v5618 = vpack.c.bf16 %v5574, %v5572
    %v5619 = vpack.c.bf16 %v5577, %v5575
    %v5620 = vpack.c.bf16 %v5578, %v5576
    %v5621 = vpack.c.bf16 %v5581, %v5579
    %v5622 = vpack.c.bf16 %v5582, %v5580
    %v5623 = vpack.c.bf16 %v5585, %v5583
    %v5624 = vpack.c.bf16 %v5586, %v5584
    %v5625 = vpack.c.bf16 %v5589, %v5587
    %v5626 = vpack.c.bf16 %v5590, %v5588
    %v5627 = vpack.c.bf16 %v5593, %v5591
    %v5628 = vpack.c.bf16 %v5594, %v5592
    %v5629 = vpack.c.bf16 %v5597, %v5595
    %v5630 = vpack.c.bf16 %v5598, %v5596
    %s5631 = scalar_lea.vmem [#allocation5], 128
    %v5632 = vld [vmem:[%s5631] sm:$0xf]
    %v5633 = vld [vmem:[%s5631 + $0x4] sm:$0xf]
    %v5634 = vld [vmem:[%s5631 + $0x8] sm:$0xf]
    %v5635 = vld [vmem:[%s5631 + $0xc] sm:$0xf]
    %v5636 = vld [vmem:[%s5631 + $0x10] sm:$0xf]
    %v5637 = vld [vmem:[%s5631 + $0x14] sm:$0xf]
    %v5638 = vld [vmem:[%s5631 + $0x18] sm:$0xf]
    %v5639 = vld [vmem:[%s5631 + $0x1c] sm:$0xf]
    %v5640 = vld [vmem:[%s5631 + $0x20] sm:$0xf]
    %v5641 = vld [vmem:[%s5631 + $0x24] sm:$0xf]
    %v5642 = vld [vmem:[%s5631 + $0x28] sm:$0xf]
    %v5643 = vld [vmem:[%s5631 + $0x2c] sm:$0xf]
    %v5644 = vld [vmem:[%s5631 + $0x30] sm:$0xf]
    %v5645 = vld [vmem:[%s5631 + $0x34] sm:$0xf]
    %v5646 = vld [vmem:[%s5631 + $0x38] sm:$0xf]
    %v5647 = vld [vmem:[%s5631 + $0x3c] sm:$0xf]
    %v5648 = vld [vmem:[%s5631 + $0x40] sm:$0xf]
    %v5649 = vld [vmem:[%s5631 + $0x44] sm:$0xf]
    %v5650 = vld [vmem:[%s5631 + $0x48] sm:$0xf]
    %v5651 = vld [vmem:[%s5631 + $0x4c] sm:$0xf]
    %v5652 = vld [vmem:[%s5631 + $0x50] sm:$0xf]
    %v5653 = vld [vmem:[%s5631 + $0x54] sm:$0xf]
    %v5654 = vld [vmem:[%s5631 + $0x58] sm:$0xf]
    %v5655 = vld [vmem:[%s5631 + $0x5c] sm:$0xf]
    %v5656 = vld [vmem:[%s5631 + $0x60] sm:$0xf]
    %v5657 = vld [vmem:[%s5631 + $0x64] sm:$0xf]
    %v5658 = vld [vmem:[%s5631 + $0x68] sm:$0xf]
    %v5659 = vld [vmem:[%s5631 + $0x6c] sm:$0xf]
    %v5660 = vld [vmem:[%s5631 + $0x70] sm:$0xf]
    %v5661 = vld [vmem:[%s5631 + $0x74] sm:$0xf]
    %v5662 = vld [vmem:[%s5631 + $0x78] sm:$0xf]
    %v5663 = vld [vmem:[%s5631 + $0x7c] sm:$0xf]
    %s5664 = scalar_lea.vmem %s12, 1
    %v5665 = vld [vmem:[%s5664] sm:$0x1]
    %v5667 = vlaneseq
    %v5668 = vshrl.u32 %v5667, 7
    %v5669 = vsub.s32 0, %v5668
    %v5670 = vrot.slane %v5665, %v5669
    %v5704 = vunpack.c.l.b16 %v5632
    %v5705 = vunpack.c.l.b16 %v5633
    %v5706 = vunpack.c.l.b16 %v5634
    %v5707 = vunpack.c.l.b16 %v5635
    %v5708 = vunpack.c.l.b16 %v5636
    %v5709 = vunpack.c.l.b16 %v5637
    %v5710 = vunpack.c.l.b16 %v5638
    %v5711 = vunpack.c.l.b16 %v5639
    %v5712 = vunpack.c.l.b16 %v5640
    %v5713 = vunpack.c.l.b16 %v5641
    %v5714 = vunpack.c.l.b16 %v5642
    %v5715 = vunpack.c.l.b16 %v5643
    %v5716 = vunpack.c.l.b16 %v5644
    %v5717 = vunpack.c.l.b16 %v5645
    %v5718 = vunpack.c.l.b16 %v5646
    %v5719 = vunpack.c.l.b16 %v5647
    %v5720 = vunpack.c.l.b16 %v5648
    %v5721 = vunpack.c.l.b16 %v5649
    %v5722 = vunpack.c.l.b16 %v5650
    %v5723 = vunpack.c.l.b16 %v5651
    %v5724 = vunpack.c.l.b16 %v5652
    %v5725 = vunpack.c.l.b16 %v5653
    %v5726 = vunpack.c.l.b16 %v5654
    %v5727 = vunpack.c.l.b16 %v5655
    %v5728 = vunpack.c.l.b16 %v5656
    %v5729 = vunpack.c.l.b16 %v5657
    %v5730 = vunpack.c.l.b16 %v5658
    %v5731 = vunpack.c.l.b16 %v5659
    %v5732 = vunpack.c.l.b16 %v5660
    %v5733 = vunpack.c.l.b16 %v5661
    %v5734 = vunpack.c.l.b16 %v5662
    %v5735 = vunpack.c.l.b16 %v5663
    %v5736 = vpack.c.b16 %v5705, %v5704
    %v5737 = vpack.c.b16 %v5707, %v5706
    %v5738 = vpack.c.b16 %v5709, %v5708
    %v5739 = vpack.c.b16 %v5711, %v5710
    %v5740 = vpack.c.b16 %v5713, %v5712
    %v5741 = vpack.c.b16 %v5715, %v5714
    %v5742 = vpack.c.b16 %v5717, %v5716
    %v5743 = vpack.c.b16 %v5719, %v5718
    %v5744 = vpack.c.b16 %v5721, %v5720
    %v5745 = vpack.c.b16 %v5723, %v5722
    %v5746 = vpack.c.b16 %v5725, %v5724
    %v5747 = vpack.c.b16 %v5727, %v5726
    %v5748 = vpack.c.b16 %v5729, %v5728
    %v5749 = vpack.c.b16 %v5731, %v5730
    %v5750 = vpack.c.b16 %v5733, %v5732
    %v5751 = vpack.c.b16 %v5735, %v5734
    %5768 = vmatprep.subr.bf16.mxu0 0
    %5769 = vmatpush1.bf16.msra.mxu0 %v5736
    %5770 = vmatprep.subr.bf16.mxu0 0
    %5771 = vmatpush1.bf16.msra.mxu0 %v5737
    %5772 = vmatprep.subr.bf16.mxu0 0
    %5773 = vmatpush1.bf16.msra.mxu0 %v5738
    %5774 = vmatprep.subr.bf16.mxu0 0
    %5775 = vmatpush1.bf16.msra.mxu0 %v5739
    %5776 = vmatprep.subr.bf16.mxu0 0
    %5777 = vmatpush1.bf16.msra.mxu0 %v5740
    %5778 = vmatprep.subr.bf16.mxu0 0
    %5779 = vmatpush1.bf16.msra.mxu0 %v5741
    %5780 = vmatprep.subr.bf16.mxu0 0
    %5781 = vmatpush1.bf16.msra.mxu0 %v5742
    %5782 = vmatprep.subr.bf16.mxu0 0
    %5783 = vmatpush1.bf16.msra.mxu0 %v5743
    %5784 = vmatprep.subr.bf16.mxu0 0
    %5785 = vmatpush1.bf16.msra.mxu0 %v5744
    %5786 = vmatprep.subr.bf16.mxu0 0
    %5787 = vmatpush1.bf16.msra.mxu0 %v5745
    %5788 = vmatprep.subr.bf16.mxu0 0
    %5789 = vmatpush1.bf16.msra.mxu0 %v5746
    %5790 = vmatprep.subr.bf16.mxu0 0
    %5791 = vmatpush1.bf16.msra.mxu0 %v5747
    %5792 = vmatprep.subr.bf16.mxu0 0
    %5793 = vmatpush1.bf16.msra.mxu0 %v5748
    %5794 = vmatprep.subr.bf16.mxu0 0
    %5795 = vmatpush1.bf16.msra.mxu0 %v5749
    %5796 = vmatprep.subr.bf16.mxu0 0
    %5797 = vmatpush1.bf16.msra.mxu0 %v5750
    %5798 = vmatprep.subr.bf16.mxu0 0
    %5799 = vmatpush1.bf16.msra.mxu0 %v5751
    %5800 = vmatprep.mubr.bf16.mxu0 %v5600
    %5801 = vmatmul.mubr.bf16.gmra.mrb[0].mxu0 %v5599
    %v5802 = vpop.f32.mrb[0].mxu0
    %v5803 = vadd.f32 %v5670, %v5802
    %v5804 = vpop.f32.mrb[0].mxu0
    %v5805 = vpop.f32.mrb[0].mxu0
    %v5806 = vadd.f32 %v5670, %v5805
    %v5807 = vpop.f32.mrb[0].mxu0
    %5808 = vmatprep.mubr.bf16.mxu0 %v5602
    %5809 = vmatmul.mubr.bf16.gmra.mrb[0].mxu0 %v5601
    %v5810 = vpop.f32.mrb[0].mxu0
    %v5811 = vadd.f32 %v5670, %v5810
    %v5812 = vpop.f32.mrb[0].mxu0
    %v5813 = vpop.f32.mrb[0].mxu0
    %v5814 = vadd.f32 %v5670, %v5813
    %v5815 = vpop.f32.mrb[0].mxu0
    %5816 = vmatprep.mubr.bf16.mxu0 %v5604
    %5817 = vmatmul.mubr.bf16.gmra.mrb[0].mxu0 %v5603
    %v5818 = vpop.f32.mrb[0].mxu0
    %v5819 = vadd.f32 %v5670, %v5818
    %v5820 = vpop.f32.mrb[0].mxu0
    %v5821 = vpop.f32.mrb[0].mxu0
    %v5822 = vadd.f32 %v5670, %v5821
    %v5823 = vpop.f32.mrb[0].mxu0
    %5824 = vmatprep.mubr.bf16.mxu0 %v5606
    %5825 = vmatmul.mubr.bf16.gmra.mrb[0].mxu0 %v5605
    %v5826 = vpop.f32.mrb[0].mxu0
    %v5827 = vadd.f32 %v5670, %v5826
    %v5828 = vpop.f32.mrb[0].mxu0
    %v5829 = vpop.f32.mrb[0].mxu0
    %v5830 = vadd.f32 %v5670, %v5829
    %v5831 = vpop.f32.mrb[0].mxu0
    %5832 = vmatprep.mubr.bf16.mxu0 %v5608
    %5833 = vmatmul.mubr.bf16.gmra.mrb[0].mxu0 %v5607
    %v5834 = vpop.f32.mrb[0].mxu0
    %v5835 = vadd.f32 %v5670, %v5834
    %v5836 = vpop.f32.mrb[0].mxu0
    %v5837 = vpop.f32.mrb[0].mxu0
    %v5838 = vadd.f32 %v5670, %v5837
    %v5839 = vpop.f32.mrb[0].mxu0
    %5840 = vmatprep.mubr.bf16.mxu0 %v5610
    %5841 = vmatmul.mubr.bf16.gmra.mrb[0].mxu0 %v5609
    %v5842 = vpop.f32.mrb[0].mxu0
    %v5843 = vadd.f32 %v5670, %v5842
    %v5844 = vpop.f32.mrb[0].mxu0
    %v5845 = vpop.f32.mrb[0].mxu0
    %v5846 = vadd.f32 %v5670, %v5845
    %v5847 = vpop.f32.mrb[0].mxu0
    %5848 = vmatprep.mubr.bf16.mxu0 %v5612
    %5849 = vmatmul.mubr.bf16.gmra.mrb[0].mxu0 %v5611
    %v5850 = vpop.f32.mrb[0].mxu0
    %v5851 = vadd.f32 %v5670, %v5850
    %v5852 = vpop.f32.mrb[0].mxu0
    %v5853 = vpop.f32.mrb[0].mxu0
    %v5854 = vadd.f32 %v5670, %v5853
    %v5855 = vpop.f32.mrb[0].mxu0
    %5856 = vmatprep.mubr.bf16.mxu0 %v5614
    %5857 = vmatmul.mubr.bf16.gmra.mrb[0].mxu0 %v5613
    %v5858 = vpop.f32.mrb[0].mxu0
    %v5859 = vadd.f32 %v5670, %v5858
    %v5860 = vpop.f32.mrb[0].mxu0
    %v5861 = vpop.f32.mrb[0].mxu0
    %v5862 = vadd.f32 %v5670, %v5861
    %v5863 = vpop.f32.mrb[0].mxu0
    %5864 = vmatprep.mubr.bf16.mxu0 %v5616
    %5865 = vmatmul.mubr.bf16.gmra.mrb[0].mxu0 %v5615
    %v5866 = vpop.f32.mrb[0].mxu0
    %v5867 = vadd.f32 %v5670, %v5866
    %v5868 = vpop.f32.mrb[0].mxu0
    %v5869 = vpop.f32.mrb[0].mxu0
    %v5870 = vadd.f32 %v5670, %v5869
    %v5871 = vpop.f32.mrb[0].mxu0
    %5872 = vmatprep.mubr.bf16.mxu0 %v5618
    %5873 = vmatmul.mubr.bf16.gmra.mrb[0].mxu0 %v5617
    %v5874 = vpop.f32.mrb[0].mxu0
    %v5875 = vadd.f32 %v5670, %v5874
    %v5876 = vpop.f32.mrb[0].mxu0
    %v5877 = vpop.f32.mrb[0].mxu0
    %v5878 = vadd.f32 %v5670, %v5877
    %v5879 = vpop.f32.mrb[0].mxu0
    %5880 = vmatprep.mubr.bf16.mxu0 %v5620
    %5881 = vmatmul.mubr.bf16.gmra.mrb[0].mxu0 %v5619
    %v5882 = vpop.f32.mrb[0].mxu0
    %v5883 = vadd.f32 %v5670, %v5882
    %v5884 = vpop.f32.mrb[0].mxu0
    %v5885 = vpop.f32.mrb[0].mxu0
    %v5886 = vadd.f32 %v5670, %v5885
    %v5887 = vpop.f32.mrb[0].mxu0
    %5888 = vmatprep.mubr.bf16.mxu0 %v5622
    %5889 = vmatmul.mubr.bf16.gmra.mrb[0].mxu0 %v5621
    %v5890 = vpop.f32.mrb[0].mxu0
    %v5891 = vadd.f32 %v5670, %v5890
    %v5892 = vpop.f32.mrb[0].mxu0
    %v5893 = vpop.f32.mrb[0].mxu0
    %v5894 = vadd.f32 %v5670, %v5893
    %v5895 = vpop.f32.mrb[0].mxu0
    %5896 = vmatprep.mubr.bf16.mxu0 %v5624
    %5897 = vmatmul.mubr.bf16.gmra.mrb[0].mxu0 %v5623
    %v5898 = vpop.f32.mrb[0].mxu0
    %v5899 = vadd.f32 %v5670, %v5898
    %v5900 = vpop.f32.mrb[0].mxu0
    %v5901 = vpop.f32.mrb[0].mxu0
    %v5902 = vadd.f32 %v5670, %v5901
    %v5903 = vpop.f32.mrb[0].mxu0
    %5904 = vmatprep.mubr.bf16.mxu0 %v5626
    %5905 = vmatmul.mubr.bf16.gmra.mrb[0].mxu0 %v5625
    %v5906 = vpop.f32.mrb[0].mxu0
    %v5907 = vadd.f32 %v5670, %v5906
    %v5908 = vpop.f32.mrb[0].mxu0
    %v5909 = vpop.f32.mrb[0].mxu0
    %v5910 = vadd.f32 %v5670, %v5909
    %v5911 = vpop.f32.mrb[0].mxu0
    %5912 = vmatprep.mubr.bf16.mxu0 %v5628
    %5913 = vmatmul.mubr.bf16.gmra.mrb[0].mxu0 %v5627
    %v5914 = vpop.f32.mrb[0].mxu0
    %v5915 = vadd.f32 %v5670, %v5914
    %v5916 = vpop.f32.mrb[0].mxu0
    %v5917 = vpop.f32.mrb[0].mxu0
    %v5918 = vadd.f32 %v5670, %v5917
    %v5919 = vpop.f32.mrb[0].mxu0
    %5920 = vmatprep.mubr.bf16.mxu0 %v5630
    %5921 = vmatmul.mubr.bf16.gmra.mrb[0].mxu0 %v5629
    %v5922 = vpop.f32.mrb[0].mxu0
    %v5923 = vadd.f32 %v5670, %v5922
    %v5924 = vpop.f32.mrb[0].mxu0
    %v5925 = vpop.f32.mrb[0].mxu0
    %v5926 = vadd.f32 %v5670, %v5925
    %v5927 = vpop.f32.mrb[0].mxu0
    %5928 = vdwg.mxu0
    %v5929 = vxor.u32 %v5803, 2147483648
    %v5930 = vxor.u32 %v5806, 2147483648
    %v5931 = vxor.u32 %v5811, 2147483648
    %v5932 = vxor.u32 %v5814, 2147483648
    %v5933 = vxor.u32 %v5819, 2147483648
    %v5934 = vxor.u32 %v5822, 2147483648
    %v5935 = vxor.u32 %v5827, 2147483648
    %v5936 = vxor.u32 %v5830, 2147483648
    %v5937 = vxor.u32 %v5835, 2147483648
    %v5938 = vxor.u32 %v5838, 2147483648
    %v5939 = vxor.u32 %v5843, 2147483648
    %v5940 = vxor.u32 %v5846, 2147483648
    %v5941 = vxor.u32 %v5851, 2147483648
    %v5942 = vxor.u32 %v5854, 2147483648
    %v5943 = vxor.u32 %v5859, 2147483648
    %v5944 = vxor.u32 %v5862, 2147483648
    %v5945 = vxor.u32 %v5867, 2147483648
    %v5946 = vxor.u32 %v5870, 2147483648
    %v5947 = vxor.u32 %v5875, 2147483648
    %v5948 = vxor.u32 %v5878, 2147483648
    %v5949 = vxor.u32 %v5883, 2147483648
    %v5950 = vxor.u32 %v5886, 2147483648
    %v5951 = vxor.u32 %v5891, 2147483648
    %v5952 = vxor.u32 %v5894, 2147483648
    %v5953 = vxor.u32 %v5899, 2147483648
    %v5954 = vxor.u32 %v5902, 2147483648
    %v5955 = vxor.u32 %v5907, 2147483648
    %v5956 = vxor.u32 %v5910, 2147483648
    %v5957 = vxor.u32 %v5915, 2147483648
    %v5958 = vxor.u32 %v5918, 2147483648
    %v5959 = vxor.u32 %v5923, 2147483648
    %v5960 = vxor.u32 %v5926, 2147483648
    %v5961 = vmul.f32 %v5929, 1.442695
    %v5962 = vpow.pop %v5961
    %v5963 = vmul.f32 %v5930, 1.442695
    %v5964 = vpow.pop %v5963
    %v5965 = vmul.f32 %v5931, 1.442695
    %v5966 = vpow.pop %v5965
    %v5967 = vmul.f32 %v5932, 1.442695
    %v5968 = vpow.pop %v5967
    %v5969 = vmul.f32 %v5933, 1.442695
    %v5970 = vpow.pop %v5969
    %v5971 = vmul.f32 %v5934, 1.442695
    %v5972 = vpow.pop %v5971
    %v5973 = vmul.f32 %v5935, 1.442695
    %v5974 = vpow.pop %v5973
    %v5975 = vmul.f32 %v5936, 1.442695
    %v5976 = vpow.pop %v5975
    %v5977 = vmul.f32 %v5937, 1.442695
    %v5978 = vpow.pop %v5977
    %v5979 = vmul.f32 %v5938, 1.442695
    %v5980 = vpow.pop %v5979
    %v5981 = vmul.f32 %v5939, 1.442695
    %v5982 = vpow.pop %v5981
    %v5983 = vmul.f32 %v5940, 1.442695
    %v5984 = vpow.pop %v5983
    %v5985 = vmul.f32 %v5941, 1.442695
    %v5986 = vpow.pop %v5985
    %v5987 = vmul.f32 %v5942, 1.442695
    %v5988 = vpow.pop %v5987
    %v5989 = vmul.f32 %v5943, 1.442695
    %v5990 = vpow.pop %v5989
    %v5991 = vmul.f32 %v5944, 1.442695
    %v5992 = vpow.pop %v5991
    %v5993 = vmul.f32 %v5945, 1.442695
    %v5994 = vpow.pop %v5993
    %v5995 = vmul.f32 %v5946, 1.442695
    %v5996 = vpow.pop %v5995
    %v5997 = vmul.f32 %v5947, 1.442695
    %v5998 = vpow.pop %v5997
    %v5999 = vmul.f32 %v5948, 1.442695
    %v6000 = vpow.pop %v5999
    %v6001 = vmul.f32 %v5949, 1.442695
    %v6002 = vpow.pop %v6001
    %v6003 = vmul.f32 %v5950, 1.442695
    %v6004 = vpow.pop %v6003
    %v6005 = vmul.f32 %v5951, 1.442695
    %v6006 = vpow.pop %v6005
    %v6007 = vmul.f32 %v5952, 1.442695
    %v6008 = vpow.pop %v6007
    %v6009 = vmul.f32 %v5953, 1.442695
    %v6010 = vpow.pop %v6009
    %v6011 = vmul.f32 %v5954, 1.442695
    %v6012 = vpow.pop %v6011
    %v6013 = vmul.f32 %v5955, 1.442695
    %v6014 = vpow.pop %v6013
    %v6015 = vmul.f32 %v5956, 1.442695
    %v6016 = vpow.pop %v6015
    %v6017 = vmul.f32 %v5957, 1.442695
    %v6018 = vpow.pop %v6017
    %v6019 = vmul.f32 %v5958, 1.442695
    %v6020 = vpow.pop %v6019
    %v6021 = vmul.f32 %v5959, 1.442695
    %v6022 = vpow.pop %v6021
    %v6023 = vmul.f32 %v5960, 1.442695
    %v6024 = vpow.pop %v6023
    %v6025 = vadd.f32 %v5962, 1.0
    %v6026 = vadd.f32 %v5964, 1.0
    %v6027 = vadd.f32 %v5966, 1.0
    %v6028 = vadd.f32 %v5968, 1.0
    %v6029 = vadd.f32 %v5970, 1.0
    %v6030 = vadd.f32 %v5972, 1.0
    %v6031 = vadd.f32 %v5974, 1.0
    %v6032 = vadd.f32 %v5976, 1.0
    %v6033 = vadd.f32 %v5978, 1.0
    %v6034 = vadd.f32 %v5980, 1.0
    %v6035 = vadd.f32 %v5982, 1.0
    %v6036 = vadd.f32 %v5984, 1.0
    %v6037 = vadd.f32 %v5986, 1.0
    %v6038 = vadd.f32 %v5988, 1.0
    %v6039 = vadd.f32 %v5990, 1.0
    %v6040 = vadd.f32 %v5992, 1.0
    %v6041 = vadd.f32 %v5994, 1.0
    %v6042 = vadd.f32 %v5996, 1.0
    %v6043 = vadd.f32 %v5998, 1.0
    %v6044 = vadd.f32 %v6000, 1.0
    %v6045 = vadd.f32 %v6002, 1.0
    %v6046 = vadd.f32 %v6004, 1.0
    %v6047 = vadd.f32 %v6006, 1.0
    %v6048 = vadd.f32 %v6008, 1.0
    %v6049 = vadd.f32 %v6010, 1.0
    %v6050 = vadd.f32 %v6012, 1.0
    %v6051 = vadd.f32 %v6014, 1.0
    %v6052 = vadd.f32 %v6016, 1.0
    %v6053 = vadd.f32 %v6018, 1.0
    %v6054 = vadd.f32 %v6020, 1.0
    %v6055 = vadd.f32 %v6022, 1.0
    %v6056 = vadd.f32 %v6024, 1.0
    %v6057 = vrcp.pop %v6025
    %v6058 = vmul.f32 1.0, %v6057
    %v6059 = vrcp.pop %v6026
    %v6060 = vmul.f32 1.0, %v6059
    %v6061 = vrcp.pop %v6027
    %v6062 = vmul.f32 1.0, %v6061
    %v6063 = vrcp.pop %v6028
    %v6064 = vmul.f32 1.0, %v6063
    %v6065 = vrcp.pop %v6029
    %v6066 = vmul.f32 1.0, %v6065
    %v6067 = vrcp.pop %v6030
    %v6068 = vmul.f32 1.0, %v6067
    %v6069 = vrcp.pop %v6031
    %v6070 = vmul.f32 1.0, %v6069
    %v6071 = vrcp.pop %v6032
    %v6072 = vmul.f32 1.0, %v6071
    %v6073 = vrcp.pop %v6033
    %v6074 = vmul.f32 1.0, %v6073
    %v6075 = vrcp.pop %v6034
    %v6076 = vmul.f32 1.0, %v6075
    %v6077 = vrcp.pop %v6035
    %v6078 = vmul.f32 1.0, %v6077
    %v6079 = vrcp.pop %v6036
    %v6080 = vmul.f32 1.0, %v6079
    %v6081 = vrcp.pop %v6037
    %v6082 = vmul.f32 1.0, %v6081
    %v6083 = vrcp.pop %v6038
    %v6084 = vmul.f32 1.0, %v6083
    %v6085 = vrcp.pop %v6039
    %v6086 = vmul.f32 1.0, %v6085
    %v6087 = vrcp.pop %v6040
    %v6088 = vmul.f32 1.0, %v6087
    %v6089 = vrcp.pop %v6041
    %v6090 = vmul.f32 1.0, %v6089
    %v6091 = vrcp.pop %v6042
    %v6092 = vmul.f32 1.0, %v6091
    %v6093 = vrcp.pop %v6043
    %v6094 = vmul.f32 1.0, %v6093
    %v6095 = vrcp.pop %v6044
    %v6096 = vmul.f32 1.0, %v6095
    %v6097 = vrcp.pop %v6045
    %v6098 = vmul.f32 1.0, %v6097
    %v6099 = vrcp.pop %v6046
    %v6100 = vmul.f32 1.0, %v6099
    %v6101 = vrcp.pop %v6047
    %v6102 = vmul.f32 1.0, %v6101
    %v6103 = vrcp.pop %v6048
    %v6104 = vmul.f32 1.0, %v6103
    %v6105 = vrcp.pop %v6049
    %v6106 = vmul.f32 1.0, %v6105
    %v6107 = vrcp.pop %v6050
    %v6108 = vmul.f32 1.0, %v6107
    %v6109 = vrcp.pop %v6051
    %v6110 = vmul.f32 1.0, %v6109
    %v6111 = vrcp.pop %v6052
    %v6112 = vmul.f32 1.0, %v6111
    %v6113 = vrcp.pop %v6053
    %v6114 = vmul.f32 1.0, %v6113
    %v6115 = vrcp.pop %v6054
    %v6116 = vmul.f32 1.0, %v6115
    %v6117 = vrcp.pop %v6055
    %v6118 = vmul.f32 1.0, %v6117
    %v6119 = vrcp.pop %v6056
    %v6120 = vmul.f32 1.0, %v6119
    %6121 = vst [vmem:[#allocation7 + $0x8] sm:$0xff] %v6058
    %6122 = vst [vmem:[#allocation7 + $0x20] sm:$0xff] %v6060
    %6123 = vst [vmem:[#allocation7 + $0x38] sm:$0xff] %v6062
    %6124 = vst [vmem:[#allocation7 + $0x50] sm:$0xff] %v6064
    %6125 = vst [vmem:[#allocation7 + $0x68] sm:$0xff] %v6066
    %6126 = vst [vmem:[#allocation7 + $0x80] sm:$0xff] %v6068
    %6127 = vst [vmem:[#allocation7 + $0x98] sm:$0xff] %v6070
    %6128 = vst [vmem:[#allocation7 + $0xb0] sm:$0xff] %v6072
    %6129 = vst [vmem:[#allocation7 + $0xc8] sm:$0xff] %v6074
    %6130 = vst [vmem:[#allocation7 + $0xe0] sm:$0xff] %v6076
    %6131 = vst [vmem:[#allocation7 + $0xf8] sm:$0xff] %v6078
    %6132 = vst [vmem:[#allocation7 + $0x110] sm:$0xff] %v6080
    %6133 = vst [vmem:[#allocation7 + $0x128] sm:$0xff] %v6082
    %6134 = vst [vmem:[#allocation7 + $0x140] sm:$0xff] %v6084
    %6135 = vst [vmem:[#allocation7 + $0x158] sm:$0xff] %v6086
    %6136 = vst [vmem:[#allocation7 + $0x170] sm:$0xff] %v6088
    %6137 = vst [vmem:[#allocation7 + $0x188] sm:$0xff] %v6090
    %6138 = vst [vmem:[#allocation7 + $0x1a0] sm:$0xff] %v6092
    %6139 = vst [vmem:[#allocation7 + $0x1b8] sm:$0xff] %v6094
    %6140 = vst [vmem:[#allocation7 + $0x1d0] sm:$0xff] %v6096
    %6141 = vst [vmem:[#allocation7 + $0x1e8] sm:$0xff] %v6098
    %6142 = vst [vmem:[#allocation7 + $0x200] sm:$0xff] %v6100
    %6143 = vst [vmem:[#allocation7 + $0x218] sm:$0xff] %v6102
    %6144 = vst [vmem:[#allocation7 + $0x230] sm:$0xff] %v6104
    %6145 = vst [vmem:[#allocation7 + $0x248] sm:$0xff] %v6106
    %6146 = vst [vmem:[#allocation7 + $0x260] sm:$0xff] %v6108
    %6147 = vst [vmem:[#allocation7 + $0x278] sm:$0xff] %v6110
    %6148 = vst [vmem:[#allocation7 + $0x290] sm:$0xff] %v6112
    %6149 = vst [vmem:[#allocation7 + $0x2a8] sm:$0xff] %v6114
    %6150 = vst [vmem:[#allocation7 + $0x2c0] sm:$0xff] %v6116
    %6151 = vst [vmem:[#allocation7 + $0x2d8] sm:$0xff] %v6118
    %6152 = vst [vmem:[#allocation7 + $0x2f0] sm:$0xff] %v6120
    %s6153 = scalar_lea.vmem %s1, 2
    %v6154 = vld [vmem:[%s6153] sm:$0x1]
    %s6155 = scalar_lea.vmem %s2, 2
    %v6156 = vld [vmem:[%s6155] sm:$0x1]
    %v6158 = vlaneseq
    %v6159 = vshrl.u32 %v6158, 7
    %v6160 = vsub.s32 0, %v6159
    %v6161 = vrot.slane %v6154, %v6160
    %v6163 = vmul.f32 %v494, %v6161
    %v6164 = vmul.f32 %v495, %v6161
    %v6165 = vmul.f32 %v496, %v6161
    %v6166 = vmul.f32 %v497, %v6161
    %v6167 = vmul.f32 %v498, %v6161
    %v6168 = vmul.f32 %v499, %v6161
    %v6169 = vmul.f32 %v500, %v6161
    %v6170 = vmul.f32 %v501, %v6161
    %v6171 = vmul.f32 %v502, %v6161
    %v6172 = vmul.f32 %v503, %v6161
    %v6173 = vmul.f32 %v504, %v6161
    %v6174 = vmul.f32 %v505, %v6161
    %v6175 = vmul.f32 %v506, %v6161
    %v6176 = vmul.f32 %v507, %v6161
    %v6177 = vmul.f32 %v508, %v6161
    %v6178 = vmul.f32 %v509, %v6161
    %v6179 = vmul.f32 %v510, %v6161
    %v6180 = vmul.f32 %v511, %v6161
    %v6181 = vmul.f32 %v512, %v6161
    %v6182 = vmul.f32 %v513, %v6161
    %v6183 = vmul.f32 %v514, %v6161
    %v6184 = vmul.f32 %v515, %v6161
    %v6185 = vmul.f32 %v516, %v6161
    %v6186 = vmul.f32 %v517, %v6161
    %v6187 = vmul.f32 %v518, %v6161
    %v6188 = vmul.f32 %v519, %v6161
    %v6189 = vmul.f32 %v520, %v6161
    %v6190 = vmul.f32 %v521, %v6161
    %v6191 = vmul.f32 %v522, %v6161
    %v6192 = vmul.f32 %v523, %v6161
    %v6193 = vmul.f32 %v524, %v6161
    %v6194 = vmul.f32 %v525, %v6161
    %v6196 = vlaneseq
    %v6197 = vshrl.u32 %v6196, 7
    %v6198 = vsub.s32 0, %v6197
    %v6199 = vrot.slane %v6156, %v6198
    %v6201 = vadd.f32 %v6163, %v6199
    %v6202 = vadd.f32 %v6164, %v6199
    %v6203 = vadd.f32 %v6165, %v6199
    %v6204 = vadd.f32 %v6166, %v6199
    %v6205 = vadd.f32 %v6167, %v6199
    %v6206 = vadd.f32 %v6168, %v6199
    %v6207 = vadd.f32 %v6169, %v6199
    %v6208 = vadd.f32 %v6170, %v6199
    %v6209 = vadd.f32 %v6171, %v6199
    %v6210 = vadd.f32 %v6172, %v6199
    %v6211 = vadd.f32 %v6173, %v6199
    %v6212 = vadd.f32 %v6174, %v6199
    %v6213 = vadd.f32 %v6175, %v6199
    %v6214 = vadd.f32 %v6176, %v6199
    %v6215 = vadd.f32 %v6177, %v6199
    %v6216 = vadd.f32 %v6178, %v6199
    %v6217 = vadd.f32 %v6179, %v6199
    %v6218 = vadd.f32 %v6180, %v6199
    %v6219 = vadd.f32 %v6181, %v6199
    %v6220 = vadd.f32 %v6182, %v6199
    %v6221 = vadd.f32 %v6183, %v6199
    %v6222 = vadd.f32 %v6184, %v6199
    %v6223 = vadd.f32 %v6185, %v6199
    %v6224 = vadd.f32 %v6186, %v6199
    %v6225 = vadd.f32 %v6187, %v6199
    %v6226 = vadd.f32 %v6188, %v6199
    %v6227 = vadd.f32 %v6189, %v6199
    %v6228 = vadd.f32 %v6190, %v6199
    %v6229 = vadd.f32 %v6191, %v6199
    %v6230 = vadd.f32 %v6192, %v6199
    %v6231 = vadd.f32 %v6193, %v6199
    %v6232 = vadd.f32 %v6194, %v6199
    %v6233 = vpack.c.bf16 %v6202, %v6201
    %v6234 = vpack.c.bf16 %v6204, %v6203
    %v6235 = vpack.c.bf16 %v6206, %v6205
    %v6236 = vpack.c.bf16 %v6208, %v6207
    %v6237 = vpack.c.bf16 %v6210, %v6209
    %v6238 = vpack.c.bf16 %v6212, %v6211
    %v6239 = vpack.c.bf16 %v6214, %v6213
    %v6240 = vpack.c.bf16 %v6216, %v6215
    %v6241 = vpack.c.bf16 %v6218, %v6217
    %v6242 = vpack.c.bf16 %v6220, %v6219
    %v6243 = vpack.c.bf16 %v6222, %v6221
    %v6244 = vpack.c.bf16 %v6224, %v6223
    %v6245 = vpack.c.bf16 %v6226, %v6225
    %v6246 = vpack.c.bf16 %v6228, %v6227
    %v6247 = vpack.c.bf16 %v6230, %v6229
    %v6248 = vpack.c.bf16 %v6232, %v6231
    %s6249 = scalar_lea.vmem %s3, 64
    %v6250 = vld [vmem:[%s6249] sm:$0xff]
    %v6251 = vld [vmem:[%s6249 + $0x8] sm:$0xff]
    %v6252 = vld [vmem:[%s6249 + $0x10] sm:$0xff]
    %v6253 = vld [vmem:[%s6249 + $0x18] sm:$0xff]
    %s6254 = scalar_lea.vmem %s4, 4
    %v6255 = vld [vmem:[%s6254] sm:$0x3]
    %v6257 = vlaneseq
    %v6258 = vshrl.u32 %v6257, 7
    %v6259 = vsub.s32 0, %v6258
    %v6260 = vrot.slane %v6255, %v6259
    %v6261 = vlaneseq
    %v6262 = vshrl.u32 %v6261, 7
    %v6263 = vsub.s32 1, %v6262
    %v6264 = vrot.slane %v6255, %v6263
    %v6271 = vunpack.c.l.b16 %v6250
    %v6272 = vunpack.c.h.b16 %v6250
    %v6273 = vunpack.c.l.b16 %v6251
    %v6274 = vunpack.c.h.b16 %v6251
    %v6275 = vunpack.c.l.b16 %v6252
    %v6276 = vunpack.c.h.b16 %v6252
    %v6277 = vunpack.c.l.b16 %v6253
    %v6278 = vunpack.c.h.b16 %v6253
    %v6279 = vpack.c.b16 %v6273, %v6271
    %v6280 = vpack.c.b16 %v6274, %v6272
    %v6281 = vpack.c.b16 %v6277, %v6275
    %v6282 = vpack.c.b16 %v6278, %v6276
    %v6288 = vsel %vm108, %v6233, 0
    %v6291 = vsel %vm108, %v6234, 0
    %v6294 = vsel %vm108, %v6235, 0
    %v6297 = vsel %vm108, %v6236, 0
    %v6300 = vsel %vm108, %v6237, 0
    %v6303 = vsel %vm108, %v6238, 0
    %v6306 = vsel %vm108, %v6239, 0
    %v6309 = vsel %vm108, %v6240, 0
    %v6312 = vsel %vm108, %v6241, 0
    %v6315 = vsel %vm108, %v6242, 0
    %v6318 = vsel %vm108, %v6243, 0
    %v6321 = vsel %vm108, %v6244, 0
    %v6324 = vsel %vm108, %v6245, 0
    %v6327 = vsel %vm108, %v6246, 0
    %v6330 = vsel %vm108, %v6247, 0
    %v6333 = vsel %vm108, %v6248, 0
    %6335 = vmatprep.subr.bf16.mxu0 %v6280
    %6336 = vmatpush1.bf16.msra.mxu0 %v6279
    %6337 = vmatprep.subr.bf16.mxu0 %v6282
    %6338 = vmatpush1.bf16.msra.mxu0 %v6281
    %6339 = vmatprep.subr.bf16.mxu0 0
    %6340 = vmatpush1.bf16.msra.mxu0 0
    %6341 = vmatprep.subr.bf16.mxu0 0
    %6342 = vmatpush1.bf16.msra.mxu0 0
    %6343 = vmatprep.subr.bf16.mxu0 0
    %6344 = vmatpush1.bf16.msra.mxu0 0
    %6345 = vmatprep.subr.bf16.mxu0 0
    %6346 = vmatpush1.bf16.msra.mxu0 0
    %6347 = vmatprep.subr.bf16.mxu0 0
    %6348 = vmatpush1.bf16.msra.mxu0 0
    %6349 = vmatprep.subr.bf16.mxu0 0
    %6350 = vmatpush1.bf16.msra.mxu0 0
    %6351 = vmatprep.subr.bf16.mxu0 0
    %6352 = vmatpush1.bf16.msra.mxu0 0
    %6353 = vmatprep.subr.bf16.mxu0 0
    %6354 = vmatpush1.bf16.msra.mxu0 0
    %6355 = vmatprep.subr.bf16.mxu0 0
    %6356 = vmatpush1.bf16.msra.mxu0 0
    %6357 = vmatprep.subr.bf16.mxu0 0
    %6358 = vmatpush1.bf16.msra.mxu0 0
    %6359 = vmatprep.subr.bf16.mxu0 0
    %6360 = vmatpush1.bf16.msra.mxu0 0
    %6361 = vmatprep.subr.bf16.mxu0 0
    %6362 = vmatpush1.bf16.msra.mxu0 0
    %6363 = vmatprep.subr.bf16.mxu0 0
    %6364 = vmatpush1.bf16.msra.mxu0 0
    %6365 = vmatprep.subr.bf16.mxu0 0
    %6366 = vmatpush1.bf16.msra.mxu0 0
    %6367 = vmatprep.mubr.bf16.mxu0 0
    %6368 = vmatmul.mubr.bf16.gmra.mrb[0].mxu0 %v6288
    %v6369 = vpop.f32.mrb[0].mxu0
    %v6370 = vadd.f32 %v6260, %v6369
    %v6371 = vpop.f32.mrb[0].mxu0
    %v6372 = vadd.f32 %v6264, %v6371
    %v6373 = vpop.f32.mrb[0].mxu0
    %v6374 = vadd.f32 %v6260, %v6373
    %v6375 = vpop.f32.mrb[0].mxu0
    %v6376 = vadd.f32 %v6264, %v6375
    %6377 = vmatprep.mubr.bf16.mxu0 0
    %6378 = vmatmul.mubr.bf16.gmra.mrb[0].mxu0 %v6291
    %v6379 = vpop.f32.mrb[0].mxu0
    %v6380 = vadd.f32 %v6260, %v6379
    %v6381 = vpop.f32.mrb[0].mxu0
    %v6382 = vadd.f32 %v6264, %v6381
    %v6383 = vpop.f32.mrb[0].mxu0
    %v6384 = vadd.f32 %v6260, %v6383
    %v6385 = vpop.f32.mrb[0].mxu0
    %v6386 = vadd.f32 %v6264, %v6385
    %6387 = vmatprep.mubr.bf16.mxu0 0
    %6388 = vmatmul.mubr.bf16.gmra.mrb[0].mxu0 %v6294
    %v6389 = vpop.f32.mrb[0].mxu0
    %v6390 = vadd.f32 %v6260, %v6389
    %v6391 = vpop.f32.mrb[0].mxu0
    %v6392 = vadd.f32 %v6264, %v6391
    %v6393 = vpop.f32.mrb[0].mxu0
    %v6394 = vadd.f32 %v6260, %v6393
    %v6395 = vpop.f32.mrb[0].mxu0
    %v6396 = vadd.f32 %v6264, %v6395
    %6397 = vmatprep.mubr.bf16.mxu0 0
    %6398 = vmatmul.mubr.bf16.gmra.mrb[0].mxu0 %v6297
    %v6399 = vpop.f32.mrb[0].mxu0
    %v6400 = vadd.f32 %v6260, %v6399
    %v6401 = vpop.f32.mrb[0].mxu0
    %v6402 = vadd.f32 %v6264, %v6401
    %v6403 = vpop.f32.mrb[0].mxu0
    %v6404 = vadd.f32 %v6260, %v6403
    %v6405 = vpop.f32.mrb[0].mxu0
    %v6406 = vadd.f32 %v6264, %v6405
    %6407 = vmatprep.mubr.bf16.mxu0 0
    %6408 = vmatmul.mubr.bf16.gmra.mrb[0].mxu0 %v6300
    %v6409 = vpop.f32.mrb[0].mxu0
    %v6410 = vadd.f32 %v6260, %v6409
    %v6411 = vpop.f32.mrb[0].mxu0
    %v6412 = vadd.f32 %v6264, %v6411
    %v6413 = vpop.f32.mrb[0].mxu0
    %v6414 = vadd.f32 %v6260, %v6413
    %v6415 = vpop.f32.mrb[0].mxu0
    %v6416 = vadd.f32 %v6264, %v6415
    %6417 = vmatprep.mubr.bf16.mxu0 0
    %6418 = vmatmul.mubr.bf16.gmra.mrb[0].mxu0 %v6303
    %v6419 = vpop.f32.mrb[0].mxu0
    %v6420 = vadd.f32 %v6260, %v6419
    %v6421 = vpop.f32.mrb[0].mxu0
    %v6422 = vadd.f32 %v6264, %v6421
    %v6423 = vpop.f32.mrb[0].mxu0
    %v6424 = vadd.f32 %v6260, %v6423
    %v6425 = vpop.f32.mrb[0].mxu0
    %v6426 = vadd.f32 %v6264, %v6425
    %6427 = vmatprep.mubr.bf16.mxu0 0
    %6428 = vmatmul.mubr.bf16.gmra.mrb[0].mxu0 %v6306
    %v6429 = vpop.f32.mrb[0].mxu0
    %v6430 = vadd.f32 %v6260, %v6429
    %v6431 = vpop.f32.mrb[0].mxu0
    %v6432 = vadd.f32 %v6264, %v6431
    %v6433 = vpop.f32.mrb[0].mxu0
    %v6434 = vadd.f32 %v6260, %v6433
    %v6435 = vpop.f32.mrb[0].mxu0
    %v6436 = vadd.f32 %v6264, %v6435
    %6437 = vmatprep.mubr.bf16.mxu0 0
    %6438 = vmatmul.mubr.bf16.gmra.mrb[0].mxu0 %v6309
    %v6439 = vpop.f32.mrb[0].mxu0
    %v6440 = vadd.f32 %v6260, %v6439
    %v6441 = vpop.f32.mrb[0].mxu0
    %v6442 = vadd.f32 %v6264, %v6441
    %v6443 = vpop.f32.mrb[0].mxu0
    %v6444 = vadd.f32 %v6260, %v6443
    %v6445 = vpop.f32.mrb[0].mxu0
    %v6446 = vadd.f32 %v6264, %v6445
    %6447 = vmatprep.mubr.bf16.mxu0 0
    %6448 = vmatmul.mubr.bf16.gmra.mrb[0].mxu0 %v6312
    %v6449 = vpop.f32.mrb[0].mxu0
    %v6450 = vadd.f32 %v6260, %v6449
    %v6451 = vpop.f32.mrb[0].mxu0
    %v6452 = vadd.f32 %v6264, %v6451
    %v6453 = vpop.f32.mrb[0].mxu0
    %v6454 = vadd.f32 %v6260, %v6453
    %v6455 = vpop.f32.mrb[0].mxu0
    %v6456 = vadd.f32 %v6264, %v6455
    %6457 = vmatprep.mubr.bf16.mxu0 0
    %6458 = vmatmul.mubr.bf16.gmra.mrb[0].mxu0 %v6315
    %v6459 = vpop.f32.mrb[0].mxu0
    %v6460 = vadd.f32 %v6260, %v6459
    %v6461 = vpop.f32.mrb[0].mxu0
    %v6462 = vadd.f32 %v6264, %v6461
    %v6463 = vpop.f32.mrb[0].mxu0
    %v6464 = vadd.f32 %v6260, %v6463
    %v6465 = vpop.f32.mrb[0].mxu0
    %v6466 = vadd.f32 %v6264, %v6465
    %6467 = vmatprep.mubr.bf16.mxu0 0
    %6468 = vmatmul.mubr.bf16.gmra.mrb[0].mxu0 %v6318
    %v6469 = vpop.f32.mrb[0].mxu0
    %v6470 = vadd.f32 %v6260, %v6469
    %v6471 = vpop.f32.mrb[0].mxu0
    %v6472 = vadd.f32 %v6264, %v6471
    %v6473 = vpop.f32.mrb[0].mxu0
    %v6474 = vadd.f32 %v6260, %v6473
    %v6475 = vpop.f32.mrb[0].mxu0
    %v6476 = vadd.f32 %v6264, %v6475
    %6477 = vmatprep.mubr.bf16.mxu0 0
    %6478 = vmatmul.mubr.bf16.gmra.mrb[0].mxu0 %v6321
    %v6479 = vpop.f32.mrb[0].mxu0
    %v6480 = vadd.f32 %v6260, %v6479
    %v6481 = vpop.f32.mrb[0].mxu0
    %v6482 = vadd.f32 %v6264, %v6481
    %v6483 = vpop.f32.mrb[0].mxu0
    %v6484 = vadd.f32 %v6260, %v6483
    %v6485 = vpop.f32.mrb[0].mxu0
    %v6486 = vadd.f32 %v6264, %v6485
    %6487 = vmatprep.mubr.bf16.mxu0 0
    %6488 = vmatmul.mubr.bf16.gmra.mrb[0].mxu0 %v6324
    %v6489 = vpop.f32.mrb[0].mxu0
    %v6490 = vadd.f32 %v6260, %v6489
    %v6491 = vpop.f32.mrb[0].mxu0
    %v6492 = vadd.f32 %v6264, %v6491
    %v6493 = vpop.f32.mrb[0].mxu0
    %v6494 = vadd.f32 %v6260, %v6493
    %v6495 = vpop.f32.mrb[0].mxu0
    %v6496 = vadd.f32 %v6264, %v6495
    %6497 = vmatprep.mubr.bf16.mxu0 0
    %6498 = vmatmul.mubr.bf16.gmra.mrb[0].mxu0 %v6327
    %v6499 = vpop.f32.mrb[0].mxu0
    %v6500 = vadd.f32 %v6260, %v6499
    %v6501 = vpop.f32.mrb[0].mxu0
    %v6502 = vadd.f32 %v6264, %v6501
    %v6503 = vpop.f32.mrb[0].mxu0
    %v6504 = vadd.f32 %v6260, %v6503
    %v6505 = vpop.f32.mrb[0].mxu0
    %v6506 = vadd.f32 %v6264, %v6505
    %6507 = vmatprep.mubr.bf16.mxu0 0
    %6508 = vmatmul.mubr.bf16.gmra.mrb[0].mxu0 %v6330
    %v6509 = vpop.f32.mrb[0].mxu0
    %v6510 = vadd.f32 %v6260, %v6509
    %v6511 = vpop.f32.mrb[0].mxu0
    %v6512 = vadd.f32 %v6264, %v6511
    %v6513 = vpop.f32.mrb[0].mxu0
    %v6514 = vadd.f32 %v6260, %v6513
    %v6515 = vpop.f32.mrb[0].mxu0
    %v6516 = vadd.f32 %v6264, %v6515
    %6517 = vmatprep.mubr.bf16.mxu0 0
    %6518 = vmatmul.mubr.bf16.gmra.mrb[0].mxu0 %v6333
    %v6519 = vpop.f32.mrb[0].mxu0
    %v6520 = vadd.f32 %v6260, %v6519
    %v6521 = vpop.f32.mrb[0].mxu0
    %v6522 = vadd.f32 %v6264, %v6521
    %v6523 = vpop.f32.mrb[0].mxu0
    %v6524 = vadd.f32 %v6260, %v6523
    %v6525 = vpop.f32.mrb[0].mxu0
    %v6526 = vadd.f32 %v6264, %v6525
    %6527 = vdwg.mxu0
    %v6528 = vmax.f32 %v6370, 0.0
    %v6529 = vmax.f32 %v6372, 0.0
    %v6530 = vmax.f32 %v6374, 0.0
    %v6531 = vmax.f32 %v6376, 0.0
    %v6532 = vmax.f32 %v6380, 0.0
    %v6533 = vmax.f32 %v6382, 0.0
    %v6534 = vmax.f32 %v6384, 0.0
    %v6535 = vmax.f32 %v6386, 0.0
    %v6536 = vmax.f32 %v6390, 0.0
    %v6537 = vmax.f32 %v6392, 0.0
    %v6538 = vmax.f32 %v6394, 0.0
    %v6539 = vmax.f32 %v6396, 0.0
    %v6540 = vmax.f32 %v6400, 0.0
    %v6541 = vmax.f32 %v6402, 0.0
    %v6542 = vmax.f32 %v6404, 0.0
    %v6543 = vmax.f32 %v6406, 0.0
    %v6544 = vmax.f32 %v6410, 0.0
    %v6545 = vmax.f32 %v6412, 0.0
    %v6546 = vmax.f32 %v6414, 0.0
    %v6547 = vmax.f32 %v6416, 0.0
    %v6548 = vmax.f32 %v6420, 0.0
    %v6549 = vmax.f32 %v6422, 0.0
    %v6550 = vmax.f32 %v6424, 0.0
    %v6551 = vmax.f32 %v6426, 0.0
    %v6552 = vmax.f32 %v6430, 0.0
    %v6553 = vmax.f32 %v6432, 0.0
    %v6554 = vmax.f32 %v6434, 0.0
    %v6555 = vmax.f32 %v6436, 0.0
    %v6556 = vmax.f32 %v6440, 0.0
    %v6557 = vmax.f32 %v6442, 0.0
    %v6558 = vmax.f32 %v6444, 0.0
    %v6559 = vmax.f32 %v6446, 0.0
    %v6560 = vmax.f32 %v6450, 0.0
    %v6561 = vmax.f32 %v6452, 0.0
    %v6562 = vmax.f32 %v6454, 0.0
    %v6563 = vmax.f32 %v6456, 0.0
    %v6564 = vmax.f32 %v6460, 0.0
    %v6565 = vmax.f32 %v6462, 0.0
    %v6566 = vmax.f32 %v6464, 0.0
    %v6567 = vmax.f32 %v6466, 0.0
    %v6568 = vmax.f32 %v6470, 0.0
    %v6569 = vmax.f32 %v6472, 0.0
    %v6570 = vmax.f32 %v6474, 0.0
    %v6571 = vmax.f32 %v6476, 0.0
    %v6572 = vmax.f32 %v6480, 0.0
    %v6573 = vmax.f32 %v6482, 0.0
    %v6574 = vmax.f32 %v6484, 0.0
    %v6575 = vmax.f32 %v6486, 0.0
    %v6576 = vmax.f32 %v6490, 0.0
    %v6577 = vmax.f32 %v6492, 0.0
    %v6578 = vmax.f32 %v6494, 0.0
    %v6579 = vmax.f32 %v6496, 0.0
    %v6580 = vmax.f32 %v6500, 0.0
    %v6581 = vmax.f32 %v6502, 0.0
    %v6582 = vmax.f32 %v6504, 0.0
    %v6583 = vmax.f32 %v6506, 0.0
    %v6584 = vmax.f32 %v6510, 0.0
    %v6585 = vmax.f32 %v6512, 0.0
    %v6586 = vmax.f32 %v6514, 0.0
    %v6587 = vmax.f32 %v6516, 0.0
    %v6588 = vmax.f32 %v6520, 0.0
    %v6589 = vmax.f32 %v6522, 0.0
    %v6590 = vmax.f32 %v6524, 0.0
    %v6591 = vmax.f32 %v6526, 0.0
    %s6592 = scalar_lea.vmem %s5, 4
    %v6593 = vld [vmem:[%s6592] sm:$0x3]
    %s6594 = scalar_lea.vmem %s6, 4
    %v6595 = vld [vmem:[%s6594] sm:$0x3]
    %v6596 = vadd.f32 %v6528, %v6529
    %6597 = vadd.xlane.f32.xlu0 %v6596
    %v6598 = vpop.xlane.xlu0 %6597
    %v6599 = vadd.f32 %v6530, %v6531
    %6600 = vadd.xlane.f32.xlu0 %v6599
    %v6601 = vpop.xlane.xlu0 %6600
    %v6602 = vadd.f32 %v6532, %v6533
    %6603 = vadd.xlane.f32.xlu0 %v6602
    %v6604 = vpop.xlane.xlu0 %6603
    %v6605 = vadd.f32 %v6534, %v6535
    %6606 = vadd.xlane.f32.xlu0 %v6605
    %v6607 = vpop.xlane.xlu0 %6606
    %v6608 = vadd.f32 %v6536, %v6537
    %6609 = vadd.xlane.f32.xlu0 %v6608
    %v6610 = vpop.xlane.xlu0 %6609
    %v6611 = vadd.f32 %v6538, %v6539
    %6612 = vadd.xlane.f32.xlu0 %v6611
    %v6613 = vpop.xlane.xlu0 %6612
    %v6614 = vadd.f32 %v6540, %v6541
    %6615 = vadd.xlane.f32.xlu0 %v6614
    %v6616 = vpop.xlane.xlu0 %6615
    %v6617 = vadd.f32 %v6542, %v6543
    %6618 = vadd.xlane.f32.xlu0 %v6617
    %v6619 = vpop.xlane.xlu0 %6618
    %v6620 = vadd.f32 %v6544, %v6545
    %6621 = vadd.xlane.f32.xlu0 %v6620
    %v6622 = vpop.xlane.xlu0 %6621
    %v6623 = vadd.f32 %v6546, %v6547
    %6624 = vadd.xlane.f32.xlu0 %v6623
    %v6625 = vpop.xlane.xlu0 %6624
    %v6626 = vadd.f32 %v6548, %v6549
    %6627 = vadd.xlane.f32.xlu0 %v6626
    %v6628 = vpop.xlane.xlu0 %6627
    %v6629 = vadd.f32 %v6550, %v6551
    %6630 = vadd.xlane.f32.xlu0 %v6629
    %v6631 = vpop.xlane.xlu0 %6630
    %v6632 = vadd.f32 %v6552, %v6553
    %6633 = vadd.xlane.f32.xlu0 %v6632
    %v6634 = vpop.xlane.xlu0 %6633
    %v6635 = vadd.f32 %v6554, %v6555
    %6636 = vadd.xlane.f32.xlu0 %v6635
    %v6637 = vpop.xlane.xlu0 %6636
    %v6638 = vadd.f32 %v6556, %v6557
    %6639 = vadd.xlane.f32.xlu0 %v6638
    %v6640 = vpop.xlane.xlu0 %6639
    %v6641 = vadd.f32 %v6558, %v6559
    %6642 = vadd.xlane.f32.xlu0 %v6641
    %v6643 = vpop.xlane.xlu0 %6642
    %v6644 = vadd.f32 %v6560, %v6561
    %6645 = vadd.xlane.f32.xlu0 %v6644
    %v6646 = vpop.xlane.xlu0 %6645
    %v6647 = vadd.f32 %v6562, %v6563
    %6648 = vadd.xlane.f32.xlu0 %v6647
    %v6649 = vpop.xlane.xlu0 %6648
    %v6650 = vadd.f32 %v6564, %v6565
    %6651 = vadd.xlane.f32.xlu0 %v6650
    %v6652 = vpop.xlane.xlu0 %6651
    %v6653 = vadd.f32 %v6566, %v6567
    %6654 = vadd.xlane.f32.xlu0 %v6653
    %v6655 = vpop.xlane.xlu0 %6654
    %v6656 = vadd.f32 %v6568, %v6569
    %6657 = vadd.xlane.f32.xlu0 %v6656
    %v6658 = vpop.xlane.xlu0 %6657
    %v6659 = vadd.f32 %v6570, %v6571
    %6660 = vadd.xlane.f32.xlu0 %v6659
    %v6661 = vpop.xlane.xlu0 %6660
    %v6662 = vadd.f32 %v6572, %v6573
    %6663 = vadd.xlane.f32.xlu0 %v6662
    %v6664 = vpop.xlane.xlu0 %6663
    %v6665 = vadd.f32 %v6574, %v6575
    %6666 = vadd.xlane.f32.xlu0 %v6665
    %v6667 = vpop.xlane.xlu0 %6666
    %v6668 = vadd.f32 %v6576, %v6577
    %6669 = vadd.xlane.f32.xlu0 %v6668
    %v6670 = vpop.xlane.xlu0 %6669
    %v6671 = vadd.f32 %v6578, %v6579
    %6672 = vadd.xlane.f32.xlu0 %v6671
    %v6673 = vpop.xlane.xlu0 %6672
    %v6674 = vadd.f32 %v6580, %v6581
    %6675 = vadd.xlane.f32.xlu0 %v6674
    %v6676 = vpop.xlane.xlu0 %6675
    %v6677 = vadd.f32 %v6582, %v6583
    %6678 = vadd.xlane.f32.xlu0 %v6677
    %v6679 = vpop.xlane.xlu0 %6678
    %v6680 = vadd.f32 %v6584, %v6585
    %6681 = vadd.xlane.f32.xlu0 %v6680
    %v6682 = vpop.xlane.xlu0 %6681
    %v6683 = vadd.f32 %v6586, %v6587
    %6684 = vadd.xlane.f32.xlu0 %v6683
    %v6685 = vpop.xlane.xlu0 %6684
    %v6686 = vadd.f32 %v6588, %v6589
    %6687 = vadd.xlane.f32.xlu0 %v6686
    %v6688 = vpop.xlane.xlu0 %6687
    %v6689 = vadd.f32 %v6590, %v6591
    %6690 = vadd.xlane.f32.xlu0 %v6689
    %v6691 = vpop.xlane.xlu0 %6690
    %v6692 = vmul.f32 %v6598, %v1057
    %v6693 = vmul.f32 %v6601, %v1057
    %v6694 = vmul.f32 %v6604, %v1057
    %v6695 = vmul.f32 %v6607, %v1057
    %v6696 = vmul.f32 %v6610, %v1057
    %v6697 = vmul.f32 %v6613, %v1057
    %v6698 = vmul.f32 %v6616, %v1057
    %v6699 = vmul.f32 %v6619, %v1057
    %v6700 = vmul.f32 %v6622, %v1057
    %v6701 = vmul.f32 %v6625, %v1057
    %v6702 = vmul.f32 %v6628, %v1057
    %v6703 = vmul.f32 %v6631, %v1057
    %v6704 = vmul.f32 %v6634, %v1057
    %v6705 = vmul.f32 %v6637, %v1057
    %v6706 = vmul.f32 %v6640, %v1057
    %v6707 = vmul.f32 %v6643, %v1057
    %v6708 = vmul.f32 %v6646, %v1057
    %v6709 = vmul.f32 %v6649, %v1057
    %v6710 = vmul.f32 %v6652, %v1057
    %v6711 = vmul.f32 %v6655, %v1057
    %v6712 = vmul.f32 %v6658, %v1057
    %v6713 = vmul.f32 %v6661, %v1057
    %v6714 = vmul.f32 %v6664, %v1057
    %v6715 = vmul.f32 %v6667, %v1057
    %v6716 = vmul.f32 %v6670, %v1057
    %v6717 = vmul.f32 %v6673, %v1057
    %v6718 = vmul.f32 %v6676, %v1057
    %v6719 = vmul.f32 %v6679, %v1057
    %v6720 = vmul.f32 %v6682, %v1057
    %v6721 = vmul.f32 %v6685, %v1057
    %v6722 = vmul.f32 %v6688, %v1057
    %v6723 = vmul.f32 %v6691, %v1057
    %v6724 = vsub.f32 %v6528, %v6692
    %v6725 = vsub.f32 %v6529, %v6692
    %v6726 = vsub.f32 %v6530, %v6693
    %v6727 = vsub.f32 %v6531, %v6693
    %v6728 = vsub.f32 %v6532, %v6694
    %v6729 = vsub.f32 %v6533, %v6694
    %v6730 = vsub.f32 %v6534, %v6695
    %v6731 = vsub.f32 %v6535, %v6695
    %v6732 = vsub.f32 %v6536, %v6696
    %v6733 = vsub.f32 %v6537, %v6696
    %v6734 = vsub.f32 %v6538, %v6697
    %v6735 = vsub.f32 %v6539, %v6697
    %v6736 = vsub.f32 %v6540, %v6698
    %v6737 = vsub.f32 %v6541, %v6698
    %v6738 = vsub.f32 %v6542, %v6699
    %v6739 = vsub.f32 %v6543, %v6699
    %v6740 = vsub.f32 %v6544, %v6700
    %v6741 = vsub.f32 %v6545, %v6700
    %v6742 = vsub.f32 %v6546, %v6701
    %v6743 = vsub.f32 %v6547, %v6701
    %v6744 = vsub.f32 %v6548, %v6702
    %v6745 = vsub.f32 %v6549, %v6702
    %v6746 = vsub.f32 %v6550, %v6703
    %v6747 = vsub.f32 %v6551, %v6703
    %v6748 = vsub.f32 %v6552, %v6704
    %v6749 = vsub.f32 %v6553, %v6704
    %v6750 = vsub.f32 %v6554, %v6705
    %v6751 = vsub.f32 %v6555, %v6705
    %v6752 = vsub.f32 %v6556, %v6706
    %v6753 = vsub.f32 %v6557, %v6706
    %v6754 = vsub.f32 %v6558, %v6707
    %v6755 = vsub.f32 %v6559, %v6707
    %v6756 = vsub.f32 %v6560, %v6708
    %v6757 = vsub.f32 %v6561, %v6708
    %v6758 = vsub.f32 %v6562, %v6709
    %v6759 = vsub.f32 %v6563, %v6709
    %v6760 = vsub.f32 %v6564, %v6710
    %v6761 = vsub.f32 %v6565, %v6710
    %v6762 = vsub.f32 %v6566, %v6711
    %v6763 = vsub.f32 %v6567, %v6711
    %v6764 = vsub.f32 %v6568, %v6712
    %v6765 = vsub.f32 %v6569, %v6712
    %v6766 = vsub.f32 %v6570, %v6713
    %v6767 = vsub.f32 %v6571, %v6713
    %v6768 = vsub.f32 %v6572, %v6714
    %v6769 = vsub.f32 %v6573, %v6714
    %v6770 = vsub.f32 %v6574, %v6715
    %v6771 = vsub.f32 %v6575, %v6715
    %v6772 = vsub.f32 %v6576, %v6716
    %v6773 = vsub.f32 %v6577, %v6716
    %v6774 = vsub.f32 %v6578, %v6717
    %v6775 = vsub.f32 %v6579, %v6717
    %v6776 = vsub.f32 %v6580, %v6718
    %v6777 = vsub.f32 %v6581, %v6718
    %v6778 = vsub.f32 %v6582, %v6719
    %v6779 = vsub.f32 %v6583, %v6719
    %v6780 = vsub.f32 %v6584, %v6720
    %v6781 = vsub.f32 %v6585, %v6720
    %v6782 = vsub.f32 %v6586, %v6721
    %v6783 = vsub.f32 %v6587, %v6721
    %v6784 = vsub.f32 %v6588, %v6722
    %v6785 = vsub.f32 %v6589, %v6722
    %v6786 = vsub.f32 %v6590, %v6723
    %v6787 = vsub.f32 %v6591, %v6723
    %v6788 = vmul.f32 %v6724, %v6724
    %v6789 = vmul.f32 %v6725, %v6725
    %v6790 = vmul.f32 %v6726, %v6726
    %v6791 = vmul.f32 %v6727, %v6727
    %v6792 = vmul.f32 %v6728, %v6728
    %v6793 = vmul.f32 %v6729, %v6729
    %v6794 = vmul.f32 %v6730, %v6730
    %v6795 = vmul.f32 %v6731, %v6731
    %v6796 = vmul.f32 %v6732, %v6732
    %v6797 = vmul.f32 %v6733, %v6733
    %v6798 = vmul.f32 %v6734, %v6734
    %v6799 = vmul.f32 %v6735, %v6735
    %v6800 = vmul.f32 %v6736, %v6736
    %v6801 = vmul.f32 %v6737, %v6737
    %v6802 = vmul.f32 %v6738, %v6738
    %v6803 = vmul.f32 %v6739, %v6739
    %v6804 = vmul.f32 %v6740, %v6740
    %v6805 = vmul.f32 %v6741, %v6741
    %v6806 = vmul.f32 %v6742, %v6742
    %v6807 = vmul.f32 %v6743, %v6743
    %v6808 = vmul.f32 %v6744, %v6744
    %v6809 = vmul.f32 %v6745, %v6745
    %v6810 = vmul.f32 %v6746, %v6746
    %v6811 = vmul.f32 %v6747, %v6747
    %v6812 = vmul.f32 %v6748, %v6748
    %v6813 = vmul.f32 %v6749, %v6749
    %v6814 = vmul.f32 %v6750, %v6750
    %v6815 = vmul.f32 %v6751, %v6751
    %v6816 = vmul.f32 %v6752, %v6752
    %v6817 = vmul.f32 %v6753, %v6753
    %v6818 = vmul.f32 %v6754, %v6754
    %v6819 = vmul.f32 %v6755, %v6755
    %v6820 = vmul.f32 %v6756, %v6756
    %v6821 = vmul.f32 %v6757, %v6757
    %v6822 = vmul.f32 %v6758, %v6758
    %v6823 = vmul.f32 %v6759, %v6759
    %v6824 = vmul.f32 %v6760, %v6760
    %v6825 = vmul.f32 %v6761, %v6761
    %v6826 = vmul.f32 %v6762, %v6762
    %v6827 = vmul.f32 %v6763, %v6763
    %v6828 = vmul.f32 %v6764, %v6764
    %v6829 = vmul.f32 %v6765, %v6765
    %v6830 = vmul.f32 %v6766, %v6766
    %v6831 = vmul.f32 %v6767, %v6767
    %v6832 = vmul.f32 %v6768, %v6768
    %v6833 = vmul.f32 %v6769, %v6769
    %v6834 = vmul.f32 %v6770, %v6770
    %v6835 = vmul.f32 %v6771, %v6771
    %v6836 = vmul.f32 %v6772, %v6772
    %v6837 = vmul.f32 %v6773, %v6773
    %v6838 = vmul.f32 %v6774, %v6774
    %v6839 = vmul.f32 %v6775, %v6775
    %v6840 = vmul.f32 %v6776, %v6776
    %v6841 = vmul.f32 %v6777, %v6777
    %v6842 = vmul.f32 %v6778, %v6778
    %v6843 = vmul.f32 %v6779, %v6779
    %v6844 = vmul.f32 %v6780, %v6780
    %v6845 = vmul.f32 %v6781, %v6781
    %v6846 = vmul.f32 %v6782, %v6782
    %v6847 = vmul.f32 %v6783, %v6783
    %v6848 = vmul.f32 %v6784, %v6784
    %v6849 = vmul.f32 %v6785, %v6785
    %v6850 = vmul.f32 %v6786, %v6786
    %v6851 = vmul.f32 %v6787, %v6787
    %v6852 = vadd.f32 %v6788, %v6789
    %6853 = vadd.xlane.f32.xlu0 %v6852
    %v6854 = vpop.xlane.xlu0 %6853
    %v6855 = vadd.f32 %v6790, %v6791
    %6856 = vadd.xlane.f32.xlu0 %v6855
    %v6857 = vpop.xlane.xlu0 %6856
    %v6858 = vadd.f32 %v6792, %v6793
    %6859 = vadd.xlane.f32.xlu0 %v6858
    %v6860 = vpop.xlane.xlu0 %6859
    %v6861 = vadd.f32 %v6794, %v6795
    %6862 = vadd.xlane.f32.xlu0 %v6861
    %v6863 = vpop.xlane.xlu0 %6862
    %v6864 = vadd.f32 %v6796, %v6797
    %6865 = vadd.xlane.f32.xlu0 %v6864
    %v6866 = vpop.xlane.xlu0 %6865
    %v6867 = vadd.f32 %v6798, %v6799
    %6868 = vadd.xlane.f32.xlu0 %v6867
    %v6869 = vpop.xlane.xlu0 %6868
    %v6870 = vadd.f32 %v6800, %v6801
    %6871 = vadd.xlane.f32.xlu0 %v6870
    %v6872 = vpop.xlane.xlu0 %6871
    %v6873 = vadd.f32 %v6802, %v6803
    %6874 = vadd.xlane.f32.xlu0 %v6873
    %v6875 = vpop.xlane.xlu0 %6874
    %v6876 = vadd.f32 %v6804, %v6805
    %6877 = vadd.xlane.f32.xlu0 %v6876
    %v6878 = vpop.xlane.xlu0 %6877
    %v6879 = vadd.f32 %v6806, %v6807
    %6880 = vadd.xlane.f32.xlu0 %v6879
    %v6881 = vpop.xlane.xlu0 %6880
    %v6882 = vadd.f32 %v6808, %v6809
    %6883 = vadd.xlane.f32.xlu0 %v6882
    %v6884 = vpop.xlane.xlu0 %6883
    %v6885 = vadd.f32 %v6810, %v6811
    %6886 = vadd.xlane.f32.xlu0 %v6885
    %v6887 = vpop.xlane.xlu0 %6886
    %v6888 = vadd.f32 %v6812, %v6813
    %6889 = vadd.xlane.f32.xlu0 %v6888
    %v6890 = vpop.xlane.xlu0 %6889
    %v6891 = vadd.f32 %v6814, %v6815
    %6892 = vadd.xlane.f32.xlu0 %v6891
    %v6893 = vpop.xlane.xlu0 %6892
    %v6894 = vadd.f32 %v6816, %v6817
    %6895 = vadd.xlane.f32.xlu0 %v6894
    %v6896 = vpop.xlane.xlu0 %6895
    %v6897 = vadd.f32 %v6818, %v6819
    %6898 = vadd.xlane.f32.xlu0 %v6897
    %v6899 = vpop.xlane.xlu0 %6898
    %v6900 = vadd.f32 %v6820, %v6821
    %6901 = vadd.xlane.f32.xlu0 %v6900
    %v6902 = vpop.xlane.xlu0 %6901
    %v6903 = vadd.f32 %v6822, %v6823
    %6904 = vadd.xlane.f32.xlu0 %v6903
    %v6905 = vpop.xlane.xlu0 %6904
    %v6906 = vadd.f32 %v6824, %v6825
    %6907 = vadd.xlane.f32.xlu0 %v6906
    %v6908 = vpop.xlane.xlu0 %6907
    %v6909 = vadd.f32 %v6826, %v6827
    %6910 = vadd.xlane.f32.xlu0 %v6909
    %v6911 = vpop.xlane.xlu0 %6910
    %v6912 = vadd.f32 %v6828, %v6829
    %6913 = vadd.xlane.f32.xlu0 %v6912
    %v6914 = vpop.xlane.xlu0 %6913
    %v6915 = vadd.f32 %v6830, %v6831
    %6916 = vadd.xlane.f32.xlu0 %v6915
    %v6917 = vpop.xlane.xlu0 %6916
    %v6918 = vadd.f32 %v6832, %v6833
    %6919 = vadd.xlane.f32.xlu0 %v6918
    %v6920 = vpop.xlane.xlu0 %6919
    %v6921 = vadd.f32 %v6834, %v6835
    %6922 = vadd.xlane.f32.xlu0 %v6921
    %v6923 = vpop.xlane.xlu0 %6922
    %v6924 = vadd.f32 %v6836, %v6837
    %6925 = vadd.xlane.f32.xlu0 %v6924
    %v6926 = vpop.xlane.xlu0 %6925
    %v6927 = vadd.f32 %v6838, %v6839
    %6928 = vadd.xlane.f32.xlu0 %v6927
    %v6929 = vpop.xlane.xlu0 %6928
    %v6930 = vadd.f32 %v6840, %v6841
    %6931 = vadd.xlane.f32.xlu0 %v6930
    %v6932 = vpop.xlane.xlu0 %6931
    %v6933 = vadd.f32 %v6842, %v6843
    %6934 = vadd.xlane.f32.xlu0 %v6933
    %v6935 = vpop.xlane.xlu0 %6934
    %v6936 = vadd.f32 %v6844, %v6845
    %6937 = vadd.xlane.f32.xlu0 %v6936
    %v6938 = vpop.xlane.xlu0 %6937
    %v6939 = vadd.f32 %v6846, %v6847
    %6940 = vadd.xlane.f32.xlu0 %v6939
    %v6941 = vpop.xlane.xlu0 %6940
    %v6942 = vadd.f32 %v6848, %v6849
    %6943 = vadd.xlane.f32.xlu0 %v6942
    %v6944 = vpop.xlane.xlu0 %6943
    %v6945 = vadd.f32 %v6850, %v6851
    %6946 = vadd.xlane.f32.xlu0 %v6945
    %v6947 = vpop.xlane.xlu0 %6946
    %v6948 = vmul.f32 %v6854, %v1057
    %v6949 = vmul.f32 %v6857, %v1057
    %v6950 = vmul.f32 %v6860, %v1057
    %v6951 = vmul.f32 %v6863, %v1057
    %v6952 = vmul.f32 %v6866, %v1057
    %v6953 = vmul.f32 %v6869, %v1057
    %v6954 = vmul.f32 %v6872, %v1057
    %v6955 = vmul.f32 %v6875, %v1057
    %v6956 = vmul.f32 %v6878, %v1057
    %v6957 = vmul.f32 %v6881, %v1057
    %v6958 = vmul.f32 %v6884, %v1057
    %v6959 = vmul.f32 %v6887, %v1057
    %v6960 = vmul.f32 %v6890, %v1057
    %v6961 = vmul.f32 %v6893, %v1057
    %v6962 = vmul.f32 %v6896, %v1057
    %v6963 = vmul.f32 %v6899, %v1057
    %v6964 = vmul.f32 %v6902, %v1057
    %v6965 = vmul.f32 %v6905, %v1057
    %v6966 = vmul.f32 %v6908, %v1057
    %v6967 = vmul.f32 %v6911, %v1057
    %v6968 = vmul.f32 %v6914, %v1057
    %v6969 = vmul.f32 %v6917, %v1057
    %v6970 = vmul.f32 %v6920, %v1057
    %v6971 = vmul.f32 %v6923, %v1057
    %v6972 = vmul.f32 %v6926, %v1057
    %v6973 = vmul.f32 %v6929, %v1057
    %v6974 = vmul.f32 %v6932, %v1057
    %v6975 = vmul.f32 %v6935, %v1057
    %v6976 = vmul.f32 %v6938, %v1057
    %v6977 = vmul.f32 %v6941, %v1057
    %v6978 = vmul.f32 %v6944, %v1057
    %v6979 = vmul.f32 %v6947, %v1057
    %v6980 = vadd.f32 %v6948, 1e-05
    %v6981 = vadd.f32 %v6949, 1e-05
    %v6982 = vadd.f32 %v6950, 1e-05
    %v6983 = vadd.f32 %v6951, 1e-05
    %v6984 = vadd.f32 %v6952, 1e-05
    %v6985 = vadd.f32 %v6953, 1e-05
    %v6986 = vadd.f32 %v6954, 1e-05
    %v6987 = vadd.f32 %v6955, 1e-05
    %v6988 = vadd.f32 %v6956, 1e-05
    %v6989 = vadd.f32 %v6957, 1e-05
    %v6990 = vadd.f32 %v6958, 1e-05
    %v6991 = vadd.f32 %v6959, 1e-05
    %v6992 = vadd.f32 %v6960, 1e-05
    %v6993 = vadd.f32 %v6961, 1e-05
    %v6994 = vadd.f32 %v6962, 1e-05
    %v6995 = vadd.f32 %v6963, 1e-05
    %v6996 = vadd.f32 %v6964, 1e-05
    %v6997 = vadd.f32 %v6965, 1e-05
    %v6998 = vadd.f32 %v6966, 1e-05
    %v6999 = vadd.f32 %v6967, 1e-05
    %v7000 = vadd.f32 %v6968, 1e-05
    %v7001 = vadd.f32 %v6969, 1e-05
    %v7002 = vadd.f32 %v6970, 1e-05
    %v7003 = vadd.f32 %v6971, 1e-05
    %v7004 = vadd.f32 %v6972, 1e-05
    %v7005 = vadd.f32 %v6973, 1e-05
    %v7006 = vadd.f32 %v6974, 1e-05
    %v7007 = vadd.f32 %v6975, 1e-05
    %v7008 = vadd.f32 %v6976, 1e-05
    %v7009 = vadd.f32 %v6977, 1e-05
    %v7010 = vadd.f32 %v6978, 1e-05
    %v7011 = vadd.f32 %v6979, 1e-05
    %v7012 = vrsqrt.pop %v6980
    %v7013 = vrsqrt.pop %v6981
    %v7014 = vrsqrt.pop %v6982
    %v7015 = vrsqrt.pop %v6983
    %v7016 = vrsqrt.pop %v6984
    %v7017 = vrsqrt.pop %v6985
    %v7018 = vrsqrt.pop %v6986
    %v7019 = vrsqrt.pop %v6987
    %v7020 = vrsqrt.pop %v6988
    %v7021 = vrsqrt.pop %v6989
    %v7022 = vrsqrt.pop %v6990
    %v7023 = vrsqrt.pop %v6991
    %v7024 = vrsqrt.pop %v6992
    %v7025 = vrsqrt.pop %v6993
    %v7026 = vrsqrt.pop %v6994
    %v7027 = vrsqrt.pop %v6995
    %v7028 = vrsqrt.pop %v6996
    %v7029 = vrsqrt.pop %v6997
    %v7030 = vrsqrt.pop %v6998
    %v7031 = vrsqrt.pop %v6999
    %v7032 = vrsqrt.pop %v7000
    %v7033 = vrsqrt.pop %v7001
    %v7034 = vrsqrt.pop %v7002
    %v7035 = vrsqrt.pop %v7003
    %v7036 = vrsqrt.pop %v7004
    %v7037 = vrsqrt.pop %v7005
    %v7038 = vrsqrt.pop %v7006
    %v7039 = vrsqrt.pop %v7007
    %v7040 = vrsqrt.pop %v7008
    %v7041 = vrsqrt.pop %v7009
    %v7042 = vrsqrt.pop %v7010
    %v7043 = vrsqrt.pop %v7011
    %v7044 = vmul.f32 %v6724, %v7012
    %v7045 = vmul.f32 %v6725, %v7012
    %v7046 = vmul.f32 %v6726, %v7013
    %v7047 = vmul.f32 %v6727, %v7013
    %v7048 = vmul.f32 %v6728, %v7014
    %v7049 = vmul.f32 %v6729, %v7014
    %v7050 = vmul.f32 %v6730, %v7015
    %v7051 = vmul.f32 %v6731, %v7015
    %v7052 = vmul.f32 %v6732, %v7016
    %v7053 = vmul.f32 %v6733, %v7016
    %v7054 = vmul.f32 %v6734, %v7017
    %v7055 = vmul.f32 %v6735, %v7017
    %v7056 = vmul.f32 %v6736, %v7018
    %v7057 = vmul.f32 %v6737, %v7018
    %v7058 = vmul.f32 %v6738, %v7019
    %v7059 = vmul.f32 %v6739, %v7019
    %v7060 = vmul.f32 %v6740, %v7020
    %v7061 = vmul.f32 %v6741, %v7020
    %v7062 = vmul.f32 %v6742, %v7021
    %v7063 = vmul.f32 %v6743, %v7021
    %v7064 = vmul.f32 %v6744, %v7022
    %v7065 = vmul.f32 %v6745, %v7022
    %v7066 = vmul.f32 %v6746, %v7023
    %v7067 = vmul.f32 %v6747, %v7023
    %v7068 = vmul.f32 %v6748, %v7024
    %v7069 = vmul.f32 %v6749, %v7024
    %v7070 = vmul.f32 %v6750, %v7025
    %v7071 = vmul.f32 %v6751, %v7025
    %v7072 = vmul.f32 %v6752, %v7026
    %v7073 = vmul.f32 %v6753, %v7026
    %v7074 = vmul.f32 %v6754, %v7027
    %v7075 = vmul.f32 %v6755, %v7027
    %v7076 = vmul.f32 %v6756, %v7028
    %v7077 = vmul.f32 %v6757, %v7028
    %v7078 = vmul.f32 %v6758, %v7029
    %v7079 = vmul.f32 %v6759, %v7029
    %v7080 = vmul.f32 %v6760, %v7030
    %v7081 = vmul.f32 %v6761, %v7030
    %v7082 = vmul.f32 %v6762, %v7031
    %v7083 = vmul.f32 %v6763, %v7031
    %v7084 = vmul.f32 %v6764, %v7032
    %v7085 = vmul.f32 %v6765, %v7032
    %v7086 = vmul.f32 %v6766, %v7033
    %v7087 = vmul.f32 %v6767, %v7033
    %v7088 = vmul.f32 %v6768, %v7034
    %v7089 = vmul.f32 %v6769, %v7034
    %v7090 = vmul.f32 %v6770, %v7035
    %v7091 = vmul.f32 %v6771, %v7035
    %v7092 = vmul.f32 %v6772, %v7036
    %v7093 = vmul.f32 %v6773, %v7036
    %v7094 = vmul.f32 %v6774, %v7037
    %v7095 = vmul.f32 %v6775, %v7037
    %v7096 = vmul.f32 %v6776, %v7038
    %v7097 = vmul.f32 %v6777, %v7038
    %v7098 = vmul.f32 %v6778, %v7039
    %v7099 = vmul.f32 %v6779, %v7039
    %v7100 = vmul.f32 %v6780, %v7040
    %v7101 = vmul.f32 %v6781, %v7040
    %v7102 = vmul.f32 %v6782, %v7041
    %v7103 = vmul.f32 %v6783, %v7041
    %v7104 = vmul.f32 %v6784, %v7042
    %v7105 = vmul.f32 %v6785, %v7042
    %v7106 = vmul.f32 %v6786, %v7043
    %v7107 = vmul.f32 %v6787, %v7043
    %v7109 = vlaneseq
    %v7110 = vshrl.u32 %v7109, 7
    %v7111 = vsub.s32 0, %v7110
    %v7112 = vrot.slane %v6593, %v7111
    %v7113 = vlaneseq
    %v7114 = vshrl.u32 %v7113, 7
    %v7115 = vsub.s32 1, %v7114
    %v7116 = vrot.slane %v6593, %v7115
    %v7119 = vmul.f32 %v7044, %v7112
    %v7120 = vmul.f32 %v7045, %v7116
    %v7121 = vmul.f32 %v7046, %v7112
    %v7122 = vmul.f32 %v7047, %v7116
    %v7123 = vmul.f32 %v7048, %v7112
    %v7124 = vmul.f32 %v7049, %v7116
    %v7125 = vmul.f32 %v7050, %v7112
    %v7126 = vmul.f32 %v7051, %v7116
    %v7127 = vmul.f32 %v7052, %v7112
    %v7128 = vmul.f32 %v7053, %v7116
    %v7129 = vmul.f32 %v7054, %v7112
    %v7130 = vmul.f32 %v7055, %v7116
    %v7131 = vmul.f32 %v7056, %v7112
    %v7132 = vmul.f32 %v7057, %v7116
    %v7133 = vmul.f32 %v7058, %v7112
    %v7134 = vmul.f32 %v7059, %v7116
    %v7135 = vmul.f32 %v7060, %v7112
    %v7136 = vmul.f32 %v7061, %v7116
    %v7137 = vmul.f32 %v7062, %v7112
    %v7138 = vmul.f32 %v7063, %v7116
    %v7139 = vmul.f32 %v7064, %v7112
    %v7140 = vmul.f32 %v7065, %v7116
    %v7141 = vmul.f32 %v7066, %v7112
    %v7142 = vmul.f32 %v7067, %v7116
    %v7143 = vmul.f32 %v7068, %v7112
    %v7144 = vmul.f32 %v7069, %v7116
    %v7145 = vmul.f32 %v7070, %v7112
    %v7146 = vmul.f32 %v7071, %v7116
    %v7147 = vmul.f32 %v7072, %v7112
    %v7148 = vmul.f32 %v7073, %v7116
    %v7149 = vmul.f32 %v7074, %v7112
    %v7150 = vmul.f32 %v7075, %v7116
    %v7151 = vmul.f32 %v7076, %v7112
    %v7152 = vmul.f32 %v7077, %v7116
    %v7153 = vmul.f32 %v7078, %v7112
    %v7154 = vmul.f32 %v7079, %v7116
    %v7155 = vmul.f32 %v7080, %v7112
    %v7156 = vmul.f32 %v7081, %v7116
    %v7157 = vmul.f32 %v7082, %v7112
    %v7158 = vmul.f32 %v7083, %v7116
    %v7159 = vmul.f32 %v7084, %v7112
    %v7160 = vmul.f32 %v7085, %v7116
    %v7161 = vmul.f32 %v7086, %v7112
    %v7162 = vmul.f32 %v7087, %v7116
    %v7163 = vmul.f32 %v7088, %v7112
    %v7164 = vmul.f32 %v7089, %v7116
    %v7165 = vmul.f32 %v7090, %v7112
    %v7166 = vmul.f32 %v7091, %v7116
    %v7167 = vmul.f32 %v7092, %v7112
    %v7168 = vmul.f32 %v7093, %v7116
    %v7169 = vmul.f32 %v7094, %v7112
    %v7170 = vmul.f32 %v7095, %v7116
    %v7171 = vmul.f32 %v7096, %v7112
    %v7172 = vmul.f32 %v7097, %v7116
    %v7173 = vmul.f32 %v7098, %v7112
    %v7174 = vmul.f32 %v7099, %v7116
    %v7175 = vmul.f32 %v7100, %v7112
    %v7176 = vmul.f32 %v7101, %v7116
    %v7177 = vmul.f32 %v7102, %v7112
    %v7178 = vmul.f32 %v7103, %v7116
    %v7179 = vmul.f32 %v7104, %v7112
    %v7180 = vmul.f32 %v7105, %v7116
    %v7181 = vmul.f32 %v7106, %v7112
    %v7182 = vmul.f32 %v7107, %v7116
    %v7184 = vlaneseq
    %v7185 = vshrl.u32 %v7184, 7
    %v7186 = vsub.s32 0, %v7185
    %v7187 = vrot.slane %v6595, %v7186
    %v7188 = vlaneseq
    %v7189 = vshrl.u32 %v7188, 7
    %v7190 = vsub.s32 1, %v7189
    %v7191 = vrot.slane %v6595, %v7190
    %v7194 = vadd.f32 %v7119, %v7187
    %v7195 = vadd.f32 %v7120, %v7191
    %v7196 = vadd.f32 %v7121, %v7187
    %v7197 = vadd.f32 %v7122, %v7191
    %v7198 = vadd.f32 %v7123, %v7187
    %v7199 = vadd.f32 %v7124, %v7191
    %v7200 = vadd.f32 %v7125, %v7187
    %v7201 = vadd.f32 %v7126, %v7191
    %v7202 = vadd.f32 %v7127, %v7187
    %v7203 = vadd.f32 %v7128, %v7191
    %v7204 = vadd.f32 %v7129, %v7187
    %v7205 = vadd.f32 %v7130, %v7191
    %v7206 = vadd.f32 %v7131, %v7187
    %v7207 = vadd.f32 %v7132, %v7191
    %v7208 = vadd.f32 %v7133, %v7187
    %v7209 = vadd.f32 %v7134, %v7191
    %v7210 = vadd.f32 %v7135, %v7187
    %v7211 = vadd.f32 %v7136, %v7191
    %v7212 = vadd.f32 %v7137, %v7187
    %v7213 = vadd.f32 %v7138, %v7191
    %v7214 = vadd.f32 %v7139, %v7187
    %v7215 = vadd.f32 %v7140, %v7191
    %v7216 = vadd.f32 %v7141, %v7187
    %v7217 = vadd.f32 %v7142, %v7191
    %v7218 = vadd.f32 %v7143, %v7187
    %v7219 = vadd.f32 %v7144, %v7191
    %v7220 = vadd.f32 %v7145, %v7187
    %v7221 = vadd.f32 %v7146, %v7191
    %v7222 = vadd.f32 %v7147, %v7187
    %v7223 = vadd.f32 %v7148, %v7191
    %v7224 = vadd.f32 %v7149, %v7187
    %v7225 = vadd.f32 %v7150, %v7191
    %v7226 = vadd.f32 %v7151, %v7187
    %v7227 = vadd.f32 %v7152, %v7191
    %v7228 = vadd.f32 %v7153, %v7187
    %v7229 = vadd.f32 %v7154, %v7191
    %v7230 = vadd.f32 %v7155, %v7187
    %v7231 = vadd.f32 %v7156, %v7191
    %v7232 = vadd.f32 %v7157, %v7187
    %v7233 = vadd.f32 %v7158, %v7191
    %v7234 = vadd.f32 %v7159, %v7187
    %v7235 = vadd.f32 %v7160, %v7191
    %v7236 = vadd.f32 %v7161, %v7187
    %v7237 = vadd.f32 %v7162, %v7191
    %v7238 = vadd.f32 %v7163, %v7187
    %v7239 = vadd.f32 %v7164, %v7191
    %v7240 = vadd.f32 %v7165, %v7187
    %v7241 = vadd.f32 %v7166, %v7191
    %v7242 = vadd.f32 %v7167, %v7187
    %v7243 = vadd.f32 %v7168, %v7191
    %v7244 = vadd.f32 %v7169, %v7187
    %v7245 = vadd.f32 %v7170, %v7191
    %v7246 = vadd.f32 %v7171, %v7187
    %v7247 = vadd.f32 %v7172, %v7191
    %v7248 = vadd.f32 %v7173, %v7187
    %v7249 = vadd.f32 %v7174, %v7191
    %v7250 = vadd.f32 %v7175, %v7187
    %v7251 = vadd.f32 %v7176, %v7191
    %v7252 = vadd.f32 %v7177, %v7187
    %v7253 = vadd.f32 %v7178, %v7191
    %v7254 = vadd.f32 %v7179, %v7187
    %v7255 = vadd.f32 %v7180, %v7191
    %v7256 = vadd.f32 %v7181, %v7187
    %v7257 = vadd.f32 %v7182, %v7191
    %v7258 = vpack.c.bf16 %v7196, %v7194
    %v7259 = vpack.c.bf16 %v7197, %v7195
    %v7260 = vpack.c.bf16 %v7200, %v7198
    %v7261 = vpack.c.bf16 %v7201, %v7199
    %v7262 = vpack.c.bf16 %v7204, %v7202
    %v7263 = vpack.c.bf16 %v7205, %v7203
    %v7264 = vpack.c.bf16 %v7208, %v7206
    %v7265 = vpack.c.bf16 %v7209, %v7207
    %v7266 = vpack.c.bf16 %v7212, %v7210
    %v7267 = vpack.c.bf16 %v7213, %v7211
    %v7268 = vpack.c.bf16 %v7216, %v7214
    %v7269 = vpack.c.bf16 %v7217, %v7215
    %v7270 = vpack.c.bf16 %v7220, %v7218
    %v7271 = vpack.c.bf16 %v7221, %v7219
    %v7272 = vpack.c.bf16 %v7224, %v7222
    %v7273 = vpack.c.bf16 %v7225, %v7223
    %v7274 = vpack.c.bf16 %v7228, %v7226
    %v7275 = vpack.c.bf16 %v7229, %v7227
    %v7276 = vpack.c.bf16 %v7232, %v7230
    %v7277 = vpack.c.bf16 %v7233, %v7231
    %v7278 = vpack.c.bf16 %v7236, %v7234
    %v7279 = vpack.c.bf16 %v7237, %v7235
    %v7280 = vpack.c.bf16 %v7240, %v7238
    %v7281 = vpack.c.bf16 %v7241, %v7239
    %v7282 = vpack.c.bf16 %v7244, %v7242
    %v7283 = vpack.c.bf16 %v7245, %v7243
    %v7284 = vpack.c.bf16 %v7248, %v7246
    %v7285 = vpack.c.bf16 %v7249, %v7247
    %v7286 = vpack.c.bf16 %v7252, %v7250
    %v7287 = vpack.c.bf16 %v7253, %v7251
    %v7288 = vpack.c.bf16 %v7256, %v7254
    %v7289 = vpack.c.bf16 %v7257, %v7255
    %s7290 = scalar_lea.vmem [#allocation2], 512
    %v7291 = vld [vmem:[%s7290] sm:$0xff]
    %v7292 = vld [vmem:[%s7290 + $0x8] sm:$0xff]
    %v7293 = vld [vmem:[%s7290 + $0x10] sm:$0xff]
    %v7294 = vld [vmem:[%s7290 + $0x18] sm:$0xff]
    %v7295 = vld [vmem:[%s7290 + $0x20] sm:$0xff]
    %v7296 = vld [vmem:[%s7290 + $0x28] sm:$0xff]
    %v7297 = vld [vmem:[%s7290 + $0x30] sm:$0xff]
    %v7298 = vld [vmem:[%s7290 + $0x38] sm:$0xff]
    %v7299 = vld [vmem:[%s7290 + $0x40] sm:$0xff]
    %v7300 = vld [vmem:[%s7290 + $0x48] sm:$0xff]
    %v7301 = vld [vmem:[%s7290 + $0x50] sm:$0xff]
    %v7302 = vld [vmem:[%s7290 + $0x58] sm:$0xff]
    %v7303 = vld [vmem:[%s7290 + $0x60] sm:$0xff]
    %v7304 = vld [vmem:[%s7290 + $0x68] sm:$0xff]
    %v7305 = vld [vmem:[%s7290 + $0x70] sm:$0xff]
    %v7306 = vld [vmem:[%s7290 + $0x78] sm:$0xff]
    %v7307 = vld [vmem:[%s7290 + $0x80] sm:$0xff]
    %v7308 = vld [vmem:[%s7290 + $0x88] sm:$0xff]
    %v7309 = vld [vmem:[%s7290 + $0x90] sm:$0xff]
    %v7310 = vld [vmem:[%s7290 + $0x98] sm:$0xff]
    %v7311 = vld [vmem:[%s7290 + $0xa0] sm:$0xff]
    %v7312 = vld [vmem:[%s7290 + $0xa8] sm:$0xff]
    %v7313 = vld [vmem:[%s7290 + $0xb0] sm:$0xff]
    %v7314 = vld [vmem:[%s7290 + $0xb8] sm:$0xff]
    %v7315 = vld [vmem:[%s7290 + $0xc0] sm:$0xff]
    %v7316 = vld [vmem:[%s7290 + $0xc8] sm:$0xff]
    %v7317 = vld [vmem:[%s7290 + $0xd0] sm:$0xff]
    %v7318 = vld [vmem:[%s7290 + $0xd8] sm:$0xff]
    %v7319 = vld [vmem:[%s7290 + $0xe0] sm:$0xff]
    %v7320 = vld [vmem:[%s7290 + $0xe8] sm:$0xff]
    %v7321 = vld [vmem:[%s7290 + $0xf0] sm:$0xff]
    %v7322 = vld [vmem:[%s7290 + $0xf8] sm:$0xff]
    %s7323 = scalar_lea.vmem %s8, 4
    %v7324 = vld [vmem:[%s7323] sm:$0x3]
    %v7326 = vlaneseq
    %v7327 = vshrl.u32 %v7326, 7
    %v7328 = vsub.s32 0, %v7327
    %v7329 = vrot.slane %v7324, %v7328
    %v7330 = vlaneseq
    %v7331 = vshrl.u32 %v7330, 7
    %v7332 = vsub.s32 1, %v7331
    %v7333 = vrot.slane %v7324, %v7332
    %v7368 = vunpack.c.l.b16 %v7291
    %v7369 = vunpack.c.h.b16 %v7291
    %v7370 = vunpack.c.l.b16 %v7292
    %v7371 = vunpack.c.h.b16 %v7292
    %v7372 = vunpack.c.l.b16 %v7293
    %v7373 = vunpack.c.h.b16 %v7293
    %v7374 = vunpack.c.l.b16 %v7294
    %v7375 = vunpack.c.h.b16 %v7294
    %v7376 = vunpack.c.l.b16 %v7295
    %v7377 = vunpack.c.h.b16 %v7295
    %v7378 = vunpack.c.l.b16 %v7296
    %v7379 = vunpack.c.h.b16 %v7296
    %v7380 = vunpack.c.l.b16 %v7297
    %v7381 = vunpack.c.h.b16 %v7297
    %v7382 = vunpack.c.l.b16 %v7298
    %v7383 = vunpack.c.h.b16 %v7298
    %v7384 = vunpack.c.l.b16 %v7299
    %v7385 = vunpack.c.h.b16 %v7299
    %v7386 = vunpack.c.l.b16 %v7300
    %v7387 = vunpack.c.h.b16 %v7300
    %v7388 = vunpack.c.l.b16 %v7301
    %v7389 = vunpack.c.h.b16 %v7301
    %v7390 = vunpack.c.l.b16 %v7302
    %v7391 = vunpack.c.h.b16 %v7302
    %v7392 = vunpack.c.l.b16 %v7303
    %v7393 = vunpack.c.h.b16 %v7303
    %v7394 = vunpack.c.l.b16 %v7304
    %v7395 = vunpack.c.h.b16 %v7304
    %v7396 = vunpack.c.l.b16 %v7305
    %v7397 = vunpack.c.h.b16 %v7305
    %v7398 = vunpack.c.l.b16 %v7306
    %v7399 = vunpack.c.h.b16 %v7306
    %v7400 = vunpack.c.l.b16 %v7307
    %v7401 = vunpack.c.h.b16 %v7307
    %v7402 = vunpack.c.l.b16 %v7308
    %v7403 = vunpack.c.h.b16 %v7308
    %v7404 = vunpack.c.l.b16 %v7309
    %v7405 = vunpack.c.h.b16 %v7309
    %v7406 = vunpack.c.l.b16 %v7310
    %v7407 = vunpack.c.h.b16 %v7310
    %v7408 = vunpack.c.l.b16 %v7311
    %v7409 = vunpack.c.h.b16 %v7311
    %v7410 = vunpack.c.l.b16 %v7312
    %v7411 = vunpack.c.h.b16 %v7312
    %v7412 = vunpack.c.l.b16 %v7313
    %v7413 = vunpack.c.h.b16 %v7313
    %v7414 = vunpack.c.l.b16 %v7314
    %v7415 = vunpack.c.h.b16 %v7314
    %v7416 = vunpack.c.l.b16 %v7315
    %v7417 = vunpack.c.h.b16 %v7315
    %v7418 = vunpack.c.l.b16 %v7316
    %v7419 = vunpack.c.h.b16 %v7316
    %v7420 = vunpack.c.l.b16 %v7317
    %v7421 = vunpack.c.h.b16 %v7317
    %v7422 = vunpack.c.l.b16 %v7318
    %v7423 = vunpack.c.h.b16 %v7318
    %v7424 = vunpack.c.l.b16 %v7319
    %v7425 = vunpack.c.h.b16 %v7319
    %v7426 = vunpack.c.l.b16 %v7320
    %v7427 = vunpack.c.h.b16 %v7320
    %v7428 = vunpack.c.l.b16 %v7321
    %v7429 = vunpack.c.h.b16 %v7321
    %v7430 = vunpack.c.l.b16 %v7322
    %v7431 = vunpack.c.h.b16 %v7322
    %v7432 = vpack.c.b16 %v7370, %v7368
    %v7433 = vpack.c.b16 %v7371, %v7369
    %v7434 = vpack.c.b16 %v7374, %v7372
    %v7435 = vpack.c.b16 %v7375, %v7373
    %v7436 = vpack.c.b16 %v7378, %v7376
    %v7437 = vpack.c.b16 %v7379, %v7377
    %v7438 = vpack.c.b16 %v7382, %v7380
    %v7439 = vpack.c.b16 %v7383, %v7381
    %v7440 = vpack.c.b16 %v7386, %v7384
    %v7441 = vpack.c.b16 %v7387, %v7385
    %v7442 = vpack.c.b16 %v7390, %v7388
    %v7443 = vpack.c.b16 %v7391, %v7389
    %v7444 = vpack.c.b16 %v7394, %v7392
    %v7445 = vpack.c.b16 %v7395, %v7393
    %v7446 = vpack.c.b16 %v7398, %v7396
    %v7447 = vpack.c.b16 %v7399, %v7397
    %v7448 = vpack.c.b16 %v7402, %v7400
    %v7449 = vpack.c.b16 %v7403, %v7401
    %v7450 = vpack.c.b16 %v7406, %v7404
    %v7451 = vpack.c.b16 %v7407, %v7405
    %v7452 = vpack.c.b16 %v7410, %v7408
    %v7453 = vpack.c.b16 %v7411, %v7409
    %v7454 = vpack.c.b16 %v7414, %v7412
    %v7455 = vpack.c.b16 %v7415, %v7413
    %v7456 = vpack.c.b16 %v7418, %v7416
    %v7457 = vpack.c.b16 %v7419, %v7417
    %v7458 = vpack.c.b16 %v7422, %v7420
    %v7459 = vpack.c.b16 %v7423, %v7421
    %v7460 = vpack.c.b16 %v7426, %v7424
    %v7461 = vpack.c.b16 %v7427, %v7425
    %v7462 = vpack.c.b16 %v7430, %v7428
    %v7463 = vpack.c.b16 %v7431, %v7429
    %7496 = vmatprep.subr.bf16.mxu0 %v7433
    %7497 = vmatpush1.bf16.msra.mxu0 %v7432
    %7498 = vmatprep.subr.bf16.mxu0 %v7435
    %7499 = vmatpush1.bf16.msra.mxu0 %v7434
    %7500 = vmatprep.subr.bf16.mxu0 %v7437
    %7501 = vmatpush1.bf16.msra.mxu0 %v7436
    %7502 = vmatprep.subr.bf16.mxu0 %v7439
    %7503 = vmatpush1.bf16.msra.mxu0 %v7438
    %7504 = vmatprep.subr.bf16.mxu0 %v7441
    %7505 = vmatpush1.bf16.msra.mxu0 %v7440
    %7506 = vmatprep.subr.bf16.mxu0 %v7443
    %7507 = vmatpush1.bf16.msra.mxu0 %v7442
    %7508 = vmatprep.subr.bf16.mxu0 %v7445
    %7509 = vmatpush1.bf16.msra.mxu0 %v7444
    %7510 = vmatprep.subr.bf16.mxu0 %v7447
    %7511 = vmatpush1.bf16.msra.mxu0 %v7446
    %7512 = vmatprep.subr.bf16.mxu0 %v7449
    %7513 = vmatpush1.bf16.msra.mxu0 %v7448
    %7514 = vmatprep.subr.bf16.mxu0 %v7451
    %7515 = vmatpush1.bf16.msra.mxu0 %v7450
    %7516 = vmatprep.subr.bf16.mxu0 %v7453
    %7517 = vmatpush1.bf16.msra.mxu0 %v7452
    %7518 = vmatprep.subr.bf16.mxu0 %v7455
    %7519 = vmatpush1.bf16.msra.mxu0 %v7454
    %7520 = vmatprep.subr.bf16.mxu0 %v7457
    %7521 = vmatpush1.bf16.msra.mxu0 %v7456
    %7522 = vmatprep.subr.bf16.mxu0 %v7459
    %7523 = vmatpush1.bf16.msra.mxu0 %v7458
    %7524 = vmatprep.subr.bf16.mxu0 %v7461
    %7525 = vmatpush1.bf16.msra.mxu0 %v7460
    %7526 = vmatprep.subr.bf16.mxu0 %v7463
    %7527 = vmatpush1.bf16.msra.mxu0 %v7462
    %7528 = vmatprep.mubr.bf16.mxu0 %v7259
    %7529 = vmatmul.mubr.bf16.gmra.mrb[0].mxu0 %v7258
    %v7530 = vpop.f32.mrb[0].mxu0
    %v7531 = vadd.f32 %v7329, %v7530
    %v7532 = vpop.f32.mrb[0].mxu0
    %v7533 = vadd.f32 %v7333, %v7532
    %v7534 = vpop.f32.mrb[0].mxu0
    %v7535 = vadd.f32 %v7329, %v7534
    %v7536 = vpop.f32.mrb[0].mxu0
    %v7537 = vadd.f32 %v7333, %v7536
    %7538 = vmatprep.mubr.bf16.mxu0 %v7261
    %7539 = vmatmul.mubr.bf16.gmra.mrb[0].mxu0 %v7260
    %v7540 = vpop.f32.mrb[0].mxu0
    %v7541 = vadd.f32 %v7329, %v7540
    %v7542 = vpop.f32.mrb[0].mxu0
    %v7543 = vadd.f32 %v7333, %v7542
    %v7544 = vpop.f32.mrb[0].mxu0
    %v7545 = vadd.f32 %v7329, %v7544
    %v7546 = vpop.f32.mrb[0].mxu0
    %v7547 = vadd.f32 %v7333, %v7546
    %7548 = vmatprep.mubr.bf16.mxu0 %v7263
    %7549 = vmatmul.mubr.bf16.gmra.mrb[0].mxu0 %v7262
    %v7550 = vpop.f32.mrb[0].mxu0
    %v7551 = vadd.f32 %v7329, %v7550
    %v7552 = vpop.f32.mrb[0].mxu0
    %v7553 = vadd.f32 %v7333, %v7552
    %v7554 = vpop.f32.mrb[0].mxu0
    %v7555 = vadd.f32 %v7329, %v7554
    %v7556 = vpop.f32.mrb[0].mxu0
    %v7557 = vadd.f32 %v7333, %v7556
    %7558 = vmatprep.mubr.bf16.mxu0 %v7265
    %7559 = vmatmul.mubr.bf16.gmra.mrb[0].mxu0 %v7264
    %v7560 = vpop.f32.mrb[0].mxu0
    %v7561 = vadd.f32 %v7329, %v7560
    %v7562 = vpop.f32.mrb[0].mxu0
    %v7563 = vadd.f32 %v7333, %v7562
    %v7564 = vpop.f32.mrb[0].mxu0
    %v7565 = vadd.f32 %v7329, %v7564
    %v7566 = vpop.f32.mrb[0].mxu0
    %v7567 = vadd.f32 %v7333, %v7566
    %7568 = vmatprep.mubr.bf16.mxu0 %v7267
    %7569 = vmatmul.mubr.bf16.gmra.mrb[0].mxu0 %v7266
    %v7570 = vpop.f32.mrb[0].mxu0
    %v7571 = vadd.f32 %v7329, %v7570
    %v7572 = vpop.f32.mrb[0].mxu0
    %v7573 = vadd.f32 %v7333, %v7572
    %v7574 = vpop.f32.mrb[0].mxu0
    %v7575 = vadd.f32 %v7329, %v7574
    %v7576 = vpop.f32.mrb[0].mxu0
    %v7577 = vadd.f32 %v7333, %v7576
    %7578 = vmatprep.mubr.bf16.mxu0 %v7269
    %7579 = vmatmul.mubr.bf16.gmra.mrb[0].mxu0 %v7268
    %v7580 = vpop.f32.mrb[0].mxu0
    %v7581 = vadd.f32 %v7329, %v7580
    %v7582 = vpop.f32.mrb[0].mxu0
    %v7583 = vadd.f32 %v7333, %v7582
    %v7584 = vpop.f32.mrb[0].mxu0
    %v7585 = vadd.f32 %v7329, %v7584
    %v7586 = vpop.f32.mrb[0].mxu0
    %v7587 = vadd.f32 %v7333, %v7586
    %7588 = vmatprep.mubr.bf16.mxu0 %v7271
    %7589 = vmatmul.mubr.bf16.gmra.mrb[0].mxu0 %v7270
    %v7590 = vpop.f32.mrb[0].mxu0
    %v7591 = vadd.f32 %v7329, %v7590
    %v7592 = vpop.f32.mrb[0].mxu0
    %v7593 = vadd.f32 %v7333, %v7592
    %v7594 = vpop.f32.mrb[0].mxu0
    %v7595 = vadd.f32 %v7329, %v7594
    %v7596 = vpop.f32.mrb[0].mxu0
    %v7597 = vadd.f32 %v7333, %v7596
    %7598 = vmatprep.mubr.bf16.mxu0 %v7273
    %7599 = vmatmul.mubr.bf16.gmra.mrb[0].mxu0 %v7272
    %v7600 = vpop.f32.mrb[0].mxu0
    %v7601 = vadd.f32 %v7329, %v7600
    %v7602 = vpop.f32.mrb[0].mxu0
    %v7603 = vadd.f32 %v7333, %v7602
    %v7604 = vpop.f32.mrb[0].mxu0
    %v7605 = vadd.f32 %v7329, %v7604
    %v7606 = vpop.f32.mrb[0].mxu0
    %v7607 = vadd.f32 %v7333, %v7606
    %7608 = vmatprep.mubr.bf16.mxu0 %v7275
    %7609 = vmatmul.mubr.bf16.gmra.mrb[0].mxu0 %v7274
    %v7610 = vpop.f32.mrb[0].mxu0
    %v7611 = vadd.f32 %v7329, %v7610
    %v7612 = vpop.f32.mrb[0].mxu0
    %v7613 = vadd.f32 %v7333, %v7612
    %v7614 = vpop.f32.mrb[0].mxu0
    %v7615 = vadd.f32 %v7329, %v7614
    %v7616 = vpop.f32.mrb[0].mxu0
    %v7617 = vadd.f32 %v7333, %v7616
    %7618 = vmatprep.mubr.bf16.mxu0 %v7277
    %7619 = vmatmul.mubr.bf16.gmra.mrb[0].mxu0 %v7276
    %v7620 = vpop.f32.mrb[0].mxu0
    %v7621 = vadd.f32 %v7329, %v7620
    %v7622 = vpop.f32.mrb[0].mxu0
    %v7623 = vadd.f32 %v7333, %v7622
    %v7624 = vpop.f32.mrb[0].mxu0
    %v7625 = vadd.f32 %v7329, %v7624
    %v7626 = vpop.f32.mrb[0].mxu0
    %v7627 = vadd.f32 %v7333, %v7626
    %7628 = vmatprep.mubr.bf16.mxu0 %v7279
    %7629 = vmatmul.mubr.bf16.gmra.mrb[0].mxu0 %v7278
    %v7630 = vpop.f32.mrb[0].mxu0
    %v7631 = vadd.f32 %v7329, %v7630
    %v7632 = vpop.f32.mrb[0].mxu0
    %v7633 = vadd.f32 %v7333, %v7632
    %v7634 = vpop.f32.mrb[0].mxu0
    %v7635 = vadd.f32 %v7329, %v7634
    %v7636 = vpop.f32.mrb[0].mxu0
    %v7637 = vadd.f32 %v7333, %v7636
    %7638 = vmatprep.mubr.bf16.mxu0 %v7281
    %7639 = vmatmul.mubr.bf16.gmra.mrb[0].mxu0 %v7280
    %v7640 = vpop.f32.mrb[0].mxu0
    %v7641 = vadd.f32 %v7329, %v7640
    %v7642 = vpop.f32.mrb[0].mxu0
    %v7643 = vadd.f32 %v7333, %v7642
    %v7644 = vpop.f32.mrb[0].mxu0
    %v7645 = vadd.f32 %v7329, %v7644
    %v7646 = vpop.f32.mrb[0].mxu0
    %v7647 = vadd.f32 %v7333, %v7646
    %7648 = vmatprep.mubr.bf16.mxu0 %v7283
    %7649 = vmatmul.mubr.bf16.gmra.mrb[0].mxu0 %v7282
    %v7650 = vpop.f32.mrb[0].mxu0
    %v7651 = vadd.f32 %v7329, %v7650
    %v7652 = vpop.f32.mrb[0].mxu0
    %v7653 = vadd.f32 %v7333, %v7652
    %v7654 = vpop.f32.mrb[0].mxu0
    %v7655 = vadd.f32 %v7329, %v7654
    %v7656 = vpop.f32.mrb[0].mxu0
    %v7657 = vadd.f32 %v7333, %v7656
    %7658 = vmatprep.mubr.bf16.mxu0 %v7285
    %7659 = vmatmul.mubr.bf16.gmra.mrb[0].mxu0 %v7284
    %v7660 = vpop.f32.mrb[0].mxu0
    %v7661 = vadd.f32 %v7329, %v7660
    %v7662 = vpop.f32.mrb[0].mxu0
    %v7663 = vadd.f32 %v7333, %v7662
    %v7664 = vpop.f32.mrb[0].mxu0
    %v7665 = vadd.f32 %v7329, %v7664
    %v7666 = vpop.f32.mrb[0].mxu0
    %v7667 = vadd.f32 %v7333, %v7666
    %7668 = vmatprep.mubr.bf16.mxu0 %v7287
    %7669 = vmatmul.mubr.bf16.gmra.mrb[0].mxu0 %v7286
    %v7670 = vpop.f32.mrb[0].mxu0
    %v7671 = vadd.f32 %v7329, %v7670
    %v7672 = vpop.f32.mrb[0].mxu0
    %v7673 = vadd.f32 %v7333, %v7672
    %v7674 = vpop.f32.mrb[0].mxu0
    %v7675 = vadd.f32 %v7329, %v7674
    %v7676 = vpop.f32.mrb[0].mxu0
    %v7677 = vadd.f32 %v7333, %v7676
    %7678 = vmatprep.mubr.bf16.mxu0 %v7289
    %7679 = vmatmul.mubr.bf16.gmra.mrb[0].mxu0 %v7288
    %v7680 = vpop.f32.mrb[0].mxu0
    %v7681 = vadd.f32 %v7329, %v7680
    %v7682 = vpop.f32.mrb[0].mxu0
    %v7683 = vadd.f32 %v7333, %v7682
    %v7684 = vpop.f32.mrb[0].mxu0
    %v7685 = vadd.f32 %v7329, %v7684
    %v7686 = vpop.f32.mrb[0].mxu0
    %v7687 = vadd.f32 %v7333, %v7686
    %7688 = vdwg.mxu0
    %v7689 = vmax.f32 %v7531, 0.0
    %v7690 = vmax.f32 %v7533, 0.0
    %v7691 = vmax.f32 %v7535, 0.0
    %v7692 = vmax.f32 %v7537, 0.0
    %v7693 = vmax.f32 %v7541, 0.0
    %v7694 = vmax.f32 %v7543, 0.0
    %v7695 = vmax.f32 %v7545, 0.0
    %v7696 = vmax.f32 %v7547, 0.0
    %v7697 = vmax.f32 %v7551, 0.0
    %v7698 = vmax.f32 %v7553, 0.0
    %v7699 = vmax.f32 %v7555, 0.0
    %v7700 = vmax.f32 %v7557, 0.0
    %v7701 = vmax.f32 %v7561, 0.0
    %v7702 = vmax.f32 %v7563, 0.0
    %v7703 = vmax.f32 %v7565, 0.0
    %v7704 = vmax.f32 %v7567, 0.0
    %v7705 = vmax.f32 %v7571, 0.0
    %v7706 = vmax.f32 %v7573, 0.0
    %v7707 = vmax.f32 %v7575, 0.0
    %v7708 = vmax.f32 %v7577, 0.0
    %v7709 = vmax.f32 %v7581, 0.0
    %v7710 = vmax.f32 %v7583, 0.0
    %v7711 = vmax.f32 %v7585, 0.0
    %v7712 = vmax.f32 %v7587, 0.0
    %v7713 = vmax.f32 %v7591, 0.0
    %v7714 = vmax.f32 %v7593, 0.0
    %v7715 = vmax.f32 %v7595, 0.0
    %v7716 = vmax.f32 %v7597, 0.0
    %v7717 = vmax.f32 %v7601, 0.0
    %v7718 = vmax.f32 %v7603, 0.0
    %v7719 = vmax.f32 %v7605, 0.0
    %v7720 = vmax.f32 %v7607, 0.0
    %v7721 = vmax.f32 %v7611, 0.0
    %v7722 = vmax.f32 %v7613, 0.0
    %v7723 = vmax.f32 %v7615, 0.0
    %v7724 = vmax.f32 %v7617, 0.0
    %v7725 = vmax.f32 %v7621, 0.0
    %v7726 = vmax.f32 %v7623, 0.0
    %v7727 = vmax.f32 %v7625, 0.0
    %v7728 = vmax.f32 %v7627, 0.0
    %v7729 = vmax.f32 %v7631, 0.0
    %v7730 = vmax.f32 %v7633, 0.0
    %v7731 = vmax.f32 %v7635, 0.0
    %v7732 = vmax.f32 %v7637, 0.0
    %v7733 = vmax.f32 %v7641, 0.0
    %v7734 = vmax.f32 %v7643, 0.0
    %v7735 = vmax.f32 %v7645, 0.0
    %v7736 = vmax.f32 %v7647, 0.0
    %v7737 = vmax.f32 %v7651, 0.0
    %v7738 = vmax.f32 %v7653, 0.0
    %v7739 = vmax.f32 %v7655, 0.0
    %v7740 = vmax.f32 %v7657, 0.0
    %v7741 = vmax.f32 %v7661, 0.0
    %v7742 = vmax.f32 %v7663, 0.0
    %v7743 = vmax.f32 %v7665, 0.0
    %v7744 = vmax.f32 %v7667, 0.0
    %v7745 = vmax.f32 %v7671, 0.0
    %v7746 = vmax.f32 %v7673, 0.0
    %v7747 = vmax.f32 %v7675, 0.0
    %v7748 = vmax.f32 %v7677, 0.0
    %v7749 = vmax.f32 %v7681, 0.0
    %v7750 = vmax.f32 %v7683, 0.0
    %v7751 = vmax.f32 %v7685, 0.0
    %v7752 = vmax.f32 %v7687, 0.0
    %s7753 = scalar_lea.vmem %s9, 4
    %v7754 = vld [vmem:[%s7753] sm:$0x3]
    %s7755 = scalar_lea.vmem %s10, 4
    %v7756 = vld [vmem:[%s7755] sm:$0x3]
    %v7757 = vadd.f32 %v7689, %v7690
    %7758 = vadd.xlane.f32.xlu0 %v7757
    %v7759 = vpop.xlane.xlu0 %7758
    %v7760 = vadd.f32 %v7691, %v7692
    %7761 = vadd.xlane.f32.xlu0 %v7760
    %v7762 = vpop.xlane.xlu0 %7761
    %v7763 = vadd.f32 %v7693, %v7694
    %7764 = vadd.xlane.f32.xlu0 %v7763
    %v7765 = vpop.xlane.xlu0 %7764
    %v7766 = vadd.f32 %v7695, %v7696
    %7767 = vadd.xlane.f32.xlu0 %v7766
    %v7768 = vpop.xlane.xlu0 %7767
    %v7769 = vadd.f32 %v7697, %v7698
    %7770 = vadd.xlane.f32.xlu0 %v7769
    %v7771 = vpop.xlane.xlu0 %7770
    %v7772 = vadd.f32 %v7699, %v7700
    %7773 = vadd.xlane.f32.xlu0 %v7772
    %v7774 = vpop.xlane.xlu0 %7773
    %v7775 = vadd.f32 %v7701, %v7702
    %7776 = vadd.xlane.f32.xlu0 %v7775
    %v7777 = vpop.xlane.xlu0 %7776
    %v7778 = vadd.f32 %v7703, %v7704
    %7779 = vadd.xlane.f32.xlu0 %v7778
    %v7780 = vpop.xlane.xlu0 %7779
    %v7781 = vadd.f32 %v7705, %v7706
    %7782 = vadd.xlane.f32.xlu0 %v7781
    %v7783 = vpop.xlane.xlu0 %7782
    %v7784 = vadd.f32 %v7707, %v7708
    %7785 = vadd.xlane.f32.xlu0 %v7784
    %v7786 = vpop.xlane.xlu0 %7785
    %v7787 = vadd.f32 %v7709, %v7710
    %7788 = vadd.xlane.f32.xlu0 %v7787
    %v7789 = vpop.xlane.xlu0 %7788
    %v7790 = vadd.f32 %v7711, %v7712
    %7791 = vadd.xlane.f32.xlu0 %v7790
    %v7792 = vpop.xlane.xlu0 %7791
    %v7793 = vadd.f32 %v7713, %v7714
    %7794 = vadd.xlane.f32.xlu0 %v7793
    %v7795 = vpop.xlane.xlu0 %7794
    %v7796 = vadd.f32 %v7715, %v7716
    %7797 = vadd.xlane.f32.xlu0 %v7796
    %v7798 = vpop.xlane.xlu0 %7797
    %v7799 = vadd.f32 %v7717, %v7718
    %7800 = vadd.xlane.f32.xlu0 %v7799
    %v7801 = vpop.xlane.xlu0 %7800
    %v7802 = vadd.f32 %v7719, %v7720
    %7803 = vadd.xlane.f32.xlu0 %v7802
    %v7804 = vpop.xlane.xlu0 %7803
    %v7805 = vadd.f32 %v7721, %v7722
    %7806 = vadd.xlane.f32.xlu0 %v7805
    %v7807 = vpop.xlane.xlu0 %7806
    %v7808 = vadd.f32 %v7723, %v7724
    %7809 = vadd.xlane.f32.xlu0 %v7808
    %v7810 = vpop.xlane.xlu0 %7809
    %v7811 = vadd.f32 %v7725, %v7726
    %7812 = vadd.xlane.f32.xlu0 %v7811
    %v7813 = vpop.xlane.xlu0 %7812
    %v7814 = vadd.f32 %v7727, %v7728
    %7815 = vadd.xlane.f32.xlu0 %v7814
    %v7816 = vpop.xlane.xlu0 %7815
    %v7817 = vadd.f32 %v7729, %v7730
    %7818 = vadd.xlane.f32.xlu0 %v7817
    %v7819 = vpop.xlane.xlu0 %7818
    %v7820 = vadd.f32 %v7731, %v7732
    %7821 = vadd.xlane.f32.xlu0 %v7820
    %v7822 = vpop.xlane.xlu0 %7821
    %v7823 = vadd.f32 %v7733, %v7734
    %7824 = vadd.xlane.f32.xlu0 %v7823
    %v7825 = vpop.xlane.xlu0 %7824
    %v7826 = vadd.f32 %v7735, %v7736
    %7827 = vadd.xlane.f32.xlu0 %v7826
    %v7828 = vpop.xlane.xlu0 %7827
    %v7829 = vadd.f32 %v7737, %v7738
    %7830 = vadd.xlane.f32.xlu0 %v7829
    %v7831 = vpop.xlane.xlu0 %7830
    %v7832 = vadd.f32 %v7739, %v7740
    %7833 = vadd.xlane.f32.xlu0 %v7832
    %v7834 = vpop.xlane.xlu0 %7833
    %v7835 = vadd.f32 %v7741, %v7742
    %7836 = vadd.xlane.f32.xlu0 %v7835
    %v7837 = vpop.xlane.xlu0 %7836
    %v7838 = vadd.f32 %v7743, %v7744
    %7839 = vadd.xlane.f32.xlu0 %v7838
    %v7840 = vpop.xlane.xlu0 %7839
    %v7841 = vadd.f32 %v7745, %v7746
    %7842 = vadd.xlane.f32.xlu0 %v7841
    %v7843 = vpop.xlane.xlu0 %7842
    %v7844 = vadd.f32 %v7747, %v7748
    %7845 = vadd.xlane.f32.xlu0 %v7844
    %v7846 = vpop.xlane.xlu0 %7845
    %v7847 = vadd.f32 %v7749, %v7750
    %7848 = vadd.xlane.f32.xlu0 %v7847
    %v7849 = vpop.xlane.xlu0 %7848
    %v7850 = vadd.f32 %v7751, %v7752
    %7851 = vadd.xlane.f32.xlu0 %v7850
    %v7852 = vpop.xlane.xlu0 %7851
    %v7853 = vmul.f32 %v7759, %v1057
    %v7854 = vmul.f32 %v7762, %v1057
    %v7855 = vmul.f32 %v7765, %v1057
    %v7856 = vmul.f32 %v7768, %v1057
    %v7857 = vmul.f32 %v7771, %v1057
    %v7858 = vmul.f32 %v7774, %v1057
    %v7859 = vmul.f32 %v7777, %v1057
    %v7860 = vmul.f32 %v7780, %v1057
    %v7861 = vmul.f32 %v7783, %v1057
    %v7862 = vmul.f32 %v7786, %v1057
    %v7863 = vmul.f32 %v7789, %v1057
    %v7864 = vmul.f32 %v7792, %v1057
    %v7865 = vmul.f32 %v7795, %v1057
    %v7866 = vmul.f32 %v7798, %v1057
    %v7867 = vmul.f32 %v7801, %v1057
    %v7868 = vmul.f32 %v7804, %v1057
    %v7869 = vmul.f32 %v7807, %v1057
    %v7870 = vmul.f32 %v7810, %v1057
    %v7871 = vmul.f32 %v7813, %v1057
    %v7872 = vmul.f32 %v7816, %v1057
    %v7873 = vmul.f32 %v7819, %v1057
    %v7874 = vmul.f32 %v7822, %v1057
    %v7875 = vmul.f32 %v7825, %v1057
    %v7876 = vmul.f32 %v7828, %v1057
    %v7877 = vmul.f32 %v7831, %v1057
    %v7878 = vmul.f32 %v7834, %v1057
    %v7879 = vmul.f32 %v7837, %v1057
    %v7880 = vmul.f32 %v7840, %v1057
    %v7881 = vmul.f32 %v7843, %v1057
    %v7882 = vmul.f32 %v7846, %v1057
    %v7883 = vmul.f32 %v7849, %v1057
    %v7884 = vmul.f32 %v7852, %v1057
    %v7885 = vsub.f32 %v7689, %v7853
    %v7886 = vsub.f32 %v7690, %v7853
    %v7887 = vsub.f32 %v7691, %v7854
    %v7888 = vsub.f32 %v7692, %v7854
    %v7889 = vsub.f32 %v7693, %v7855
    %v7890 = vsub.f32 %v7694, %v7855
    %v7891 = vsub.f32 %v7695, %v7856
    %v7892 = vsub.f32 %v7696, %v7856
    %v7893 = vsub.f32 %v7697, %v7857
    %v7894 = vsub.f32 %v7698, %v7857
    %v7895 = vsub.f32 %v7699, %v7858
    %v7896 = vsub.f32 %v7700, %v7858
    %v7897 = vsub.f32 %v7701, %v7859
    %v7898 = vsub.f32 %v7702, %v7859
    %v7899 = vsub.f32 %v7703, %v7860
    %v7900 = vsub.f32 %v7704, %v7860
    %v7901 = vsub.f32 %v7705, %v7861
    %v7902 = vsub.f32 %v7706, %v7861
    %v7903 = vsub.f32 %v7707, %v7862
    %v7904 = vsub.f32 %v7708, %v7862
    %v7905 = vsub.f32 %v7709, %v7863
    %v7906 = vsub.f32 %v7710, %v7863
    %v7907 = vsub.f32 %v7711, %v7864
    %v7908 = vsub.f32 %v7712, %v7864
    %v7909 = vsub.f32 %v7713, %v7865
    %v7910 = vsub.f32 %v7714, %v7865
    %v7911 = vsub.f32 %v7715, %v7866
    %v7912 = vsub.f32 %v7716, %v7866
    %v7913 = vsub.f32 %v7717, %v7867
    %v7914 = vsub.f32 %v7718, %v7867
    %v7915 = vsub.f32 %v7719, %v7868
    %v7916 = vsub.f32 %v7720, %v7868
    %v7917 = vsub.f32 %v7721, %v7869
    %v7918 = vsub.f32 %v7722, %v7869
    %v7919 = vsub.f32 %v7723, %v7870
    %v7920 = vsub.f32 %v7724, %v7870
    %v7921 = vsub.f32 %v7725, %v7871
    %v7922 = vsub.f32 %v7726, %v7871
    %v7923 = vsub.f32 %v7727, %v7872
    %v7924 = vsub.f32 %v7728, %v7872
    %v7925 = vsub.f32 %v7729, %v7873
    %v7926 = vsub.f32 %v7730, %v7873
    %v7927 = vsub.f32 %v7731, %v7874
    %v7928 = vsub.f32 %v7732, %v7874
    %v7929 = vsub.f32 %v7733, %v7875
    %v7930 = vsub.f32 %v7734, %v7875
    %v7931 = vsub.f32 %v7735, %v7876
    %v7932 = vsub.f32 %v7736, %v7876
    %v7933 = vsub.f32 %v7737, %v7877
    %v7934 = vsub.f32 %v7738, %v7877
    %v7935 = vsub.f32 %v7739, %v7878
    %v7936 = vsub.f32 %v7740, %v7878
    %v7937 = vsub.f32 %v7741, %v7879
    %v7938 = vsub.f32 %v7742, %v7879
    %v7939 = vsub.f32 %v7743, %v7880
    %v7940 = vsub.f32 %v7744, %v7880
    %v7941 = vsub.f32 %v7745, %v7881
    %v7942 = vsub.f32 %v7746, %v7881
    %v7943 = vsub.f32 %v7747, %v7882
    %v7944 = vsub.f32 %v7748, %v7882
    %v7945 = vsub.f32 %v7749, %v7883
    %v7946 = vsub.f32 %v7750, %v7883
    %v7947 = vsub.f32 %v7751, %v7884
    %v7948 = vsub.f32 %v7752, %v7884
    %v7949 = vmul.f32 %v7885, %v7885
    %v7950 = vmul.f32 %v7886, %v7886
    %v7951 = vmul.f32 %v7887, %v7887
    %v7952 = vmul.f32 %v7888, %v7888
    %v7953 = vmul.f32 %v7889, %v7889
    %v7954 = vmul.f32 %v7890, %v7890
    %v7955 = vmul.f32 %v7891, %v7891
    %v7956 = vmul.f32 %v7892, %v7892
    %v7957 = vmul.f32 %v7893, %v7893
    %v7958 = vmul.f32 %v7894, %v7894
    %v7959 = vmul.f32 %v7895, %v7895
    %v7960 = vmul.f32 %v7896, %v7896
    %v7961 = vmul.f32 %v7897, %v7897
    %v7962 = vmul.f32 %v7898, %v7898
    %v7963 = vmul.f32 %v7899, %v7899
    %v7964 = vmul.f32 %v7900, %v7900
    %v7965 = vmul.f32 %v7901, %v7901
    %v7966 = vmul.f32 %v7902, %v7902
    %v7967 = vmul.f32 %v7903, %v7903
    %v7968 = vmul.f32 %v7904, %v7904
    %v7969 = vmul.f32 %v7905, %v7905
    %v7970 = vmul.f32 %v7906, %v7906
    %v7971 = vmul.f32 %v7907, %v7907
    %v7972 = vmul.f32 %v7908, %v7908
    %v7973 = vmul.f32 %v7909, %v7909
    %v7974 = vmul.f32 %v7910, %v7910
    %v7975 = vmul.f32 %v7911, %v7911
    %v7976 = vmul.f32 %v7912, %v7912
    %v7977 = vmul.f32 %v7913, %v7913
    %v7978 = vmul.f32 %v7914, %v7914
    %v7979 = vmul.f32 %v7915, %v7915
    %v7980 = vmul.f32 %v7916, %v7916
    %v7981 = vmul.f32 %v7917, %v7917
    %v7982 = vmul.f32 %v7918, %v7918
    %v7983 = vmul.f32 %v7919, %v7919
    %v7984 = vmul.f32 %v7920, %v7920
    %v7985 = vmul.f32 %v7921, %v7921
    %v7986 = vmul.f32 %v7922, %v7922
    %v7987 = vmul.f32 %v7923, %v7923
    %v7988 = vmul.f32 %v7924, %v7924
    %v7989 = vmul.f32 %v7925, %v7925
    %v7990 = vmul.f32 %v7926, %v7926
    %v7991 = vmul.f32 %v7927, %v7927
    %v7992 = vmul.f32 %v7928, %v7928
    %v7993 = vmul.f32 %v7929, %v7929
    %v7994 = vmul.f32 %v7930, %v7930
    %v7995 = vmul.f32 %v7931, %v7931
    %v7996 = vmul.f32 %v7932, %v7932
    %v7997 = vmul.f32 %v7933, %v7933
    %v7998 = vmul.f32 %v7934, %v7934
    %v7999 = vmul.f32 %v7935, %v7935
    %v8000 = vmul.f32 %v7936, %v7936
    %v8001 = vmul.f32 %v7937, %v7937
    %v8002 = vmul.f32 %v7938, %v7938
    %v8003 = vmul.f32 %v7939, %v7939
    %v8004 = vmul.f32 %v7940, %v7940
    %v8005 = vmul.f32 %v7941, %v7941
    %v8006 = vmul.f32 %v7942, %v7942
    %v8007 = vmul.f32 %v7943, %v7943
    %v8008 = vmul.f32 %v7944, %v7944
    %v8009 = vmul.f32 %v7945, %v7945
    %v8010 = vmul.f32 %v7946, %v7946
    %v8011 = vmul.f32 %v7947, %v7947
    %v8012 = vmul.f32 %v7948, %v7948
    %v8013 = vadd.f32 %v7949, %v7950
    %8014 = vadd.xlane.f32.xlu0 %v8013
    %v8015 = vpop.xlane.xlu0 %8014
    %v8016 = vadd.f32 %v7951, %v7952
    %8017 = vadd.xlane.f32.xlu0 %v8016
    %v8018 = vpop.xlane.xlu0 %8017
    %v8019 = vadd.f32 %v7953, %v7954
    %8020 = vadd.xlane.f32.xlu0 %v8019
    %v8021 = vpop.xlane.xlu0 %8020
    %v8022 = vadd.f32 %v7955, %v7956
    %8023 = vadd.xlane.f32.xlu0 %v8022
    %v8024 = vpop.xlane.xlu0 %8023
    %v8025 = vadd.f32 %v7957, %v7958
    %8026 = vadd.xlane.f32.xlu0 %v8025
    %v8027 = vpop.xlane.xlu0 %8026
    %v8028 = vadd.f32 %v7959, %v7960
    %8029 = vadd.xlane.f32.xlu0 %v8028
    %v8030 = vpop.xlane.xlu0 %8029
    %v8031 = vadd.f32 %v7961, %v7962
    %8032 = vadd.xlane.f32.xlu0 %v8031
    %v8033 = vpop.xlane.xlu0 %8032
    %v8034 = vadd.f32 %v7963, %v7964
    %8035 = vadd.xlane.f32.xlu0 %v8034
    %v8036 = vpop.xlane.xlu0 %8035
    %v8037 = vadd.f32 %v7965, %v7966
    %8038 = vadd.xlane.f32.xlu0 %v8037
    %v8039 = vpop.xlane.xlu0 %8038
    %v8040 = vadd.f32 %v7967, %v7968
    %8041 = vadd.xlane.f32.xlu0 %v8040
    %v8042 = vpop.xlane.xlu0 %8041
    %v8043 = vadd.f32 %v7969, %v7970
    %8044 = vadd.xlane.f32.xlu0 %v8043
    %v8045 = vpop.xlane.xlu0 %8044
    %v8046 = vadd.f32 %v7971, %v7972
    %8047 = vadd.xlane.f32.xlu0 %v8046
    %v8048 = vpop.xlane.xlu0 %8047
    %v8049 = vadd.f32 %v7973, %v7974
    %8050 = vadd.xlane.f32.xlu0 %v8049
    %v8051 = vpop.xlane.xlu0 %8050
    %v8052 = vadd.f32 %v7975, %v7976
    %8053 = vadd.xlane.f32.xlu0 %v8052
    %v8054 = vpop.xlane.xlu0 %8053
    %v8055 = vadd.f32 %v7977, %v7978
    %8056 = vadd.xlane.f32.xlu0 %v8055
    %v8057 = vpop.xlane.xlu0 %8056
    %v8058 = vadd.f32 %v7979, %v7980
    %8059 = vadd.xlane.f32.xlu0 %v8058
    %v8060 = vpop.xlane.xlu0 %8059
    %v8061 = vadd.f32 %v7981, %v7982
    %8062 = vadd.xlane.f32.xlu0 %v8061
    %v8063 = vpop.xlane.xlu0 %8062
    %v8064 = vadd.f32 %v7983, %v7984
    %8065 = vadd.xlane.f32.xlu0 %v8064
    %v8066 = vpop.xlane.xlu0 %8065
    %v8067 = vadd.f32 %v7985, %v7986
    %8068 = vadd.xlane.f32.xlu0 %v8067
    %v8069 = vpop.xlane.xlu0 %8068
    %v8070 = vadd.f32 %v7987, %v7988
    %8071 = vadd.xlane.f32.xlu0 %v8070
    %v8072 = vpop.xlane.xlu0 %8071
    %v8073 = vadd.f32 %v7989, %v7990
    %8074 = vadd.xlane.f32.xlu0 %v8073
    %v8075 = vpop.xlane.xlu0 %8074
    %v8076 = vadd.f32 %v7991, %v7992
    %8077 = vadd.xlane.f32.xlu0 %v8076
    %v8078 = vpop.xlane.xlu0 %8077
    %v8079 = vadd.f32 %v7993, %v7994
    %8080 = vadd.xlane.f32.xlu0 %v8079
    %v8081 = vpop.xlane.xlu0 %8080
    %v8082 = vadd.f32 %v7995, %v7996
    %8083 = vadd.xlane.f32.xlu0 %v8082
    %v8084 = vpop.xlane.xlu0 %8083
    %v8085 = vadd.f32 %v7997, %v7998
    %8086 = vadd.xlane.f32.xlu0 %v8085
    %v8087 = vpop.xlane.xlu0 %8086
    %v8088 = vadd.f32 %v7999, %v8000
    %8089 = vadd.xlane.f32.xlu0 %v8088
    %v8090 = vpop.xlane.xlu0 %8089
    %v8091 = vadd.f32 %v8001, %v8002
    %8092 = vadd.xlane.f32.xlu0 %v8091
    %v8093 = vpop.xlane.xlu0 %8092
    %v8094 = vadd.f32 %v8003, %v8004
    %8095 = vadd.xlane.f32.xlu0 %v8094
    %v8096 = vpop.xlane.xlu0 %8095
    %v8097 = vadd.f32 %v8005, %v8006
    %8098 = vadd.xlane.f32.xlu0 %v8097
    %v8099 = vpop.xlane.xlu0 %8098
    %v8100 = vadd.f32 %v8007, %v8008
    %8101 = vadd.xlane.f32.xlu0 %v8100
    %v8102 = vpop.xlane.xlu0 %8101
    %v8103 = vadd.f32 %v8009, %v8010
    %8104 = vadd.xlane.f32.xlu0 %v8103
    %v8105 = vpop.xlane.xlu0 %8104
    %v8106 = vadd.f32 %v8011, %v8012
    %8107 = vadd.xlane.f32.xlu0 %v8106
    %v8108 = vpop.xlane.xlu0 %8107
    %v8109 = vmul.f32 %v8015, %v1057
    %v8110 = vmul.f32 %v8018, %v1057
    %v8111 = vmul.f32 %v8021, %v1057
    %v8112 = vmul.f32 %v8024, %v1057
    %v8113 = vmul.f32 %v8027, %v1057
    %v8114 = vmul.f32 %v8030, %v1057
    %v8115 = vmul.f32 %v8033, %v1057
    %v8116 = vmul.f32 %v8036, %v1057
    %v8117 = vmul.f32 %v8039, %v1057
    %v8118 = vmul.f32 %v8042, %v1057
    %v8119 = vmul.f32 %v8045, %v1057
    %v8120 = vmul.f32 %v8048, %v1057
    %v8121 = vmul.f32 %v8051, %v1057
    %v8122 = vmul.f32 %v8054, %v1057
    %v8123 = vmul.f32 %v8057, %v1057
    %v8124 = vmul.f32 %v8060, %v1057
    %v8125 = vmul.f32 %v8063, %v1057
    %v8126 = vmul.f32 %v8066, %v1057
    %v8127 = vmul.f32 %v8069, %v1057
    %v8128 = vmul.f32 %v8072, %v1057
    %v8129 = vmul.f32 %v8075, %v1057
    %v8130 = vmul.f32 %v8078, %v1057
    %v8131 = vmul.f32 %v8081, %v1057
    %v8132 = vmul.f32 %v8084, %v1057
    %v8133 = vmul.f32 %v8087, %v1057
    %v8134 = vmul.f32 %v8090, %v1057
    %v8135 = vmul.f32 %v8093, %v1057
    %v8136 = vmul.f32 %v8096, %v1057
    %v8137 = vmul.f32 %v8099, %v1057
    %v8138 = vmul.f32 %v8102, %v1057
    %v8139 = vmul.f32 %v8105, %v1057
    %v8140 = vmul.f32 %v8108, %v1057
    %v8141 = vadd.f32 %v8109, 1e-05
    %v8142 = vadd.f32 %v8110, 1e-05
    %v8143 = vadd.f32 %v8111, 1e-05
    %v8144 = vadd.f32 %v8112, 1e-05
    %v8145 = vadd.f32 %v8113, 1e-05
    %v8146 = vadd.f32 %v8114, 1e-05
    %v8147 = vadd.f32 %v8115, 1e-05
    %v8148 = vadd.f32 %v8116, 1e-05
    %v8149 = vadd.f32 %v8117, 1e-05
    %v8150 = vadd.f32 %v8118, 1e-05
    %v8151 = vadd.f32 %v8119, 1e-05
    %v8152 = vadd.f32 %v8120, 1e-05
    %v8153 = vadd.f32 %v8121, 1e-05
    %v8154 = vadd.f32 %v8122, 1e-05
    %v8155 = vadd.f32 %v8123, 1e-05
    %v8156 = vadd.f32 %v8124, 1e-05
    %v8157 = vadd.f32 %v8125, 1e-05
    %v8158 = vadd.f32 %v8126, 1e-05
    %v8159 = vadd.f32 %v8127, 1e-05
    %v8160 = vadd.f32 %v8128, 1e-05
    %v8161 = vadd.f32 %v8129, 1e-05
    %v8162 = vadd.f32 %v8130, 1e-05
    %v8163 = vadd.f32 %v8131, 1e-05
    %v8164 = vadd.f32 %v8132, 1e-05
    %v8165 = vadd.f32 %v8133, 1e-05
    %v8166 = vadd.f32 %v8134, 1e-05
    %v8167 = vadd.f32 %v8135, 1e-05
    %v8168 = vadd.f32 %v8136, 1e-05
    %v8169 = vadd.f32 %v8137, 1e-05
    %v8170 = vadd.f32 %v8138, 1e-05
    %v8171 = vadd.f32 %v8139, 1e-05
    %v8172 = vadd.f32 %v8140, 1e-05
    %v8173 = vrsqrt.pop %v8141
    %v8174 = vrsqrt.pop %v8142
    %v8175 = vrsqrt.pop %v8143
    %v8176 = vrsqrt.pop %v8144
    %v8177 = vrsqrt.pop %v8145
    %v8178 = vrsqrt.pop %v8146
    %v8179 = vrsqrt.pop %v8147
    %v8180 = vrsqrt.pop %v8148
    %v8181 = vrsqrt.pop %v8149
    %v8182 = vrsqrt.pop %v8150
    %v8183 = vrsqrt.pop %v8151
    %v8184 = vrsqrt.pop %v8152
    %v8185 = vrsqrt.pop %v8153
    %v8186 = vrsqrt.pop %v8154
    %v8187 = vrsqrt.pop %v8155
    %v8188 = vrsqrt.pop %v8156
    %v8189 = vrsqrt.pop %v8157
    %v8190 = vrsqrt.pop %v8158
    %v8191 = vrsqrt.pop %v8159
    %v8192 = vrsqrt.pop %v8160
    %v8193 = vrsqrt.pop %v8161
    %v8194 = vrsqrt.pop %v8162
    %v8195 = vrsqrt.pop %v8163
    %v8196 = vrsqrt.pop %v8164
    %v8197 = vrsqrt.pop %v8165
    %v8198 = vrsqrt.pop %v8166
    %v8199 = vrsqrt.pop %v8167
    %v8200 = vrsqrt.pop %v8168
    %v8201 = vrsqrt.pop %v8169
    %v8202 = vrsqrt.pop %v8170
    %v8203 = vrsqrt.pop %v8171
    %v8204 = vrsqrt.pop %v8172
    %v8205 = vmul.f32 %v7885, %v8173
    %v8206 = vmul.f32 %v7886, %v8173
    %v8207 = vmul.f32 %v7887, %v8174
    %v8208 = vmul.f32 %v7888, %v8174
    %v8209 = vmul.f32 %v7889, %v8175
    %v8210 = vmul.f32 %v7890, %v8175
    %v8211 = vmul.f32 %v7891, %v8176
    %v8212 = vmul.f32 %v7892, %v8176
    %v8213 = vmul.f32 %v7893, %v8177
    %v8214 = vmul.f32 %v7894, %v8177
    %v8215 = vmul.f32 %v7895, %v8178
    %v8216 = vmul.f32 %v7896, %v8178
    %v8217 = vmul.f32 %v7897, %v8179
    %v8218 = vmul.f32 %v7898, %v8179
    %v8219 = vmul.f32 %v7899, %v8180
    %v8220 = vmul.f32 %v7900, %v8180
    %v8221 = vmul.f32 %v7901, %v8181
    %v8222 = vmul.f32 %v7902, %v8181
    %v8223 = vmul.f32 %v7903, %v8182
    %v8224 = vmul.f32 %v7904, %v8182
    %v8225 = vmul.f32 %v7905, %v8183
    %v8226 = vmul.f32 %v7906, %v8183
    %v8227 = vmul.f32 %v7907, %v8184
    %v8228 = vmul.f32 %v7908, %v8184
    %v8229 = vmul.f32 %v7909, %v8185
    %v8230 = vmul.f32 %v7910, %v8185
    %v8231 = vmul.f32 %v7911, %v8186
    %v8232 = vmul.f32 %v7912, %v8186
    %v8233 = vmul.f32 %v7913, %v8187
    %v8234 = vmul.f32 %v7914, %v8187
    %v8235 = vmul.f32 %v7915, %v8188
    %v8236 = vmul.f32 %v7916, %v8188
    %v8237 = vmul.f32 %v7917, %v8189
    %v8238 = vmul.f32 %v7918, %v8189
    %v8239 = vmul.f32 %v7919, %v8190
    %v8240 = vmul.f32 %v7920, %v8190
    %v8241 = vmul.f32 %v7921, %v8191
    %v8242 = vmul.f32 %v7922, %v8191
    %v8243 = vmul.f32 %v7923, %v8192
    %v8244 = vmul.f32 %v7924, %v8192
    %v8245 = vmul.f32 %v7925, %v8193
    %v8246 = vmul.f32 %v7926, %v8193
    %v8247 = vmul.f32 %v7927, %v8194
    %v8248 = vmul.f32 %v7928, %v8194
    %v8249 = vmul.f32 %v7929, %v8195
    %v8250 = vmul.f32 %v7930, %v8195
    %v8251 = vmul.f32 %v7931, %v8196
    %v8252 = vmul.f32 %v7932, %v8196
    %v8253 = vmul.f32 %v7933, %v8197
    %v8254 = vmul.f32 %v7934, %v8197
    %v8255 = vmul.f32 %v7935, %v8198
    %v8256 = vmul.f32 %v7936, %v8198
    %v8257 = vmul.f32 %v7937, %v8199
    %v8258 = vmul.f32 %v7938, %v8199
    %v8259 = vmul.f32 %v7939, %v8200
    %v8260 = vmul.f32 %v7940, %v8200
    %v8261 = vmul.f32 %v7941, %v8201
    %v8262 = vmul.f32 %v7942, %v8201
    %v8263 = vmul.f32 %v7943, %v8202
    %v8264 = vmul.f32 %v7944, %v8202
    %v8265 = vmul.f32 %v7945, %v8203
    %v8266 = vmul.f32 %v7946, %v8203
    %v8267 = vmul.f32 %v7947, %v8204
    %v8268 = vmul.f32 %v7948, %v8204
    %v8270 = vlaneseq
    %v8271 = vshrl.u32 %v8270, 7
    %v8272 = vsub.s32 0, %v8271
    %v8273 = vrot.slane %v7754, %v8272
    %v8274 = vlaneseq
    %v8275 = vshrl.u32 %v8274, 7
    %v8276 = vsub.s32 1, %v8275
    %v8277 = vrot.slane %v7754, %v8276
    %v8280 = vmul.f32 %v8205, %v8273
    %v8281 = vmul.f32 %v8206, %v8277
    %v8282 = vmul.f32 %v8207, %v8273
    %v8283 = vmul.f32 %v8208, %v8277
    %v8284 = vmul.f32 %v8209, %v8273
    %v8285 = vmul.f32 %v8210, %v8277
    %v8286 = vmul.f32 %v8211, %v8273
    %v8287 = vmul.f32 %v8212, %v8277
    %v8288 = vmul.f32 %v8213, %v8273
    %v8289 = vmul.f32 %v8214, %v8277
    %v8290 = vmul.f32 %v8215, %v8273
    %v8291 = vmul.f32 %v8216, %v8277
    %v8292 = vmul.f32 %v8217, %v8273
    %v8293 = vmul.f32 %v8218, %v8277
    %v8294 = vmul.f32 %v8219, %v8273
    %v8295 = vmul.f32 %v8220, %v8277
    %v8296 = vmul.f32 %v8221, %v8273
    %v8297 = vmul.f32 %v8222, %v8277
    %v8298 = vmul.f32 %v8223, %v8273
    %v8299 = vmul.f32 %v8224, %v8277
    %v8300 = vmul.f32 %v8225, %v8273
    %v8301 = vmul.f32 %v8226, %v8277
    %v8302 = vmul.f32 %v8227, %v8273
    %v8303 = vmul.f32 %v8228, %v8277
    %v8304 = vmul.f32 %v8229, %v8273
    %v8305 = vmul.f32 %v8230, %v8277
    %v8306 = vmul.f32 %v8231, %v8273
    %v8307 = vmul.f32 %v8232, %v8277
    %v8308 = vmul.f32 %v8233, %v8273
    %v8309 = vmul.f32 %v8234, %v8277
    %v8310 = vmul.f32 %v8235, %v8273
    %v8311 = vmul.f32 %v8236, %v8277
    %v8312 = vmul.f32 %v8237, %v8273
    %v8313 = vmul.f32 %v8238, %v8277
    %v8314 = vmul.f32 %v8239, %v8273
    %v8315 = vmul.f32 %v8240, %v8277
    %v8316 = vmul.f32 %v8241, %v8273
    %v8317 = vmul.f32 %v8242, %v8277
    %v8318 = vmul.f32 %v8243, %v8273
    %v8319 = vmul.f32 %v8244, %v8277
    %v8320 = vmul.f32 %v8245, %v8273
    %v8321 = vmul.f32 %v8246, %v8277
    %v8322 = vmul.f32 %v8247, %v8273
    %v8323 = vmul.f32 %v8248, %v8277
    %v8324 = vmul.f32 %v8249, %v8273
    %v8325 = vmul.f32 %v8250, %v8277
    %v8326 = vmul.f32 %v8251, %v8273
    %v8327 = vmul.f32 %v8252, %v8277
    %v8328 = vmul.f32 %v8253, %v8273
    %v8329 = vmul.f32 %v8254, %v8277
    %v8330 = vmul.f32 %v8255, %v8273
    %v8331 = vmul.f32 %v8256, %v8277
    %v8332 = vmul.f32 %v8257, %v8273
    %v8333 = vmul.f32 %v8258, %v8277
    %v8334 = vmul.f32 %v8259, %v8273
    %v8335 = vmul.f32 %v8260, %v8277
    %v8336 = vmul.f32 %v8261, %v8273
    %v8337 = vmul.f32 %v8262, %v8277
    %v8338 = vmul.f32 %v8263, %v8273
    %v8339 = vmul.f32 %v8264, %v8277
    %v8340 = vmul.f32 %v8265, %v8273
    %v8341 = vmul.f32 %v8266, %v8277
    %v8342 = vmul.f32 %v8267, %v8273
    %v8343 = vmul.f32 %v8268, %v8277
    %v8345 = vlaneseq
    %v8346 = vshrl.u32 %v8345, 7
    %v8347 = vsub.s32 0, %v8346
    %v8348 = vrot.slane %v7756, %v8347
    %v8349 = vlaneseq
    %v8350 = vshrl.u32 %v8349, 7
    %v8351 = vsub.s32 1, %v8350
    %v8352 = vrot.slane %v7756, %v8351
    %v8355 = vadd.f32 %v8280, %v8348
    %v8356 = vadd.f32 %v8281, %v8352
    %v8357 = vadd.f32 %v8282, %v8348
    %v8358 = vadd.f32 %v8283, %v8352
    %v8359 = vadd.f32 %v8284, %v8348
    %v8360 = vadd.f32 %v8285, %v8352
    %v8361 = vadd.f32 %v8286, %v8348
    %v8362 = vadd.f32 %v8287, %v8352
    %v8363 = vadd.f32 %v8288, %v8348
    %v8364 = vadd.f32 %v8289, %v8352
    %v8365 = vadd.f32 %v8290, %v8348
    %v8366 = vadd.f32 %v8291, %v8352
    %v8367 = vadd.f32 %v8292, %v8348
    %v8368 = vadd.f32 %v8293, %v8352
    %v8369 = vadd.f32 %v8294, %v8348
    %v8370 = vadd.f32 %v8295, %v8352
    %v8371 = vadd.f32 %v8296, %v8348
    %v8372 = vadd.f32 %v8297, %v8352
    %v8373 = vadd.f32 %v8298, %v8348
    %v8374 = vadd.f32 %v8299, %v8352
    %v8375 = vadd.f32 %v8300, %v8348
    %v8376 = vadd.f32 %v8301, %v8352
    %v8377 = vadd.f32 %v8302, %v8348
    %v8378 = vadd.f32 %v8303, %v8352
    %v8379 = vadd.f32 %v8304, %v8348
    %v8380 = vadd.f32 %v8305, %v8352
    %v8381 = vadd.f32 %v8306, %v8348
    %v8382 = vadd.f32 %v8307, %v8352
    %v8383 = vadd.f32 %v8308, %v8348
    %v8384 = vadd.f32 %v8309, %v8352
    %v8385 = vadd.f32 %v8310, %v8348
    %v8386 = vadd.f32 %v8311, %v8352
    %v8387 = vadd.f32 %v8312, %v8348
    %v8388 = vadd.f32 %v8313, %v8352
    %v8389 = vadd.f32 %v8314, %v8348
    %v8390 = vadd.f32 %v8315, %v8352
    %v8391 = vadd.f32 %v8316, %v8348
    %v8392 = vadd.f32 %v8317, %v8352
    %v8393 = vadd.f32 %v8318, %v8348
    %v8394 = vadd.f32 %v8319, %v8352
    %v8395 = vadd.f32 %v8320, %v8348
    %v8396 = vadd.f32 %v8321, %v8352
    %v8397 = vadd.f32 %v8322, %v8348
    %v8398 = vadd.f32 %v8323, %v8352
    %v8399 = vadd.f32 %v8324, %v8348
    %v8400 = vadd.f32 %v8325, %v8352
    %v8401 = vadd.f32 %v8326, %v8348
    %v8402 = vadd.f32 %v8327, %v8352
    %v8403 = vadd.f32 %v8328, %v8348
    %v8404 = vadd.f32 %v8329, %v8352
    %v8405 = vadd.f32 %v8330, %v8348
    %v8406 = vadd.f32 %v8331, %v8352
    %v8407 = vadd.f32 %v8332, %v8348
    %v8408 = vadd.f32 %v8333, %v8352
    %v8409 = vadd.f32 %v8334, %v8348
    %v8410 = vadd.f32 %v8335, %v8352
    %v8411 = vadd.f32 %v8336, %v8348
    %v8412 = vadd.f32 %v8337, %v8352
    %v8413 = vadd.f32 %v8338, %v8348
    %v8414 = vadd.f32 %v8339, %v8352
    %v8415 = vadd.f32 %v8340, %v8348
    %v8416 = vadd.f32 %v8341, %v8352
    %v8417 = vadd.f32 %v8342, %v8348
    %v8418 = vadd.f32 %v8343, %v8352
    %v8419 = vpack.c.bf16 %v8357, %v8355
    %v8420 = vpack.c.bf16 %v8358, %v8356
    %v8421 = vpack.c.bf16 %v8361, %v8359
    %v8422 = vpack.c.bf16 %v8362, %v8360
    %v8423 = vpack.c.bf16 %v8365, %v8363
    %v8424 = vpack.c.bf16 %v8366, %v8364
    %v8425 = vpack.c.bf16 %v8369, %v8367
    %v8426 = vpack.c.bf16 %v8370, %v8368
    %v8427 = vpack.c.bf16 %v8373, %v8371
    %v8428 = vpack.c.bf16 %v8374, %v8372
    %v8429 = vpack.c.bf16 %v8377, %v8375
    %v8430 = vpack.c.bf16 %v8378, %v8376
    %v8431 = vpack.c.bf16 %v8381, %v8379
    %v8432 = vpack.c.bf16 %v8382, %v8380
    %v8433 = vpack.c.bf16 %v8385, %v8383
    %v8434 = vpack.c.bf16 %v8386, %v8384
    %v8435 = vpack.c.bf16 %v8389, %v8387
    %v8436 = vpack.c.bf16 %v8390, %v8388
    %v8437 = vpack.c.bf16 %v8393, %v8391
    %v8438 = vpack.c.bf16 %v8394, %v8392
    %v8439 = vpack.c.bf16 %v8397, %v8395
    %v8440 = vpack.c.bf16 %v8398, %v8396
    %v8441 = vpack.c.bf16 %v8401, %v8399
    %v8442 = vpack.c.bf16 %v8402, %v8400
    %v8443 = vpack.c.bf16 %v8405, %v8403
    %v8444 = vpack.c.bf16 %v8406, %v8404
    %v8445 = vpack.c.bf16 %v8409, %v8407
    %v8446 = vpack.c.bf16 %v8410, %v8408
    %v8447 = vpack.c.bf16 %v8413, %v8411
    %v8448 = vpack.c.bf16 %v8414, %v8412
    %v8449 = vpack.c.bf16 %v8417, %v8415
    %v8450 = vpack.c.bf16 %v8418, %v8416
    %s8451 = scalar_lea.vmem [#allocation5], 256
    %v8452 = vld [vmem:[%s8451] sm:$0xf]
    %v8453 = vld [vmem:[%s8451 + $0x4] sm:$0xf]
    %v8454 = vld [vmem:[%s8451 + $0x8] sm:$0xf]
    %v8455 = vld [vmem:[%s8451 + $0xc] sm:$0xf]
    %v8456 = vld [vmem:[%s8451 + $0x10] sm:$0xf]
    %v8457 = vld [vmem:[%s8451 + $0x14] sm:$0xf]
    %v8458 = vld [vmem:[%s8451 + $0x18] sm:$0xf]
    %v8459 = vld [vmem:[%s8451 + $0x1c] sm:$0xf]
    %v8460 = vld [vmem:[%s8451 + $0x20] sm:$0xf]
    %v8461 = vld [vmem:[%s8451 + $0x24] sm:$0xf]
    %v8462 = vld [vmem:[%s8451 + $0x28] sm:$0xf]
    %v8463 = vld [vmem:[%s8451 + $0x2c] sm:$0xf]
    %v8464 = vld [vmem:[%s8451 + $0x30] sm:$0xf]
    %v8465 = vld [vmem:[%s8451 + $0x34] sm:$0xf]
    %v8466 = vld [vmem:[%s8451 + $0x38] sm:$0xf]
    %v8467 = vld [vmem:[%s8451 + $0x3c] sm:$0xf]
    %v8468 = vld [vmem:[%s8451 + $0x40] sm:$0xf]
    %v8469 = vld [vmem:[%s8451 + $0x44] sm:$0xf]
    %v8470 = vld [vmem:[%s8451 + $0x48] sm:$0xf]
    %v8471 = vld [vmem:[%s8451 + $0x4c] sm:$0xf]
    %v8472 = vld [vmem:[%s8451 + $0x50] sm:$0xf]
    %v8473 = vld [vmem:[%s8451 + $0x54] sm:$0xf]
    %v8474 = vld [vmem:[%s8451 + $0x58] sm:$0xf]
    %v8475 = vld [vmem:[%s8451 + $0x5c] sm:$0xf]
    %v8476 = vld [vmem:[%s8451 + $0x60] sm:$0xf]
    %v8477 = vld [vmem:[%s8451 + $0x64] sm:$0xf]
    %v8478 = vld [vmem:[%s8451 + $0x68] sm:$0xf]
    %v8479 = vld [vmem:[%s8451 + $0x6c] sm:$0xf]
    %v8480 = vld [vmem:[%s8451 + $0x70] sm:$0xf]
    %v8481 = vld [vmem:[%s8451 + $0x74] sm:$0xf]
    %v8482 = vld [vmem:[%s8451 + $0x78] sm:$0xf]
    %v8483 = vld [vmem:[%s8451 + $0x7c] sm:$0xf]
    %s8484 = scalar_lea.vmem %s12, 2
    %v8485 = vld [vmem:[%s8484] sm:$0x1]
    %v8487 = vlaneseq
    %v8488 = vshrl.u32 %v8487, 7
    %v8489 = vsub.s32 0, %v8488
    %v8490 = vrot.slane %v8485, %v8489
    %v8524 = vunpack.c.l.b16 %v8452
    %v8525 = vunpack.c.l.b16 %v8453
    %v8526 = vunpack.c.l.b16 %v8454
    %v8527 = vunpack.c.l.b16 %v8455
    %v8528 = vunpack.c.l.b16 %v8456
    %v8529 = vunpack.c.l.b16 %v8457
    %v8530 = vunpack.c.l.b16 %v8458
    %v8531 = vunpack.c.l.b16 %v8459
    %v8532 = vunpack.c.l.b16 %v8460
    %v8533 = vunpack.c.l.b16 %v8461
    %v8534 = vunpack.c.l.b16 %v8462
    %v8535 = vunpack.c.l.b16 %v8463
    %v8536 = vunpack.c.l.b16 %v8464
    %v8537 = vunpack.c.l.b16 %v8465
    %v8538 = vunpack.c.l.b16 %v8466
    %v8539 = vunpack.c.l.b16 %v8467
    %v8540 = vunpack.c.l.b16 %v8468
    %v8541 = vunpack.c.l.b16 %v8469
    %v8542 = vunpack.c.l.b16 %v8470
    %v8543 = vunpack.c.l.b16 %v8471
    %v8544 = vunpack.c.l.b16 %v8472
    %v8545 = vunpack.c.l.b16 %v8473
    %v8546 = vunpack.c.l.b16 %v8474
    %v8547 = vunpack.c.l.b16 %v8475
    %v8548 = vunpack.c.l.b16 %v8476
    %v8549 = vunpack.c.l.b16 %v8477
    %v8550 = vunpack.c.l.b16 %v8478
    %v8551 = vunpack.c.l.b16 %v8479
    %v8552 = vunpack.c.l.b16 %v8480
    %v8553 = vunpack.c.l.b16 %v8481
    %v8554 = vunpack.c.l.b16 %v8482
    %v8555 = vunpack.c.l.b16 %v8483
    %v8556 = vpack.c.b16 %v8525, %v8524
    %v8557 = vpack.c.b16 %v8527, %v8526
    %v8558 = vpack.c.b16 %v8529, %v8528
    %v8559 = vpack.c.b16 %v8531, %v8530
    %v8560 = vpack.c.b16 %v8533, %v8532
    %v8561 = vpack.c.b16 %v8535, %v8534
    %v8562 = vpack.c.b16 %v8537, %v8536
    %v8563 = vpack.c.b16 %v8539, %v8538
    %v8564 = vpack.c.b16 %v8541, %v8540
    %v8565 = vpack.c.b16 %v8543, %v8542
    %v8566 = vpack.c.b16 %v8545, %v8544
    %v8567 = vpack.c.b16 %v8547, %v8546
    %v8568 = vpack.c.b16 %v8549, %v8548
    %v8569 = vpack.c.b16 %v8551, %v8550
    %v8570 = vpack.c.b16 %v8553, %v8552
    %v8571 = vpack.c.b16 %v8555, %v8554
    %8588 = vmatprep.subr.bf16.mxu0 0
    %8589 = vmatpush1.bf16.msra.mxu0 %v8556
    %8590 = vmatprep.subr.bf16.mxu0 0
    %8591 = vmatpush1.bf16.msra.mxu0 %v8557
    %8592 = vmatprep.subr.bf16.mxu0 0
    %8593 = vmatpush1.bf16.msra.mxu0 %v8558
    %8594 = vmatprep.subr.bf16.mxu0 0
    %8595 = vmatpush1.bf16.msra.mxu0 %v8559
    %8596 = vmatprep.subr.bf16.mxu0 0
    %8597 = vmatpush1.bf16.msra.mxu0 %v8560
    %8598 = vmatprep.subr.bf16.mxu0 0
    %8599 = vmatpush1.bf16.msra.mxu0 %v8561
    %8600 = vmatprep.subr.bf16.mxu0 0
    %8601 = vmatpush1.bf16.msra.mxu0 %v8562
    %8602 = vmatprep.subr.bf16.mxu0 0
    %8603 = vmatpush1.bf16.msra.mxu0 %v8563
    %8604 = vmatprep.subr.bf16.mxu0 0
    %8605 = vmatpush1.bf16.msra.mxu0 %v8564
    %8606 = vmatprep.subr.bf16.mxu0 0
    %8607 = vmatpush1.bf16.msra.mxu0 %v8565
    %8608 = vmatprep.subr.bf16.mxu0 0
    %8609 = vmatpush1.bf16.msra.mxu0 %v8566
    %8610 = vmatprep.subr.bf16.mxu0 0
    %8611 = vmatpush1.bf16.msra.mxu0 %v8567
    %8612 = vmatprep.subr.bf16.mxu0 0
    %8613 = vmatpush1.bf16.msra.mxu0 %v8568
    %8614 = vmatprep.subr.bf16.mxu0 0
    %8615 = vmatpush1.bf16.msra.mxu0 %v8569
    %8616 = vmatprep.subr.bf16.mxu0 0
    %8617 = vmatpush1.bf16.msra.mxu0 %v8570
    %8618 = vmatprep.subr.bf16.mxu0 0
    %8619 = vmatpush1.bf16.msra.mxu0 %v8571
    %8620 = vmatprep.mubr.bf16.mxu0 %v8420
    %8621 = vmatmul.mubr.bf16.gmra.mrb[0].mxu0 %v8419
    %v8622 = vpop.f32.mrb[0].mxu0
    %v8623 = vadd.f32 %v8490, %v8622
    %v8624 = vpop.f32.mrb[0].mxu0
    %v8625 = vpop.f32.mrb[0].mxu0
    %v8626 = vadd.f32 %v8490, %v8625
    %v8627 = vpop.f32.mrb[0].mxu0
    %8628 = vmatprep.mubr.bf16.mxu0 %v8422
    %8629 = vmatmul.mubr.bf16.gmra.mrb[0].mxu0 %v8421
    %v8630 = vpop.f32.mrb[0].mxu0
    %v8631 = vadd.f32 %v8490, %v8630
    %v8632 = vpop.f32.mrb[0].mxu0
    %v8633 = vpop.f32.mrb[0].mxu0
    %v8634 = vadd.f32 %v8490, %v8633
    %v8635 = vpop.f32.mrb[0].mxu0
    %8636 = vmatprep.mubr.bf16.mxu0 %v8424
    %8637 = vmatmul.mubr.bf16.gmra.mrb[0].mxu0 %v8423
    %v8638 = vpop.f32.mrb[0].mxu0
    %v8639 = vadd.f32 %v8490, %v8638
    %v8640 = vpop.f32.mrb[0].mxu0
    %v8641 = vpop.f32.mrb[0].mxu0
    %v8642 = vadd.f32 %v8490, %v8641
    %v8643 = vpop.f32.mrb[0].mxu0
    %8644 = vmatprep.mubr.bf16.mxu0 %v8426
    %8645 = vmatmul.mubr.bf16.gmra.mrb[0].mxu0 %v8425
    %v8646 = vpop.f32.mrb[0].mxu0
    %v8647 = vadd.f32 %v8490, %v8646
    %v8648 = vpop.f32.mrb[0].mxu0
    %v8649 = vpop.f32.mrb[0].mxu0
    %v8650 = vadd.f32 %v8490, %v8649
    %v8651 = vpop.f32.mrb[0].mxu0
    %8652 = vmatprep.mubr.bf16.mxu0 %v8428
    %8653 = vmatmul.mubr.bf16.gmra.mrb[0].mxu0 %v8427
    %v8654 = vpop.f32.mrb[0].mxu0
    %v8655 = vadd.f32 %v8490, %v8654
    %v8656 = vpop.f32.mrb[0].mxu0
    %v8657 = vpop.f32.mrb[0].mxu0
    %v8658 = vadd.f32 %v8490, %v8657
    %v8659 = vpop.f32.mrb[0].mxu0
    %8660 = vmatprep.mubr.bf16.mxu0 %v8430
    %8661 = vmatmul.mubr.bf16.gmra.mrb[0].mxu0 %v8429
    %v8662 = vpop.f32.mrb[0].mxu0
    %v8663 = vadd.f32 %v8490, %v8662
    %v8664 = vpop.f32.mrb[0].mxu0
    %v8665 = vpop.f32.mrb[0].mxu0
    %v8666 = vadd.f32 %v8490, %v8665
    %v8667 = vpop.f32.mrb[0].mxu0
    %8668 = vmatprep.mubr.bf16.mxu0 %v8432
    %8669 = vmatmul.mubr.bf16.gmra.mrb[0].mxu0 %v8431
    %v8670 = vpop.f32.mrb[0].mxu0
    %v8671 = vadd.f32 %v8490, %v8670
    %v8672 = vpop.f32.mrb[0].mxu0
    %v8673 = vpop.f32.mrb[0].mxu0
    %v8674 = vadd.f32 %v8490, %v8673
    %v8675 = vpop.f32.mrb[0].mxu0
    %8676 = vmatprep.mubr.bf16.mxu0 %v8434
    %8677 = vmatmul.mubr.bf16.gmra.mrb[0].mxu0 %v8433
    %v8678 = vpop.f32.mrb[0].mxu0
    %v8679 = vadd.f32 %v8490, %v8678
    %v8680 = vpop.f32.mrb[0].mxu0
    %v8681 = vpop.f32.mrb[0].mxu0
    %v8682 = vadd.f32 %v8490, %v8681
    %v8683 = vpop.f32.mrb[0].mxu0
    %8684 = vmatprep.mubr.bf16.mxu0 %v8436
    %8685 = vmatmul.mubr.bf16.gmra.mrb[0].mxu0 %v8435
    %v8686 = vpop.f32.mrb[0].mxu0
    %v8687 = vadd.f32 %v8490, %v8686
    %v8688 = vpop.f32.mrb[0].mxu0
    %v8689 = vpop.f32.mrb[0].mxu0
    %v8690 = vadd.f32 %v8490, %v8689
    %v8691 = vpop.f32.mrb[0].mxu0
    %8692 = vmatprep.mubr.bf16.mxu0 %v8438
    %8693 = vmatmul.mubr.bf16.gmra.mrb[0].mxu0 %v8437
    %v8694 = vpop.f32.mrb[0].mxu0
    %v8695 = vadd.f32 %v8490, %v8694
    %v8696 = vpop.f32.mrb[0].mxu0
    %v8697 = vpop.f32.mrb[0].mxu0
    %v8698 = vadd.f32 %v8490, %v8697
    %v8699 = vpop.f32.mrb[0].mxu0
    %8700 = vmatprep.mubr.bf16.mxu0 %v8440
    %8701 = vmatmul.mubr.bf16.gmra.mrb[0].mxu0 %v8439
    %v8702 = vpop.f32.mrb[0].mxu0
    %v8703 = vadd.f32 %v8490, %v8702
    %v8704 = vpop.f32.mrb[0].mxu0
    %v8705 = vpop.f32.mrb[0].mxu0
    %v8706 = vadd.f32 %v8490, %v8705
    %v8707 = vpop.f32.mrb[0].mxu0
    %8708 = vmatprep.mubr.bf16.mxu0 %v8442
    %8709 = vmatmul.mubr.bf16.gmra.mrb[0].mxu0 %v8441
    %v8710 = vpop.f32.mrb[0].mxu0
    %v8711 = vadd.f32 %v8490, %v8710
    %v8712 = vpop.f32.mrb[0].mxu0
    %v8713 = vpop.f32.mrb[0].mxu0
    %v8714 = vadd.f32 %v8490, %v8713
    %v8715 = vpop.f32.mrb[0].mxu0
    %8716 = vmatprep.mubr.bf16.mxu0 %v8444
    %8717 = vmatmul.mubr.bf16.gmra.mrb[0].mxu0 %v8443
    %v8718 = vpop.f32.mrb[0].mxu0
    %v8719 = vadd.f32 %v8490, %v8718
    %v8720 = vpop.f32.mrb[0].mxu0
    %v8721 = vpop.f32.mrb[0].mxu0
    %v8722 = vadd.f32 %v8490, %v8721
    %v8723 = vpop.f32.mrb[0].mxu0
    %8724 = vmatprep.mubr.bf16.mxu0 %v8446
    %8725 = vmatmul.mubr.bf16.gmra.mrb[0].mxu0 %v8445
    %v8726 = vpop.f32.mrb[0].mxu0
    %v8727 = vadd.f32 %v8490, %v8726
    %v8728 = vpop.f32.mrb[0].mxu0
    %v8729 = vpop.f32.mrb[0].mxu0
    %v8730 = vadd.f32 %v8490, %v8729
    %v8731 = vpop.f32.mrb[0].mxu0
    %8732 = vmatprep.mubr.bf16.mxu0 %v8448
    %8733 = vmatmul.mubr.bf16.gmra.mrb[0].mxu0 %v8447
    %v8734 = vpop.f32.mrb[0].mxu0
    %v8735 = vadd.f32 %v8490, %v8734
    %v8736 = vpop.f32.mrb[0].mxu0
    %v8737 = vpop.f32.mrb[0].mxu0
    %v8738 = vadd.f32 %v8490, %v8737
    %v8739 = vpop.f32.mrb[0].mxu0
    %8740 = vmatprep.mubr.bf16.mxu0 %v8450
    %8741 = vmatmul.mubr.bf16.gmra.mrb[0].mxu0 %v8449
    %v8742 = vpop.f32.mrb[0].mxu0
    %v8743 = vadd.f32 %v8490, %v8742
    %v8744 = vpop.f32.mrb[0].mxu0
    %v8745 = vpop.f32.mrb[0].mxu0
    %v8746 = vadd.f32 %v8490, %v8745
    %v8747 = vpop.f32.mrb[0].mxu0
    %8748 = vdwg.mxu0
    %v8749 = vxor.u32 %v8623, 2147483648
    %v8750 = vxor.u32 %v8626, 2147483648
    %v8751 = vxor.u32 %v8631, 2147483648
    %v8752 = vxor.u32 %v8634, 2147483648
    %v8753 = vxor.u32 %v8639, 2147483648
    %v8754 = vxor.u32 %v8642, 2147483648
    %v8755 = vxor.u32 %v8647, 2147483648
    %v8756 = vxor.u32 %v8650, 2147483648
    %v8757 = vxor.u32 %v8655, 2147483648
    %v8758 = vxor.u32 %v8658, 2147483648
    %v8759 = vxor.u32 %v8663, 2147483648
    %v8760 = vxor.u32 %v8666, 2147483648
    %v8761 = vxor.u32 %v8671, 2147483648
    %v8762 = vxor.u32 %v8674, 2147483648
    %v8763 = vxor.u32 %v8679, 2147483648
    %v8764 = vxor.u32 %v8682, 2147483648
    %v8765 = vxor.u32 %v8687, 2147483648
    %v8766 = vxor.u32 %v8690, 2147483648
    %v8767 = vxor.u32 %v8695, 2147483648
    %v8768 = vxor.u32 %v8698, 2147483648
    %v8769 = vxor.u32 %v8703, 2147483648
    %v8770 = vxor.u32 %v8706, 2147483648
    %v8771 = vxor.u32 %v8711, 2147483648
    %v8772 = vxor.u32 %v8714, 2147483648
    %v8773 = vxor.u32 %v8719, 2147483648
    %v8774 = vxor.u32 %v8722, 2147483648
    %v8775 = vxor.u32 %v8727, 2147483648
    %v8776 = vxor.u32 %v8730, 2147483648
    %v8777 = vxor.u32 %v8735, 2147483648
    %v8778 = vxor.u32 %v8738, 2147483648
    %v8779 = vxor.u32 %v8743, 2147483648
    %v8780 = vxor.u32 %v8746, 2147483648
    %v8781 = vmul.f32 %v8749, 1.442695
    %v8782 = vpow.pop %v8781
    %v8783 = vmul.f32 %v8750, 1.442695
    %v8784 = vpow.pop %v8783
    %v8785 = vmul.f32 %v8751, 1.442695
    %v8786 = vpow.pop %v8785
    %v8787 = vmul.f32 %v8752, 1.442695
    %v8788 = vpow.pop %v8787
    %v8789 = vmul.f32 %v8753, 1.442695
    %v8790 = vpow.pop %v8789
    %v8791 = vmul.f32 %v8754, 1.442695
    %v8792 = vpow.pop %v8791
    %v8793 = vmul.f32 %v8755, 1.442695
    %v8794 = vpow.pop %v8793
    %v8795 = vmul.f32 %v8756, 1.442695
    %v8796 = vpow.pop %v8795
    %v8797 = vmul.f32 %v8757, 1.442695
    %v8798 = vpow.pop %v8797
    %v8799 = vmul.f32 %v8758, 1.442695
    %v8800 = vpow.pop %v8799
    %v8801 = vmul.f32 %v8759, 1.442695
    %v8802 = vpow.pop %v8801
    %v8803 = vmul.f32 %v8760, 1.442695
    %v8804 = vpow.pop %v8803
    %v8805 = vmul.f32 %v8761, 1.442695
    %v8806 = vpow.pop %v8805
    %v8807 = vmul.f32 %v8762, 1.442695
    %v8808 = vpow.pop %v8807
    %v8809 = vmul.f32 %v8763, 1.442695
    %v8810 = vpow.pop %v8809
    %v8811 = vmul.f32 %v8764, 1.442695
    %v8812 = vpow.pop %v8811
    %v8813 = vmul.f32 %v8765, 1.442695
    %v8814 = vpow.pop %v8813
    %v8815 = vmul.f32 %v8766, 1.442695
    %v8816 = vpow.pop %v8815
    %v8817 = vmul.f32 %v8767, 1.442695
    %v8818 = vpow.pop %v8817
    %v8819 = vmul.f32 %v8768, 1.442695
    %v8820 = vpow.pop %v8819
    %v8821 = vmul.f32 %v8769, 1.442695
    %v8822 = vpow.pop %v8821
    %v8823 = vmul.f32 %v8770, 1.442695
    %v8824 = vpow.pop %v8823
    %v8825 = vmul.f32 %v8771, 1.442695
    %v8826 = vpow.pop %v8825
    %v8827 = vmul.f32 %v8772, 1.442695
    %v8828 = vpow.pop %v8827
    %v8829 = vmul.f32 %v8773, 1.442695
    %v8830 = vpow.pop %v8829
    %v8831 = vmul.f32 %v8774, 1.442695
    %v8832 = vpow.pop %v8831
    %v8833 = vmul.f32 %v8775, 1.442695
    %v8834 = vpow.pop %v8833
    %v8835 = vmul.f32 %v8776, 1.442695
    %v8836 = vpow.pop %v8835
    %v8837 = vmul.f32 %v8777, 1.442695
    %v8838 = vpow.pop %v8837
    %v8839 = vmul.f32 %v8778, 1.442695
    %v8840 = vpow.pop %v8839
    %v8841 = vmul.f32 %v8779, 1.442695
    %v8842 = vpow.pop %v8841
    %v8843 = vmul.f32 %v8780, 1.442695
    %v8844 = vpow.pop %v8843
    %v8845 = vadd.f32 %v8782, 1.0
    %v8846 = vadd.f32 %v8784, 1.0
    %v8847 = vadd.f32 %v8786, 1.0
    %v8848 = vadd.f32 %v8788, 1.0
    %v8849 = vadd.f32 %v8790, 1.0
    %v8850 = vadd.f32 %v8792, 1.0
    %v8851 = vadd.f32 %v8794, 1.0
    %v8852 = vadd.f32 %v8796, 1.0
    %v8853 = vadd.f32 %v8798, 1.0
    %v8854 = vadd.f32 %v8800, 1.0
    %v8855 = vadd.f32 %v8802, 1.0
    %v8856 = vadd.f32 %v8804, 1.0
    %v8857 = vadd.f32 %v8806, 1.0
    %v8858 = vadd.f32 %v8808, 1.0
    %v8859 = vadd.f32 %v8810, 1.0
    %v8860 = vadd.f32 %v8812, 1.0
    %v8861 = vadd.f32 %v8814, 1.0
    %v8862 = vadd.f32 %v8816, 1.0
    %v8863 = vadd.f32 %v8818, 1.0
    %v8864 = vadd.f32 %v8820, 1.0
    %v8865 = vadd.f32 %v8822, 1.0
    %v8866 = vadd.f32 %v8824, 1.0
    %v8867 = vadd.f32 %v8826, 1.0
    %v8868 = vadd.f32 %v8828, 1.0
    %v8869 = vadd.f32 %v8830, 1.0
    %v8870 = vadd.f32 %v8832, 1.0
    %v8871 = vadd.f32 %v8834, 1.0
    %v8872 = vadd.f32 %v8836, 1.0
    %v8873 = vadd.f32 %v8838, 1.0
    %v8874 = vadd.f32 %v8840, 1.0
    %v8875 = vadd.f32 %v8842, 1.0
    %v8876 = vadd.f32 %v8844, 1.0
    %v8877 = vrcp.pop %v8845
    %v8878 = vmul.f32 1.0, %v8877
    %v8879 = vrcp.pop %v8846
    %v8880 = vmul.f32 1.0, %v8879
    %v8881 = vrcp.pop %v8847
    %v8882 = vmul.f32 1.0, %v8881
    %v8883 = vrcp.pop %v8848
    %v8884 = vmul.f32 1.0, %v8883
    %v8885 = vrcp.pop %v8849
    %v8886 = vmul.f32 1.0, %v8885
    %v8887 = vrcp.pop %v8850
    %v8888 = vmul.f32 1.0, %v8887
    %v8889 = vrcp.pop %v8851
    %v8890 = vmul.f32 1.0, %v8889
    %v8891 = vrcp.pop %v8852
    %v8892 = vmul.f32 1.0, %v8891
    %v8893 = vrcp.pop %v8853
    %v8894 = vmul.f32 1.0, %v8893
    %v8895 = vrcp.pop %v8854
    %v8896 = vmul.f32 1.0, %v8895
    %v8897 = vrcp.pop %v8855
    %v8898 = vmul.f32 1.0, %v8897
    %v8899 = vrcp.pop %v8856
    %v8900 = vmul.f32 1.0, %v8899
    %v8901 = vrcp.pop %v8857
    %v8902 = vmul.f32 1.0, %v8901
    %v8903 = vrcp.pop %v8858
    %v8904 = vmul.f32 1.0, %v8903
    %v8905 = vrcp.pop %v8859
    %v8906 = vmul.f32 1.0, %v8905
    %v8907 = vrcp.pop %v8860
    %v8908 = vmul.f32 1.0, %v8907
    %v8909 = vrcp.pop %v8861
    %v8910 = vmul.f32 1.0, %v8909
    %v8911 = vrcp.pop %v8862
    %v8912 = vmul.f32 1.0, %v8911
    %v8913 = vrcp.pop %v8863
    %v8914 = vmul.f32 1.0, %v8913
    %v8915 = vrcp.pop %v8864
    %v8916 = vmul.f32 1.0, %v8915
    %v8917 = vrcp.pop %v8865
    %v8918 = vmul.f32 1.0, %v8917
    %v8919 = vrcp.pop %v8866
    %v8920 = vmul.f32 1.0, %v8919
    %v8921 = vrcp.pop %v8867
    %v8922 = vmul.f32 1.0, %v8921
    %v8923 = vrcp.pop %v8868
    %v8924 = vmul.f32 1.0, %v8923
    %v8925 = vrcp.pop %v8869
    %v8926 = vmul.f32 1.0, %v8925
    %v8927 = vrcp.pop %v8870
    %v8928 = vmul.f32 1.0, %v8927
    %v8929 = vrcp.pop %v8871
    %v8930 = vmul.f32 1.0, %v8929
    %v8931 = vrcp.pop %v8872
    %v8932 = vmul.f32 1.0, %v8931
    %v8933 = vrcp.pop %v8873
    %v8934 = vmul.f32 1.0, %v8933
    %v8935 = vrcp.pop %v8874
    %v8936 = vmul.f32 1.0, %v8935
    %v8937 = vrcp.pop %v8875
    %v8938 = vmul.f32 1.0, %v8937
    %v8939 = vrcp.pop %v8876
    %v8940 = vmul.f32 1.0, %v8939
    %8941 = vst [vmem:[#allocation7 + $0x10] sm:$0xff] %v8878
    %8942 = vst [vmem:[#allocation7 + $0x28] sm:$0xff] %v8880
    %8943 = vst [vmem:[#allocation7 + $0x40] sm:$0xff] %v8882
    %8944 = vst [vmem:[#allocation7 + $0x58] sm:$0xff] %v8884
    %8945 = vst [vmem:[#allocation7 + $0x70] sm:$0xff] %v8886
    %8946 = vst [vmem:[#allocation7 + $0x88] sm:$0xff] %v8888
    %8947 = vst [vmem:[#allocation7 + $0xa0] sm:$0xff] %v8890
    %8948 = vst [vmem:[#allocation7 + $0xb8] sm:$0xff] %v8892
    %8949 = vst [vmem:[#allocation7 + $0xd0] sm:$0xff] %v8894
    %8950 = vst [vmem:[#allocation7 + $0xe8] sm:$0xff] %v8896
    %8951 = vst [vmem:[#allocation7 + $0x100] sm:$0xff] %v8898
    %8952 = vst [vmem:[#allocation7 + $0x118] sm:$0xff] %v8900
    %8953 = vst [vmem:[#allocation7 + $0x130] sm:$0xff] %v8902
    %8954 = vst [vmem:[#allocation7 + $0x148] sm:$0xff] %v8904
    %8955 = vst [vmem:[#allocation7 + $0x160] sm:$0xff] %v8906
    %8956 = vst [vmem:[#allocation7 + $0x178] sm:$0xff] %v8908
    %8957 = vst [vmem:[#allocation7 + $0x190] sm:$0xff] %v8910
    %8958 = vst [vmem:[#allocation7 + $0x1a8] sm:$0xff] %v8912
    %8959 = vst [vmem:[#allocation7 + $0x1c0] sm:$0xff] %v8914
    %8960 = vst [vmem:[#allocation7 + $0x1d8] sm:$0xff] %v8916
    %8961 = vst [vmem:[#allocation7 + $0x1f0] sm:$0xff] %v8918
    %8962 = vst [vmem:[#allocation7 + $0x208] sm:$0xff] %v8920
    %8963 = vst [vmem:[#allocation7 + $0x220] sm:$0xff] %v8922
    %8964 = vst [vmem:[#allocation7 + $0x238] sm:$0xff] %v8924
    %8965 = vst [vmem:[#allocation7 + $0x250] sm:$0xff] %v8926
    %8966 = vst [vmem:[#allocation7 + $0x268] sm:$0xff] %v8928
    %8967 = vst [vmem:[#allocation7 + $0x280] sm:$0xff] %v8930
    %8968 = vst [vmem:[#allocation7 + $0x298] sm:$0xff] %v8932
    %8969 = vst [vmem:[#allocation7 + $0x2b0] sm:$0xff] %v8934
    %8970 = vst [vmem:[#allocation7 + $0x2c8] sm:$0xff] %v8936
    %8971 = vst [vmem:[#allocation7 + $0x2e0] sm:$0xff] %v8938
    %8972 = vst [vmem:[#allocation7 + $0x2f8] sm:$0xff] %v8940
    // Predicated region
    $region62: #{tpu_custom_call.1} parent=1 // pred_check
      _
    $region63: #{tpu_custom_call.1} parent=1 // pred_check_branch
      %8974 = sbr.rel (0) target = $region65
    $region64: #{tpu_custom_call.1} parent=1 // pred_region
      %s8976 = ssub.s32 12288, 12288
      %8977 = vsyncadd [#allocation4], %s8976
      %s8978 = sshll.u32 [#allocation7], 4
      %s8979 = int_to_ptr.vmem [resolvable:$true] %s8978
      %8984 = dma.vmem_to_hbm [thread:$0]  %s8979, 12288, %s13, [#allocation4], 384, 384, 24
    $region65: #{tpu_custom_call.1} parent=1 // pred_fallthru
      _
    // Predicated region
    $region66: #{tpu_custom_call.1} parent=1 // pred_check
      _
    $region67: #{tpu_custom_call.1} parent=1 // pred_check_branch
      %8986 = sbr.rel (0) target = $region69
    $region68: #{tpu_custom_call.1} parent=1 // pred_region
      %8987 = dma.done [#allocation4], 12288
    $region69: #{tpu_custom_call.1} parent=1 // pred_fallthru
      _
    %8988 = vsyncpa [#allocation3], 1
    %8989 = vsyncpa [#allocation6], 1
    %8990 = vsyncpa [#allocation4], 1

</llo_original>
